<compile_context>
chip_gen: v7x
topology: tpu7x:2x2x1
jax: 0.10.0
libtpu: 0.0.40
codegen_flags: <defaults>
</compile_context>

<pallas_src>
import functools

import numpy as np
import jax
import jax.numpy as jnp
from jax.experimental import pallas as pl
from jax.experimental.pallas import tpu as pltpu

# ---------------------------------------------------------------------------
# Small, module-consistent shapes
# ---------------------------------------------------------------------------
SHAPE = (2, 4, 4)              # (t, h, w) latent shape -> seq len 32
EMBD_DIM = 96                  # must be divisible by len(SHAPE)
N_HEAD = 4
N_LAYER = 2
BATCH = 2
SEQ = int(np.prod(SHAPE))
D_K = EMBD_DIM // N_HEAD       # 24
HID = 4 * EMBD_DIM             # 384
LN_EPS = 1e-5

# lane-dense padded sizes
D_PAD = 128                    # 96  -> one full 128-lane group
DK_PAD = 32                    # 24  -> 32-lane aligned head span
HID_PAD = 512                  # 384 -> 4 x 128 lanes


# ---------------------------------------------------------------------------
# Pallas kernel: the whole AttentionStack for one batch element
# ---------------------------------------------------------------------------
def stack_kernel(x_ref, shiftm_ref, pos_ref, bias_ref,
                 ln1g_ref, ln1b_ref, wq_ref, wk_ref, wv_ref, wo_ref, bo_ref,
                 ln2g_ref, ln2b_ref, w1_ref, b1_ref, w2_ref, b2_ref,
                 out_ref, *, n_layer, n_head, d_real):
    f32 = jnp.float32
    inv_d = f32(1.0 / d_real)

    def layernorm(v, g, b):
        # Pad lanes of v are zero, so summing over all 128 lanes equals the
        # sum over the real 96 channels; divide by the real width.
        mu = jnp.sum(v, axis=-1, keepdims=True) * inv_d
        ex2 = jnp.sum(v * v, axis=-1, keepdims=True) * inv_d
        var = ex2 - mu * mu
        return (v - mu) * jax.lax.rsqrt(var + f32(LN_EPS)) * g + b

    # RightShift + AddBroadcastPosEmbed.  shiftm has a zero first row and a
    # sub-diagonal of ones; the SOS row is folded into row 0 of pos.
    x = jnp.dot(shiftm_ref[...], x_ref[0],
                preferred_element_type=f32) + pos_ref[...]          # (S, DP)
    bias = bias_ref[...]                                            # (S, S)
    S, DP = x.shape

    for l in range(n_layer):                    # static unroll (n_layer == 2)
        # ---- causal multi-head self-attention (head-batched) --------------
        h = layernorm(x, ln1g_ref[l], ln1b_ref[l])
        hb = jnp.broadcast_to(h[None], (n_head, S, DP))
        # 1/sqrt(d_k) is folded into wq at pack time.
        q = jnp.einsum('hsd,hdk->hsk', hb, wq_ref[l],
                       preferred_element_type=f32)                  # (H,S,DKP)
        k = jnp.einsum('hsd,hdk->hsk', hb, wk_ref[l],
                       preferred_element_type=f32)
        v = jnp.einsum('hsd,hdk->hsk', hb, wv_ref[l],
                       preferred_element_type=f32)
        logits = jnp.einsum('hqc,hkc->hqk', q, k,
                            preferred_element_type=f32) + bias[None]
        m = jnp.max(logits, axis=-1, keepdims=True)
        p = jnp.exp(logits - m)
        p = p * pl.reciprocal(jnp.sum(p, axis=-1, keepdims=True), approx=True)
        a = jnp.einsum('hqk,hkc->hqc', p, v, preferred_element_type=f32)
        # per-head rows of Wo; summing over heads == concat(heads) @ Wo
        o = jnp.einsum('hqc,hcd->hqd', a, wo_ref[l],
                       preferred_element_type=f32)                  # (H,S,DP)
        x = x + jnp.sum(o, axis=0) + bo_ref[l]

        # ---- feed-forward: Linear -> GeLU2 -> Linear -----------------------
        h = layernorm(x, ln2g_ref[l], ln2b_ref[l])
        h1 = jnp.dot(h, w1_ref[l], preferred_element_type=f32) + b1_ref[l]
        h1 = jax.nn.sigmoid(1.702 * h1) * h1                        # GeLU2
        x = x + jnp.dot(h1, w2_ref[l], preferred_element_type=f32) + b2_ref[l]

    out_ref[0] = x


# ---------------------------------------------------------------------------
# Wrapper: pack / pad params, single fused pallas_call over the batch grid
# ---------------------------------------------------------------------------
def _pack_inputs(params):
    f32 = jnp.float32
    D, n_dim = EMBD_DIM, len(SHAPE)
    chunk = D // n_dim

    # Strict sub-diagonal shift matrix: (shiftm @ x)[i] = x[i-1], row 0 = 0.
    shiftm = jnp.asarray(np.eye(SEQ, k=-1), dtype=f32)              # (S, S)

    # Broadcast positional table (AddBroadcastPosEmbed), SOS folded into row 0.
    pieces = []
    for i in range(n_dim):
        view = [1] * i + [SHAPE[i]] + [1] * (n_dim - i - 1) + [chunk]
        e = jnp.reshape(params['pos_emb'][i], view)
        pieces.append(jnp.broadcast_to(e, (*SHAPE, chunk)))
    pos = jnp.concatenate(pieces, axis=-1).reshape(SEQ, D)
    pos = pos.at[0].add(params['sos'])
    pos = jnp.pad(pos, ((0, 0), (0, D_PAD - D))).astype(f32)        # (S, DP)

    # Additive causal bias.
    tril = np.tril(np.ones((SEQ, SEQ), np.float32))
    bias = jnp.asarray(np.where(tril > 0, 0.0, -1e30), dtype=f32)   # (S, S)

    scale = 1.0 / np.sqrt(D_K)

    def pad_vec(v, width):
        return jnp.pad(v, ((0, 0), (0, width - v.shape[-1])))

    def pack_qkv(w, s=1.0):
        # (D, D) -> (n_head, D_PAD, DK_PAD), head h = output cols [h*d_k,(h+1)*d_k)
        w = (w * s).reshape(D, N_HEAD, D_K).transpose(1, 0, 2)
        return jnp.pad(w, ((0, 0), (0, D_PAD - D), (0, DK_PAD - D_K)))

    def pack_wo(w):
        # (D, D) -> (n_head, DK_PAD, D_PAD), head h = input rows [h*d_k,(h+1)*d_k)
        w = w.reshape(N_HEAD, D_K, D)
        return jnp.pad(w, ((0, 0), (0, DK_PAD - D_K), (0, D_PAD - D)))

    names = ['ln1_g', 'ln1_b', 'wq', 'wk', 'wv', 'wo', 'bo',
             'ln2_g', 'ln2_b', 'w1', 'b1', 'w2', 'b2']
    stacks = {k: [] for k in names}
    for lp in params['layers']:
        stacks['ln1_g'].append(pad_vec(lp['ln1_g'], D_PAD))
        stacks['ln1_b'].append(pad_vec(lp['ln1_b'], D_PAD))
        stacks['wq'].append(pack_qkv(lp['wq'], scale))
        stacks['wk'].append(pack_qkv(lp['wk']))
        stacks['wv'].append(pack_qkv(lp['wv']))
        stacks['wo'].append(pack_wo(lp['wo']))
        stacks['bo'].append(pad_vec(lp['bo'], D_PAD))
        stacks['ln2_g'].append(pad_vec(lp['ln2_g'], D_PAD))
        stacks['ln2_b'].append(pad_vec(lp['ln2_b'], D_PAD))
        stacks['w1'].append(jnp.pad(lp['w1'], ((0, D_PAD - D), (0, HID_PAD - HID))))
        stacks['b1'].append(pad_vec(lp['b1'], HID_PAD))
        stacks['w2'].append(jnp.pad(lp['w2'], ((0, HID_PAD - HID), (0, D_PAD - D))))
        stacks['b2'].append(pad_vec(lp['b2'], D_PAD))
    stacked = {k: jnp.stack(v).astype(f32) for k, v in stacks.items()}

    ordered = [shiftm, pos, bias,
               stacked['ln1_g'], stacked['ln1_b'], stacked['wq'], stacked['wk'],
               stacked['wv'], stacked['wo'], stacked['bo'], stacked['ln2_g'],
               stacked['ln2_b'], stacked['w1'], stacked['b1'], stacked['w2'],
               stacked['b2']]
    return ordered


def attention_stack_pallas(x, params):
    """x: (B, *SHAPE, EMBD_DIM) float32 -> same shape."""
    B, D = x.shape[0], x.shape[-1]
    x_flat = x.reshape(B, SEQ, D)
    x_pad = jnp.pad(x_flat, ((0, 0), (0, 0), (0, D_PAD - D)))

    ordered = _pack_inputs(params)

    in_specs = [pl.BlockSpec((1, SEQ, D_PAD), lambda b: (b, 0, 0))]
    for a in ordered:
        in_specs.append(pl.BlockSpec(a.shape, lambda b, n=a.ndim: (0,) * n))

    kernel = functools.partial(stack_kernel, n_layer=N_LAYER,
                               n_head=N_HEAD, d_real=D)
    out = pl.pallas_call(
        kernel,
        grid=(B,),
        in_specs=in_specs,
        out_specs=pl.BlockSpec((1, SEQ, D_PAD), lambda b: (b, 0, 0)),
        out_shape=jax.ShapeDtypeStruct((B, SEQ, D_PAD), jnp.float32),
        compiler_params=pltpu.CompilerParams(dimension_semantics=("parallel",)),
    )(x_pad, *ordered)
    return out[:, :, :D].reshape(x.shape)


# ---------------------------------------------------------------------------
# Pure-JAX reference (unpadded layout, high precision)
# ---------------------------------------------------------------------------
def _layernorm(v, g, b):
    mu = jnp.mean(v, axis=-1, keepdims=True)
    var = jnp.mean(jnp.square(v - mu), axis=-1, keepdims=True)
    return (v - mu) * jax.lax.rsqrt(var + LN_EPS) * g + b


def right_shift_ref(x_flat, sos):
    B, S, D = x_flat.shape
    sos_row = jnp.broadcast_to(sos[None, None, :], (B, 1, D)).astype(x_flat.dtype)
    return jnp.concatenate([sos_row, x_flat[:, :-1, :]], axis=1)


def add_pos_embd_ref(x, embs, shape, embd_dim):
    n_dim = len(shape)
    chunk = embd_dim // n_dim
    pieces = []
    for i in range(n_dim):
        view = [1] + [1] * i + [shape[i]] + [1] * (n_dim - i - 1) + [chunk]
        e = jnp.reshape(embs[i], view)
        pieces.append(jnp.broadcast_to(e, (1, *shape, chunk)))
    return x + jnp.concatenate(pieces, axis=-1)


def attn_block_ref(x, p):
    hp = jax.lax.Precision.HIGHEST
    B, S, D = x.shape
    h = _layernorm(x, p['ln1_g'], p['ln1_b'])
    q = jnp.dot(h, p['wq'], precision=hp)
    k = jnp.dot(h, p['wk'], precision=hp)
    v = jnp.dot(h, p['wv'], precision=hp)

    def heads(t):
        return t.reshape(B, S, N_HEAD, D_K).transpose(0, 2, 1, 3)

    qh, kh, vh = heads(q), heads(k), heads(v)
    logits = jnp.einsum('bhqd,bhkd->bhqk', qh, kh, precision=hp) / np.sqrt(D_K)
    rows = jax.lax.broadcasted_iota(jnp.int32, (S, S), 0)
    cols = jax.lax.broadcasted_iota(jnp.int32, (S, S), 1)
    logits = jnp.where(rows >= cols, logits, jnp.float32(-1e30))
    attn = jax.nn.softmax(logits, axis=-1)
    a = jnp.einsum('bhqk,bhkd->bhqd', attn, vh, precision=hp)
    a = a.transpose(0, 2, 1, 3).reshape(B, S, D)
    a = jnp.dot(a, p['wo'], precision=hp) + p['bo']
    x = x + a

    h = _layernorm(x, p['ln2_g'], p['ln2_b'])
    h1 = jnp.dot(h, p['w1'], precision=hp) + p['b1']
    h1 = jax.nn.sigmoid(1.702 * h1) * h1
    h2 = jnp.dot(h1, p['w2'], precision=hp) + p['b2']
    return x + h2


def attention_stack_ref(x, params):
    B, D = x.shape[0], x.shape[-1]
    x_flat = x.reshape(B, -1, D)
    x_flat = right_shift_ref(x_flat, params['sos'])
    x = x_flat.reshape(x.shape)
    x = add_pos_embd_ref(x, params['pos_emb'], SHAPE, D)
    h = x.reshape(B, -1, D)
    for lp in params['layers']:
        h = attn_block_ref(h, lp)
    return h.reshape(x.shape)


# ---------------------------------------------------------------------------
# Deterministic parameter init (shapes per the module __init__)
# ---------------------------------------------------------------------------
def init_params(key):
    k_sos, k_pos, *k_layers = jax.random.split(key, 2 + N_LAYER)
    params = {}
    params['sos'] = 0.02 * jax.random.normal(k_sos, (EMBD_DIM,), jnp.float32)
    n_dim = len(SHAPE)
    pk = jax.random.split(k_pos, n_dim)
    params['pos_emb'] = [
        0.01 * jax.random.normal(pk[i], (SHAPE[i], EMBD_DIM // n_dim), jnp.float32)
        for i in range(n_dim)
    ]
    D = EMBD_DIM
    layers = []
    for l in range(N_LAYER):
        lk = jax.random.split(k_layers[l], 8)
        layers.append(dict(
            ln1_g=jnp.ones((1, D), jnp.float32),
            ln1_b=jnp.zeros((1, D), jnp.float32),
            # weights stored as (in, out); y = x @ W (+ b), matches torch Linear
            wq=(1.0 / np.sqrt(D)) * jax.random.normal(lk[0], (D, D), jnp.float32),
            wk=(1.0 / np.sqrt(D)) * jax.random.normal(lk[1], (D, D), jnp.float32),
            wv=(1.0 / np.sqrt(D)) * jax.random.normal(lk[2], (D, D), jnp.float32),
            wo=(1.0 / np.sqrt(D * N_LAYER)) * jax.random.normal(lk[3], (D, D), jnp.float32),
            bo=0.01 * jax.random.normal(lk[4], (1, D), jnp.float32),
            ln2_g=jnp.ones((1, D), jnp.float32),
            ln2_b=jnp.zeros((1, D), jnp.float32),
            w1=0.02 * jax.random.normal(lk[5], (D, 4 * D), jnp.float32),
            b1=0.01 * jax.random.normal(lk[6], (1, 4 * D), jnp.float32),
            w2=0.02 * jax.random.normal(lk[7], (4 * D, D), jnp.float32),
            b2=jnp.zeros((1, D), jnp.float32),
        ))
    params['layers'] = layers
    return params


if __name__ == "__main__":
    key = jax.random.PRNGKey(0)
    k_par, k_x = jax.random.split(key)
    params = init_params(k_par)
    x = 0.5 * jax.random.normal(k_x, (BATCH, *SHAPE, EMBD_DIM), jnp.float32)

    pallas_fn = jax.jit(attention_stack_pallas)
    out = jax.block_until_ready(pallas_fn(x, params))

    ref = attention_stack_ref(x, params)
    assert out.shape == x.shape
    np.testing.assert_allclose(np.asarray(out), np.asarray(ref),
                               rtol=2e-2, atol=2e-2)
    print("KERNEL_OK")
</pallas_src>

<mosaic_0001>
module attributes {stable_mosaic.version = 11 : i64} {
  func.func @stack_kernel(%arg0: i32, %arg1: memref<1x32x128xf32, #tpu.memory_space<vmem>>, %arg2: memref<32x32xf32, #tpu.memory_space<vmem>>, %arg3: memref<32x128xf32, #tpu.memory_space<vmem>>, %arg4: memref<32x32xf32, #tpu.memory_space<vmem>>, %arg5: memref<2x1x128xf32, #tpu.memory_space<vmem>>, %arg6: memref<2x1x128xf32, #tpu.memory_space<vmem>>, %arg7: memref<2x4x128x32xf32, #tpu.memory_space<vmem>>, %arg8: memref<2x4x128x32xf32, #tpu.memory_space<vmem>>, %arg9: memref<2x4x128x32xf32, #tpu.memory_space<vmem>>, %arg10: memref<2x4x32x128xf32, #tpu.memory_space<vmem>>, %arg11: memref<2x1x128xf32, #tpu.memory_space<vmem>>, %arg12: memref<2x1x128xf32, #tpu.memory_space<vmem>>, %arg13: memref<2x1x128xf32, #tpu.memory_space<vmem>>, %arg14: memref<2x128x512xf32, #tpu.memory_space<vmem>>, %arg15: memref<2x1x512xf32, #tpu.memory_space<vmem>>, %arg16: memref<2x512x128xf32, #tpu.memory_space<vmem>>, %arg17: memref<2x1x128xf32, #tpu.memory_space<vmem>>, %arg18: memref<1x32x128xf32, #tpu.memory_space<vmem>>) attributes {dimension_semantics = [#tpu.dimension_semantics<parallel>], iteration_bounds = array<i64: 2>, scalar_prefetch = 0 : i64, scratch_operands = 0 : i64, tpu.core_type = #tpu.core_type<tc>, window_params = [{transform_indices = @transform_0, window_bounds = array<i64: 1, 32, 128>}, {pipeline_mode = #tpu.pipeline_mode<synchronous>, transform_indices = @transform_1, window_bounds = array<i64: 32, 32>}, {pipeline_mode = #tpu.pipeline_mode<synchronous>, transform_indices = @transform_2, window_bounds = array<i64: 32, 128>}, {pipeline_mode = #tpu.pipeline_mode<synchronous>, transform_indices = @transform_3, window_bounds = array<i64: 32, 32>}, {pipeline_mode = #tpu.pipeline_mode<synchronous>, transform_indices = @transform_4, window_bounds = array<i64: 2, 1, 128>}, {pipeline_mode = #tpu.pipeline_mode<synchronous>, transform_indices = @transform_5, window_bounds = array<i64: 2, 1, 128>}, {pipeline_mode = #tpu.pipeline_mode<synchronous>, transform_indices = @transform_6, window_bounds = array<i64: 2, 4, 128, 32>}, {pipeline_mode = #tpu.pipeline_mode<synchronous>, transform_indices = @transform_7, window_bounds = array<i64: 2, 4, 128, 32>}, {pipeline_mode = #tpu.pipeline_mode<synchronous>, transform_indices = @transform_8, window_bounds = array<i64: 2, 4, 128, 32>}, {pipeline_mode = #tpu.pipeline_mode<synchronous>, transform_indices = @transform_9, window_bounds = array<i64: 2, 4, 32, 128>}, {pipeline_mode = #tpu.pipeline_mode<synchronous>, transform_indices = @transform_10, window_bounds = array<i64: 2, 1, 128>}, {pipeline_mode = #tpu.pipeline_mode<synchronous>, transform_indices = @transform_11, window_bounds = array<i64: 2, 1, 128>}, {pipeline_mode = #tpu.pipeline_mode<synchronous>, transform_indices = @transform_12, window_bounds = array<i64: 2, 1, 128>}, {pipeline_mode = #tpu.pipeline_mode<synchronous>, transform_indices = @transform_13, window_bounds = array<i64: 2, 128, 512>}, {pipeline_mode = #tpu.pipeline_mode<synchronous>, transform_indices = @transform_14, window_bounds = array<i64: 2, 1, 512>}, {pipeline_mode = #tpu.pipeline_mode<synchronous>, transform_indices = @transform_15, window_bounds = array<i64: 2, 512, 128>}, {pipeline_mode = #tpu.pipeline_mode<synchronous>, transform_indices = @transform_16, window_bounds = array<i64: 2, 1, 128>}, {transform_indices = @transform_17, window_bounds = array<i64: 1, 32, 128>}]} {
    %c0 = arith.constant 0 : index
    %c0_0 = arith.constant 0 : index
    %0 = vector.load %arg2[%c0, %c0_0] : memref<32x32xf32, #tpu.memory_space<vmem>>, vector<32x32xf32>
    %c0_1 = arith.constant 0 : index
    %c0_2 = arith.constant 0 : index
    %c0_3 = arith.constant 0 : index
    %1 = vector.load %arg1[%c0_1, %c0_2, %c0_3] : memref<1x32x128xf32, #tpu.memory_space<vmem>>, vector<1x32x128xf32>
    %2 = vector.shape_cast %1 : vector<1x32x128xf32> to vector<32x128xf32>
    %cst = arith.constant dense<0.000000e+00> : vector<32x128xf32>
    %3 = tpu.matmul %0, %2, %cst {dimension_numbers = #tpu.dot_dimension_numbers<[1], [0], [0], [1], [0, 0, 1, 1], [], []>} : vector<32x32xf32>, vector<32x128xf32>, vector<32x128xf32> -> vector<32x128xf32>
    %c0_4 = arith.constant 0 : index
    %c0_5 = arith.constant 0 : index
    %4 = vector.load %arg3[%c0_4, %c0_5] : memref<32x128xf32, #tpu.memory_space<vmem>>, vector<32x128xf32>
    %5 = arith.addf %3, %4 : vector<32x128xf32>
    %c0_6 = arith.constant 0 : index
    %c0_7 = arith.constant 0 : index
    %6 = vector.load %arg4[%c0_6, %c0_7] : memref<32x32xf32, #tpu.memory_space<vmem>>, vector<32x32xf32>
    %c0_8 = arith.constant 0 : index
    %c0_9 = arith.constant 0 : index
    %c0_10 = arith.constant 0 : index
    %7 = vector.load %arg5[%c0_8, %c0_9, %c0_10] : memref<2x1x128xf32, #tpu.memory_space<vmem>>, vector<1x1x128xf32>
    %8 = vector.shape_cast %7 : vector<1x1x128xf32> to vector<1x128xf32>
    %c0_11 = arith.constant 0 : index
    %c0_12 = arith.constant 0 : index
    %c0_13 = arith.constant 0 : index
    %9 = vector.load %arg6[%c0_11, %c0_12, %c0_13] : memref<2x1x128xf32, #tpu.memory_space<vmem>>, vector<1x1x128xf32>
    %10 = vector.shape_cast %9 : vector<1x1x128xf32> to vector<1x128xf32>
    %cst_14 = arith.constant dense<0.000000e+00> : vector<32xf32>
    %11 = vector.multi_reduction <add>, %5, %cst_14 [1] : vector<32x128xf32> to vector<32xf32>
    %12 = vector.shape_cast %11 : vector<32xf32> to vector<32x1xf32>
    %cst_15 = arith.constant 0.010416667 : f32
    %13 = vector.broadcast %cst_15 : f32 to vector<32x1xf32>
    %14 = arith.mulf %12, %13 : vector<32x1xf32>
    %15 = arith.mulf %5, %5 : vector<32x128xf32>
    %cst_16 = arith.constant dense<0.000000e+00> : vector<32xf32>
    %16 = vector.multi_reduction <add>, %15, %cst_16 [1] : vector<32x128xf32> to vector<32xf32>
    %17 = vector.shape_cast %16 : vector<32xf32> to vector<32x1xf32>
    %cst_17 = arith.constant 0.010416667 : f32
    %18 = vector.broadcast %cst_17 : f32 to vector<32x1xf32>
    %19 = arith.mulf %17, %18 : vector<32x1xf32>
    %20 = arith.mulf %14, %14 : vector<32x1xf32>
    %21 = arith.subf %19, %20 : vector<32x1xf32>
    %22 = vector.broadcast %14 : vector<32x1xf32> to vector<32x128xf32>
    %23 = arith.subf %5, %22 : vector<32x128xf32>
    %cst_18 = arith.constant 9.99999974E-6 : f32
    %24 = vector.broadcast %cst_18 : f32 to vector<32x1xf32>
    %25 = arith.addf %21, %24 : vector<32x1xf32>
    %26 = math.rsqrt %25 : vector<32x1xf32>
    %27 = vector.broadcast %26 : vector<32x1xf32> to vector<32x128xf32>
    %28 = arith.mulf %23, %27 : vector<32x128xf32>
    %29 = vector.broadcast %8 : vector<1x128xf32> to vector<32x128xf32>
    %30 = arith.mulf %28, %29 : vector<32x128xf32>
    %31 = vector.broadcast %10 : vector<1x128xf32> to vector<32x128xf32>
    %32 = arith.addf %30, %31 : vector<32x128xf32>
    %33 = vector.shape_cast %32 : vector<32x128xf32> to vector<1x32x128xf32>
    %34 = vector.shape_cast %33 : vector<1x32x128xf32> to vector<1x32x128xf32>
    %35 = vector.broadcast %34 : vector<1x32x128xf32> to vector<4x32x128xf32>
    %c0_19 = arith.constant 0 : index
    %c0_20 = arith.constant 0 : index
    %c0_21 = arith.constant 0 : index
    %c0_22 = arith.constant 0 : index
    %36 = vector.load %arg7[%c0_19, %c0_20, %c0_21, %c0_22] : memref<2x4x128x32xf32, #tpu.memory_space<vmem>>, vector<1x4x128x32xf32>
    %37 = vector.shape_cast %36 : vector<1x4x128x32xf32> to vector<4x128x32xf32>
    "tpu.trace_start"() <{level = 10 : i32, message = "hsd,hdk->hsk"}> : () -> ()
    %cst_23 = arith.constant dense<0.000000e+00> : vector<4x32x32xf32>
    %38 = tpu.matmul %35, %37, %cst_23 {dimension_numbers = #tpu.dot_dimension_numbers<[2], [1], [1], [2], [0, 0, 0, 1, 1, 2], [0], [0]>} : vector<4x32x128xf32>, vector<4x128x32xf32>, vector<4x32x32xf32> -> vector<4x32x32xf32>
    "tpu.trace_stop"() : () -> ()
    %c0_24 = arith.constant 0 : index
    %c0_25 = arith.constant 0 : index
    %c0_26 = arith.constant 0 : index
    %c0_27 = arith.constant 0 : index
    %39 = vector.load %arg8[%c0_24, %c0_25, %c0_26, %c0_27] : memref<2x4x128x32xf32, #tpu.memory_space<vmem>>, vector<1x4x128x32xf32>
    %40 = vector.shape_cast %39 : vector<1x4x128x32xf32> to vector<4x128x32xf32>
    "tpu.trace_start"() <{level = 10 : i32, message = "hsd,hdk->hsk"}> : () -> ()
    %cst_28 = arith.constant dense<0.000000e+00> : vector<4x32x32xf32>
    %41 = tpu.matmul %35, %40, %cst_28 {dimension_numbers = #tpu.dot_dimension_numbers<[2], [1], [1], [2], [0, 0, 0, 1, 1, 2], [0], [0]>} : vector<4x32x128xf32>, vector<4x128x32xf32>, vector<4x32x32xf32> -> vector<4x32x32xf32>
    "tpu.trace_stop"() : () -> ()
    %c0_29 = arith.constant 0 : index
    %c0_30 = arith.constant 0 : index
    %c0_31 = arith.constant 0 : index
    %c0_32 = arith.constant 0 : index
    %42 = vector.load %arg9[%c0_29, %c0_30, %c0_31, %c0_32] : memref<2x4x128x32xf32, #tpu.memory_space<vmem>>, vector<1x4x128x32xf32>
    %43 = vector.shape_cast %42 : vector<1x4x128x32xf32> to vector<4x128x32xf32>
    "tpu.trace_start"() <{level = 10 : i32, message = "hsd,hdk->hsk"}> : () -> ()
    %cst_33 = arith.constant dense<0.000000e+00> : vector<4x32x32xf32>
    %44 = tpu.matmul %35, %43, %cst_33 {dimension_numbers = #tpu.dot_dimension_numbers<[2], [1], [1], [2], [0, 0, 0, 1, 1, 2], [0], [0]>} : vector<4x32x128xf32>, vector<4x128x32xf32>, vector<4x32x32xf32> -> vector<4x32x32xf32>
    "tpu.trace_stop"() : () -> ()
    "tpu.trace_start"() <{level = 10 : i32, message = "hqc,hkc->hqk"}> : () -> ()
    %cst_34 = arith.constant dense<0.000000e+00> : vector<4x32x32xf32>
    %45 = tpu.matmul %38, %41, %cst_34 {dimension_numbers = #tpu.dot_dimension_numbers<[2], [2], [1], [1], [0, 0, 0, 1, 1, 1], [0], [0]>} : vector<4x32x32xf32>, vector<4x32x32xf32>, vector<4x32x32xf32> -> vector<4x32x32xf32>
    "tpu.trace_stop"() : () -> ()
    %46 = vector.shape_cast %6 : vector<32x32xf32> to vector<1x32x32xf32>
    %47 = vector.broadcast %46 : vector<1x32x32xf32> to vector<4x32x32xf32>
    %48 = arith.addf %45, %47 : vector<4x32x32xf32>
    %cst_35 = arith.constant dense<0xFF800000> : vector<4x32xf32>
    %49 = vector.multi_reduction <maximumf>, %48, %cst_35 [2] : vector<4x32x32xf32> to vector<4x32xf32>
    %50 = vector.shape_cast %49 : vector<4x32xf32> to vector<4x32x1xf32>
    %51 = vector.broadcast %50 : vector<4x32x1xf32> to vector<4x32x32xf32>
    %52 = arith.subf %48, %51 : vector<4x32x32xf32>
    %53 = math.exp %52 : vector<4x32x32xf32>
    %cst_36 = arith.constant dense<0.000000e+00> : vector<4x32xf32>
    %54 = vector.multi_reduction <add>, %53, %cst_36 [2] : vector<4x32x32xf32> to vector<4x32xf32>
    %55 = vector.shape_cast %54 : vector<4x32xf32> to vector<4x32x1xf32>
    %56 = tpu.reciprocal %55 {approx = true} : vector<4x32x1xf32> -> vector<4x32x1xf32>
    %57 = vector.broadcast %56 : vector<4x32x1xf32> to vector<4x32x32xf32>
    %58 = arith.mulf %53, %57 : vector<4x32x32xf32>
    "tpu.trace_start"() <{level = 10 : i32, message = "hqk,hkc->hqc"}> : () -> ()
    %cst_37 = arith.constant dense<0.000000e+00> : vector<4x32x32xf32>
    %59 = tpu.matmul %58, %44, %cst_37 {dimension_numbers = #tpu.dot_dimension_numbers<[2], [1], [1], [2], [0, 0, 0, 1, 1, 2], [0], [0]>} : vector<4x32x32xf32>, vector<4x32x32xf32>, vector<4x32x32xf32> -> vector<4x32x32xf32>
    "tpu.trace_stop"() : () -> ()
    %c0_38 = arith.constant 0 : index
    %c0_39 = arith.constant 0 : index
    %c0_40 = arith.constant 0 : index
    %c0_41 = arith.constant 0 : index
    %60 = vector.load %arg10[%c0_38, %c0_39, %c0_40, %c0_41] : memref<2x4x32x128xf32, #tpu.memory_space<vmem>>, vector<1x4x32x128xf32>
    %61 = vector.shape_cast %60 : vector<1x4x32x128xf32> to vector<4x32x128xf32>
    "tpu.trace_start"() <{level = 10 : i32, message = "hqc,hcd->hqd"}> : () -> ()
    %cst_42 = arith.constant dense<0.000000e+00> : vector<4x32x128xf32>
    %62 = tpu.matmul %59, %61, %cst_42 {dimension_numbers = #tpu.dot_dimension_numbers<[2], [1], [1], [2], [0, 0, 0, 1, 1, 2], [0], [0]>} : vector<4x32x32xf32>, vector<4x32x128xf32>, vector<4x32x128xf32> -> vector<4x32x128xf32>
    "tpu.trace_stop"() : () -> ()
    %cst_43 = arith.constant dense<0.000000e+00> : vector<32x128xf32>
    %63 = vector.multi_reduction <add>, %62, %cst_43 [0] : vector<4x32x128xf32> to vector<32x128xf32>
    %64 = arith.addf %5, %63 : vector<32x128xf32>
    %c0_44 = arith.constant 0 : index
    %c0_45 = arith.constant 0 : index
    %c0_46 = arith.constant 0 : index
    %65 = vector.load %arg11[%c0_44, %c0_45, %c0_46] : memref<2x1x128xf32, #tpu.memory_space<vmem>>, vector<1x1x128xf32>
    %66 = vector.shape_cast %65 : vector<1x1x128xf32> to vector<1x128xf32>
    %67 = vector.broadcast %66 : vector<1x128xf32> to vector<32x128xf32>
    %68 = arith.addf %64, %67 : vector<32x128xf32>
    %c0_47 = arith.constant 0 : index
    %c0_48 = arith.constant 0 : index
    %c0_49 = arith.constant 0 : index
    %69 = vector.load %arg12[%c0_47, %c0_48, %c0_49] : memref<2x1x128xf32, #tpu.memory_space<vmem>>, vector<1x1x128xf32>
    %70 = vector.shape_cast %69 : vector<1x1x128xf32> to vector<1x128xf32>
    %c0_50 = arith.constant 0 : index
    %c0_51 = arith.constant 0 : index
    %c0_52 = arith.constant 0 : index
    %71 = vector.load %arg13[%c0_50, %c0_51, %c0_52] : memref<2x1x128xf32, #tpu.memory_space<vmem>>, vector<1x1x128xf32>
    %72 = vector.shape_cast %71 : vector<1x1x128xf32> to vector<1x128xf32>
    %cst_53 = arith.constant dense<0.000000e+00> : vector<32xf32>
    %73 = vector.multi_reduction <add>, %68, %cst_53 [1] : vector<32x128xf32> to vector<32xf32>
    %74 = vector.shape_cast %73 : vector<32xf32> to vector<32x1xf32>
    %cst_54 = arith.constant 0.010416667 : f32
    %75 = vector.broadcast %cst_54 : f32 to vector<32x1xf32>
    %76 = arith.mulf %74, %75 : vector<32x1xf32>
    %77 = arith.mulf %68, %68 : vector<32x128xf32>
    %cst_55 = arith.constant dense<0.000000e+00> : vector<32xf32>
    %78 = vector.multi_reduction <add>, %77, %cst_55 [1] : vector<32x128xf32> to vector<32xf32>
    %79 = vector.shape_cast %78 : vector<32xf32> to vector<32x1xf32>
    %cst_56 = arith.constant 0.010416667 : f32
    %80 = vector.broadcast %cst_56 : f32 to vector<32x1xf32>
    %81 = arith.mulf %79, %80 : vector<32x1xf32>
    %82 = arith.mulf %76, %76 : vector<32x1xf32>
    %83 = arith.subf %81, %82 : vector<32x1xf32>
    %84 = vector.broadcast %76 : vector<32x1xf32> to vector<32x128xf32>
    %85 = arith.subf %68, %84 : vector<32x128xf32>
    %cst_57 = arith.constant 9.99999974E-6 : f32
    %86 = vector.broadcast %cst_57 : f32 to vector<32x1xf32>
    %87 = arith.addf %83, %86 : vector<32x1xf32>
    %88 = math.rsqrt %87 : vector<32x1xf32>
    %89 = vector.broadcast %88 : vector<32x1xf32> to vector<32x128xf32>
    %90 = arith.mulf %85, %89 : vector<32x128xf32>
    %91 = vector.broadcast %70 : vector<1x128xf32> to vector<32x128xf32>
    %92 = arith.mulf %90, %91 : vector<32x128xf32>
    %93 = vector.broadcast %72 : vector<1x128xf32> to vector<32x128xf32>
    %94 = arith.addf %92, %93 : vector<32x128xf32>
    %c0_58 = arith.constant 0 : index
    %c0_59 = arith.constant 0 : index
    %c0_60 = arith.constant 0 : index
    %95 = vector.load %arg14[%c0_58, %c0_59, %c0_60] : memref<2x128x512xf32, #tpu.memory_space<vmem>>, vector<1x128x512xf32>
    %96 = vector.shape_cast %95 : vector<1x128x512xf32> to vector<128x512xf32>
    %cst_61 = arith.constant dense<0.000000e+00> : vector<32x512xf32>
    %97 = tpu.matmul %94, %96, %cst_61 {dimension_numbers = #tpu.dot_dimension_numbers<[1], [0], [0], [1], [0, 0, 1, 1], [], []>} : vector<32x128xf32>, vector<128x512xf32>, vector<32x512xf32> -> vector<32x512xf32>
    %c0_62 = arith.constant 0 : index
    %c0_63 = arith.constant 0 : index
    %c0_64 = arith.constant 0 : index
    %98 = vector.load %arg15[%c0_62, %c0_63, %c0_64] : memref<2x1x512xf32, #tpu.memory_space<vmem>>, vector<1x1x512xf32>
    %99 = vector.shape_cast %98 : vector<1x1x512xf32> to vector<1x512xf32>
    %100 = vector.broadcast %99 : vector<1x512xf32> to vector<32x512xf32>
    %101 = arith.addf %97, %100 : vector<32x512xf32>
    %cst_65 = arith.constant 1.702000e+00 : f32
    %102 = vector.broadcast %cst_65 : f32 to vector<32x512xf32>
    %103 = arith.mulf %102, %101 : vector<32x512xf32>
    %104 = arith.negf %103 : vector<32x512xf32>
    %105 = math.exp %104 : vector<32x512xf32>
    %cst_66 = arith.constant 1.000000e+00 : f32
    %106 = vector.broadcast %cst_66 : f32 to vector<32x512xf32>
    %107 = arith.addf %106, %105 : vector<32x512xf32>
    %108 = arith.divf %106, %107 : vector<32x512xf32>
    %109 = arith.mulf %108, %101 : vector<32x512xf32>
    %c0_67 = arith.constant 0 : index
    %c0_68 = arith.constant 0 : index
    %c0_69 = arith.constant 0 : index
    %110 = vector.load %arg16[%c0_67, %c0_68, %c0_69] : memref<2x512x128xf32, #tpu.memory_space<vmem>>, vector<1x512x128xf32>
    %111 = vector.shape_cast %110 : vector<1x512x128xf32> to vector<512x128xf32>
    %cst_70 = arith.constant dense<0.000000e+00> : vector<32x128xf32>
    %112 = tpu.matmul %109, %111, %cst_70 {dimension_numbers = #tpu.dot_dimension_numbers<[1], [0], [0], [1], [0, 0, 1, 1], [], []>} : vector<32x512xf32>, vector<512x128xf32>, vector<32x128xf32> -> vector<32x128xf32>
    %113 = arith.addf %68, %112 : vector<32x128xf32>
    %c0_71 = arith.constant 0 : index
    %c0_72 = arith.constant 0 : index
    %c0_73 = arith.constant 0 : index
    %114 = vector.load %arg17[%c0_71, %c0_72, %c0_73] : memref<2x1x128xf32, #tpu.memory_space<vmem>>, vector<1x1x128xf32>
    %115 = vector.shape_cast %114 : vector<1x1x128xf32> to vector<1x128xf32>
    %116 = vector.broadcast %115 : vector<1x128xf32> to vector<32x128xf32>
    %117 = arith.addf %113, %116 : vector<32x128xf32>
    %c1 = arith.constant 1 : index
    %c0_74 = arith.constant 0 : index
    %c0_75 = arith.constant 0 : index
    %118 = vector.load %arg5[%c1, %c0_74, %c0_75] : memref<2x1x128xf32, #tpu.memory_space<vmem>>, vector<1x1x128xf32>
    %119 = vector.shape_cast %118 : vector<1x1x128xf32> to vector<1x128xf32>
    %c1_76 = arith.constant 1 : index
    %c0_77 = arith.constant 0 : index
    %c0_78 = arith.constant 0 : index
    %120 = vector.load %arg6[%c1_76, %c0_77, %c0_78] : memref<2x1x128xf32, #tpu.memory_space<vmem>>, vector<1x1x128xf32>
    %121 = vector.shape_cast %120 : vector<1x1x128xf32> to vector<1x128xf32>
    %cst_79 = arith.constant dense<0.000000e+00> : vector<32xf32>
    %122 = vector.multi_reduction <add>, %117, %cst_79 [1] : vector<32x128xf32> to vector<32xf32>
    %123 = vector.shape_cast %122 : vector<32xf32> to vector<32x1xf32>
    %cst_80 = arith.constant 0.010416667 : f32
    %124 = vector.broadcast %cst_80 : f32 to vector<32x1xf32>
    %125 = arith.mulf %123, %124 : vector<32x1xf32>
    %126 = arith.mulf %117, %117 : vector<32x128xf32>
    %cst_81 = arith.constant dense<0.000000e+00> : vector<32xf32>
    %127 = vector.multi_reduction <add>, %126, %cst_81 [1] : vector<32x128xf32> to vector<32xf32>
    %128 = vector.shape_cast %127 : vector<32xf32> to vector<32x1xf32>
    %cst_82 = arith.constant 0.010416667 : f32
    %129 = vector.broadcast %cst_82 : f32 to vector<32x1xf32>
    %130 = arith.mulf %128, %129 : vector<32x1xf32>
    %131 = arith.mulf %125, %125 : vector<32x1xf32>
    %132 = arith.subf %130, %131 : vector<32x1xf32>
    %133 = vector.broadcast %125 : vector<32x1xf32> to vector<32x128xf32>
    %134 = arith.subf %117, %133 : vector<32x128xf32>
    %cst_83 = arith.constant 9.99999974E-6 : f32
    %135 = vector.broadcast %cst_83 : f32 to vector<32x1xf32>
    %136 = arith.addf %132, %135 : vector<32x1xf32>
    %137 = math.rsqrt %136 : vector<32x1xf32>
    %138 = vector.broadcast %137 : vector<32x1xf32> to vector<32x128xf32>
    %139 = arith.mulf %134, %138 : vector<32x128xf32>
    %140 = vector.broadcast %119 : vector<1x128xf32> to vector<32x128xf32>
    %141 = arith.mulf %139, %140 : vector<32x128xf32>
    %142 = vector.broadcast %121 : vector<1x128xf32> to vector<32x128xf32>
    %143 = arith.addf %141, %142 : vector<32x128xf32>
    %144 = vector.shape_cast %143 : vector<32x128xf32> to vector<1x32x128xf32>
    %145 = vector.shape_cast %144 : vector<1x32x128xf32> to vector<1x32x128xf32>
    %146 = vector.broadcast %145 : vector<1x32x128xf32> to vector<4x32x128xf32>
    %c1_84 = arith.constant 1 : index
    %c0_85 = arith.constant 0 : index
    %c0_86 = arith.constant 0 : index
    %c0_87 = arith.constant 0 : index
    %147 = vector.load %arg7[%c1_84, %c0_85, %c0_86, %c0_87] : memref<2x4x128x32xf32, #tpu.memory_space<vmem>>, vector<1x4x128x32xf32>
    %148 = vector.shape_cast %147 : vector<1x4x128x32xf32> to vector<4x128x32xf32>
    "tpu.trace_start"() <{level = 10 : i32, message = "hsd,hdk->hsk"}> : () -> ()
    %cst_88 = arith.constant dense<0.000000e+00> : vector<4x32x32xf32>
    %149 = tpu.matmul %146, %148, %cst_88 {dimension_numbers = #tpu.dot_dimension_numbers<[2], [1], [1], [2], [0, 0, 0, 1, 1, 2], [0], [0]>} : vector<4x32x128xf32>, vector<4x128x32xf32>, vector<4x32x32xf32> -> vector<4x32x32xf32>
    "tpu.trace_stop"() : () -> ()
    %c1_89 = arith.constant 1 : index
    %c0_90 = arith.constant 0 : index
    %c0_91 = arith.constant 0 : index
    %c0_92 = arith.constant 0 : index
    %150 = vector.load %arg8[%c1_89, %c0_90, %c0_91, %c0_92] : memref<2x4x128x32xf32, #tpu.memory_space<vmem>>, vector<1x4x128x32xf32>
    %151 = vector.shape_cast %150 : vector<1x4x128x32xf32> to vector<4x128x32xf32>
    "tpu.trace_start"() <{level = 10 : i32, message = "hsd,hdk->hsk"}> : () -> ()
    %cst_93 = arith.constant dense<0.000000e+00> : vector<4x32x32xf32>
    %152 = tpu.matmul %146, %151, %cst_93 {dimension_numbers = #tpu.dot_dimension_numbers<[2], [1], [1], [2], [0, 0, 0, 1, 1, 2], [0], [0]>} : vector<4x32x128xf32>, vector<4x128x32xf32>, vector<4x32x32xf32> -> vector<4x32x32xf32>
    "tpu.trace_stop"() : () -> ()
    %c1_94 = arith.constant 1 : index
    %c0_95 = arith.constant 0 : index
    %c0_96 = arith.constant 0 : index
    %c0_97 = arith.constant 0 : index
    %153 = vector.load %arg9[%c1_94, %c0_95, %c0_96, %c0_97] : memref<2x4x128x32xf32, #tpu.memory_space<vmem>>, vector<1x4x128x32xf32>
    %154 = vector.shape_cast %153 : vector<1x4x128x32xf32> to vector<4x128x32xf32>
    "tpu.trace_start"() <{level = 10 : i32, message = "hsd,hdk->hsk"}> : () -> ()
    %cst_98 = arith.constant dense<0.000000e+00> : vector<4x32x32xf32>
    %155 = tpu.matmul %146, %154, %cst_98 {dimension_numbers = #tpu.dot_dimension_numbers<[2], [1], [1], [2], [0, 0, 0, 1, 1, 2], [0], [0]>} : vector<4x32x128xf32>, vector<4x128x32xf32>, vector<4x32x32xf32> -> vector<4x32x32xf32>
    "tpu.trace_stop"() : () -> ()
    "tpu.trace_start"() <{level = 10 : i32, message = "hqc,hkc->hqk"}> : () -> ()
    %cst_99 = arith.constant dense<0.000000e+00> : vector<4x32x32xf32>
    %156 = tpu.matmul %149, %152, %cst_99 {dimension_numbers = #tpu.dot_dimension_numbers<[2], [2], [1], [1], [0, 0, 0, 1, 1, 1], [0], [0]>} : vector<4x32x32xf32>, vector<4x32x32xf32>, vector<4x32x32xf32> -> vector<4x32x32xf32>
    "tpu.trace_stop"() : () -> ()
    %157 = vector.shape_cast %6 : vector<32x32xf32> to vector<1x32x32xf32>
    %158 = vector.broadcast %157 : vector<1x32x32xf32> to vector<4x32x32xf32>
    %159 = arith.addf %156, %158 : vector<4x32x32xf32>
    %cst_100 = arith.constant dense<0xFF800000> : vector<4x32xf32>
    %160 = vector.multi_reduction <maximumf>, %159, %cst_100 [2] : vector<4x32x32xf32> to vector<4x32xf32>
    %161 = vector.shape_cast %160 : vector<4x32xf32> to vector<4x32x1xf32>
    %162 = vector.broadcast %161 : vector<4x32x1xf32> to vector<4x32x32xf32>
    %163 = arith.subf %159, %162 : vector<4x32x32xf32>
    %164 = math.exp %163 : vector<4x32x32xf32>
    %cst_101 = arith.constant dense<0.000000e+00> : vector<4x32xf32>
    %165 = vector.multi_reduction <add>, %164, %cst_101 [2] : vector<4x32x32xf32> to vector<4x32xf32>
    %166 = vector.shape_cast %165 : vector<4x32xf32> to vector<4x32x1xf32>
    %167 = tpu.reciprocal %166 {approx = true} : vector<4x32x1xf32> -> vector<4x32x1xf32>
    %168 = vector.broadcast %167 : vector<4x32x1xf32> to vector<4x32x32xf32>
    %169 = arith.mulf %164, %168 : vector<4x32x32xf32>
    "tpu.trace_start"() <{level = 10 : i32, message = "hqk,hkc->hqc"}> : () -> ()
    %cst_102 = arith.constant dense<0.000000e+00> : vector<4x32x32xf32>
    %170 = tpu.matmul %169, %155, %cst_102 {dimension_numbers = #tpu.dot_dimension_numbers<[2], [1], [1], [2], [0, 0, 0, 1, 1, 2], [0], [0]>} : vector<4x32x32xf32>, vector<4x32x32xf32>, vector<4x32x32xf32> -> vector<4x32x32xf32>
    "tpu.trace_stop"() : () -> ()
    %c1_103 = arith.constant 1 : index
    %c0_104 = arith.constant 0 : index
    %c0_105 = arith.constant 0 : index
    %c0_106 = arith.constant 0 : index
    %171 = vector.load %arg10[%c1_103, %c0_104, %c0_105, %c0_106] : memref<2x4x32x128xf32, #tpu.memory_space<vmem>>, vector<1x4x32x128xf32>
    %172 = vector.shape_cast %171 : vector<1x4x32x128xf32> to vector<4x32x128xf32>
    "tpu.trace_start"() <{level = 10 : i32, message = "hqc,hcd->hqd"}> : () -> ()
    %cst_107 = arith.constant dense<0.000000e+00> : vector<4x32x128xf32>
    %173 = tpu.matmul %170, %172, %cst_107 {dimension_numbers = #tpu.dot_dimension_numbers<[2], [1], [1], [2], [0, 0, 0, 1, 1, 2], [0], [0]>} : vector<4x32x32xf32>, vector<4x32x128xf32>, vector<4x32x128xf32> -> vector<4x32x128xf32>
    "tpu.trace_stop"() : () -> ()
    %cst_108 = arith.constant dense<0.000000e+00> : vector<32x128xf32>
    %174 = vector.multi_reduction <add>, %173, %cst_108 [0] : vector<4x32x128xf32> to vector<32x128xf32>
    %175 = arith.addf %117, %174 : vector<32x128xf32>
    %c1_109 = arith.constant 1 : index
    %c0_110 = arith.constant 0 : index
    %c0_111 = arith.constant 0 : index
    %176 = vector.load %arg11[%c1_109, %c0_110, %c0_111] : memref<2x1x128xf32, #tpu.memory_space<vmem>>, vector<1x1x128xf32>
    %177 = vector.shape_cast %176 : vector<1x1x128xf32> to vector<1x128xf32>
    %178 = vector.broadcast %177 : vector<1x128xf32> to vector<32x128xf32>
    %179 = arith.addf %175, %178 : vector<32x128xf32>
    %c1_112 = arith.constant 1 : index
    %c0_113 = arith.constant 0 : index
    %c0_114 = arith.constant 0 : index
    %180 = vector.load %arg12[%c1_112, %c0_113, %c0_114] : memref<2x1x128xf32, #tpu.memory_space<vmem>>, vector<1x1x128xf32>
    %181 = vector.shape_cast %180 : vector<1x1x128xf32> to vector<1x128xf32>
    %c1_115 = arith.constant 1 : index
    %c0_116 = arith.constant 0 : index
    %c0_117 = arith.constant 0 : index
    %182 = vector.load %arg13[%c1_115, %c0_116, %c0_117] : memref<2x1x128xf32, #tpu.memory_space<vmem>>, vector<1x1x128xf32>
    %183 = vector.shape_cast %182 : vector<1x1x128xf32> to vector<1x128xf32>
    %cst_118 = arith.constant dense<0.000000e+00> : vector<32xf32>
    %184 = vector.multi_reduction <add>, %179, %cst_118 [1] : vector<32x128xf32> to vector<32xf32>
    %185 = vector.shape_cast %184 : vector<32xf32> to vector<32x1xf32>
    %cst_119 = arith.constant 0.010416667 : f32
    %186 = vector.broadcast %cst_119 : f32 to vector<32x1xf32>
    %187 = arith.mulf %185, %186 : vector<32x1xf32>
    %188 = arith.mulf %179, %179 : vector<32x128xf32>
    %cst_120 = arith.constant dense<0.000000e+00> : vector<32xf32>
    %189 = vector.multi_reduction <add>, %188, %cst_120 [1] : vector<32x128xf32> to vector<32xf32>
    %190 = vector.shape_cast %189 : vector<32xf32> to vector<32x1xf32>
    %cst_121 = arith.constant 0.010416667 : f32
    %191 = vector.broadcast %cst_121 : f32 to vector<32x1xf32>
    %192 = arith.mulf %190, %191 : vector<32x1xf32>
    %193 = arith.mulf %187, %187 : vector<32x1xf32>
    %194 = arith.subf %192, %193 : vector<32x1xf32>
    %195 = vector.broadcast %187 : vector<32x1xf32> to vector<32x128xf32>
    %196 = arith.subf %179, %195 : vector<32x128xf32>
    %cst_122 = arith.constant 9.99999974E-6 : f32
    %197 = vector.broadcast %cst_122 : f32 to vector<32x1xf32>
    %198 = arith.addf %194, %197 : vector<32x1xf32>
    %199 = math.rsqrt %198 : vector<32x1xf32>
    %200 = vector.broadcast %199 : vector<32x1xf32> to vector<32x128xf32>
    %201 = arith.mulf %196, %200 : vector<32x128xf32>
    %202 = vector.broadcast %181 : vector<1x128xf32> to vector<32x128xf32>
    %203 = arith.mulf %201, %202 : vector<32x128xf32>
    %204 = vector.broadcast %183 : vector<1x128xf32> to vector<32x128xf32>
    %205 = arith.addf %203, %204 : vector<32x128xf32>
    %c1_123 = arith.constant 1 : index
    %c0_124 = arith.constant 0 : index
    %c0_125 = arith.constant 0 : index
    %206 = vector.load %arg14[%c1_123, %c0_124, %c0_125] : memref<2x128x512xf32, #tpu.memory_space<vmem>>, vector<1x128x512xf32>
    %207 = vector.shape_cast %206 : vector<1x128x512xf32> to vector<128x512xf32>
    %cst_126 = arith.constant dense<0.000000e+00> : vector<32x512xf32>
    %208 = tpu.matmul %205, %207, %cst_126 {dimension_numbers = #tpu.dot_dimension_numbers<[1], [0], [0], [1], [0, 0, 1, 1], [], []>} : vector<32x128xf32>, vector<128x512xf32>, vector<32x512xf32> -> vector<32x512xf32>
    %c1_127 = arith.constant 1 : index
    %c0_128 = arith.constant 0 : index
    %c0_129 = arith.constant 0 : index
    %209 = vector.load %arg15[%c1_127, %c0_128, %c0_129] : memref<2x1x512xf32, #tpu.memory_space<vmem>>, vector<1x1x512xf32>
    %210 = vector.shape_cast %209 : vector<1x1x512xf32> to vector<1x512xf32>
    %211 = vector.broadcast %210 : vector<1x512xf32> to vector<32x512xf32>
    %212 = arith.addf %208, %211 : vector<32x512xf32>
    %cst_130 = arith.constant 1.702000e+00 : f32
    %213 = vector.broadcast %cst_130 : f32 to vector<32x512xf32>
    %214 = arith.mulf %213, %212 : vector<32x512xf32>
    %215 = arith.negf %214 : vector<32x512xf32>
    %216 = math.exp %215 : vector<32x512xf32>
    %cst_131 = arith.constant 1.000000e+00 : f32
    %217 = vector.broadcast %cst_131 : f32 to vector<32x512xf32>
    %218 = arith.addf %217, %216 : vector<32x512xf32>
    %219 = arith.divf %217, %218 : vector<32x512xf32>
    %220 = arith.mulf %219, %212 : vector<32x512xf32>
    %c1_132 = arith.constant 1 : index
    %c0_133 = arith.constant 0 : index
    %c0_134 = arith.constant 0 : index
    %221 = vector.load %arg16[%c1_132, %c0_133, %c0_134] : memref<2x512x128xf32, #tpu.memory_space<vmem>>, vector<1x512x128xf32>
    %222 = vector.shape_cast %221 : vector<1x512x128xf32> to vector<512x128xf32>
    %cst_135 = arith.constant dense<0.000000e+00> : vector<32x128xf32>
    %223 = tpu.matmul %220, %222, %cst_135 {dimension_numbers = #tpu.dot_dimension_numbers<[1], [0], [0], [1], [0, 0, 1, 1], [], []>} : vector<32x512xf32>, vector<512x128xf32>, vector<32x128xf32> -> vector<32x128xf32>
    %224 = arith.addf %179, %223 : vector<32x128xf32>
    %c1_136 = arith.constant 1 : index
    %c0_137 = arith.constant 0 : index
    %c0_138 = arith.constant 0 : index
    %225 = vector.load %arg17[%c1_136, %c0_137, %c0_138] : memref<2x1x128xf32, #tpu.memory_space<vmem>>, vector<1x1x128xf32>
    %226 = vector.shape_cast %225 : vector<1x1x128xf32> to vector<1x128xf32>
    %227 = vector.broadcast %226 : vector<1x128xf32> to vector<32x128xf32>
    %228 = arith.addf %224, %227 : vector<32x128xf32>
    %c0_139 = arith.constant 0 : index
    %c0_140 = arith.constant 0 : index
    %c0_141 = arith.constant 0 : index
    %229 = vector.load %arg18[%c0_139, %c0_140, %c0_141] : memref<1x32x128xf32, #tpu.memory_space<vmem>>, vector<1x32x128xf32>
    %230 = vector.shape_cast %229 : vector<1x32x128xf32> to vector<32x128xf32>
    %231 = vector.shape_cast %228 : vector<32x128xf32> to vector<1x32x128xf32>
    tpu.vector_store %arg18[%c0_139, %c0_140, %c0_141], %231 {strides = array<i32>} : memref<1x32x128xf32, #tpu.memory_space<vmem>>, vector<1x32x128xf32>,
    return
  }
  func.func @transform_0(%arg0: i32) -> (i32, i32, i32) {
    %c0_i32 = arith.constant 0 : i32
    %c0_i32_0 = arith.constant 0 : i32
    %c0_i32_1 = arith.constant 0 : i32
    return %arg0, %c0_i32, %c0_i32_0 : i32, i32, i32
  }
  func.func @transform_1(%arg0: i32) -> (i32, i32) {
    %c0_i32 = arith.constant 0 : i32
    %c0_i32_0 = arith.constant 0 : i32
    %c0_i32_1 = arith.constant 0 : i32
    return %c0_i32, %c0_i32_0 : i32, i32
  }
  func.func @transform_2(%arg0: i32) -> (i32, i32) {
    %c0_i32 = arith.constant 0 : i32
    %c0_i32_0 = arith.constant 0 : i32
    %c0_i32_1 = arith.constant 0 : i32
    return %c0_i32, %c0_i32_0 : i32, i32
  }
  func.func @transform_3(%arg0: i32) -> (i32, i32) {
    %c0_i32 = arith.constant 0 : i32
    %c0_i32_0 = arith.constant 0 : i32
    %c0_i32_1 = arith.constant 0 : i32
    return %c0_i32, %c0_i32_0 : i32, i32
  }
  func.func @transform_4(%arg0: i32) -> (i32, i32, i32) {
    %c0_i32 = arith.constant 0 : i32
    %c0_i32_0 = arith.constant 0 : i32
    %c0_i32_1 = arith.constant 0 : i32
    %c0_i32_2 = arith.constant 0 : i32
    return %c0_i32, %c0_i32_0, %c0_i32_1 : i32, i32, i32
  }
  func.func @transform_5(%arg0: i32) -> (i32, i32, i32) {
    %c0_i32 = arith.constant 0 : i32
    %c0_i32_0 = arith.constant 0 : i32
    %c0_i32_1 = arith.constant 0 : i32
    %c0_i32_2 = arith.constant 0 : i32
    return %c0_i32, %c0_i32_0, %c0_i32_1 : i32, i32, i32
  }
  func.func @transform_6(%arg0: i32) -> (i32, i32, i32, i32) {
    %c0_i32 = arith.constant 0 : i32
    %c0_i32_0 = arith.constant 0 : i32
    %c0_i32_1 = arith.constant 0 : i32
    %c0_i32_2 = arith.constant 0 : i32
    %c0_i32_3 = arith.constant 0 : i32
    return %c0_i32, %c0_i32_0, %c0_i32_1, %c0_i32_2 : i32, i32, i32, i32
  }
  func.func @transform_7(%arg0: i32) -> (i32, i32, i32, i32) {
    %c0_i32 = arith.constant 0 : i32
    %c0_i32_0 = arith.constant 0 : i32
    %c0_i32_1 = arith.constant 0 : i32
    %c0_i32_2 = arith.constant 0 : i32
    %c0_i32_3 = arith.constant 0 : i32
    return %c0_i32, %c0_i32_0, %c0_i32_1, %c0_i32_2 : i32, i32, i32, i32
  }
  func.func @transform_8(%arg0: i32) -> (i32, i32, i32, i32) {
    %c0_i32 = arith.constant 0 : i32
    %c0_i32_0 = arith.constant 0 : i32
    %c0_i32_1 = arith.constant 0 : i32
    %c0_i32_2 = arith.constant 0 : i32
    %c0_i32_3 = arith.constant 0 : i32
    return %c0_i32, %c0_i32_0, %c0_i32_1, %c0_i32_2 : i32, i32, i32, i32
  }
  func.func @transform_9(%arg0: i32) -> (i32, i32, i32, i32) {
    %c0_i32 = arith.constant 0 : i32
    %c0_i32_0 = arith.constant 0 : i32
    %c0_i32_1 = arith.constant 0 : i32
    %c0_i32_2 = arith.constant 0 : i32
    %c0_i32_3 = arith.constant 0 : i32
    return %c0_i32, %c0_i32_0, %c0_i32_1, %c0_i32_2 : i32, i32, i32, i32
  }
  func.func @transform_10(%arg0: i32) -> (i32, i32, i32) {
    %c0_i32 = arith.constant 0 : i32
    %c0_i32_0 = arith.constant 0 : i32
    %c0_i32_1 = arith.constant 0 : i32
    %c0_i32_2 = arith.constant 0 : i32
    return %c0_i32, %c0_i32_0, %c0_i32_1 : i32, i32, i32
  }
  func.func @transform_11(%arg0: i32) -> (i32, i32, i32) {
    %c0_i32 = arith.constant 0 : i32
    %c0_i32_0 = arith.constant 0 : i32
    %c0_i32_1 = arith.constant 0 : i32
    %c0_i32_2 = arith.constant 0 : i32
    return %c0_i32, %c0_i32_0, %c0_i32_1 : i32, i32, i32
  }
  func.func @transform_12(%arg0: i32) -> (i32, i32, i32) {
    %c0_i32 = arith.constant 0 : i32
    %c0_i32_0 = arith.constant 0 : i32
    %c0_i32_1 = arith.constant 0 : i32
    %c0_i32_2 = arith.constant 0 : i32
    return %c0_i32, %c0_i32_0, %c0_i32_1 : i32, i32, i32
  }
  func.func @transform_13(%arg0: i32) -> (i32, i32, i32) {
    %c0_i32 = arith.constant 0 : i32
    %c0_i32_0 = arith.constant 0 : i32
    %c0_i32_1 = arith.constant 0 : i32
    %c0_i32_2 = arith.constant 0 : i32
    return %c0_i32, %c0_i32_0, %c0_i32_1 : i32, i32, i32
  }
  func.func @transform_14(%arg0: i32) -> (i32, i32, i32) {
    %c0_i32 = arith.constant 0 : i32
    %c0_i32_0 = arith.constant 0 : i32
    %c0_i32_1 = arith.constant 0 : i32
    %c0_i32_2 = arith.constant 0 : i32
    return %c0_i32, %c0_i32_0, %c0_i32_1 : i32, i32, i32
  }
  func.func @transform_15(%arg0: i32) -> (i32, i32, i32) {
    %c0_i32 = arith.constant 0 : i32
    %c0_i32_0 = arith.constant 0 : i32
    %c0_i32_1 = arith.constant 0 : i32
    %c0_i32_2 = arith.constant 0 : i32
    return %c0_i32, %c0_i32_0, %c0_i32_1 : i32, i32, i32
  }
  func.func @transform_16(%arg0: i32) -> (i32, i32, i32) {
    %c0_i32 = arith.constant 0 : i32
    %c0_i32_0 = arith.constant 0 : i32
    %c0_i32_1 = arith.constant 0 : i32
    %c0_i32_2 = arith.constant 0 : i32
    return %c0_i32, %c0_i32_0, %c0_i32_1 : i32, i32, i32
  }
  func.func @transform_17(%arg0: i32) -> (i32, i32, i32) {
    %c0_i32 = arith.constant 0 : i32
    %c0_i32_0 = arith.constant 0 : i32
    %c0_i32_1 = arith.constant 0 : i32
    return %arg0, %c0_i32, %c0_i32_0 : i32, i32, i32
  }
}

</mosaic_0001>

<llo_original>
// kernel: attention_stack_pallas.1
$region0: #{attention_stack_pallas.1}
  #allocation0 [shape = 'u32[]', space=smem, size = 0x4, offset = 0x4, fixed_abs, tag = 'smem constant byte address 0x4 - core index']
  #allocation1 [shape = 'u32[144,128]{1,0:T(1,128)}', space=vmem, size = 0x12000, scoped, tag = 'internal scratch']
  %s0 = inlined_call_operand.vmem [shape: f32[2,32,128], index: 0, kind: input, shape index: {}]
  %s1 = inlined_call_operand.vmem [shape: f32[32,32], index: 1, kind: input, shape index: {}]
  %s2 = inlined_call_operand.vmem [shape: f32[32,128], index: 2, kind: input, shape index: {}]
  %s3 = inlined_call_operand.vmem [shape: f32[32,32], index: 3, kind: input, shape index: {}]
  %s4 = inlined_call_operand.vmem [shape: f32[2,1,128], index: 4, kind: input, shape index: {}]
  %s5 = inlined_call_operand.vmem [shape: f32[2,1,128], index: 5, kind: input, shape index: {}]
  %s6 = inlined_call_operand.vmem [shape: f32[2,4,128,32], index: 6, kind: input, shape index: {}]
  %s7 = inlined_call_operand.vmem [shape: f32[2,4,128,32], index: 7, kind: input, shape index: {}]
  %s8 = inlined_call_operand.vmem [shape: f32[2,4,128,32], index: 8, kind: input, shape index: {}]
  %s9 = inlined_call_operand.vmem [shape: f32[2,4,32,128], index: 9, kind: input, shape index: {}]
  %s10 = inlined_call_operand.vmem [shape: f32[2,1,128], index: 10, kind: input, shape index: {}]
  %s11 = inlined_call_operand.vmem [shape: f32[2,1,128], index: 11, kind: input, shape index: {}]
  %s12 = inlined_call_operand.vmem [shape: f32[2,1,128], index: 12, kind: input, shape index: {}]
  %s13 = inlined_call_operand.vmem [shape: f32[2,128,512], index: 13, kind: input, shape index: {}]
  %s14 = inlined_call_operand.vmem [shape: f32[2,1,512], index: 14, kind: input, shape index: {}]
  %s15 = inlined_call_operand.vmem [shape: f32[2,512,128], index: 15, kind: input, shape index: {}]
  %s16 = inlined_call_operand.vmem [shape: f32[2,1,128], index: 16, kind: input, shape index: {}]
  %s17 = inlined_call_operand.hbm [shape: f32[2,32,128], index: 17, kind: output, shape index: {}]
  %s18 = sld [smem:[#allocation0]]
  $region101: #{attention_stack_pallas.1} parent=0
    _
  %s20 = ssub.s32 1, %s18
  %s21 = scalar_select 0, %s20, %s18
  $region1: #{attention_stack_pallas.1} parent=0
    #allocation2 [shape = 'u8[32768]{0}', space=vmem, size = 0x8000, scoped, tag = 'output window, operand 0']
    #allocation3 [shape = 's32[2]{0}', space=sflag, size = 0x8, scoped, tag = 'scoped memory for attention_stack_pallas.1']
    %22 = vsyncpa [#allocation3], 0
    %s23 = scalar_lea.sflag [#allocation3], 1
    %24 = vsyncpa %s23, 0
    loop: start=0, step=1, limit=4
    $region2: #{attention_stack_pallas.1} parent=1 // loop_pre_header
      _
    $region3: #{attention_stack_pallas.1} parent=1 // loop_header
      %s26 = sphi 0, %s30
      %p27 = scmp.ge.s32.totalorder %s26, 4
      %s36 = sphi 0, %s38
      %s39 = sphi 0, %s36
      %s40 = sphi 0, %s39
      %s56 = sphi 0, %s40
      %s60 = sphi 0, %s60
      %s62 = sphi 0, %s60
      %s63 = sphi 0, %s62
      %s77 = sphi 0, %s63
      %s81 = sphi 0, %s81
      %s83 = sphi 0, %s81
      %s84 = sphi 0, %s83
      %s98 = sphi 0, %s84
      %s102 = sphi 0, %s102
      %s104 = sphi 0, %s102
      %s105 = sphi 0, %s104
      %s119 = sphi 0, %s105
      %s123 = sphi 0, %s123
      %s125 = sphi 0, %s123
      %s126 = sphi 0, %s125
      %s140 = sphi 0, %s126
      %s144 = sphi 0, %s144
      %s146 = sphi 0, %s144
      %s147 = sphi 0, %s146
      %s161 = sphi 0, %s147
      %s165 = sphi 0, %s165
      %s167 = sphi 0, %s165
      %s168 = sphi 0, %s167
      %s182 = sphi 0, %s168
      %s186 = sphi 0, %s186
      %s188 = sphi 0, %s186
      %s189 = sphi 0, %s188
      %s203 = sphi 0, %s189
      %s207 = sphi 0, %s207
      %s209 = sphi 0, %s207
      %s210 = sphi 0, %s209
      %s224 = sphi 0, %s210
      %s228 = sphi 0, %s228
      %s230 = sphi 0, %s228
      %s231 = sphi 0, %s230
      %s245 = sphi 0, %s231
      %s249 = sphi 0, %s249
      %s251 = sphi 0, %s249
      %s252 = sphi 0, %s251
      %s266 = sphi 0, %s252
      %s270 = sphi 0, %s270
      %s272 = sphi 0, %s270
      %s273 = sphi 0, %s272
      %s287 = sphi 0, %s273
      %s291 = sphi 0, %s291
      %s293 = sphi 0, %s291
      %s294 = sphi 0, %s293
      %s308 = sphi 0, %s294
      %s312 = sphi 0, %s312
      %s314 = sphi 0, %s312
      %s315 = sphi 0, %s314
      %s329 = sphi 0, %s315
      %s333 = sphi 0, %s333
      %s335 = sphi 0, %s333
      %s336 = sphi 0, %s335
      %s350 = sphi 0, %s336
      %s354 = sphi 0, %s354
      %s356 = sphi 0, %s354
      %s357 = sphi 0, %s356
      %s371 = sphi 0, %s357
      %s375 = sphi 0, %s375
      %s377 = sphi 0, %s375
      %s378 = sphi 0, %s377
      %s392 = sphi 0, %s378
      %s398 = sphi 0, %s400
      %s401 = sphi 0, %s398
      %s402 = sphi 0, %s401
      %s418 = sphi 0, %s402
    $region4: #{attention_stack_pallas.1} parent=1 // loop_header_branch
      %29 = sbr.rel (%p27) target = $region8
    $region5: #{attention_stack_pallas.1} parent=1 // loop_body
      %s31 = ssub.s32 %s26, 1
      %s32 = ssub.s32 %s26, 2
      %s33 = sadd.s32 %s26, 1
      %s34 = ssub.s32 %s26, %s33
      %p35 = scmp.eq.s32.totalorder %s34, 0
      %s37 = sadd.s32 %s36, 1
      %s38 = scalar_select %p35, %s36, %s37
      %p41 = pneg %p35
      %p42 = scmp.eq.s32.totalorder %s26, 1
      %p43 = por %p41, %p42
      %p44 = scmp.ne.s32.totalorder %s36, %s39
      %p45 = scmp.eq.s32.totalorder %s26, 0
      %p46 = por %p44, %p45
      %p47 = scmp.ne.s32.totalorder %s36, %s39
      %p48 = scmp.eq.s32.totalorder %s31, 1
      %p49 = por %p47, %p48
      %p50 = scmp.ne.s32.totalorder %s39, %s40
      %p51 = scmp.eq.s32.totalorder %s31, 0
      %p52 = por %p50, %p51
      %p53 = scmp.ne.s32.totalorder %s39, %s40
      %p54 = scmp.eq.s32.totalorder %s32, 1
      %p55 = por %p53, %p54
      %p57 = scmp.ne.s32.totalorder %s40, %s56
      %p58 = scmp.eq.s32.totalorder %s32, 0
      %p59 = por %p57, %p58
      %s61 = sadd.s32 %s60, 1
      %p64 = scmp.eq.s32.totalorder %s26, 1
      %p65 = scmp.ne.s32.totalorder %s60, %s62
      %p66 = scmp.eq.s32.totalorder %s26, 0
      %p67 = por %p65, %p66
      %p68 = scmp.ne.s32.totalorder %s60, %s62
      %p69 = scmp.eq.s32.totalorder %s31, 1
      %p70 = por %p68, %p69
      %p71 = scmp.ne.s32.totalorder %s62, %s63
      %p72 = scmp.eq.s32.totalorder %s31, 0
      %p73 = por %p71, %p72
      %p74 = scmp.ne.s32.totalorder %s62, %s63
      %p75 = scmp.eq.s32.totalorder %s32, 1
      %p76 = por %p74, %p75
      %p78 = scmp.ne.s32.totalorder %s63, %s77
      %p79 = scmp.eq.s32.totalorder %s32, 0
      %p80 = por %p78, %p79
      %s82 = sadd.s32 %s81, 1
      %p85 = scmp.eq.s32.totalorder %s26, 1
      %p86 = scmp.ne.s32.totalorder %s81, %s83
      %p87 = scmp.eq.s32.totalorder %s26, 0
      %p88 = por %p86, %p87
      %p89 = scmp.ne.s32.totalorder %s81, %s83
      %p90 = scmp.eq.s32.totalorder %s31, 1
      %p91 = por %p89, %p90
      %p92 = scmp.ne.s32.totalorder %s83, %s84
      %p93 = scmp.eq.s32.totalorder %s31, 0
      %p94 = por %p92, %p93
      %p95 = scmp.ne.s32.totalorder %s83, %s84
      %p96 = scmp.eq.s32.totalorder %s32, 1
      %p97 = por %p95, %p96
      %p99 = scmp.ne.s32.totalorder %s84, %s98
      %p100 = scmp.eq.s32.totalorder %s32, 0
      %p101 = por %p99, %p100
      %s103 = sadd.s32 %s102, 1
      %p106 = scmp.eq.s32.totalorder %s26, 1
      %p107 = scmp.ne.s32.totalorder %s102, %s104
      %p108 = scmp.eq.s32.totalorder %s26, 0
      %p109 = por %p107, %p108
      %p110 = scmp.ne.s32.totalorder %s102, %s104
      %p111 = scmp.eq.s32.totalorder %s31, 1
      %p112 = por %p110, %p111
      %p113 = scmp.ne.s32.totalorder %s104, %s105
      %p114 = scmp.eq.s32.totalorder %s31, 0
      %p115 = por %p113, %p114
      %p116 = scmp.ne.s32.totalorder %s104, %s105
      %p117 = scmp.eq.s32.totalorder %s32, 1
      %p118 = por %p116, %p117
      %p120 = scmp.ne.s32.totalorder %s105, %s119
      %p121 = scmp.eq.s32.totalorder %s32, 0
      %p122 = por %p120, %p121
      %s124 = sadd.s32 %s123, 1
      %p127 = scmp.eq.s32.totalorder %s26, 1
      %p128 = scmp.ne.s32.totalorder %s123, %s125
      %p129 = scmp.eq.s32.totalorder %s26, 0
      %p130 = por %p128, %p129
      %p131 = scmp.ne.s32.totalorder %s123, %s125
      %p132 = scmp.eq.s32.totalorder %s31, 1
      %p133 = por %p131, %p132
      %p134 = scmp.ne.s32.totalorder %s125, %s126
      %p135 = scmp.eq.s32.totalorder %s31, 0
      %p136 = por %p134, %p135
      %p137 = scmp.ne.s32.totalorder %s125, %s126
      %p138 = scmp.eq.s32.totalorder %s32, 1
      %p139 = por %p137, %p138
      %p141 = scmp.ne.s32.totalorder %s126, %s140
      %p142 = scmp.eq.s32.totalorder %s32, 0
      %p143 = por %p141, %p142
      %s145 = sadd.s32 %s144, 1
      %p148 = scmp.eq.s32.totalorder %s26, 1
      %p149 = scmp.ne.s32.totalorder %s144, %s146
      %p150 = scmp.eq.s32.totalorder %s26, 0
      %p151 = por %p149, %p150
      %p152 = scmp.ne.s32.totalorder %s144, %s146
      %p153 = scmp.eq.s32.totalorder %s31, 1
      %p154 = por %p152, %p153
      %p155 = scmp.ne.s32.totalorder %s146, %s147
      %p156 = scmp.eq.s32.totalorder %s31, 0
      %p157 = por %p155, %p156
      %p158 = scmp.ne.s32.totalorder %s146, %s147
      %p159 = scmp.eq.s32.totalorder %s32, 1
      %p160 = por %p158, %p159
      %p162 = scmp.ne.s32.totalorder %s147, %s161
      %p163 = scmp.eq.s32.totalorder %s32, 0
      %p164 = por %p162, %p163
      %s166 = sadd.s32 %s165, 1
      %p169 = scmp.eq.s32.totalorder %s26, 1
      %p170 = scmp.ne.s32.totalorder %s165, %s167
      %p171 = scmp.eq.s32.totalorder %s26, 0
      %p172 = por %p170, %p171
      %p173 = scmp.ne.s32.totalorder %s165, %s167
      %p174 = scmp.eq.s32.totalorder %s31, 1
      %p175 = por %p173, %p174
      %p176 = scmp.ne.s32.totalorder %s167, %s168
      %p177 = scmp.eq.s32.totalorder %s31, 0
      %p178 = por %p176, %p177
      %p179 = scmp.ne.s32.totalorder %s167, %s168
      %p180 = scmp.eq.s32.totalorder %s32, 1
      %p181 = por %p179, %p180
      %p183 = scmp.ne.s32.totalorder %s168, %s182
      %p184 = scmp.eq.s32.totalorder %s32, 0
      %p185 = por %p183, %p184
      %s187 = sadd.s32 %s186, 1
      %p190 = scmp.eq.s32.totalorder %s26, 1
      %p191 = scmp.ne.s32.totalorder %s186, %s188
      %p192 = scmp.eq.s32.totalorder %s26, 0
      %p193 = por %p191, %p192
      %p194 = scmp.ne.s32.totalorder %s186, %s188
      %p195 = scmp.eq.s32.totalorder %s31, 1
      %p196 = por %p194, %p195
      %p197 = scmp.ne.s32.totalorder %s188, %s189
      %p198 = scmp.eq.s32.totalorder %s31, 0
      %p199 = por %p197, %p198
      %p200 = scmp.ne.s32.totalorder %s188, %s189
      %p201 = scmp.eq.s32.totalorder %s32, 1
      %p202 = por %p200, %p201
      %p204 = scmp.ne.s32.totalorder %s189, %s203
      %p205 = scmp.eq.s32.totalorder %s32, 0
      %p206 = por %p204, %p205
      %s208 = sadd.s32 %s207, 1
      %p211 = scmp.eq.s32.totalorder %s26, 1
      %p212 = scmp.ne.s32.totalorder %s207, %s209
      %p213 = scmp.eq.s32.totalorder %s26, 0
      %p214 = por %p212, %p213
      %p215 = scmp.ne.s32.totalorder %s207, %s209
      %p216 = scmp.eq.s32.totalorder %s31, 1
      %p217 = por %p215, %p216
      %p218 = scmp.ne.s32.totalorder %s209, %s210
      %p219 = scmp.eq.s32.totalorder %s31, 0
      %p220 = por %p218, %p219
      %p221 = scmp.ne.s32.totalorder %s209, %s210
      %p222 = scmp.eq.s32.totalorder %s32, 1
      %p223 = por %p221, %p222
      %p225 = scmp.ne.s32.totalorder %s210, %s224
      %p226 = scmp.eq.s32.totalorder %s32, 0
      %p227 = por %p225, %p226
      %s229 = sadd.s32 %s228, 1
      %p232 = scmp.eq.s32.totalorder %s26, 1
      %p233 = scmp.ne.s32.totalorder %s228, %s230
      %p234 = scmp.eq.s32.totalorder %s26, 0
      %p235 = por %p233, %p234
      %p236 = scmp.ne.s32.totalorder %s228, %s230
      %p237 = scmp.eq.s32.totalorder %s31, 1
      %p238 = por %p236, %p237
      %p239 = scmp.ne.s32.totalorder %s230, %s231
      %p240 = scmp.eq.s32.totalorder %s31, 0
      %p241 = por %p239, %p240
      %p242 = scmp.ne.s32.totalorder %s230, %s231
      %p243 = scmp.eq.s32.totalorder %s32, 1
      %p244 = por %p242, %p243
      %p246 = scmp.ne.s32.totalorder %s231, %s245
      %p247 = scmp.eq.s32.totalorder %s32, 0
      %p248 = por %p246, %p247
      %s250 = sadd.s32 %s249, 1
      %p253 = scmp.eq.s32.totalorder %s26, 1
      %p254 = scmp.ne.s32.totalorder %s249, %s251
      %p255 = scmp.eq.s32.totalorder %s26, 0
      %p256 = por %p254, %p255
      %p257 = scmp.ne.s32.totalorder %s249, %s251
      %p258 = scmp.eq.s32.totalorder %s31, 1
      %p259 = por %p257, %p258
      %p260 = scmp.ne.s32.totalorder %s251, %s252
      %p261 = scmp.eq.s32.totalorder %s31, 0
      %p262 = por %p260, %p261
      %p263 = scmp.ne.s32.totalorder %s251, %s252
      %p264 = scmp.eq.s32.totalorder %s32, 1
      %p265 = por %p263, %p264
      %p267 = scmp.ne.s32.totalorder %s252, %s266
      %p268 = scmp.eq.s32.totalorder %s32, 0
      %p269 = por %p267, %p268
      %s271 = sadd.s32 %s270, 1
      %p274 = scmp.eq.s32.totalorder %s26, 1
      %p275 = scmp.ne.s32.totalorder %s270, %s272
      %p276 = scmp.eq.s32.totalorder %s26, 0
      %p277 = por %p275, %p276
      %p278 = scmp.ne.s32.totalorder %s270, %s272
      %p279 = scmp.eq.s32.totalorder %s31, 1
      %p280 = por %p278, %p279
      %p281 = scmp.ne.s32.totalorder %s272, %s273
      %p282 = scmp.eq.s32.totalorder %s31, 0
      %p283 = por %p281, %p282
      %p284 = scmp.ne.s32.totalorder %s272, %s273
      %p285 = scmp.eq.s32.totalorder %s32, 1
      %p286 = por %p284, %p285
      %p288 = scmp.ne.s32.totalorder %s273, %s287
      %p289 = scmp.eq.s32.totalorder %s32, 0
      %p290 = por %p288, %p289
      %s292 = sadd.s32 %s291, 1
      %p295 = scmp.eq.s32.totalorder %s26, 1
      %p296 = scmp.ne.s32.totalorder %s291, %s293
      %p297 = scmp.eq.s32.totalorder %s26, 0
      %p298 = por %p296, %p297
      %p299 = scmp.ne.s32.totalorder %s291, %s293
      %p300 = scmp.eq.s32.totalorder %s31, 1
      %p301 = por %p299, %p300
      %p302 = scmp.ne.s32.totalorder %s293, %s294
      %p303 = scmp.eq.s32.totalorder %s31, 0
      %p304 = por %p302, %p303
      %p305 = scmp.ne.s32.totalorder %s293, %s294
      %p306 = scmp.eq.s32.totalorder %s32, 1
      %p307 = por %p305, %p306
      %p309 = scmp.ne.s32.totalorder %s294, %s308
      %p310 = scmp.eq.s32.totalorder %s32, 0
      %p311 = por %p309, %p310
      %s313 = sadd.s32 %s312, 1
      %p316 = scmp.eq.s32.totalorder %s26, 1
      %p317 = scmp.ne.s32.totalorder %s312, %s314
      %p318 = scmp.eq.s32.totalorder %s26, 0
      %p319 = por %p317, %p318
      %p320 = scmp.ne.s32.totalorder %s312, %s314
      %p321 = scmp.eq.s32.totalorder %s31, 1
      %p322 = por %p320, %p321
      %p323 = scmp.ne.s32.totalorder %s314, %s315
      %p324 = scmp.eq.s32.totalorder %s31, 0
      %p325 = por %p323, %p324
      %p326 = scmp.ne.s32.totalorder %s314, %s315
      %p327 = scmp.eq.s32.totalorder %s32, 1
      %p328 = por %p326, %p327
      %p330 = scmp.ne.s32.totalorder %s315, %s329
      %p331 = scmp.eq.s32.totalorder %s32, 0
      %p332 = por %p330, %p331
      %s334 = sadd.s32 %s333, 1
      %p337 = scmp.eq.s32.totalorder %s26, 1
      %p338 = scmp.ne.s32.totalorder %s333, %s335
      %p339 = scmp.eq.s32.totalorder %s26, 0
      %p340 = por %p338, %p339
      %p341 = scmp.ne.s32.totalorder %s333, %s335
      %p342 = scmp.eq.s32.totalorder %s31, 1
      %p343 = por %p341, %p342
      %p344 = scmp.ne.s32.totalorder %s335, %s336
      %p345 = scmp.eq.s32.totalorder %s31, 0
      %p346 = por %p344, %p345
      %p347 = scmp.ne.s32.totalorder %s335, %s336
      %p348 = scmp.eq.s32.totalorder %s32, 1
      %p349 = por %p347, %p348
      %p351 = scmp.ne.s32.totalorder %s336, %s350
      %p352 = scmp.eq.s32.totalorder %s32, 0
      %p353 = por %p351, %p352
      %s355 = sadd.s32 %s354, 1
      %p358 = scmp.eq.s32.totalorder %s26, 1
      %p359 = scmp.ne.s32.totalorder %s354, %s356
      %p360 = scmp.eq.s32.totalorder %s26, 0
      %p361 = por %p359, %p360
      %p362 = scmp.ne.s32.totalorder %s354, %s356
      %p363 = scmp.eq.s32.totalorder %s31, 1
      %p364 = por %p362, %p363
      %p365 = scmp.ne.s32.totalorder %s356, %s357
      %p366 = scmp.eq.s32.totalorder %s31, 0
      %p367 = por %p365, %p366
      %p368 = scmp.ne.s32.totalorder %s356, %s357
      %p369 = scmp.eq.s32.totalorder %s32, 1
      %p370 = por %p368, %p369
      %p372 = scmp.ne.s32.totalorder %s357, %s371
      %p373 = scmp.eq.s32.totalorder %s32, 0
      %p374 = por %p372, %p373
      %s376 = sadd.s32 %s375, 1
      %p379 = scmp.eq.s32.totalorder %s26, 1
      %p380 = scmp.ne.s32.totalorder %s375, %s377
      %p381 = scmp.eq.s32.totalorder %s26, 0
      %p382 = por %p380, %p381
      %p383 = scmp.ne.s32.totalorder %s375, %s377
      %p384 = scmp.eq.s32.totalorder %s31, 1
      %p385 = por %p383, %p384
      %p386 = scmp.ne.s32.totalorder %s377, %s378
      %p387 = scmp.eq.s32.totalorder %s31, 0
      %p388 = por %p386, %p387
      %p389 = scmp.ne.s32.totalorder %s377, %s378
      %p390 = scmp.eq.s32.totalorder %s32, 1
      %p391 = por %p389, %p390
      %p393 = scmp.ne.s32.totalorder %s378, %s392
      %p394 = scmp.eq.s32.totalorder %s32, 0
      %p395 = por %p393, %p394
      %s396 = ssub.s32 %s26, %s33
      %p397 = scmp.eq.s32.totalorder %s396, 0
      %s399 = sadd.s32 %s398, 1
      %s400 = scalar_select %p397, %s398, %s399
      %p403 = pneg %p397
      %p404 = scmp.eq.s32.totalorder %s26, 1
      %p405 = por %p403, %p404
      %p406 = scmp.ne.s32.totalorder %s398, %s401
      %p407 = scmp.eq.s32.totalorder %s26, 0
      %p408 = por %p406, %p407
      %p409 = scmp.ne.s32.totalorder %s398, %s401
      %p410 = scmp.eq.s32.totalorder %s31, 1
      %p411 = por %p409, %p410
      %p412 = scmp.ne.s32.totalorder %s401, %s402
      %p413 = scmp.eq.s32.totalorder %s31, 0
      %p414 = por %p412, %p413
      %p415 = scmp.ne.s32.totalorder %s401, %s402
      %p416 = scmp.eq.s32.totalorder %s32, 1
      %p417 = por %p415, %p416
      %p419 = scmp.ne.s32.totalorder %s402, %s418
      %p420 = scmp.eq.s32.totalorder %s32, 0
      %p421 = por %p419, %p420
      %p422 = scmp.le.s32.totalorder 1, %s26
      %p423 = scmp.lt.s32.totalorder %s26, 3
      %p424 = pnand %p422, %p423
      %p425 = pneg %p424
      // Predicated region
      $region9: #{attention_stack_pallas.1} parent=5 // pred_check
        _
      $region10: #{attention_stack_pallas.1} parent=5 // pred_check_branch
        %427 = sbr.rel (%p424) target = $region12
      $region11: #{attention_stack_pallas.1} parent=5 // pred_region
        %s428 = ssub.s32 %s26, 1
        // Predicated region
        $region13: #{attention_stack_pallas.1} parent=11 // pred_check
          %p429 = pneg %p73
        $region14: #{attention_stack_pallas.1} parent=11 // pred_check_branch
          %431 = sbr.rel (%p429) target = $region16
        $region15: #{attention_stack_pallas.1} parent=11 // pred_region
          _
        $region16: #{attention_stack_pallas.1} parent=11 // pred_fallthru
          _
        // Predicated region
        $region17: #{attention_stack_pallas.1} parent=11 // pred_check
          %p432 = pneg %p94
        $region18: #{attention_stack_pallas.1} parent=11 // pred_check_branch
          %434 = sbr.rel (%p432) target = $region20
        $region19: #{attention_stack_pallas.1} parent=11 // pred_region
          _
        $region20: #{attention_stack_pallas.1} parent=11 // pred_fallthru
          _
        // Predicated region
        $region21: #{attention_stack_pallas.1} parent=11 // pred_check
          %p435 = pneg %p115
        $region22: #{attention_stack_pallas.1} parent=11 // pred_check_branch
          %437 = sbr.rel (%p435) target = $region24
        $region23: #{attention_stack_pallas.1} parent=11 // pred_region
          _
        $region24: #{attention_stack_pallas.1} parent=11 // pred_fallthru
          _
        // Predicated region
        $region25: #{attention_stack_pallas.1} parent=11 // pred_check
          %p438 = pneg %p136
        $region26: #{attention_stack_pallas.1} parent=11 // pred_check_branch
          %440 = sbr.rel (%p438) target = $region28
        $region27: #{attention_stack_pallas.1} parent=11 // pred_region
          _
        $region28: #{attention_stack_pallas.1} parent=11 // pred_fallthru
          _
        // Predicated region
        $region29: #{attention_stack_pallas.1} parent=11 // pred_check
          %p441 = pneg %p157
        $region30: #{attention_stack_pallas.1} parent=11 // pred_check_branch
          %443 = sbr.rel (%p441) target = $region32
        $region31: #{attention_stack_pallas.1} parent=11 // pred_region
          _
        $region32: #{attention_stack_pallas.1} parent=11 // pred_fallthru
          _
        // Predicated region
        $region33: #{attention_stack_pallas.1} parent=11 // pred_check
          %p444 = pneg %p178
        $region34: #{attention_stack_pallas.1} parent=11 // pred_check_branch
          %446 = sbr.rel (%p444) target = $region36
        $region35: #{attention_stack_pallas.1} parent=11 // pred_region
          _
        $region36: #{attention_stack_pallas.1} parent=11 // pred_fallthru
          _
        // Predicated region
        $region37: #{attention_stack_pallas.1} parent=11 // pred_check
          %p447 = pneg %p199
        $region38: #{attention_stack_pallas.1} parent=11 // pred_check_branch
          %449 = sbr.rel (%p447) target = $region40
        $region39: #{attention_stack_pallas.1} parent=11 // pred_region
          _
        $region40: #{attention_stack_pallas.1} parent=11 // pred_fallthru
          _
        // Predicated region
        $region41: #{attention_stack_pallas.1} parent=11 // pred_check
          %p450 = pneg %p220
        $region42: #{attention_stack_pallas.1} parent=11 // pred_check_branch
          %452 = sbr.rel (%p450) target = $region44
        $region43: #{attention_stack_pallas.1} parent=11 // pred_region
          _
        $region44: #{attention_stack_pallas.1} parent=11 // pred_fallthru
          _
        // Predicated region
        $region45: #{attention_stack_pallas.1} parent=11 // pred_check
          %p453 = pneg %p241
        $region46: #{attention_stack_pallas.1} parent=11 // pred_check_branch
          %455 = sbr.rel (%p453) target = $region48
        $region47: #{attention_stack_pallas.1} parent=11 // pred_region
          _
        $region48: #{attention_stack_pallas.1} parent=11 // pred_fallthru
          _
        // Predicated region
        $region49: #{attention_stack_pallas.1} parent=11 // pred_check
          %p456 = pneg %p262
        $region50: #{attention_stack_pallas.1} parent=11 // pred_check_branch
          %458 = sbr.rel (%p456) target = $region52
        $region51: #{attention_stack_pallas.1} parent=11 // pred_region
          _
        $region52: #{attention_stack_pallas.1} parent=11 // pred_fallthru
          _
        // Predicated region
        $region53: #{attention_stack_pallas.1} parent=11 // pred_check
          %p459 = pneg %p283
        $region54: #{attention_stack_pallas.1} parent=11 // pred_check_branch
          %461 = sbr.rel (%p459) target = $region56
        $region55: #{attention_stack_pallas.1} parent=11 // pred_region
          _
        $region56: #{attention_stack_pallas.1} parent=11 // pred_fallthru
          _
        // Predicated region
        $region57: #{attention_stack_pallas.1} parent=11 // pred_check
          %p462 = pneg %p304
        $region58: #{attention_stack_pallas.1} parent=11 // pred_check_branch
          %464 = sbr.rel (%p462) target = $region60
        $region59: #{attention_stack_pallas.1} parent=11 // pred_region
          _
        $region60: #{attention_stack_pallas.1} parent=11 // pred_fallthru
          _
        // Predicated region
        $region61: #{attention_stack_pallas.1} parent=11 // pred_check
          %p465 = pneg %p325
        $region62: #{attention_stack_pallas.1} parent=11 // pred_check_branch
          %467 = sbr.rel (%p465) target = $region64
        $region63: #{attention_stack_pallas.1} parent=11 // pred_region
          _
        $region64: #{attention_stack_pallas.1} parent=11 // pred_fallthru
          _
        // Predicated region
        $region65: #{attention_stack_pallas.1} parent=11 // pred_check
          %p468 = pneg %p346
        $region66: #{attention_stack_pallas.1} parent=11 // pred_check_branch
          %470 = sbr.rel (%p468) target = $region68
        $region67: #{attention_stack_pallas.1} parent=11 // pred_region
          _
        $region68: #{attention_stack_pallas.1} parent=11 // pred_fallthru
          _
        // Predicated region
        $region69: #{attention_stack_pallas.1} parent=11 // pred_check
          %p471 = pneg %p367
        $region70: #{attention_stack_pallas.1} parent=11 // pred_check_branch
          %473 = sbr.rel (%p471) target = $region72
        $region71: #{attention_stack_pallas.1} parent=11 // pred_region
          _
        $region72: #{attention_stack_pallas.1} parent=11 // pred_fallthru
          _
        // Predicated region
        $region73: #{attention_stack_pallas.1} parent=11 // pred_check
          %p474 = pneg %p388
        $region74: #{attention_stack_pallas.1} parent=11 // pred_check_branch
          %476 = sbr.rel (%p474) target = $region76
        $region75: #{attention_stack_pallas.1} parent=11 // pred_region
          _
        $region76: #{attention_stack_pallas.1} parent=11 // pred_fallthru
          _
      $region12: #{attention_stack_pallas.1} parent=5 // pred_fallthru
        _
      %p477 = scmp.lt.s32.totalorder %s26, 2
      // Predicated region
      $region77: #{attention_stack_pallas.1} parent=5 // pred_check
        %p478 = pneg %p477
      $region78: #{attention_stack_pallas.1} parent=5 // pred_check_branch
        %480 = sbr.rel (%p478) target = $region80
      $region79: #{attention_stack_pallas.1} parent=5 // pred_region
        // Predicated region
        $region81: #{attention_stack_pallas.1} parent=79 // pred_check
          %p481 = pneg %p46
        $region82: #{attention_stack_pallas.1} parent=79 // pred_check_branch
          %483 = sbr.rel (%p481) target = $region84
        $region83: #{attention_stack_pallas.1} parent=79 // pred_region
          %p484 = scmp.lt.s32.totalorder %s26, 1
          %s485 = scalar_select %p484, %s26, 1
          %s486 = smul.addr %s485, 4
          %s487 = smul.addr %s486, 8
          %s488 = scalar_lea.vmem %s0, %s487
        $region84: #{attention_stack_pallas.1} parent=79 // pred_fallthru
          _
      $region80: #{attention_stack_pallas.1} parent=5 // pred_fallthru
        _
      %p489 = scmp.le.s32.totalorder 1, %s26
      %p490 = scmp.lt.s32.totalorder %s26, 3
      %p491 = pnand %p489, %p490
      %p492 = pneg %p491
      // Predicated region
      $region85: #{attention_stack_pallas.1} parent=5 // pred_check
        _
      $region86: #{attention_stack_pallas.1} parent=5 // pred_check_branch
        %494 = sbr.rel (%p491) target = $region88
      $region87: #{attention_stack_pallas.1} parent=5 // pred_region
        %s495 = ssub.s32 %s26, 1
        %p496 = scmp.lt.s32.totalorder %s31, 1
        %s497 = scalar_select %p496, %s31, 1
        %s498 = smul.addr %s497, 4
        %s499 = smul.addr %s498, 8
        %s500 = scalar_lea.vmem %s0, %s499
        %p501 = pneg %p52
        %p502 = pneg %p49
        %p503 = pneg %p73
        %p504 = pneg %p70
        %p505 = pneg %p94
        %p506 = pneg %p91
        %p507 = pneg %p115
        %p508 = pneg %p112
        %p509 = pneg %p136
        %p510 = pneg %p133
        %p511 = pneg %p157
        %p512 = pneg %p154
        %p513 = pneg %p178
        %p514 = pneg %p175
        %p515 = pneg %p199
        %p516 = pneg %p196
        %p517 = pneg %p220
        %p518 = pneg %p217
        %p519 = pneg %p241
        %p520 = pneg %p238
        %p521 = pneg %p262
        %p522 = pneg %p259
        %p523 = pneg %p283
        %p524 = pneg %p280
        %p525 = pneg %p304
        %p526 = pneg %p301
        %p527 = pneg %p325
        %p528 = pneg %p322
        %p529 = pneg %p346
        %p530 = pneg %p343
        %p531 = pneg %p367
        %p532 = pneg %p364
        %p533 = pneg %p388
        %p534 = pneg %p385
        %p535 = pneg %p414
        %p536 = pneg %p411
        %s537 = sand.u32 %s401, 1
        %s538 = scalar_lea.sflag [#allocation3], %s537
        %s539 = sand.u32 %s401, 1
        %s540 = smul.addr %s539, 32
        %s541 = scalar_lea.vmem [#allocation2], %s540
        %p542 = scmp.lt.s32.totalorder %s31, 1
        %s543 = scalar_select %p542, %s31, 1
        %s544 = smul.addr %s543, 4
        %s545 = smul.addr %s544, 8
        %s546 = scalar_lea.vmem %s0, %s545
        %v547 = vld [vmem:[%s1] sm:$0xff]
        %v548 = vld [vmem:[%s1 + $0x8] sm:$0xff]
        %v549 = vld [vmem:[%s1 + $0x10] sm:$0xff]
        %v550 = vld [vmem:[%s1 + $0x18] sm:$0xff]
        %v551 = vld [vmem:[%s546] sm:$0xff]
        %v552 = vld [vmem:[%s546 + $0x8] sm:$0xff]
        %v553 = vld [vmem:[%s546 + $0x10] sm:$0xff]
        %v554 = vld [vmem:[%s546 + $0x18] sm:$0xff]
        %v555 = vld [vmem:[%s2] sm:$0xff]
        %v556 = vld [vmem:[%s2 + $0x8] sm:$0xff]
        %v557 = vld [vmem:[%s2 + $0x10] sm:$0xff]
        %v558 = vld [vmem:[%s2 + $0x18] sm:$0xff]
        %vm559 = vcmask 261120
        %v561 = vsel %vm559, %v547, 0
        %v564 = vsel %vm559, %v548, 0
        %v567 = vsel %vm559, %v549, 0
        %v570 = vsel %vm559, %v550, 0
        %572 = vmatprep.subr.mxu0 0.0
        %573 = vmatpush1.msra.mxu0 %v551
        %574 = vmatprep.subr.mxu0 0.0
        %575 = vmatpush1.msra.mxu0 %v552
        %576 = vmatprep.subr.mxu0 0.0
        %577 = vmatpush1.msra.mxu0 %v553
        %578 = vmatprep.subr.mxu0 0.0
        %579 = vmatpush1.msra.mxu0 %v554
        %580 = vmatprep.subr.mxu0 0.0
        %581 = vmatpush1.msra.mxu0 0.0
        %582 = vmatprep.subr.mxu0 0.0
        %583 = vmatpush1.msra.mxu0 0.0
        %584 = vmatprep.subr.mxu0 0.0
        %585 = vmatpush1.msra.mxu0 0.0
        %586 = vmatprep.subr.mxu0 0.0
        %587 = vmatpush1.msra.mxu0 0.0
        %588 = vmatprep.subr.mxu0 0.0
        %589 = vmatpush1.msra.mxu0 0.0
        %590 = vmatprep.subr.mxu0 0.0
        %591 = vmatpush1.msra.mxu0 0.0
        %592 = vmatprep.subr.mxu0 0.0
        %593 = vmatpush1.msra.mxu0 0.0
        %594 = vmatprep.subr.mxu0 0.0
        %595 = vmatpush1.msra.mxu0 0.0
        %596 = vmatprep.subr.mxu0 0.0
        %597 = vmatpush1.msra.mxu0 0.0
        %598 = vmatprep.subr.mxu0 0.0
        %599 = vmatpush1.msra.mxu0 0.0
        %600 = vmatprep.subr.mxu0 0.0
        %601 = vmatpush1.msra.mxu0 0.0
        %602 = vmatprep.subr.mxu0 0.0
        %603 = vmatpush1.msra.mxu0 0.0
        %604 = vmatprep.subr.mxu0 0.0
        %605 = vmatpush1.msra.mxu0 0.0
        %606 = vmatprep.subr.mxu0 0.0
        %607 = vmatpush1.msra.mxu0 0.0
        %608 = vmatprep.subr.mxu0 0.0
        %609 = vmatpush1.msra.mxu0 0.0
        %610 = vmatprep.subr.mxu0 0.0
        %611 = vmatpush1.msra.mxu0 0.0
        %612 = vmatprep.subr.mxu0 0.0
        %613 = vmatpush1.msra.mxu0 0.0
        %614 = vmatprep.subr.mxu0 0.0
        %615 = vmatpush1.msra.mxu0 0.0
        %616 = vmatprep.subr.mxu0 0.0
        %617 = vmatpush1.msra.mxu0 0.0
        %618 = vmatprep.subr.mxu0 0.0
        %619 = vmatpush1.msra.mxu0 0.0
        %620 = vmatprep.subr.mxu0 0.0
        %621 = vmatpush1.msra.mxu0 0.0
        %622 = vmatprep.subr.mxu0 0.0
        %623 = vmatpush1.msra.mxu0 0.0
        %624 = vmatprep.subr.mxu0 0.0
        %625 = vmatpush1.msra.mxu0 0.0
        %626 = vmatprep.subr.mxu0 0.0
        %627 = vmatpush1.msra.mxu0 0.0
        %628 = vmatprep.subr.mxu0 0.0
        %629 = vmatpush1.msra.mxu0 0.0
        %630 = vmatprep.subr.mxu0 0.0
        %631 = vmatpush1.msra.mxu0 0.0
        %632 = vmatprep.subr.mxu0 0.0
        %633 = vmatpush1.msra.mxu0 0.0
        %634 = vmatprep.subr.mxu0 0.0
        %635 = vmatpush1.msra.mxu0 0.0
        %636 = vmatprep.mubr.f32.mxu0 0.0
        %637 = vmatmul.mubr.f32.gmra.mrb[0].mxu0 %v561
        %v638 = vpop.f32.mrb[0].mxu0
        %v639 = vadd.f32 %v555, %v638
        %v640 = vpop.f32.mrb[0].mxu0
        %641 = vmatprep.mubr.f32.mxu0 0.0
        %642 = vmatmul.mubr.f32.gmra.mrb[0].mxu0 %v564
        %v643 = vpop.f32.mrb[0].mxu0
        %v644 = vadd.f32 %v556, %v643
        %v645 = vpop.f32.mrb[0].mxu0
        %646 = vmatprep.mubr.f32.mxu0 0.0
        %647 = vmatmul.mubr.f32.gmra.mrb[0].mxu0 %v567
        %v648 = vpop.f32.mrb[0].mxu0
        %v649 = vadd.f32 %v557, %v648
        %v650 = vpop.f32.mrb[0].mxu0
        %651 = vmatprep.mubr.f32.mxu0 0.0
        %652 = vmatmul.mubr.f32.gmra.mrb[0].mxu0 %v570
        %v653 = vpop.f32.mrb[0].mxu0
        %v654 = vadd.f32 %v558, %v653
        %v655 = vpop.f32.mrb[0].mxu0
        %656 = vdwg.mxu0
        %v657 = vld [vmem:[%s3] sm:$0xff]
        %v658 = vld [vmem:[%s3 + $0x8] sm:$0xff]
        %v659 = vld [vmem:[%s3 + $0x10] sm:$0xff]
        %v660 = vld [vmem:[%s3 + $0x18] sm:$0xff]
        %v661 = vld [vmem:[%s4] sm:$0x1]
        %v662 = vld [vmem:[%s5] sm:$0x1]
        %663 = vadd.xlane.f32.xlu0 %v639
        %v664 = vpop.xlane.xlu0 %663
        %665 = vadd.xlane.f32.xlu0 %v644
        %v666 = vpop.xlane.xlu0 %665
        %667 = vadd.xlane.f32.xlu0 %v649
        %v668 = vpop.xlane.xlu0 %667
        %669 = vadd.xlane.f32.xlu0 %v654
        %v670 = vpop.xlane.xlu0 %669
        %v671 = vmul.f32 %v664, 0.010416667
        %v672 = vmul.f32 %v666, 0.010416667
        %v673 = vmul.f32 %v668, 0.010416667
        %v674 = vmul.f32 %v670, 0.010416667
        %v675 = vmul.f32 %v639, %v639
        %v676 = vmul.f32 %v644, %v644
        %v677 = vmul.f32 %v649, %v649
        %v678 = vmul.f32 %v654, %v654
        %679 = vadd.xlane.f32.xlu0 %v675
        %v680 = vpop.xlane.xlu0 %679
        %681 = vadd.xlane.f32.xlu0 %v676
        %v682 = vpop.xlane.xlu0 %681
        %683 = vadd.xlane.f32.xlu0 %v677
        %v684 = vpop.xlane.xlu0 %683
        %685 = vadd.xlane.f32.xlu0 %v678
        %v686 = vpop.xlane.xlu0 %685
        %v687 = vmul.f32 %v680, 0.010416667
        %v688 = vmul.f32 %v682, 0.010416667
        %v689 = vmul.f32 %v684, 0.010416667
        %v690 = vmul.f32 %v686, 0.010416667
        %v691 = vmul.f32 %v671, %v671
        %v692 = vmul.f32 %v672, %v672
        %v693 = vmul.f32 %v673, %v673
        %v694 = vmul.f32 %v674, %v674
        %v695 = vsub.f32 %v687, %v691
        %v696 = vsub.f32 %v688, %v692
        %v697 = vsub.f32 %v689, %v693
        %v698 = vsub.f32 %v690, %v694
        %v699 = vsub.f32 %v639, %v671
        %v700 = vsub.f32 %v644, %v672
        %v701 = vsub.f32 %v649, %v673
        %v702 = vsub.f32 %v654, %v674
        %v703 = vadd.f32 %v695, 1e-05
        %v704 = vadd.f32 %v696, 1e-05
        %v705 = vadd.f32 %v697, 1e-05
        %v706 = vadd.f32 %v698, 1e-05
        %v707 = vrsqrt.pop %v703
        %v708 = vrsqrt.pop %v704
        %v709 = vrsqrt.pop %v705
        %v710 = vrsqrt.pop %v706
        %v711 = vmul.f32 %v699, %v707
        %v712 = vmul.f32 %v700, %v708
        %v713 = vmul.f32 %v701, %v709
        %v714 = vmul.f32 %v702, %v710
        %v716 = vlaneseq
        %v717 = vshrl.u32 %v716, 7
        %v718 = vsub.s32 0, %v717
        %v719 = vrot.slane %v661, %v718
        %v721 = vmul.f32 %v711, %v719
        %v722 = vmul.f32 %v712, %v719
        %v723 = vmul.f32 %v713, %v719
        %v724 = vmul.f32 %v714, %v719
        %v726 = vlaneseq
        %v727 = vshrl.u32 %v726, 7
        %v728 = vsub.s32 0, %v727
        %v729 = vrot.slane %v662, %v728
        %v731 = vadd.f32 %v721, %v729
        %v732 = vadd.f32 %v722, %v729
        %v733 = vadd.f32 %v723, %v729
        %v734 = vadd.f32 %v724, %v729
        %v735 = vld [vmem:[%s6] sm:$0xff]
        %v736 = vld [vmem:[%s6 + $0x8] sm:$0xff]
        %v737 = vld [vmem:[%s6 + $0x10] sm:$0xff]
        %v738 = vld [vmem:[%s6 + $0x18] sm:$0xff]
        %v739 = vld [vmem:[%s6 + $0x20] sm:$0xff]
        %v740 = vld [vmem:[%s6 + $0x28] sm:$0xff]
        %v741 = vld [vmem:[%s6 + $0x30] sm:$0xff]
        %v742 = vld [vmem:[%s6 + $0x38] sm:$0xff]
        %v743 = vld [vmem:[%s6 + $0x40] sm:$0xff]
        %v744 = vld [vmem:[%s6 + $0x48] sm:$0xff]
        %v745 = vld [vmem:[%s6 + $0x50] sm:$0xff]
        %v746 = vld [vmem:[%s6 + $0x58] sm:$0xff]
        %v747 = vld [vmem:[%s6 + $0x60] sm:$0xff]
        %v748 = vld [vmem:[%s6 + $0x68] sm:$0xff]
        %v749 = vld [vmem:[%s6 + $0x70] sm:$0xff]
        %v750 = vld [vmem:[%s6 + $0x78] sm:$0xff]
        %v751 = vld [vmem:[%s6 + $0x80] sm:$0xff]
        %v752 = vld [vmem:[%s6 + $0x88] sm:$0xff]
        %v753 = vld [vmem:[%s6 + $0x90] sm:$0xff]
        %v754 = vld [vmem:[%s6 + $0x98] sm:$0xff]
        %v755 = vld [vmem:[%s6 + $0xa0] sm:$0xff]
        %v756 = vld [vmem:[%s6 + $0xa8] sm:$0xff]
        %v757 = vld [vmem:[%s6 + $0xb0] sm:$0xff]
        %v758 = vld [vmem:[%s6 + $0xb8] sm:$0xff]
        %v759 = vld [vmem:[%s6 + $0xc0] sm:$0xff]
        %v760 = vld [vmem:[%s6 + $0xc8] sm:$0xff]
        %v761 = vld [vmem:[%s6 + $0xd0] sm:$0xff]
        %v762 = vld [vmem:[%s6 + $0xd8] sm:$0xff]
        %v763 = vld [vmem:[%s6 + $0xe0] sm:$0xff]
        %v764 = vld [vmem:[%s6 + $0xe8] sm:$0xff]
        %v765 = vld [vmem:[%s6 + $0xf0] sm:$0xff]
        %v766 = vld [vmem:[%s6 + $0xf8] sm:$0xff]
        %v767 = vld [vmem:[%s6 + $0x100] sm:$0xff]
        %v768 = vld [vmem:[%s6 + $0x108] sm:$0xff]
        %v769 = vld [vmem:[%s6 + $0x110] sm:$0xff]
        %v770 = vld [vmem:[%s6 + $0x118] sm:$0xff]
        %v771 = vld [vmem:[%s6 + $0x120] sm:$0xff]
        %v772 = vld [vmem:[%s6 + $0x128] sm:$0xff]
        %v773 = vld [vmem:[%s6 + $0x130] sm:$0xff]
        %v774 = vld [vmem:[%s6 + $0x138] sm:$0xff]
        %v775 = vld [vmem:[%s6 + $0x140] sm:$0xff]
        %v776 = vld [vmem:[%s6 + $0x148] sm:$0xff]
        %v777 = vld [vmem:[%s6 + $0x150] sm:$0xff]
        %v778 = vld [vmem:[%s6 + $0x158] sm:$0xff]
        %v779 = vld [vmem:[%s6 + $0x160] sm:$0xff]
        %v780 = vld [vmem:[%s6 + $0x168] sm:$0xff]
        %v781 = vld [vmem:[%s6 + $0x170] sm:$0xff]
        %v782 = vld [vmem:[%s6 + $0x178] sm:$0xff]
        %v783 = vld [vmem:[%s6 + $0x180] sm:$0xff]
        %v784 = vld [vmem:[%s6 + $0x188] sm:$0xff]
        %v785 = vld [vmem:[%s6 + $0x190] sm:$0xff]
        %v786 = vld [vmem:[%s6 + $0x198] sm:$0xff]
        %v787 = vld [vmem:[%s6 + $0x1a0] sm:$0xff]
        %v788 = vld [vmem:[%s6 + $0x1a8] sm:$0xff]
        %v789 = vld [vmem:[%s6 + $0x1b0] sm:$0xff]
        %v790 = vld [vmem:[%s6 + $0x1b8] sm:$0xff]
        %v791 = vld [vmem:[%s6 + $0x1c0] sm:$0xff]
        %v792 = vld [vmem:[%s6 + $0x1c8] sm:$0xff]
        %v793 = vld [vmem:[%s6 + $0x1d0] sm:$0xff]
        %v794 = vld [vmem:[%s6 + $0x1d8] sm:$0xff]
        %v795 = vld [vmem:[%s6 + $0x1e0] sm:$0xff]
        %v796 = vld [vmem:[%s6 + $0x1e8] sm:$0xff]
        %v797 = vld [vmem:[%s6 + $0x1f0] sm:$0xff]
        %v798 = vld [vmem:[%s6 + $0x1f8] sm:$0xff]
        %799 = vmatprep.subr.mxu0 0.0
        %800 = vmatpush1.msra.mxu0 %v735
        %801 = vmatprep.subr.mxu0 0.0
        %802 = vmatpush1.msra.mxu0 %v736
        %803 = vmatprep.subr.mxu0 0.0
        %804 = vmatpush1.msra.mxu0 %v737
        %805 = vmatprep.subr.mxu0 0.0
        %806 = vmatpush1.msra.mxu0 %v738
        %807 = vmatprep.subr.mxu0 0.0
        %808 = vmatpush1.msra.mxu0 %v739
        %809 = vmatprep.subr.mxu0 0.0
        %810 = vmatpush1.msra.mxu0 %v740
        %811 = vmatprep.subr.mxu0 0.0
        %812 = vmatpush1.msra.mxu0 %v741
        %813 = vmatprep.subr.mxu0 0.0
        %814 = vmatpush1.msra.mxu0 %v742
        %815 = vmatprep.subr.mxu0 0.0
        %816 = vmatpush1.msra.mxu0 %v743
        %817 = vmatprep.subr.mxu0 0.0
        %818 = vmatpush1.msra.mxu0 %v744
        %819 = vmatprep.subr.mxu0 0.0
        %820 = vmatpush1.msra.mxu0 %v745
        %821 = vmatprep.subr.mxu0 0.0
        %822 = vmatpush1.msra.mxu0 %v746
        %823 = vmatprep.subr.mxu0 0.0
        %824 = vmatpush1.msra.mxu0 %v747
        %825 = vmatprep.subr.mxu0 0.0
        %826 = vmatpush1.msra.mxu0 %v748
        %827 = vmatprep.subr.mxu0 0.0
        %828 = vmatpush1.msra.mxu0 %v749
        %829 = vmatprep.subr.mxu0 0.0
        %830 = vmatpush1.msra.mxu0 %v750
        %831 = vmatprep.subr.mxu0 0.0
        %832 = vmatpush1.msra.mxu0 0.0
        %833 = vmatprep.subr.mxu0 0.0
        %834 = vmatpush1.msra.mxu0 0.0
        %835 = vmatprep.subr.mxu0 0.0
        %836 = vmatpush1.msra.mxu0 0.0
        %837 = vmatprep.subr.mxu0 0.0
        %838 = vmatpush1.msra.mxu0 0.0
        %839 = vmatprep.subr.mxu0 0.0
        %840 = vmatpush1.msra.mxu0 0.0
        %841 = vmatprep.subr.mxu0 0.0
        %842 = vmatpush1.msra.mxu0 0.0
        %843 = vmatprep.subr.mxu0 0.0
        %844 = vmatpush1.msra.mxu0 0.0
        %845 = vmatprep.subr.mxu0 0.0
        %846 = vmatpush1.msra.mxu0 0.0
        %847 = vmatprep.subr.mxu0 0.0
        %848 = vmatpush1.msra.mxu0 0.0
        %849 = vmatprep.subr.mxu0 0.0
        %850 = vmatpush1.msra.mxu0 0.0
        %851 = vmatprep.subr.mxu0 0.0
        %852 = vmatpush1.msra.mxu0 0.0
        %853 = vmatprep.subr.mxu0 0.0
        %854 = vmatpush1.msra.mxu0 0.0
        %855 = vmatprep.subr.mxu0 0.0
        %856 = vmatpush1.msra.mxu0 0.0
        %857 = vmatprep.subr.mxu0 0.0
        %858 = vmatpush1.msra.mxu0 0.0
        %859 = vmatprep.subr.mxu0 0.0
        %860 = vmatpush1.msra.mxu0 0.0
        %861 = vmatprep.subr.mxu0 0.0
        %862 = vmatpush1.msra.mxu0 0.0
        %863 = vmatprep.mubr.f32.mxu0 0.0
        %864 = vmatmul.mubr.f32.gmra.mrb[0].mxu0 %v731
        %v865 = vpop.f32.mrb[0].mxu0
        %v866 = vadd.f32 0.0, %v865
        %v867 = vpop.f32.mrb[0].mxu0
        %868 = vmatprep.mubr.f32.mxu0 0.0
        %869 = vmatmul.mubr.f32.gmra.mrb[0].mxu0 %v732
        %v870 = vpop.f32.mrb[0].mxu0
        %v871 = vadd.f32 0.0, %v870
        %v872 = vpop.f32.mrb[0].mxu0
        %873 = vmatprep.mubr.f32.mxu0 0.0
        %874 = vmatmul.mubr.f32.gmra.mrb[0].mxu0 %v733
        %v875 = vpop.f32.mrb[0].mxu0
        %v876 = vadd.f32 0.0, %v875
        %v877 = vpop.f32.mrb[0].mxu0
        %878 = vmatprep.mubr.f32.mxu0 0.0
        %879 = vmatmul.mubr.f32.gmra.mrb[0].mxu0 %v734
        %v880 = vpop.f32.mrb[0].mxu0
        %v881 = vadd.f32 0.0, %v880
        %v882 = vpop.f32.mrb[0].mxu0
        %883 = vdwg.mxu0
        %884 = vmatprep.subr.mxu0 0.0
        %885 = vmatpush1.msra.mxu0 %v751
        %886 = vmatprep.subr.mxu0 0.0
        %887 = vmatpush1.msra.mxu0 %v752
        %888 = vmatprep.subr.mxu0 0.0
        %889 = vmatpush1.msra.mxu0 %v753
        %890 = vmatprep.subr.mxu0 0.0
        %891 = vmatpush1.msra.mxu0 %v754
        %892 = vmatprep.subr.mxu0 0.0
        %893 = vmatpush1.msra.mxu0 %v755
        %894 = vmatprep.subr.mxu0 0.0
        %895 = vmatpush1.msra.mxu0 %v756
        %896 = vmatprep.subr.mxu0 0.0
        %897 = vmatpush1.msra.mxu0 %v757
        %898 = vmatprep.subr.mxu0 0.0
        %899 = vmatpush1.msra.mxu0 %v758
        %900 = vmatprep.subr.mxu0 0.0
        %901 = vmatpush1.msra.mxu0 %v759
        %902 = vmatprep.subr.mxu0 0.0
        %903 = vmatpush1.msra.mxu0 %v760
        %904 = vmatprep.subr.mxu0 0.0
        %905 = vmatpush1.msra.mxu0 %v761
        %906 = vmatprep.subr.mxu0 0.0
        %907 = vmatpush1.msra.mxu0 %v762
        %908 = vmatprep.subr.mxu0 0.0
        %909 = vmatpush1.msra.mxu0 %v763
        %910 = vmatprep.subr.mxu0 0.0
        %911 = vmatpush1.msra.mxu0 %v764
        %912 = vmatprep.subr.mxu0 0.0
        %913 = vmatpush1.msra.mxu0 %v765
        %914 = vmatprep.subr.mxu0 0.0
        %915 = vmatpush1.msra.mxu0 %v766
        %916 = vmatprep.subr.mxu0 0.0
        %917 = vmatpush1.msra.mxu0 0.0
        %918 = vmatprep.subr.mxu0 0.0
        %919 = vmatpush1.msra.mxu0 0.0
        %920 = vmatprep.subr.mxu0 0.0
        %921 = vmatpush1.msra.mxu0 0.0
        %922 = vmatprep.subr.mxu0 0.0
        %923 = vmatpush1.msra.mxu0 0.0
        %924 = vmatprep.subr.mxu0 0.0
        %925 = vmatpush1.msra.mxu0 0.0
        %926 = vmatprep.subr.mxu0 0.0
        %927 = vmatpush1.msra.mxu0 0.0
        %928 = vmatprep.subr.mxu0 0.0
        %929 = vmatpush1.msra.mxu0 0.0
        %930 = vmatprep.subr.mxu0 0.0
        %931 = vmatpush1.msra.mxu0 0.0
        %932 = vmatprep.subr.mxu0 0.0
        %933 = vmatpush1.msra.mxu0 0.0
        %934 = vmatprep.subr.mxu0 0.0
        %935 = vmatpush1.msra.mxu0 0.0
        %936 = vmatprep.subr.mxu0 0.0
        %937 = vmatpush1.msra.mxu0 0.0
        %938 = vmatprep.subr.mxu0 0.0
        %939 = vmatpush1.msra.mxu0 0.0
        %940 = vmatprep.subr.mxu0 0.0
        %941 = vmatpush1.msra.mxu0 0.0
        %942 = vmatprep.subr.mxu0 0.0
        %943 = vmatpush1.msra.mxu0 0.0
        %944 = vmatprep.subr.mxu0 0.0
        %945 = vmatpush1.msra.mxu0 0.0
        %946 = vmatprep.subr.mxu0 0.0
        %947 = vmatpush1.msra.mxu0 0.0
        %948 = vmatprep.mubr.f32.mxu0 0.0
        %949 = vmatmul.mubr.f32.gmra.mrb[0].mxu0 %v731
        %v950 = vpop.f32.mrb[0].mxu0
        %v951 = vadd.f32 0.0, %v950
        %v952 = vpop.f32.mrb[0].mxu0
        %953 = vmatprep.mubr.f32.mxu0 0.0
        %954 = vmatmul.mubr.f32.gmra.mrb[0].mxu0 %v732
        %v955 = vpop.f32.mrb[0].mxu0
        %v956 = vadd.f32 0.0, %v955
        %v957 = vpop.f32.mrb[0].mxu0
        %958 = vmatprep.mubr.f32.mxu0 0.0
        %959 = vmatmul.mubr.f32.gmra.mrb[0].mxu0 %v733
        %v960 = vpop.f32.mrb[0].mxu0
        %v961 = vadd.f32 0.0, %v960
        %v962 = vpop.f32.mrb[0].mxu0
        %963 = vmatprep.mubr.f32.mxu0 0.0
        %964 = vmatmul.mubr.f32.gmra.mrb[0].mxu0 %v734
        %v965 = vpop.f32.mrb[0].mxu0
        %v966 = vadd.f32 0.0, %v965
        %v967 = vpop.f32.mrb[0].mxu0
        %968 = vdwg.mxu0
        %969 = vmatprep.subr.mxu0 0.0
        %970 = vmatpush1.msra.mxu0 %v767
        %971 = vmatprep.subr.mxu0 0.0
        %972 = vmatpush1.msra.mxu0 %v768
        %973 = vmatprep.subr.mxu0 0.0
        %974 = vmatpush1.msra.mxu0 %v769
        %975 = vmatprep.subr.mxu0 0.0
        %976 = vmatpush1.msra.mxu0 %v770
        %977 = vmatprep.subr.mxu0 0.0
        %978 = vmatpush1.msra.mxu0 %v771
        %979 = vmatprep.subr.mxu0 0.0
        %980 = vmatpush1.msra.mxu0 %v772
        %981 = vmatprep.subr.mxu0 0.0
        %982 = vmatpush1.msra.mxu0 %v773
        %983 = vmatprep.subr.mxu0 0.0
        %984 = vmatpush1.msra.mxu0 %v774
        %985 = vmatprep.subr.mxu0 0.0
        %986 = vmatpush1.msra.mxu0 %v775
        %987 = vmatprep.subr.mxu0 0.0
        %988 = vmatpush1.msra.mxu0 %v776
        %989 = vmatprep.subr.mxu0 0.0
        %990 = vmatpush1.msra.mxu0 %v777
        %991 = vmatprep.subr.mxu0 0.0
        %992 = vmatpush1.msra.mxu0 %v778
        %993 = vmatprep.subr.mxu0 0.0
        %994 = vmatpush1.msra.mxu0 %v779
        %995 = vmatprep.subr.mxu0 0.0
        %996 = vmatpush1.msra.mxu0 %v780
        %997 = vmatprep.subr.mxu0 0.0
        %998 = vmatpush1.msra.mxu0 %v781
        %999 = vmatprep.subr.mxu0 0.0
        %1000 = vmatpush1.msra.mxu0 %v782
        %1001 = vmatprep.subr.mxu0 0.0
        %1002 = vmatpush1.msra.mxu0 0.0
        %1003 = vmatprep.subr.mxu0 0.0
        %1004 = vmatpush1.msra.mxu0 0.0
        %1005 = vmatprep.subr.mxu0 0.0
        %1006 = vmatpush1.msra.mxu0 0.0
        %1007 = vmatprep.subr.mxu0 0.0
        %1008 = vmatpush1.msra.mxu0 0.0
        %1009 = vmatprep.subr.mxu0 0.0
        %1010 = vmatpush1.msra.mxu0 0.0
        %1011 = vmatprep.subr.mxu0 0.0
        %1012 = vmatpush1.msra.mxu0 0.0
        %1013 = vmatprep.subr.mxu0 0.0
        %1014 = vmatpush1.msra.mxu0 0.0
        %1015 = vmatprep.subr.mxu0 0.0
        %1016 = vmatpush1.msra.mxu0 0.0
        %1017 = vmatprep.subr.mxu0 0.0
        %1018 = vmatpush1.msra.mxu0 0.0
        %1019 = vmatprep.subr.mxu0 0.0
        %1020 = vmatpush1.msra.mxu0 0.0
        %1021 = vmatprep.subr.mxu0 0.0
        %1022 = vmatpush1.msra.mxu0 0.0
        %1023 = vmatprep.subr.mxu0 0.0
        %1024 = vmatpush1.msra.mxu0 0.0
        %1025 = vmatprep.subr.mxu0 0.0
        %1026 = vmatpush1.msra.mxu0 0.0
        %1027 = vmatprep.subr.mxu0 0.0
        %1028 = vmatpush1.msra.mxu0 0.0
        %1029 = vmatprep.subr.mxu0 0.0
        %1030 = vmatpush1.msra.mxu0 0.0
        %1031 = vmatprep.subr.mxu0 0.0
        %1032 = vmatpush1.msra.mxu0 0.0
        %1033 = vmatprep.mubr.f32.mxu0 0.0
        %1034 = vmatmul.mubr.f32.gmra.mrb[0].mxu0 %v731
        %v1035 = vpop.f32.mrb[0].mxu0
        %v1036 = vadd.f32 0.0, %v1035
        %v1037 = vpop.f32.mrb[0].mxu0
        %1038 = vmatprep.mubr.f32.mxu0 0.0
        %1039 = vmatmul.mubr.f32.gmra.mrb[0].mxu0 %v732
        %v1040 = vpop.f32.mrb[0].mxu0
        %v1041 = vadd.f32 0.0, %v1040
        %v1042 = vpop.f32.mrb[0].mxu0
        %1043 = vmatprep.mubr.f32.mxu0 0.0
        %1044 = vmatmul.mubr.f32.gmra.mrb[0].mxu0 %v733
        %v1045 = vpop.f32.mrb[0].mxu0
        %v1046 = vadd.f32 0.0, %v1045
        %v1047 = vpop.f32.mrb[0].mxu0
        %1048 = vmatprep.mubr.f32.mxu0 0.0
        %1049 = vmatmul.mubr.f32.gmra.mrb[0].mxu0 %v734
        %v1050 = vpop.f32.mrb[0].mxu0
        %v1051 = vadd.f32 0.0, %v1050
        %v1052 = vpop.f32.mrb[0].mxu0
        %1053 = vdwg.mxu0
        %1054 = vmatprep.subr.mxu0 0.0
        %1055 = vmatpush1.msra.mxu0 %v783
        %1056 = vmatprep.subr.mxu0 0.0
        %1057 = vmatpush1.msra.mxu0 %v784
        %1058 = vmatprep.subr.mxu0 0.0
        %1059 = vmatpush1.msra.mxu0 %v785
        %1060 = vmatprep.subr.mxu0 0.0
        %1061 = vmatpush1.msra.mxu0 %v786
        %1062 = vmatprep.subr.mxu0 0.0
        %1063 = vmatpush1.msra.mxu0 %v787
        %1064 = vmatprep.subr.mxu0 0.0
        %1065 = vmatpush1.msra.mxu0 %v788
        %1066 = vmatprep.subr.mxu0 0.0
        %1067 = vmatpush1.msra.mxu0 %v789
        %1068 = vmatprep.subr.mxu0 0.0
        %1069 = vmatpush1.msra.mxu0 %v790
        %1070 = vmatprep.subr.mxu0 0.0
        %1071 = vmatpush1.msra.mxu0 %v791
        %1072 = vmatprep.subr.mxu0 0.0
        %1073 = vmatpush1.msra.mxu0 %v792
        %1074 = vmatprep.subr.mxu0 0.0
        %1075 = vmatpush1.msra.mxu0 %v793
        %1076 = vmatprep.subr.mxu0 0.0
        %1077 = vmatpush1.msra.mxu0 %v794
        %1078 = vmatprep.subr.mxu0 0.0
        %1079 = vmatpush1.msra.mxu0 %v795
        %1080 = vmatprep.subr.mxu0 0.0
        %1081 = vmatpush1.msra.mxu0 %v796
        %1082 = vmatprep.subr.mxu0 0.0
        %1083 = vmatpush1.msra.mxu0 %v797
        %1084 = vmatprep.subr.mxu0 0.0
        %1085 = vmatpush1.msra.mxu0 %v798
        %1086 = vmatprep.subr.mxu0 0.0
        %1087 = vmatpush1.msra.mxu0 0.0
        %1088 = vmatprep.subr.mxu0 0.0
        %1089 = vmatpush1.msra.mxu0 0.0
        %1090 = vmatprep.subr.mxu0 0.0
        %1091 = vmatpush1.msra.mxu0 0.0
        %1092 = vmatprep.subr.mxu0 0.0
        %1093 = vmatpush1.msra.mxu0 0.0
        %1094 = vmatprep.subr.mxu0 0.0
        %1095 = vmatpush1.msra.mxu0 0.0
        %1096 = vmatprep.subr.mxu0 0.0
        %1097 = vmatpush1.msra.mxu0 0.0
        %1098 = vmatprep.subr.mxu0 0.0
        %1099 = vmatpush1.msra.mxu0 0.0
        %1100 = vmatprep.subr.mxu0 0.0
        %1101 = vmatpush1.msra.mxu0 0.0
        %1102 = vmatprep.subr.mxu0 0.0
        %1103 = vmatpush1.msra.mxu0 0.0
        %1104 = vmatprep.subr.mxu0 0.0
        %1105 = vmatpush1.msra.mxu0 0.0
        %1106 = vmatprep.subr.mxu0 0.0
        %1107 = vmatpush1.msra.mxu0 0.0
        %1108 = vmatprep.subr.mxu0 0.0
        %1109 = vmatpush1.msra.mxu0 0.0
        %1110 = vmatprep.subr.mxu0 0.0
        %1111 = vmatpush1.msra.mxu0 0.0
        %1112 = vmatprep.subr.mxu0 0.0
        %1113 = vmatpush1.msra.mxu0 0.0
        %1114 = vmatprep.subr.mxu0 0.0
        %1115 = vmatpush1.msra.mxu0 0.0
        %1116 = vmatprep.subr.mxu0 0.0
        %1117 = vmatpush1.msra.mxu0 0.0
        %1118 = vmatprep.mubr.f32.mxu0 0.0
        %1119 = vmatmul.mubr.f32.gmra.mrb[0].mxu0 %v731
        %v1120 = vpop.f32.mrb[0].mxu0
        %v1121 = vadd.f32 0.0, %v1120
        %v1122 = vpop.f32.mrb[0].mxu0
        %1123 = vmatprep.mubr.f32.mxu0 0.0
        %1124 = vmatmul.mubr.f32.gmra.mrb[0].mxu0 %v732
        %v1125 = vpop.f32.mrb[0].mxu0
        %v1126 = vadd.f32 0.0, %v1125
        %v1127 = vpop.f32.mrb[0].mxu0
        %1128 = vmatprep.mubr.f32.mxu0 0.0
        %1129 = vmatmul.mubr.f32.gmra.mrb[0].mxu0 %v733
        %v1130 = vpop.f32.mrb[0].mxu0
        %v1131 = vadd.f32 0.0, %v1130
        %v1132 = vpop.f32.mrb[0].mxu0
        %1133 = vmatprep.mubr.f32.mxu0 0.0
        %1134 = vmatmul.mubr.f32.gmra.mrb[0].mxu0 %v734
        %v1135 = vpop.f32.mrb[0].mxu0
        %v1136 = vadd.f32 0.0, %v1135
        %v1137 = vpop.f32.mrb[0].mxu0
        %1138 = vdwg.mxu0
        %v1139 = vld [vmem:[%s7] sm:$0xff]
        %v1140 = vld [vmem:[%s7 + $0x8] sm:$0xff]
        %v1141 = vld [vmem:[%s7 + $0x10] sm:$0xff]
        %v1142 = vld [vmem:[%s7 + $0x18] sm:$0xff]
        %v1143 = vld [vmem:[%s7 + $0x20] sm:$0xff]
        %v1144 = vld [vmem:[%s7 + $0x28] sm:$0xff]
        %v1145 = vld [vmem:[%s7 + $0x30] sm:$0xff]
        %v1146 = vld [vmem:[%s7 + $0x38] sm:$0xff]
        %v1147 = vld [vmem:[%s7 + $0x40] sm:$0xff]
        %v1148 = vld [vmem:[%s7 + $0x48] sm:$0xff]
        %v1149 = vld [vmem:[%s7 + $0x50] sm:$0xff]
        %v1150 = vld [vmem:[%s7 + $0x58] sm:$0xff]
        %v1151 = vld [vmem:[%s7 + $0x60] sm:$0xff]
        %v1152 = vld [vmem:[%s7 + $0x68] sm:$0xff]
        %v1153 = vld [vmem:[%s7 + $0x70] sm:$0xff]
        %v1154 = vld [vmem:[%s7 + $0x78] sm:$0xff]
        %v1155 = vld [vmem:[%s7 + $0x80] sm:$0xff]
        %v1156 = vld [vmem:[%s7 + $0x88] sm:$0xff]
        %v1157 = vld [vmem:[%s7 + $0x90] sm:$0xff]
        %v1158 = vld [vmem:[%s7 + $0x98] sm:$0xff]
        %v1159 = vld [vmem:[%s7 + $0xa0] sm:$0xff]
        %v1160 = vld [vmem:[%s7 + $0xa8] sm:$0xff]
        %v1161 = vld [vmem:[%s7 + $0xb0] sm:$0xff]
        %v1162 = vld [vmem:[%s7 + $0xb8] sm:$0xff]
        %v1163 = vld [vmem:[%s7 + $0xc0] sm:$0xff]
        %v1164 = vld [vmem:[%s7 + $0xc8] sm:$0xff]
        %v1165 = vld [vmem:[%s7 + $0xd0] sm:$0xff]
        %v1166 = vld [vmem:[%s7 + $0xd8] sm:$0xff]
        %v1167 = vld [vmem:[%s7 + $0xe0] sm:$0xff]
        %v1168 = vld [vmem:[%s7 + $0xe8] sm:$0xff]
        %v1169 = vld [vmem:[%s7 + $0xf0] sm:$0xff]
        %v1170 = vld [vmem:[%s7 + $0xf8] sm:$0xff]
        %v1171 = vld [vmem:[%s7 + $0x100] sm:$0xff]
        %v1172 = vld [vmem:[%s7 + $0x108] sm:$0xff]
        %v1173 = vld [vmem:[%s7 + $0x110] sm:$0xff]
        %v1174 = vld [vmem:[%s7 + $0x118] sm:$0xff]
        %v1175 = vld [vmem:[%s7 + $0x120] sm:$0xff]
        %v1176 = vld [vmem:[%s7 + $0x128] sm:$0xff]
        %v1177 = vld [vmem:[%s7 + $0x130] sm:$0xff]
        %v1178 = vld [vmem:[%s7 + $0x138] sm:$0xff]
        %v1179 = vld [vmem:[%s7 + $0x140] sm:$0xff]
        %v1180 = vld [vmem:[%s7 + $0x148] sm:$0xff]
        %v1181 = vld [vmem:[%s7 + $0x150] sm:$0xff]
        %v1182 = vld [vmem:[%s7 + $0x158] sm:$0xff]
        %v1183 = vld [vmem:[%s7 + $0x160] sm:$0xff]
        %v1184 = vld [vmem:[%s7 + $0x168] sm:$0xff]
        %v1185 = vld [vmem:[%s7 + $0x170] sm:$0xff]
        %v1186 = vld [vmem:[%s7 + $0x178] sm:$0xff]
        %v1187 = vld [vmem:[%s7 + $0x180] sm:$0xff]
        %v1188 = vld [vmem:[%s7 + $0x188] sm:$0xff]
        %v1189 = vld [vmem:[%s7 + $0x190] sm:$0xff]
        %v1190 = vld [vmem:[%s7 + $0x198] sm:$0xff]
        %v1191 = vld [vmem:[%s7 + $0x1a0] sm:$0xff]
        %v1192 = vld [vmem:[%s7 + $0x1a8] sm:$0xff]
        %v1193 = vld [vmem:[%s7 + $0x1b0] sm:$0xff]
        %v1194 = vld [vmem:[%s7 + $0x1b8] sm:$0xff]
        %v1195 = vld [vmem:[%s7 + $0x1c0] sm:$0xff]
        %v1196 = vld [vmem:[%s7 + $0x1c8] sm:$0xff]
        %v1197 = vld [vmem:[%s7 + $0x1d0] sm:$0xff]
        %v1198 = vld [vmem:[%s7 + $0x1d8] sm:$0xff]
        %v1199 = vld [vmem:[%s7 + $0x1e0] sm:$0xff]
        %v1200 = vld [vmem:[%s7 + $0x1e8] sm:$0xff]
        %v1201 = vld [vmem:[%s7 + $0x1f0] sm:$0xff]
        %v1202 = vld [vmem:[%s7 + $0x1f8] sm:$0xff]
        %1203 = vmatprep.subr.mxu0 0.0
        %1204 = vmatpush1.msra.mxu0 %v1139
        %1205 = vmatprep.subr.mxu0 0.0
        %1206 = vmatpush1.msra.mxu0 %v1140
        %1207 = vmatprep.subr.mxu0 0.0
        %1208 = vmatpush1.msra.mxu0 %v1141
        %1209 = vmatprep.subr.mxu0 0.0
        %1210 = vmatpush1.msra.mxu0 %v1142
        %1211 = vmatprep.subr.mxu0 0.0
        %1212 = vmatpush1.msra.mxu0 %v1143
        %1213 = vmatprep.subr.mxu0 0.0
        %1214 = vmatpush1.msra.mxu0 %v1144
        %1215 = vmatprep.subr.mxu0 0.0
        %1216 = vmatpush1.msra.mxu0 %v1145
        %1217 = vmatprep.subr.mxu0 0.0
        %1218 = vmatpush1.msra.mxu0 %v1146
        %1219 = vmatprep.subr.mxu0 0.0
        %1220 = vmatpush1.msra.mxu0 %v1147
        %1221 = vmatprep.subr.mxu0 0.0
        %1222 = vmatpush1.msra.mxu0 %v1148
        %1223 = vmatprep.subr.mxu0 0.0
        %1224 = vmatpush1.msra.mxu0 %v1149
        %1225 = vmatprep.subr.mxu0 0.0
        %1226 = vmatpush1.msra.mxu0 %v1150
        %1227 = vmatprep.subr.mxu0 0.0
        %1228 = vmatpush1.msra.mxu0 %v1151
        %1229 = vmatprep.subr.mxu0 0.0
        %1230 = vmatpush1.msra.mxu0 %v1152
        %1231 = vmatprep.subr.mxu0 0.0
        %1232 = vmatpush1.msra.mxu0 %v1153
        %1233 = vmatprep.subr.mxu0 0.0
        %1234 = vmatpush1.msra.mxu0 %v1154
        %1235 = vmatprep.subr.mxu0 0.0
        %1236 = vmatpush1.msra.mxu0 0.0
        %1237 = vmatprep.subr.mxu0 0.0
        %1238 = vmatpush1.msra.mxu0 0.0
        %1239 = vmatprep.subr.mxu0 0.0
        %1240 = vmatpush1.msra.mxu0 0.0
        %1241 = vmatprep.subr.mxu0 0.0
        %1242 = vmatpush1.msra.mxu0 0.0
        %1243 = vmatprep.subr.mxu0 0.0
        %1244 = vmatpush1.msra.mxu0 0.0
        %1245 = vmatprep.subr.mxu0 0.0
        %1246 = vmatpush1.msra.mxu0 0.0
        %1247 = vmatprep.subr.mxu0 0.0
        %1248 = vmatpush1.msra.mxu0 0.0
        %1249 = vmatprep.subr.mxu0 0.0
        %1250 = vmatpush1.msra.mxu0 0.0
        %1251 = vmatprep.subr.mxu0 0.0
        %1252 = vmatpush1.msra.mxu0 0.0
        %1253 = vmatprep.subr.mxu0 0.0
        %1254 = vmatpush1.msra.mxu0 0.0
        %1255 = vmatprep.subr.mxu0 0.0
        %1256 = vmatpush1.msra.mxu0 0.0
        %1257 = vmatprep.subr.mxu0 0.0
        %1258 = vmatpush1.msra.mxu0 0.0
        %1259 = vmatprep.subr.mxu0 0.0
        %1260 = vmatpush1.msra.mxu0 0.0
        %1261 = vmatprep.subr.mxu0 0.0
        %1262 = vmatpush1.msra.mxu0 0.0
        %1263 = vmatprep.subr.mxu0 0.0
        %1264 = vmatpush1.msra.mxu0 0.0
        %1265 = vmatprep.subr.mxu0 0.0
        %1266 = vmatpush1.msra.mxu0 0.0
        %1267 = vmatprep.mubr.f32.mxu0 0.0
        %1268 = vmatmul.mubr.f32.gmra.mrb[0].mxu0 %v731
        %v1269 = vpop.f32.mrb[0].mxu0
        %v1270 = vadd.f32 0.0, %v1269
        %v1271 = vpop.f32.mrb[0].mxu0
        %1272 = vmatprep.mubr.f32.mxu0 0.0
        %1273 = vmatmul.mubr.f32.gmra.mrb[0].mxu0 %v732
        %v1274 = vpop.f32.mrb[0].mxu0
        %v1275 = vadd.f32 0.0, %v1274
        %v1276 = vpop.f32.mrb[0].mxu0
        %1277 = vmatprep.mubr.f32.mxu0 0.0
        %1278 = vmatmul.mubr.f32.gmra.mrb[0].mxu0 %v733
        %v1279 = vpop.f32.mrb[0].mxu0
        %v1280 = vadd.f32 0.0, %v1279
        %v1281 = vpop.f32.mrb[0].mxu0
        %1282 = vmatprep.mubr.f32.mxu0 0.0
        %1283 = vmatmul.mubr.f32.gmra.mrb[0].mxu0 %v734
        %v1284 = vpop.f32.mrb[0].mxu0
        %v1285 = vadd.f32 0.0, %v1284
        %v1286 = vpop.f32.mrb[0].mxu0
        %1287 = vdwg.mxu0
        %1288 = vmatprep.subr.mxu0 0.0
        %1289 = vmatpush1.msra.mxu0 %v1155
        %1290 = vmatprep.subr.mxu0 0.0
        %1291 = vmatpush1.msra.mxu0 %v1156
        %1292 = vmatprep.subr.mxu0 0.0
        %1293 = vmatpush1.msra.mxu0 %v1157
        %1294 = vmatprep.subr.mxu0 0.0
        %1295 = vmatpush1.msra.mxu0 %v1158
        %1296 = vmatprep.subr.mxu0 0.0
        %1297 = vmatpush1.msra.mxu0 %v1159
        %1298 = vmatprep.subr.mxu0 0.0
        %1299 = vmatpush1.msra.mxu0 %v1160
        %1300 = vmatprep.subr.mxu0 0.0
        %1301 = vmatpush1.msra.mxu0 %v1161
        %1302 = vmatprep.subr.mxu0 0.0
        %1303 = vmatpush1.msra.mxu0 %v1162
        %1304 = vmatprep.subr.mxu0 0.0
        %1305 = vmatpush1.msra.mxu0 %v1163
        %1306 = vmatprep.subr.mxu0 0.0
        %1307 = vmatpush1.msra.mxu0 %v1164
        %1308 = vmatprep.subr.mxu0 0.0
        %1309 = vmatpush1.msra.mxu0 %v1165
        %1310 = vmatprep.subr.mxu0 0.0
        %1311 = vmatpush1.msra.mxu0 %v1166
        %1312 = vmatprep.subr.mxu0 0.0
        %1313 = vmatpush1.msra.mxu0 %v1167
        %1314 = vmatprep.subr.mxu0 0.0
        %1315 = vmatpush1.msra.mxu0 %v1168
        %1316 = vmatprep.subr.mxu0 0.0
        %1317 = vmatpush1.msra.mxu0 %v1169
        %1318 = vmatprep.subr.mxu0 0.0
        %1319 = vmatpush1.msra.mxu0 %v1170
        %1320 = vmatprep.subr.mxu0 0.0
        %1321 = vmatpush1.msra.mxu0 0.0
        %1322 = vmatprep.subr.mxu0 0.0
        %1323 = vmatpush1.msra.mxu0 0.0
        %1324 = vmatprep.subr.mxu0 0.0
        %1325 = vmatpush1.msra.mxu0 0.0
        %1326 = vmatprep.subr.mxu0 0.0
        %1327 = vmatpush1.msra.mxu0 0.0
        %1328 = vmatprep.subr.mxu0 0.0
        %1329 = vmatpush1.msra.mxu0 0.0
        %1330 = vmatprep.subr.mxu0 0.0
        %1331 = vmatpush1.msra.mxu0 0.0
        %1332 = vmatprep.subr.mxu0 0.0
        %1333 = vmatpush1.msra.mxu0 0.0
        %1334 = vmatprep.subr.mxu0 0.0
        %1335 = vmatpush1.msra.mxu0 0.0
        %1336 = vmatprep.subr.mxu0 0.0
        %1337 = vmatpush1.msra.mxu0 0.0
        %1338 = vmatprep.subr.mxu0 0.0
        %1339 = vmatpush1.msra.mxu0 0.0
        %1340 = vmatprep.subr.mxu0 0.0
        %1341 = vmatpush1.msra.mxu0 0.0
        %1342 = vmatprep.subr.mxu0 0.0
        %1343 = vmatpush1.msra.mxu0 0.0
        %1344 = vmatprep.subr.mxu0 0.0
        %1345 = vmatpush1.msra.mxu0 0.0
        %1346 = vmatprep.subr.mxu0 0.0
        %1347 = vmatpush1.msra.mxu0 0.0
        %1348 = vmatprep.subr.mxu0 0.0
        %1349 = vmatpush1.msra.mxu0 0.0
        %1350 = vmatprep.subr.mxu0 0.0
        %1351 = vmatpush1.msra.mxu0 0.0
        %1352 = vmatprep.mubr.f32.mxu0 0.0
        %1353 = vmatmul.mubr.f32.gmra.mrb[0].mxu0 %v731
        %v1354 = vpop.f32.mrb[0].mxu0
        %v1355 = vadd.f32 0.0, %v1354
        %v1356 = vpop.f32.mrb[0].mxu0
        %1357 = vmatprep.mubr.f32.mxu0 0.0
        %1358 = vmatmul.mubr.f32.gmra.mrb[0].mxu0 %v732
        %v1359 = vpop.f32.mrb[0].mxu0
        %v1360 = vadd.f32 0.0, %v1359
        %v1361 = vpop.f32.mrb[0].mxu0
        %1362 = vmatprep.mubr.f32.mxu0 0.0
        %1363 = vmatmul.mubr.f32.gmra.mrb[0].mxu0 %v733
        %v1364 = vpop.f32.mrb[0].mxu0
        %v1365 = vadd.f32 0.0, %v1364
        %v1366 = vpop.f32.mrb[0].mxu0
        %1367 = vmatprep.mubr.f32.mxu0 0.0
        %1368 = vmatmul.mubr.f32.gmra.mrb[0].mxu0 %v734
        %v1369 = vpop.f32.mrb[0].mxu0
        %v1370 = vadd.f32 0.0, %v1369
        %v1371 = vpop.f32.mrb[0].mxu0
        %1372 = vdwg.mxu0
        %1373 = vmatprep.subr.mxu0 0.0
        %1374 = vmatpush1.msra.mxu0 %v1171
        %1375 = vmatprep.subr.mxu0 0.0
        %1376 = vmatpush1.msra.mxu0 %v1172
        %1377 = vmatprep.subr.mxu0 0.0
        %1378 = vmatpush1.msra.mxu0 %v1173
        %1379 = vmatprep.subr.mxu0 0.0
        %1380 = vmatpush1.msra.mxu0 %v1174
        %1381 = vmatprep.subr.mxu0 0.0
        %1382 = vmatpush1.msra.mxu0 %v1175
        %1383 = vmatprep.subr.mxu0 0.0
        %1384 = vmatpush1.msra.mxu0 %v1176
        %1385 = vmatprep.subr.mxu0 0.0
        %1386 = vmatpush1.msra.mxu0 %v1177
        %1387 = vmatprep.subr.mxu0 0.0
        %1388 = vmatpush1.msra.mxu0 %v1178
        %1389 = vmatprep.subr.mxu0 0.0
        %1390 = vmatpush1.msra.mxu0 %v1179
        %1391 = vmatprep.subr.mxu0 0.0
        %1392 = vmatpush1.msra.mxu0 %v1180
        %1393 = vmatprep.subr.mxu0 0.0
        %1394 = vmatpush1.msra.mxu0 %v1181
        %1395 = vmatprep.subr.mxu0 0.0
        %1396 = vmatpush1.msra.mxu0 %v1182
        %1397 = vmatprep.subr.mxu0 0.0
        %1398 = vmatpush1.msra.mxu0 %v1183
        %1399 = vmatprep.subr.mxu0 0.0
        %1400 = vmatpush1.msra.mxu0 %v1184
        %1401 = vmatprep.subr.mxu0 0.0
        %1402 = vmatpush1.msra.mxu0 %v1185
        %1403 = vmatprep.subr.mxu0 0.0
        %1404 = vmatpush1.msra.mxu0 %v1186
        %1405 = vmatprep.subr.mxu0 0.0
        %1406 = vmatpush1.msra.mxu0 0.0
        %1407 = vmatprep.subr.mxu0 0.0
        %1408 = vmatpush1.msra.mxu0 0.0
        %1409 = vmatprep.subr.mxu0 0.0
        %1410 = vmatpush1.msra.mxu0 0.0
        %1411 = vmatprep.subr.mxu0 0.0
        %1412 = vmatpush1.msra.mxu0 0.0
        %1413 = vmatprep.subr.mxu0 0.0
        %1414 = vmatpush1.msra.mxu0 0.0
        %1415 = vmatprep.subr.mxu0 0.0
        %1416 = vmatpush1.msra.mxu0 0.0
        %1417 = vmatprep.subr.mxu0 0.0
        %1418 = vmatpush1.msra.mxu0 0.0
        %1419 = vmatprep.subr.mxu0 0.0
        %1420 = vmatpush1.msra.mxu0 0.0
        %1421 = vmatprep.subr.mxu0 0.0
        %1422 = vmatpush1.msra.mxu0 0.0
        %1423 = vmatprep.subr.mxu0 0.0
        %1424 = vmatpush1.msra.mxu0 0.0
        %1425 = vmatprep.subr.mxu0 0.0
        %1426 = vmatpush1.msra.mxu0 0.0
        %1427 = vmatprep.subr.mxu0 0.0
        %1428 = vmatpush1.msra.mxu0 0.0
        %1429 = vmatprep.subr.mxu0 0.0
        %1430 = vmatpush1.msra.mxu0 0.0
        %1431 = vmatprep.subr.mxu0 0.0
        %1432 = vmatpush1.msra.mxu0 0.0
        %1433 = vmatprep.subr.mxu0 0.0
        %1434 = vmatpush1.msra.mxu0 0.0
        %1435 = vmatprep.subr.mxu0 0.0
        %1436 = vmatpush1.msra.mxu0 0.0
        %1437 = vmatprep.mubr.f32.mxu0 0.0
        %1438 = vmatmul.mubr.f32.gmra.mrb[0].mxu0 %v731
        %v1439 = vpop.f32.mrb[0].mxu0
        %v1440 = vadd.f32 0.0, %v1439
        %v1441 = vpop.f32.mrb[0].mxu0
        %1442 = vmatprep.mubr.f32.mxu0 0.0
        %1443 = vmatmul.mubr.f32.gmra.mrb[0].mxu0 %v732
        %v1444 = vpop.f32.mrb[0].mxu0
        %v1445 = vadd.f32 0.0, %v1444
        %v1446 = vpop.f32.mrb[0].mxu0
        %1447 = vmatprep.mubr.f32.mxu0 0.0
        %1448 = vmatmul.mubr.f32.gmra.mrb[0].mxu0 %v733
        %v1449 = vpop.f32.mrb[0].mxu0
        %v1450 = vadd.f32 0.0, %v1449
        %v1451 = vpop.f32.mrb[0].mxu0
        %1452 = vmatprep.mubr.f32.mxu0 0.0
        %1453 = vmatmul.mubr.f32.gmra.mrb[0].mxu0 %v734
        %v1454 = vpop.f32.mrb[0].mxu0
        %v1455 = vadd.f32 0.0, %v1454
        %v1456 = vpop.f32.mrb[0].mxu0
        %1457 = vdwg.mxu0
        %1458 = vmatprep.subr.mxu0 0.0
        %1459 = vmatpush1.msra.mxu0 %v1187
        %1460 = vmatprep.subr.mxu0 0.0
        %1461 = vmatpush1.msra.mxu0 %v1188
        %1462 = vmatprep.subr.mxu0 0.0
        %1463 = vmatpush1.msra.mxu0 %v1189
        %1464 = vmatprep.subr.mxu0 0.0
        %1465 = vmatpush1.msra.mxu0 %v1190
        %1466 = vmatprep.subr.mxu0 0.0
        %1467 = vmatpush1.msra.mxu0 %v1191
        %1468 = vmatprep.subr.mxu0 0.0
        %1469 = vmatpush1.msra.mxu0 %v1192
        %1470 = vmatprep.subr.mxu0 0.0
        %1471 = vmatpush1.msra.mxu0 %v1193
        %1472 = vmatprep.subr.mxu0 0.0
        %1473 = vmatpush1.msra.mxu0 %v1194
        %1474 = vmatprep.subr.mxu0 0.0
        %1475 = vmatpush1.msra.mxu0 %v1195
        %1476 = vmatprep.subr.mxu0 0.0
        %1477 = vmatpush1.msra.mxu0 %v1196
        %1478 = vmatprep.subr.mxu0 0.0
        %1479 = vmatpush1.msra.mxu0 %v1197
        %1480 = vmatprep.subr.mxu0 0.0
        %1481 = vmatpush1.msra.mxu0 %v1198
        %1482 = vmatprep.subr.mxu0 0.0
        %1483 = vmatpush1.msra.mxu0 %v1199
        %1484 = vmatprep.subr.mxu0 0.0
        %1485 = vmatpush1.msra.mxu0 %v1200
        %1486 = vmatprep.subr.mxu0 0.0
        %1487 = vmatpush1.msra.mxu0 %v1201
        %1488 = vmatprep.subr.mxu0 0.0
        %1489 = vmatpush1.msra.mxu0 %v1202
        %1490 = vmatprep.subr.mxu0 0.0
        %1491 = vmatpush1.msra.mxu0 0.0
        %1492 = vmatprep.subr.mxu0 0.0
        %1493 = vmatpush1.msra.mxu0 0.0
        %1494 = vmatprep.subr.mxu0 0.0
        %1495 = vmatpush1.msra.mxu0 0.0
        %1496 = vmatprep.subr.mxu0 0.0
        %1497 = vmatpush1.msra.mxu0 0.0
        %1498 = vmatprep.subr.mxu0 0.0
        %1499 = vmatpush1.msra.mxu0 0.0
        %1500 = vmatprep.subr.mxu0 0.0
        %1501 = vmatpush1.msra.mxu0 0.0
        %1502 = vmatprep.subr.mxu0 0.0
        %1503 = vmatpush1.msra.mxu0 0.0
        %1504 = vmatprep.subr.mxu0 0.0
        %1505 = vmatpush1.msra.mxu0 0.0
        %1506 = vmatprep.subr.mxu0 0.0
        %1507 = vmatpush1.msra.mxu0 0.0
        %1508 = vmatprep.subr.mxu0 0.0
        %1509 = vmatpush1.msra.mxu0 0.0
        %1510 = vmatprep.subr.mxu0 0.0
        %1511 = vmatpush1.msra.mxu0 0.0
        %1512 = vmatprep.subr.mxu0 0.0
        %1513 = vmatpush1.msra.mxu0 0.0
        %1514 = vmatprep.subr.mxu0 0.0
        %1515 = vmatpush1.msra.mxu0 0.0
        %1516 = vmatprep.subr.mxu0 0.0
        %1517 = vmatpush1.msra.mxu0 0.0
        %1518 = vmatprep.subr.mxu0 0.0
        %1519 = vmatpush1.msra.mxu0 0.0
        %1520 = vmatprep.subr.mxu0 0.0
        %1521 = vmatpush1.msra.mxu0 0.0
        %1522 = vmatprep.mubr.f32.mxu0 0.0
        %1523 = vmatmul.mubr.f32.gmra.mrb[0].mxu0 %v731
        %v1524 = vpop.f32.mrb[0].mxu0
        %v1525 = vadd.f32 0.0, %v1524
        %v1526 = vpop.f32.mrb[0].mxu0
        %1527 = vmatprep.mubr.f32.mxu0 0.0
        %1528 = vmatmul.mubr.f32.gmra.mrb[0].mxu0 %v732
        %v1529 = vpop.f32.mrb[0].mxu0
        %v1530 = vadd.f32 0.0, %v1529
        %v1531 = vpop.f32.mrb[0].mxu0
        %1532 = vmatprep.mubr.f32.mxu0 0.0
        %1533 = vmatmul.mubr.f32.gmra.mrb[0].mxu0 %v733
        %v1534 = vpop.f32.mrb[0].mxu0
        %v1535 = vadd.f32 0.0, %v1534
        %v1536 = vpop.f32.mrb[0].mxu0
        %1537 = vmatprep.mubr.f32.mxu0 0.0
        %1538 = vmatmul.mubr.f32.gmra.mrb[0].mxu0 %v734
        %v1539 = vpop.f32.mrb[0].mxu0
        %v1540 = vadd.f32 0.0, %v1539
        %v1541 = vpop.f32.mrb[0].mxu0
        %1542 = vdwg.mxu0
        %v1543 = vld [vmem:[%s8] sm:$0xff]
        %v1544 = vld [vmem:[%s8 + $0x8] sm:$0xff]
        %v1545 = vld [vmem:[%s8 + $0x10] sm:$0xff]
        %v1546 = vld [vmem:[%s8 + $0x18] sm:$0xff]
        %v1547 = vld [vmem:[%s8 + $0x20] sm:$0xff]
        %v1548 = vld [vmem:[%s8 + $0x28] sm:$0xff]
        %v1549 = vld [vmem:[%s8 + $0x30] sm:$0xff]
        %v1550 = vld [vmem:[%s8 + $0x38] sm:$0xff]
        %v1551 = vld [vmem:[%s8 + $0x40] sm:$0xff]
        %v1552 = vld [vmem:[%s8 + $0x48] sm:$0xff]
        %v1553 = vld [vmem:[%s8 + $0x50] sm:$0xff]
        %v1554 = vld [vmem:[%s8 + $0x58] sm:$0xff]
        %v1555 = vld [vmem:[%s8 + $0x60] sm:$0xff]
        %v1556 = vld [vmem:[%s8 + $0x68] sm:$0xff]
        %v1557 = vld [vmem:[%s8 + $0x70] sm:$0xff]
        %v1558 = vld [vmem:[%s8 + $0x78] sm:$0xff]
        %v1559 = vld [vmem:[%s8 + $0x80] sm:$0xff]
        %v1560 = vld [vmem:[%s8 + $0x88] sm:$0xff]
        %v1561 = vld [vmem:[%s8 + $0x90] sm:$0xff]
        %v1562 = vld [vmem:[%s8 + $0x98] sm:$0xff]
        %v1563 = vld [vmem:[%s8 + $0xa0] sm:$0xff]
        %v1564 = vld [vmem:[%s8 + $0xa8] sm:$0xff]
        %v1565 = vld [vmem:[%s8 + $0xb0] sm:$0xff]
        %v1566 = vld [vmem:[%s8 + $0xb8] sm:$0xff]
        %v1567 = vld [vmem:[%s8 + $0xc0] sm:$0xff]
        %v1568 = vld [vmem:[%s8 + $0xc8] sm:$0xff]
        %v1569 = vld [vmem:[%s8 + $0xd0] sm:$0xff]
        %v1570 = vld [vmem:[%s8 + $0xd8] sm:$0xff]
        %v1571 = vld [vmem:[%s8 + $0xe0] sm:$0xff]
        %v1572 = vld [vmem:[%s8 + $0xe8] sm:$0xff]
        %v1573 = vld [vmem:[%s8 + $0xf0] sm:$0xff]
        %v1574 = vld [vmem:[%s8 + $0xf8] sm:$0xff]
        %v1575 = vld [vmem:[%s8 + $0x100] sm:$0xff]
        %v1576 = vld [vmem:[%s8 + $0x108] sm:$0xff]
        %v1577 = vld [vmem:[%s8 + $0x110] sm:$0xff]
        %v1578 = vld [vmem:[%s8 + $0x118] sm:$0xff]
        %v1579 = vld [vmem:[%s8 + $0x120] sm:$0xff]
        %v1580 = vld [vmem:[%s8 + $0x128] sm:$0xff]
        %v1581 = vld [vmem:[%s8 + $0x130] sm:$0xff]
        %v1582 = vld [vmem:[%s8 + $0x138] sm:$0xff]
        %v1583 = vld [vmem:[%s8 + $0x140] sm:$0xff]
        %v1584 = vld [vmem:[%s8 + $0x148] sm:$0xff]
        %v1585 = vld [vmem:[%s8 + $0x150] sm:$0xff]
        %v1586 = vld [vmem:[%s8 + $0x158] sm:$0xff]
        %v1587 = vld [vmem:[%s8 + $0x160] sm:$0xff]
        %v1588 = vld [vmem:[%s8 + $0x168] sm:$0xff]
        %v1589 = vld [vmem:[%s8 + $0x170] sm:$0xff]
        %v1590 = vld [vmem:[%s8 + $0x178] sm:$0xff]
        %v1591 = vld [vmem:[%s8 + $0x180] sm:$0xff]
        %v1592 = vld [vmem:[%s8 + $0x188] sm:$0xff]
        %v1593 = vld [vmem:[%s8 + $0x190] sm:$0xff]
        %v1594 = vld [vmem:[%s8 + $0x198] sm:$0xff]
        %v1595 = vld [vmem:[%s8 + $0x1a0] sm:$0xff]
        %v1596 = vld [vmem:[%s8 + $0x1a8] sm:$0xff]
        %v1597 = vld [vmem:[%s8 + $0x1b0] sm:$0xff]
        %v1598 = vld [vmem:[%s8 + $0x1b8] sm:$0xff]
        %v1599 = vld [vmem:[%s8 + $0x1c0] sm:$0xff]
        %v1600 = vld [vmem:[%s8 + $0x1c8] sm:$0xff]
        %v1601 = vld [vmem:[%s8 + $0x1d0] sm:$0xff]
        %v1602 = vld [vmem:[%s8 + $0x1d8] sm:$0xff]
        %v1603 = vld [vmem:[%s8 + $0x1e0] sm:$0xff]
        %v1604 = vld [vmem:[%s8 + $0x1e8] sm:$0xff]
        %v1605 = vld [vmem:[%s8 + $0x1f0] sm:$0xff]
        %v1606 = vld [vmem:[%s8 + $0x1f8] sm:$0xff]
        %1607 = vmatprep.subr.mxu0 0.0
        %1608 = vmatpush1.msra.mxu0 %v1543
        %1609 = vmatprep.subr.mxu0 0.0
        %1610 = vmatpush1.msra.mxu0 %v1544
        %1611 = vmatprep.subr.mxu0 0.0
        %1612 = vmatpush1.msra.mxu0 %v1545
        %1613 = vmatprep.subr.mxu0 0.0
        %1614 = vmatpush1.msra.mxu0 %v1546
        %1615 = vmatprep.subr.mxu0 0.0
        %1616 = vmatpush1.msra.mxu0 %v1547
        %1617 = vmatprep.subr.mxu0 0.0
        %1618 = vmatpush1.msra.mxu0 %v1548
        %1619 = vmatprep.subr.mxu0 0.0
        %1620 = vmatpush1.msra.mxu0 %v1549
        %1621 = vmatprep.subr.mxu0 0.0
        %1622 = vmatpush1.msra.mxu0 %v1550
        %1623 = vmatprep.subr.mxu0 0.0
        %1624 = vmatpush1.msra.mxu0 %v1551
        %1625 = vmatprep.subr.mxu0 0.0
        %1626 = vmatpush1.msra.mxu0 %v1552
        %1627 = vmatprep.subr.mxu0 0.0
        %1628 = vmatpush1.msra.mxu0 %v1553
        %1629 = vmatprep.subr.mxu0 0.0
        %1630 = vmatpush1.msra.mxu0 %v1554
        %1631 = vmatprep.subr.mxu0 0.0
        %1632 = vmatpush1.msra.mxu0 %v1555
        %1633 = vmatprep.subr.mxu0 0.0
        %1634 = vmatpush1.msra.mxu0 %v1556
        %1635 = vmatprep.subr.mxu0 0.0
        %1636 = vmatpush1.msra.mxu0 %v1557
        %1637 = vmatprep.subr.mxu0 0.0
        %1638 = vmatpush1.msra.mxu0 %v1558
        %1639 = vmatprep.subr.mxu0 0.0
        %1640 = vmatpush1.msra.mxu0 0.0
        %1641 = vmatprep.subr.mxu0 0.0
        %1642 = vmatpush1.msra.mxu0 0.0
        %1643 = vmatprep.subr.mxu0 0.0
        %1644 = vmatpush1.msra.mxu0 0.0
        %1645 = vmatprep.subr.mxu0 0.0
        %1646 = vmatpush1.msra.mxu0 0.0
        %1647 = vmatprep.subr.mxu0 0.0
        %1648 = vmatpush1.msra.mxu0 0.0
        %1649 = vmatprep.subr.mxu0 0.0
        %1650 = vmatpush1.msra.mxu0 0.0
        %1651 = vmatprep.subr.mxu0 0.0
        %1652 = vmatpush1.msra.mxu0 0.0
        %1653 = vmatprep.subr.mxu0 0.0
        %1654 = vmatpush1.msra.mxu0 0.0
        %1655 = vmatprep.subr.mxu0 0.0
        %1656 = vmatpush1.msra.mxu0 0.0
        %1657 = vmatprep.subr.mxu0 0.0
        %1658 = vmatpush1.msra.mxu0 0.0
        %1659 = vmatprep.subr.mxu0 0.0
        %1660 = vmatpush1.msra.mxu0 0.0
        %1661 = vmatprep.subr.mxu0 0.0
        %1662 = vmatpush1.msra.mxu0 0.0
        %1663 = vmatprep.subr.mxu0 0.0
        %1664 = vmatpush1.msra.mxu0 0.0
        %1665 = vmatprep.subr.mxu0 0.0
        %1666 = vmatpush1.msra.mxu0 0.0
        %1667 = vmatprep.subr.mxu0 0.0
        %1668 = vmatpush1.msra.mxu0 0.0
        %1669 = vmatprep.subr.mxu0 0.0
        %1670 = vmatpush1.msra.mxu0 0.0
        %1671 = vmatprep.mubr.f32.mxu0 0.0
        %1672 = vmatmul.mubr.f32.gmra.mrb[0].mxu0 %v731
        %v1673 = vpop.f32.mrb[0].mxu0
        %v1674 = vadd.f32 0.0, %v1673
        %v1675 = vpop.f32.mrb[0].mxu0
        %1676 = vmatprep.mubr.f32.mxu0 0.0
        %1677 = vmatmul.mubr.f32.gmra.mrb[0].mxu0 %v732
        %v1678 = vpop.f32.mrb[0].mxu0
        %v1679 = vadd.f32 0.0, %v1678
        %v1680 = vpop.f32.mrb[0].mxu0
        %1681 = vmatprep.mubr.f32.mxu0 0.0
        %1682 = vmatmul.mubr.f32.gmra.mrb[0].mxu0 %v733
        %v1683 = vpop.f32.mrb[0].mxu0
        %v1684 = vadd.f32 0.0, %v1683
        %v1685 = vpop.f32.mrb[0].mxu0
        %1686 = vmatprep.mubr.f32.mxu0 0.0
        %1687 = vmatmul.mubr.f32.gmra.mrb[0].mxu0 %v734
        %v1688 = vpop.f32.mrb[0].mxu0
        %v1689 = vadd.f32 0.0, %v1688
        %v1690 = vpop.f32.mrb[0].mxu0
        %1691 = vdwg.mxu0
        %1692 = vmatprep.subr.mxu0 0.0
        %1693 = vmatpush1.msra.mxu0 %v1559
        %1694 = vmatprep.subr.mxu0 0.0
        %1695 = vmatpush1.msra.mxu0 %v1560
        %1696 = vmatprep.subr.mxu0 0.0
        %1697 = vmatpush1.msra.mxu0 %v1561
        %1698 = vmatprep.subr.mxu0 0.0
        %1699 = vmatpush1.msra.mxu0 %v1562
        %1700 = vmatprep.subr.mxu0 0.0
        %1701 = vmatpush1.msra.mxu0 %v1563
        %1702 = vmatprep.subr.mxu0 0.0
        %1703 = vmatpush1.msra.mxu0 %v1564
        %1704 = vmatprep.subr.mxu0 0.0
        %1705 = vmatpush1.msra.mxu0 %v1565
        %1706 = vmatprep.subr.mxu0 0.0
        %1707 = vmatpush1.msra.mxu0 %v1566
        %1708 = vmatprep.subr.mxu0 0.0
        %1709 = vmatpush1.msra.mxu0 %v1567
        %1710 = vmatprep.subr.mxu0 0.0
        %1711 = vmatpush1.msra.mxu0 %v1568
        %1712 = vmatprep.subr.mxu0 0.0
        %1713 = vmatpush1.msra.mxu0 %v1569
        %1714 = vmatprep.subr.mxu0 0.0
        %1715 = vmatpush1.msra.mxu0 %v1570
        %1716 = vmatprep.subr.mxu0 0.0
        %1717 = vmatpush1.msra.mxu0 %v1571
        %1718 = vmatprep.subr.mxu0 0.0
        %1719 = vmatpush1.msra.mxu0 %v1572
        %1720 = vmatprep.subr.mxu0 0.0
        %1721 = vmatpush1.msra.mxu0 %v1573
        %1722 = vmatprep.subr.mxu0 0.0
        %1723 = vmatpush1.msra.mxu0 %v1574
        %1724 = vmatprep.subr.mxu0 0.0
        %1725 = vmatpush1.msra.mxu0 0.0
        %1726 = vmatprep.subr.mxu0 0.0
        %1727 = vmatpush1.msra.mxu0 0.0
        %1728 = vmatprep.subr.mxu0 0.0
        %1729 = vmatpush1.msra.mxu0 0.0
        %1730 = vmatprep.subr.mxu0 0.0
        %1731 = vmatpush1.msra.mxu0 0.0
        %1732 = vmatprep.subr.mxu0 0.0
        %1733 = vmatpush1.msra.mxu0 0.0
        %1734 = vmatprep.subr.mxu0 0.0
        %1735 = vmatpush1.msra.mxu0 0.0
        %1736 = vmatprep.subr.mxu0 0.0
        %1737 = vmatpush1.msra.mxu0 0.0
        %1738 = vmatprep.subr.mxu0 0.0
        %1739 = vmatpush1.msra.mxu0 0.0
        %1740 = vmatprep.subr.mxu0 0.0
        %1741 = vmatpush1.msra.mxu0 0.0
        %1742 = vmatprep.subr.mxu0 0.0
        %1743 = vmatpush1.msra.mxu0 0.0
        %1744 = vmatprep.subr.mxu0 0.0
        %1745 = vmatpush1.msra.mxu0 0.0
        %1746 = vmatprep.subr.mxu0 0.0
        %1747 = vmatpush1.msra.mxu0 0.0
        %1748 = vmatprep.subr.mxu0 0.0
        %1749 = vmatpush1.msra.mxu0 0.0
        %1750 = vmatprep.subr.mxu0 0.0
        %1751 = vmatpush1.msra.mxu0 0.0
        %1752 = vmatprep.subr.mxu0 0.0
        %1753 = vmatpush1.msra.mxu0 0.0
        %1754 = vmatprep.subr.mxu0 0.0
        %1755 = vmatpush1.msra.mxu0 0.0
        %1756 = vmatprep.mubr.f32.mxu0 0.0
        %1757 = vmatmul.mubr.f32.gmra.mrb[0].mxu0 %v731
        %v1758 = vpop.f32.mrb[0].mxu0
        %v1759 = vadd.f32 0.0, %v1758
        %v1760 = vpop.f32.mrb[0].mxu0
        %1761 = vmatprep.mubr.f32.mxu0 0.0
        %1762 = vmatmul.mubr.f32.gmra.mrb[0].mxu0 %v732
        %v1763 = vpop.f32.mrb[0].mxu0
        %v1764 = vadd.f32 0.0, %v1763
        %v1765 = vpop.f32.mrb[0].mxu0
        %1766 = vmatprep.mubr.f32.mxu0 0.0
        %1767 = vmatmul.mubr.f32.gmra.mrb[0].mxu0 %v733
        %v1768 = vpop.f32.mrb[0].mxu0
        %v1769 = vadd.f32 0.0, %v1768
        %v1770 = vpop.f32.mrb[0].mxu0
        %1771 = vmatprep.mubr.f32.mxu0 0.0
        %1772 = vmatmul.mubr.f32.gmra.mrb[0].mxu0 %v734
        %v1773 = vpop.f32.mrb[0].mxu0
        %v1774 = vadd.f32 0.0, %v1773
        %v1775 = vpop.f32.mrb[0].mxu0
        %1776 = vdwg.mxu0
        %1777 = vmatprep.subr.mxu0 0.0
        %1778 = vmatpush1.msra.mxu0 %v1575
        %1779 = vmatprep.subr.mxu0 0.0
        %1780 = vmatpush1.msra.mxu0 %v1576
        %1781 = vmatprep.subr.mxu0 0.0
        %1782 = vmatpush1.msra.mxu0 %v1577
        %1783 = vmatprep.subr.mxu0 0.0
        %1784 = vmatpush1.msra.mxu0 %v1578
        %1785 = vmatprep.subr.mxu0 0.0
        %1786 = vmatpush1.msra.mxu0 %v1579
        %1787 = vmatprep.subr.mxu0 0.0
        %1788 = vmatpush1.msra.mxu0 %v1580
        %1789 = vmatprep.subr.mxu0 0.0
        %1790 = vmatpush1.msra.mxu0 %v1581
        %1791 = vmatprep.subr.mxu0 0.0
        %1792 = vmatpush1.msra.mxu0 %v1582
        %1793 = vmatprep.subr.mxu0 0.0
        %1794 = vmatpush1.msra.mxu0 %v1583
        %1795 = vmatprep.subr.mxu0 0.0
        %1796 = vmatpush1.msra.mxu0 %v1584
        %1797 = vmatprep.subr.mxu0 0.0
        %1798 = vmatpush1.msra.mxu0 %v1585
        %1799 = vmatprep.subr.mxu0 0.0
        %1800 = vmatpush1.msra.mxu0 %v1586
        %1801 = vmatprep.subr.mxu0 0.0
        %1802 = vmatpush1.msra.mxu0 %v1587
        %1803 = vmatprep.subr.mxu0 0.0
        %1804 = vmatpush1.msra.mxu0 %v1588
        %1805 = vmatprep.subr.mxu0 0.0
        %1806 = vmatpush1.msra.mxu0 %v1589
        %1807 = vmatprep.subr.mxu0 0.0
        %1808 = vmatpush1.msra.mxu0 %v1590
        %1809 = vmatprep.subr.mxu0 0.0
        %1810 = vmatpush1.msra.mxu0 0.0
        %1811 = vmatprep.subr.mxu0 0.0
        %1812 = vmatpush1.msra.mxu0 0.0
        %1813 = vmatprep.subr.mxu0 0.0
        %1814 = vmatpush1.msra.mxu0 0.0
        %1815 = vmatprep.subr.mxu0 0.0
        %1816 = vmatpush1.msra.mxu0 0.0
        %1817 = vmatprep.subr.mxu0 0.0
        %1818 = vmatpush1.msra.mxu0 0.0
        %1819 = vmatprep.subr.mxu0 0.0
        %1820 = vmatpush1.msra.mxu0 0.0
        %1821 = vmatprep.subr.mxu0 0.0
        %1822 = vmatpush1.msra.mxu0 0.0
        %1823 = vmatprep.subr.mxu0 0.0
        %1824 = vmatpush1.msra.mxu0 0.0
        %1825 = vmatprep.subr.mxu0 0.0
        %1826 = vmatpush1.msra.mxu0 0.0
        %1827 = vmatprep.subr.mxu0 0.0
        %1828 = vmatpush1.msra.mxu0 0.0
        %1829 = vmatprep.subr.mxu0 0.0
        %1830 = vmatpush1.msra.mxu0 0.0
        %1831 = vmatprep.subr.mxu0 0.0
        %1832 = vmatpush1.msra.mxu0 0.0
        %1833 = vmatprep.subr.mxu0 0.0
        %1834 = vmatpush1.msra.mxu0 0.0
        %1835 = vmatprep.subr.mxu0 0.0
        %1836 = vmatpush1.msra.mxu0 0.0
        %1837 = vmatprep.subr.mxu0 0.0
        %1838 = vmatpush1.msra.mxu0 0.0
        %1839 = vmatprep.subr.mxu0 0.0
        %1840 = vmatpush1.msra.mxu0 0.0
        %1841 = vmatprep.mubr.f32.mxu0 0.0
        %1842 = vmatmul.mubr.f32.gmra.mrb[0].mxu0 %v731
        %v1843 = vpop.f32.mrb[0].mxu0
        %v1844 = vadd.f32 0.0, %v1843
        %v1845 = vpop.f32.mrb[0].mxu0
        %1846 = vmatprep.mubr.f32.mxu0 0.0
        %1847 = vmatmul.mubr.f32.gmra.mrb[0].mxu0 %v732
        %v1848 = vpop.f32.mrb[0].mxu0
        %v1849 = vadd.f32 0.0, %v1848
        %v1850 = vpop.f32.mrb[0].mxu0
        %1851 = vmatprep.mubr.f32.mxu0 0.0
        %1852 = vmatmul.mubr.f32.gmra.mrb[0].mxu0 %v733
        %v1853 = vpop.f32.mrb[0].mxu0
        %v1854 = vadd.f32 0.0, %v1853
        %v1855 = vpop.f32.mrb[0].mxu0
        %1856 = vmatprep.mubr.f32.mxu0 0.0
        %1857 = vmatmul.mubr.f32.gmra.mrb[0].mxu0 %v734
        %v1858 = vpop.f32.mrb[0].mxu0
        %v1859 = vadd.f32 0.0, %v1858
        %v1860 = vpop.f32.mrb[0].mxu0
        %1861 = vdwg.mxu0
        %1862 = vmatprep.subr.mxu0 0.0
        %1863 = vmatpush1.msra.mxu0 %v1591
        %1864 = vmatprep.subr.mxu0 0.0
        %1865 = vmatpush1.msra.mxu0 %v1592
        %1866 = vmatprep.subr.mxu0 0.0
        %1867 = vmatpush1.msra.mxu0 %v1593
        %1868 = vmatprep.subr.mxu0 0.0
        %1869 = vmatpush1.msra.mxu0 %v1594
        %1870 = vmatprep.subr.mxu0 0.0
        %1871 = vmatpush1.msra.mxu0 %v1595
        %1872 = vmatprep.subr.mxu0 0.0
        %1873 = vmatpush1.msra.mxu0 %v1596
        %1874 = vmatprep.subr.mxu0 0.0
        %1875 = vmatpush1.msra.mxu0 %v1597
        %1876 = vmatprep.subr.mxu0 0.0
        %1877 = vmatpush1.msra.mxu0 %v1598
        %1878 = vmatprep.subr.mxu0 0.0
        %1879 = vmatpush1.msra.mxu0 %v1599
        %1880 = vmatprep.subr.mxu0 0.0
        %1881 = vmatpush1.msra.mxu0 %v1600
        %1882 = vmatprep.subr.mxu0 0.0
        %1883 = vmatpush1.msra.mxu0 %v1601
        %1884 = vmatprep.subr.mxu0 0.0
        %1885 = vmatpush1.msra.mxu0 %v1602
        %1886 = vmatprep.subr.mxu0 0.0
        %1887 = vmatpush1.msra.mxu0 %v1603
        %1888 = vmatprep.subr.mxu0 0.0
        %1889 = vmatpush1.msra.mxu0 %v1604
        %1890 = vmatprep.subr.mxu0 0.0
        %1891 = vmatpush1.msra.mxu0 %v1605
        %1892 = vmatprep.subr.mxu0 0.0
        %1893 = vmatpush1.msra.mxu0 %v1606
        %1894 = vmatprep.subr.mxu0 0.0
        %1895 = vmatpush1.msra.mxu0 0.0
        %1896 = vmatprep.subr.mxu0 0.0
        %1897 = vmatpush1.msra.mxu0 0.0
        %1898 = vmatprep.subr.mxu0 0.0
        %1899 = vmatpush1.msra.mxu0 0.0
        %1900 = vmatprep.subr.mxu0 0.0
        %1901 = vmatpush1.msra.mxu0 0.0
        %1902 = vmatprep.subr.mxu0 0.0
        %1903 = vmatpush1.msra.mxu0 0.0
        %1904 = vmatprep.subr.mxu0 0.0
        %1905 = vmatpush1.msra.mxu0 0.0
        %1906 = vmatprep.subr.mxu0 0.0
        %1907 = vmatpush1.msra.mxu0 0.0
        %1908 = vmatprep.subr.mxu0 0.0
        %1909 = vmatpush1.msra.mxu0 0.0
        %1910 = vmatprep.subr.mxu0 0.0
        %1911 = vmatpush1.msra.mxu0 0.0
        %1912 = vmatprep.subr.mxu0 0.0
        %1913 = vmatpush1.msra.mxu0 0.0
        %1914 = vmatprep.subr.mxu0 0.0
        %1915 = vmatpush1.msra.mxu0 0.0
        %1916 = vmatprep.subr.mxu0 0.0
        %1917 = vmatpush1.msra.mxu0 0.0
        %1918 = vmatprep.subr.mxu0 0.0
        %1919 = vmatpush1.msra.mxu0 0.0
        %1920 = vmatprep.subr.mxu0 0.0
        %1921 = vmatpush1.msra.mxu0 0.0
        %1922 = vmatprep.subr.mxu0 0.0
        %1923 = vmatpush1.msra.mxu0 0.0
        %1924 = vmatprep.subr.mxu0 0.0
        %1925 = vmatpush1.msra.mxu0 0.0
        %1926 = vmatprep.mubr.f32.mxu0 0.0
        %1927 = vmatmul.mubr.f32.gmra.mrb[0].mxu0 %v731
        %v1928 = vpop.f32.mrb[0].mxu0
        %v1929 = vadd.f32 0.0, %v1928
        %v1930 = vpop.f32.mrb[0].mxu0
        %1931 = vmatprep.mubr.f32.mxu0 0.0
        %1932 = vmatmul.mubr.f32.gmra.mrb[0].mxu0 %v732
        %v1933 = vpop.f32.mrb[0].mxu0
        %v1934 = vadd.f32 0.0, %v1933
        %v1935 = vpop.f32.mrb[0].mxu0
        %1936 = vmatprep.mubr.f32.mxu0 0.0
        %1937 = vmatmul.mubr.f32.gmra.mrb[0].mxu0 %v733
        %v1938 = vpop.f32.mrb[0].mxu0
        %v1939 = vadd.f32 0.0, %v1938
        %v1940 = vpop.f32.mrb[0].mxu0
        %1941 = vmatprep.mubr.f32.mxu0 0.0
        %1942 = vmatmul.mubr.f32.gmra.mrb[0].mxu0 %v734
        %v1943 = vpop.f32.mrb[0].mxu0
        %v1944 = vadd.f32 0.0, %v1943
        %v1945 = vpop.f32.mrb[0].mxu0
        %1946 = vdwg.mxu0
        %v1948 = vsel %vm559, %v866, 0
        %v1951 = vsel %vm559, %v871, 0
        %v1954 = vsel %vm559, %v876, 0
        %v1957 = vsel %vm559, %v881, 0
        %v1960 = vsel %vm559, %v1270, 0
        %v1963 = vsel %vm559, %v1275, 0
        %v1966 = vsel %vm559, %v1280, 0
        %v1969 = vsel %vm559, %v1285, 0
        %1971 = vmatprep.subr.mxu0 0.0
        %1972 = vmatpush1.xpose.msra.mxu0 %v1960
        %1973 = vmatprep.subr.mxu0 0.0
        %1974 = vmatpush1.xpose.msra.mxu0 %v1963
        %1975 = vmatprep.subr.mxu0 0.0
        %1976 = vmatpush1.xpose.msra.mxu0 %v1966
        %1977 = vmatprep.subr.mxu0 0.0
        %1978 = vmatpush1.xpose.msra.mxu0 %v1969
        %1979 = vmatprep.subr.mxu0 0.0
        %1980 = vmatpush1.xpose.msra.mxu0 0.0
        %1981 = vmatprep.subr.mxu0 0.0
        %1982 = vmatpush1.xpose.msra.mxu0 0.0
        %1983 = vmatprep.subr.mxu0 0.0
        %1984 = vmatpush1.xpose.msra.mxu0 0.0
        %1985 = vmatprep.subr.mxu0 0.0
        %1986 = vmatpush1.xpose.msra.mxu0 0.0
        %1987 = vmatprep.subr.mxu0 0.0
        %1988 = vmatpush1.xpose.msra.mxu0 0.0
        %1989 = vmatprep.subr.mxu0 0.0
        %1990 = vmatpush1.xpose.msra.mxu0 0.0
        %1991 = vmatprep.subr.mxu0 0.0
        %1992 = vmatpush1.xpose.msra.mxu0 0.0
        %1993 = vmatprep.subr.mxu0 0.0
        %1994 = vmatpush1.xpose.msra.mxu0 0.0
        %1995 = vmatprep.subr.mxu0 0.0
        %1996 = vmatpush1.xpose.msra.mxu0 0.0
        %1997 = vmatprep.subr.mxu0 0.0
        %1998 = vmatpush1.xpose.msra.mxu0 0.0
        %1999 = vmatprep.subr.mxu0 0.0
        %2000 = vmatpush1.xpose.msra.mxu0 0.0
        %2001 = vmatprep.subr.mxu0 0.0
        %2002 = vmatpush1.xpose.msra.mxu0 0.0
        %2003 = vmatprep.subr.mxu0 0.0
        %2004 = vmatpush1.xpose.msra.mxu0 0.0
        %2005 = vmatprep.subr.mxu0 0.0
        %2006 = vmatpush1.xpose.msra.mxu0 0.0
        %2007 = vmatprep.subr.mxu0 0.0
        %2008 = vmatpush1.xpose.msra.mxu0 0.0
        %2009 = vmatprep.subr.mxu0 0.0
        %2010 = vmatpush1.xpose.msra.mxu0 0.0
        %2011 = vmatprep.subr.mxu0 0.0
        %2012 = vmatpush1.xpose.msra.mxu0 0.0
        %2013 = vmatprep.subr.mxu0 0.0
        %2014 = vmatpush1.xpose.msra.mxu0 0.0
        %2015 = vmatprep.subr.mxu0 0.0
        %2016 = vmatpush1.xpose.msra.mxu0 0.0
        %2017 = vmatprep.subr.mxu0 0.0
        %2018 = vmatpush1.xpose.msra.mxu0 0.0
        %2019 = vmatprep.subr.mxu0 0.0
        %2020 = vmatpush1.xpose.msra.mxu0 0.0
        %2021 = vmatprep.subr.mxu0 0.0
        %2022 = vmatpush1.xpose.msra.mxu0 0.0
        %2023 = vmatprep.subr.mxu0 0.0
        %2024 = vmatpush1.xpose.msra.mxu0 0.0
        %2025 = vmatprep.subr.mxu0 0.0
        %2026 = vmatpush1.xpose.msra.mxu0 0.0
        %2027 = vmatprep.subr.mxu0 0.0
        %2028 = vmatpush1.xpose.msra.mxu0 0.0
        %2029 = vmatprep.subr.mxu0 0.0
        %2030 = vmatpush1.xpose.msra.mxu0 0.0
        %2031 = vmatprep.subr.mxu0 0.0
        %2032 = vmatpush1.xpose.msra.mxu0 0.0
        %2033 = vmatprep.subr.mxu0 0.0
        %2034 = vmatpush1.xpose.msra.mxu0 0.0
        %2035 = vmatprep.mubr.f32.mxu0 0.0
        %2036 = vmatmul.mubr.f32.gmra.mrb[0].mxu0 %v1948
        %v2037 = vpop.f32.mrb[0].mxu0
        %v2038 = vadd.f32 %v657, %v2037
        %v2039 = vpop.f32.mrb[0].mxu0
        %2040 = vmatprep.mubr.f32.mxu0 0.0
        %2041 = vmatmul.mubr.f32.gmra.mrb[0].mxu0 %v1951
        %v2042 = vpop.f32.mrb[0].mxu0
        %v2043 = vadd.f32 %v658, %v2042
        %v2044 = vpop.f32.mrb[0].mxu0
        %2045 = vmatprep.mubr.f32.mxu0 0.0
        %2046 = vmatmul.mubr.f32.gmra.mrb[0].mxu0 %v1954
        %v2047 = vpop.f32.mrb[0].mxu0
        %v2048 = vadd.f32 %v659, %v2047
        %v2049 = vpop.f32.mrb[0].mxu0
        %2050 = vmatprep.mubr.f32.mxu0 0.0
        %2051 = vmatmul.mubr.f32.gmra.mrb[0].mxu0 %v1957
        %v2052 = vpop.f32.mrb[0].mxu0
        %v2053 = vadd.f32 %v660, %v2052
        %v2054 = vpop.f32.mrb[0].mxu0
        %2055 = vdwg.mxu0
        %v2057 = vsel %vm559, %v951, 0
        %v2060 = vsel %vm559, %v956, 0
        %v2063 = vsel %vm559, %v961, 0
        %v2066 = vsel %vm559, %v966, 0
        %v2069 = vsel %vm559, %v1355, 0
        %v2072 = vsel %vm559, %v1360, 0
        %v2075 = vsel %vm559, %v1365, 0
        %v2078 = vsel %vm559, %v1370, 0
        %2080 = vmatprep.subr.mxu0 0.0
        %2081 = vmatpush1.xpose.msra.mxu0 %v2069
        %2082 = vmatprep.subr.mxu0 0.0
        %2083 = vmatpush1.xpose.msra.mxu0 %v2072
        %2084 = vmatprep.subr.mxu0 0.0
        %2085 = vmatpush1.xpose.msra.mxu0 %v2075
        %2086 = vmatprep.subr.mxu0 0.0
        %2087 = vmatpush1.xpose.msra.mxu0 %v2078
        %2088 = vmatprep.subr.mxu0 0.0
        %2089 = vmatpush1.xpose.msra.mxu0 0.0
        %2090 = vmatprep.subr.mxu0 0.0
        %2091 = vmatpush1.xpose.msra.mxu0 0.0
        %2092 = vmatprep.subr.mxu0 0.0
        %2093 = vmatpush1.xpose.msra.mxu0 0.0
        %2094 = vmatprep.subr.mxu0 0.0
        %2095 = vmatpush1.xpose.msra.mxu0 0.0
        %2096 = vmatprep.subr.mxu0 0.0
        %2097 = vmatpush1.xpose.msra.mxu0 0.0
        %2098 = vmatprep.subr.mxu0 0.0
        %2099 = vmatpush1.xpose.msra.mxu0 0.0
        %2100 = vmatprep.subr.mxu0 0.0
        %2101 = vmatpush1.xpose.msra.mxu0 0.0
        %2102 = vmatprep.subr.mxu0 0.0
        %2103 = vmatpush1.xpose.msra.mxu0 0.0
        %2104 = vmatprep.subr.mxu0 0.0
        %2105 = vmatpush1.xpose.msra.mxu0 0.0
        %2106 = vmatprep.subr.mxu0 0.0
        %2107 = vmatpush1.xpose.msra.mxu0 0.0
        %2108 = vmatprep.subr.mxu0 0.0
        %2109 = vmatpush1.xpose.msra.mxu0 0.0
        %2110 = vmatprep.subr.mxu0 0.0
        %2111 = vmatpush1.xpose.msra.mxu0 0.0
        %2112 = vmatprep.subr.mxu0 0.0
        %2113 = vmatpush1.xpose.msra.mxu0 0.0
        %2114 = vmatprep.subr.mxu0 0.0
        %2115 = vmatpush1.xpose.msra.mxu0 0.0
        %2116 = vmatprep.subr.mxu0 0.0
        %2117 = vmatpush1.xpose.msra.mxu0 0.0
        %2118 = vmatprep.subr.mxu0 0.0
        %2119 = vmatpush1.xpose.msra.mxu0 0.0
        %2120 = vmatprep.subr.mxu0 0.0
        %2121 = vmatpush1.xpose.msra.mxu0 0.0
        %2122 = vmatprep.subr.mxu0 0.0
        %2123 = vmatpush1.xpose.msra.mxu0 0.0
        %2124 = vmatprep.subr.mxu0 0.0
        %2125 = vmatpush1.xpose.msra.mxu0 0.0
        %2126 = vmatprep.subr.mxu0 0.0
        %2127 = vmatpush1.xpose.msra.mxu0 0.0
        %2128 = vmatprep.subr.mxu0 0.0
        %2129 = vmatpush1.xpose.msra.mxu0 0.0
        %2130 = vmatprep.subr.mxu0 0.0
        %2131 = vmatpush1.xpose.msra.mxu0 0.0
        %2132 = vmatprep.subr.mxu0 0.0
        %2133 = vmatpush1.xpose.msra.mxu0 0.0
        %2134 = vmatprep.subr.mxu0 0.0
        %2135 = vmatpush1.xpose.msra.mxu0 0.0
        %2136 = vmatprep.subr.mxu0 0.0
        %2137 = vmatpush1.xpose.msra.mxu0 0.0
        %2138 = vmatprep.subr.mxu0 0.0
        %2139 = vmatpush1.xpose.msra.mxu0 0.0
        %2140 = vmatprep.subr.mxu0 0.0
        %2141 = vmatpush1.xpose.msra.mxu0 0.0
        %2142 = vmatprep.subr.mxu0 0.0
        %2143 = vmatpush1.xpose.msra.mxu0 0.0
        %2144 = vmatprep.mubr.f32.mxu0 0.0
        %2145 = vmatmul.mubr.f32.gmra.mrb[0].mxu0 %v2057
        %v2146 = vpop.f32.mrb[0].mxu0
        %v2147 = vadd.f32 %v657, %v2146
        %v2148 = vpop.f32.mrb[0].mxu0
        %2149 = vmatprep.mubr.f32.mxu0 0.0
        %2150 = vmatmul.mubr.f32.gmra.mrb[0].mxu0 %v2060
        %v2151 = vpop.f32.mrb[0].mxu0
        %v2152 = vadd.f32 %v658, %v2151
        %v2153 = vpop.f32.mrb[0].mxu0
        %2154 = vmatprep.mubr.f32.mxu0 0.0
        %2155 = vmatmul.mubr.f32.gmra.mrb[0].mxu0 %v2063
        %v2156 = vpop.f32.mrb[0].mxu0
        %v2157 = vadd.f32 %v659, %v2156
        %v2158 = vpop.f32.mrb[0].mxu0
        %2159 = vmatprep.mubr.f32.mxu0 0.0
        %2160 = vmatmul.mubr.f32.gmra.mrb[0].mxu0 %v2066
        %v2161 = vpop.f32.mrb[0].mxu0
        %v2162 = vadd.f32 %v660, %v2161
        %v2163 = vpop.f32.mrb[0].mxu0
        %2164 = vdwg.mxu0
        %v2166 = vsel %vm559, %v1036, 0
        %v2169 = vsel %vm559, %v1041, 0
        %v2172 = vsel %vm559, %v1046, 0
        %v2175 = vsel %vm559, %v1051, 0
        %v2178 = vsel %vm559, %v1440, 0
        %v2181 = vsel %vm559, %v1445, 0
        %v2184 = vsel %vm559, %v1450, 0
        %v2187 = vsel %vm559, %v1455, 0
        %2189 = vmatprep.subr.mxu0 0.0
        %2190 = vmatpush1.xpose.msra.mxu0 %v2178
        %2191 = vmatprep.subr.mxu0 0.0
        %2192 = vmatpush1.xpose.msra.mxu0 %v2181
        %2193 = vmatprep.subr.mxu0 0.0
        %2194 = vmatpush1.xpose.msra.mxu0 %v2184
        %2195 = vmatprep.subr.mxu0 0.0
        %2196 = vmatpush1.xpose.msra.mxu0 %v2187
        %2197 = vmatprep.subr.mxu0 0.0
        %2198 = vmatpush1.xpose.msra.mxu0 0.0
        %2199 = vmatprep.subr.mxu0 0.0
        %2200 = vmatpush1.xpose.msra.mxu0 0.0
        %2201 = vmatprep.subr.mxu0 0.0
        %2202 = vmatpush1.xpose.msra.mxu0 0.0
        %2203 = vmatprep.subr.mxu0 0.0
        %2204 = vmatpush1.xpose.msra.mxu0 0.0
        %2205 = vmatprep.subr.mxu0 0.0
        %2206 = vmatpush1.xpose.msra.mxu0 0.0
        %2207 = vmatprep.subr.mxu0 0.0
        %2208 = vmatpush1.xpose.msra.mxu0 0.0
        %2209 = vmatprep.subr.mxu0 0.0
        %2210 = vmatpush1.xpose.msra.mxu0 0.0
        %2211 = vmatprep.subr.mxu0 0.0
        %2212 = vmatpush1.xpose.msra.mxu0 0.0
        %2213 = vmatprep.subr.mxu0 0.0
        %2214 = vmatpush1.xpose.msra.mxu0 0.0
        %2215 = vmatprep.subr.mxu0 0.0
        %2216 = vmatpush1.xpose.msra.mxu0 0.0
        %2217 = vmatprep.subr.mxu0 0.0
        %2218 = vmatpush1.xpose.msra.mxu0 0.0
        %2219 = vmatprep.subr.mxu0 0.0
        %2220 = vmatpush1.xpose.msra.mxu0 0.0
        %2221 = vmatprep.subr.mxu0 0.0
        %2222 = vmatpush1.xpose.msra.mxu0 0.0
        %2223 = vmatprep.subr.mxu0 0.0
        %2224 = vmatpush1.xpose.msra.mxu0 0.0
        %2225 = vmatprep.subr.mxu0 0.0
        %2226 = vmatpush1.xpose.msra.mxu0 0.0
        %2227 = vmatprep.subr.mxu0 0.0
        %2228 = vmatpush1.xpose.msra.mxu0 0.0
        %2229 = vmatprep.subr.mxu0 0.0
        %2230 = vmatpush1.xpose.msra.mxu0 0.0
        %2231 = vmatprep.subr.mxu0 0.0
        %2232 = vmatpush1.xpose.msra.mxu0 0.0
        %2233 = vmatprep.subr.mxu0 0.0
        %2234 = vmatpush1.xpose.msra.mxu0 0.0
        %2235 = vmatprep.subr.mxu0 0.0
        %2236 = vmatpush1.xpose.msra.mxu0 0.0
        %2237 = vmatprep.subr.mxu0 0.0
        %2238 = vmatpush1.xpose.msra.mxu0 0.0
        %2239 = vmatprep.subr.mxu0 0.0
        %2240 = vmatpush1.xpose.msra.mxu0 0.0
        %2241 = vmatprep.subr.mxu0 0.0
        %2242 = vmatpush1.xpose.msra.mxu0 0.0
        %2243 = vmatprep.subr.mxu0 0.0
        %2244 = vmatpush1.xpose.msra.mxu0 0.0
        %2245 = vmatprep.subr.mxu0 0.0
        %2246 = vmatpush1.xpose.msra.mxu0 0.0
        %2247 = vmatprep.subr.mxu0 0.0
        %2248 = vmatpush1.xpose.msra.mxu0 0.0
        %2249 = vmatprep.subr.mxu0 0.0
        %2250 = vmatpush1.xpose.msra.mxu0 0.0
        %2251 = vmatprep.subr.mxu0 0.0
        %2252 = vmatpush1.xpose.msra.mxu0 0.0
        %2253 = vmatprep.mubr.f32.mxu0 0.0
        %2254 = vmatmul.mubr.f32.gmra.mrb[0].mxu0 %v2166
        %v2255 = vpop.f32.mrb[0].mxu0
        %v2256 = vadd.f32 %v657, %v2255
        %v2257 = vpop.f32.mrb[0].mxu0
        %2258 = vmatprep.mubr.f32.mxu0 0.0
        %2259 = vmatmul.mubr.f32.gmra.mrb[0].mxu0 %v2169
        %v2260 = vpop.f32.mrb[0].mxu0
        %v2261 = vadd.f32 %v658, %v2260
        %v2262 = vpop.f32.mrb[0].mxu0
        %2263 = vmatprep.mubr.f32.mxu0 0.0
        %2264 = vmatmul.mubr.f32.gmra.mrb[0].mxu0 %v2172
        %v2265 = vpop.f32.mrb[0].mxu0
        %v2266 = vadd.f32 %v659, %v2265
        %v2267 = vpop.f32.mrb[0].mxu0
        %2268 = vmatprep.mubr.f32.mxu0 0.0
        %2269 = vmatmul.mubr.f32.gmra.mrb[0].mxu0 %v2175
        %v2270 = vpop.f32.mrb[0].mxu0
        %v2271 = vadd.f32 %v660, %v2270
        %v2272 = vpop.f32.mrb[0].mxu0
        %2273 = vdwg.mxu0
        %v2275 = vsel %vm559, %v1121, 0
        %v2278 = vsel %vm559, %v1126, 0
        %v2281 = vsel %vm559, %v1131, 0
        %v2284 = vsel %vm559, %v1136, 0
        %v2287 = vsel %vm559, %v1525, 0
        %v2290 = vsel %vm559, %v1530, 0
        %v2293 = vsel %vm559, %v1535, 0
        %v2296 = vsel %vm559, %v1540, 0
        %2298 = vmatprep.subr.mxu0 0.0
        %2299 = vmatpush1.xpose.msra.mxu0 %v2287
        %2300 = vmatprep.subr.mxu0 0.0
        %2301 = vmatpush1.xpose.msra.mxu0 %v2290
        %2302 = vmatprep.subr.mxu0 0.0
        %2303 = vmatpush1.xpose.msra.mxu0 %v2293
        %2304 = vmatprep.subr.mxu0 0.0
        %2305 = vmatpush1.xpose.msra.mxu0 %v2296
        %2306 = vmatprep.subr.mxu0 0.0
        %2307 = vmatpush1.xpose.msra.mxu0 0.0
        %2308 = vmatprep.subr.mxu0 0.0
        %2309 = vmatpush1.xpose.msra.mxu0 0.0
        %2310 = vmatprep.subr.mxu0 0.0
        %2311 = vmatpush1.xpose.msra.mxu0 0.0
        %2312 = vmatprep.subr.mxu0 0.0
        %2313 = vmatpush1.xpose.msra.mxu0 0.0
        %2314 = vmatprep.subr.mxu0 0.0
        %2315 = vmatpush1.xpose.msra.mxu0 0.0
        %2316 = vmatprep.subr.mxu0 0.0
        %2317 = vmatpush1.xpose.msra.mxu0 0.0
        %2318 = vmatprep.subr.mxu0 0.0
        %2319 = vmatpush1.xpose.msra.mxu0 0.0
        %2320 = vmatprep.subr.mxu0 0.0
        %2321 = vmatpush1.xpose.msra.mxu0 0.0
        %2322 = vmatprep.subr.mxu0 0.0
        %2323 = vmatpush1.xpose.msra.mxu0 0.0
        %2324 = vmatprep.subr.mxu0 0.0
        %2325 = vmatpush1.xpose.msra.mxu0 0.0
        %2326 = vmatprep.subr.mxu0 0.0
        %2327 = vmatpush1.xpose.msra.mxu0 0.0
        %2328 = vmatprep.subr.mxu0 0.0
        %2329 = vmatpush1.xpose.msra.mxu0 0.0
        %2330 = vmatprep.subr.mxu0 0.0
        %2331 = vmatpush1.xpose.msra.mxu0 0.0
        %2332 = vmatprep.subr.mxu0 0.0
        %2333 = vmatpush1.xpose.msra.mxu0 0.0
        %2334 = vmatprep.subr.mxu0 0.0
        %2335 = vmatpush1.xpose.msra.mxu0 0.0
        %2336 = vmatprep.subr.mxu0 0.0
        %2337 = vmatpush1.xpose.msra.mxu0 0.0
        %2338 = vmatprep.subr.mxu0 0.0
        %2339 = vmatpush1.xpose.msra.mxu0 0.0
        %2340 = vmatprep.subr.mxu0 0.0
        %2341 = vmatpush1.xpose.msra.mxu0 0.0
        %2342 = vmatprep.subr.mxu0 0.0
        %2343 = vmatpush1.xpose.msra.mxu0 0.0
        %2344 = vmatprep.subr.mxu0 0.0
        %2345 = vmatpush1.xpose.msra.mxu0 0.0
        %2346 = vmatprep.subr.mxu0 0.0
        %2347 = vmatpush1.xpose.msra.mxu0 0.0
        %2348 = vmatprep.subr.mxu0 0.0
        %2349 = vmatpush1.xpose.msra.mxu0 0.0
        %2350 = vmatprep.subr.mxu0 0.0
        %2351 = vmatpush1.xpose.msra.mxu0 0.0
        %2352 = vmatprep.subr.mxu0 0.0
        %2353 = vmatpush1.xpose.msra.mxu0 0.0
        %2354 = vmatprep.subr.mxu0 0.0
        %2355 = vmatpush1.xpose.msra.mxu0 0.0
        %2356 = vmatprep.subr.mxu0 0.0
        %2357 = vmatpush1.xpose.msra.mxu0 0.0
        %2358 = vmatprep.subr.mxu0 0.0
        %2359 = vmatpush1.xpose.msra.mxu0 0.0
        %2360 = vmatprep.subr.mxu0 0.0
        %2361 = vmatpush1.xpose.msra.mxu0 0.0
        %2362 = vmatprep.mubr.f32.mxu0 0.0
        %2363 = vmatmul.mubr.f32.gmra.mrb[0].mxu0 %v2275
        %v2364 = vpop.f32.mrb[0].mxu0
        %v2365 = vadd.f32 %v657, %v2364
        %v2366 = vpop.f32.mrb[0].mxu0
        %2367 = vmatprep.mubr.f32.mxu0 0.0
        %2368 = vmatmul.mubr.f32.gmra.mrb[0].mxu0 %v2278
        %v2369 = vpop.f32.mrb[0].mxu0
        %v2370 = vadd.f32 %v658, %v2369
        %v2371 = vpop.f32.mrb[0].mxu0
        %2372 = vmatprep.mubr.f32.mxu0 0.0
        %2373 = vmatmul.mubr.f32.gmra.mrb[0].mxu0 %v2281
        %v2374 = vpop.f32.mrb[0].mxu0
        %v2375 = vadd.f32 %v659, %v2374
        %v2376 = vpop.f32.mrb[0].mxu0
        %2377 = vmatprep.mubr.f32.mxu0 0.0
        %2378 = vmatmul.mubr.f32.gmra.mrb[0].mxu0 %v2284
        %v2379 = vpop.f32.mrb[0].mxu0
        %v2380 = vadd.f32 %v660, %v2379
        %v2381 = vpop.f32.mrb[0].mxu0
        %2382 = vdwg.mxu0
        %v2383 = vsel %vm559, %v2038, -inf
        %2384 = vmax.xlane.f32.xlu0 %v2383
        %v2385 = vpop.xlane.xlu0 %2384
        %v2386 = vsel %vm559, %v2043, -inf
        %2387 = vmax.xlane.f32.xlu0 %v2386
        %v2388 = vpop.xlane.xlu0 %2387
        %v2389 = vsel %vm559, %v2048, -inf
        %2390 = vmax.xlane.f32.xlu0 %v2389
        %v2391 = vpop.xlane.xlu0 %2390
        %v2392 = vsel %vm559, %v2053, -inf
        %2393 = vmax.xlane.f32.xlu0 %v2392
        %v2394 = vpop.xlane.xlu0 %2393
        %v2395 = vsel %vm559, %v2147, -inf
        %2396 = vmax.xlane.f32.xlu0 %v2395
        %v2397 = vpop.xlane.xlu0 %2396
        %v2398 = vsel %vm559, %v2152, -inf
        %2399 = vmax.xlane.f32.xlu0 %v2398
        %v2400 = vpop.xlane.xlu0 %2399
        %v2401 = vsel %vm559, %v2157, -inf
        %2402 = vmax.xlane.f32.xlu0 %v2401
        %v2403 = vpop.xlane.xlu0 %2402
        %v2404 = vsel %vm559, %v2162, -inf
        %2405 = vmax.xlane.f32.xlu0 %v2404
        %v2406 = vpop.xlane.xlu0 %2405
        %v2407 = vsel %vm559, %v2256, -inf
        %2408 = vmax.xlane.f32.xlu0 %v2407
        %v2409 = vpop.xlane.xlu0 %2408
        %v2410 = vsel %vm559, %v2261, -inf
        %2411 = vmax.xlane.f32.xlu0 %v2410
        %v2412 = vpop.xlane.xlu0 %2411
        %v2413 = vsel %vm559, %v2266, -inf
        %2414 = vmax.xlane.f32.xlu0 %v2413
        %v2415 = vpop.xlane.xlu0 %2414
        %v2416 = vsel %vm559, %v2271, -inf
        %2417 = vmax.xlane.f32.xlu0 %v2416
        %v2418 = vpop.xlane.xlu0 %2417
        %v2419 = vsel %vm559, %v2365, -inf
        %2420 = vmax.xlane.f32.xlu0 %v2419
        %v2421 = vpop.xlane.xlu0 %2420
        %v2422 = vsel %vm559, %v2370, -inf
        %2423 = vmax.xlane.f32.xlu0 %v2422
        %v2424 = vpop.xlane.xlu0 %2423
        %v2425 = vsel %vm559, %v2375, -inf
        %2426 = vmax.xlane.f32.xlu0 %v2425
        %v2427 = vpop.xlane.xlu0 %2426
        %v2428 = vsel %vm559, %v2380, -inf
        %2429 = vmax.xlane.f32.xlu0 %v2428
        %v2430 = vpop.xlane.xlu0 %2429
        %v2431 = vsub.f32 %v2038, %v2385
        %v2432 = vsub.f32 %v2043, %v2388
        %v2433 = vsub.f32 %v2048, %v2391
        %v2434 = vsub.f32 %v2053, %v2394
        %v2435 = vsub.f32 %v2147, %v2397
        %v2436 = vsub.f32 %v2152, %v2400
        %v2437 = vsub.f32 %v2157, %v2403
        %v2438 = vsub.f32 %v2162, %v2406
        %v2439 = vsub.f32 %v2256, %v2409
        %v2440 = vsub.f32 %v2261, %v2412
        %v2441 = vsub.f32 %v2266, %v2415
        %v2442 = vsub.f32 %v2271, %v2418
        %v2443 = vsub.f32 %v2365, %v2421
        %v2444 = vsub.f32 %v2370, %v2424
        %v2445 = vsub.f32 %v2375, %v2427
        %v2446 = vsub.f32 %v2380, %v2430
        %v2447 = vmul.f32 %v2431, 1.442695
        %v2448 = vpow.pop %v2447
        %v2449 = vmul.f32 %v2432, 1.442695
        %v2450 = vpow.pop %v2449
        %v2451 = vmul.f32 %v2433, 1.442695
        %v2452 = vpow.pop %v2451
        %v2453 = vmul.f32 %v2434, 1.442695
        %v2454 = vpow.pop %v2453
        %v2455 = vmul.f32 %v2435, 1.442695
        %v2456 = vpow.pop %v2455
        %v2457 = vmul.f32 %v2436, 1.442695
        %v2458 = vpow.pop %v2457
        %v2459 = vmul.f32 %v2437, 1.442695
        %v2460 = vpow.pop %v2459
        %v2461 = vmul.f32 %v2438, 1.442695
        %v2462 = vpow.pop %v2461
        %v2463 = vmul.f32 %v2439, 1.442695
        %v2464 = vpow.pop %v2463
        %v2465 = vmul.f32 %v2440, 1.442695
        %v2466 = vpow.pop %v2465
        %v2467 = vmul.f32 %v2441, 1.442695
        %v2468 = vpow.pop %v2467
        %v2469 = vmul.f32 %v2442, 1.442695
        %v2470 = vpow.pop %v2469
        %v2471 = vmul.f32 %v2443, 1.442695
        %v2472 = vpow.pop %v2471
        %v2473 = vmul.f32 %v2444, 1.442695
        %v2474 = vpow.pop %v2473
        %v2475 = vmul.f32 %v2445, 1.442695
        %v2476 = vpow.pop %v2475
        %v2477 = vmul.f32 %v2446, 1.442695
        %v2478 = vpow.pop %v2477
        %v2479 = vsel %vm559, %v2448, 0.0
        %2480 = vadd.xlane.f32.xlu0 %v2479
        %v2481 = vpop.xlane.xlu0 %2480
        %v2482 = vsel %vm559, %v2450, 0.0
        %2483 = vadd.xlane.f32.xlu0 %v2482
        %v2484 = vpop.xlane.xlu0 %2483
        %v2485 = vsel %vm559, %v2452, 0.0
        %2486 = vadd.xlane.f32.xlu0 %v2485
        %v2487 = vpop.xlane.xlu0 %2486
        %v2488 = vsel %vm559, %v2454, 0.0
        %2489 = vadd.xlane.f32.xlu0 %v2488
        %v2490 = vpop.xlane.xlu0 %2489
        %v2491 = vsel %vm559, %v2456, 0.0
        %2492 = vadd.xlane.f32.xlu0 %v2491
        %v2493 = vpop.xlane.xlu0 %2492
        %v2494 = vsel %vm559, %v2458, 0.0
        %2495 = vadd.xlane.f32.xlu0 %v2494
        %v2496 = vpop.xlane.xlu0 %2495
        %v2497 = vsel %vm559, %v2460, 0.0
        %2498 = vadd.xlane.f32.xlu0 %v2497
        %v2499 = vpop.xlane.xlu0 %2498
        %v2500 = vsel %vm559, %v2462, 0.0
        %2501 = vadd.xlane.f32.xlu0 %v2500
        %v2502 = vpop.xlane.xlu0 %2501
        %v2503 = vsel %vm559, %v2464, 0.0
        %2504 = vadd.xlane.f32.xlu0 %v2503
        %v2505 = vpop.xlane.xlu0 %2504
        %v2506 = vsel %vm559, %v2466, 0.0
        %2507 = vadd.xlane.f32.xlu0 %v2506
        %v2508 = vpop.xlane.xlu0 %2507
        %v2509 = vsel %vm559, %v2468, 0.0
        %2510 = vadd.xlane.f32.xlu0 %v2509
        %v2511 = vpop.xlane.xlu0 %2510
        %v2512 = vsel %vm559, %v2470, 0.0
        %2513 = vadd.xlane.f32.xlu0 %v2512
        %v2514 = vpop.xlane.xlu0 %2513
        %v2515 = vsel %vm559, %v2472, 0.0
        %2516 = vadd.xlane.f32.xlu0 %v2515
        %v2517 = vpop.xlane.xlu0 %2516
        %v2518 = vsel %vm559, %v2474, 0.0
        %2519 = vadd.xlane.f32.xlu0 %v2518
        %v2520 = vpop.xlane.xlu0 %2519
        %v2521 = vsel %vm559, %v2476, 0.0
        %2522 = vadd.xlane.f32.xlu0 %v2521
        %v2523 = vpop.xlane.xlu0 %2522
        %v2524 = vsel %vm559, %v2478, 0.0
        %2525 = vadd.xlane.f32.xlu0 %v2524
        %v2526 = vpop.xlane.xlu0 %2525
        %v2527 = vrcp.pop %v2481
        %v2528 = vrcp.pop %v2484
        %v2529 = vrcp.pop %v2487
        %v2530 = vrcp.pop %v2490
        %v2531 = vrcp.pop %v2493
        %v2532 = vrcp.pop %v2496
        %v2533 = vrcp.pop %v2499
        %v2534 = vrcp.pop %v2502
        %v2535 = vrcp.pop %v2505
        %v2536 = vrcp.pop %v2508
        %v2537 = vrcp.pop %v2511
        %v2538 = vrcp.pop %v2514
        %v2539 = vrcp.pop %v2517
        %v2540 = vrcp.pop %v2520
        %v2541 = vrcp.pop %v2523
        %v2542 = vrcp.pop %v2526
        %v2543 = vmul.f32 %v2448, %v2527
        %v2544 = vmul.f32 %v2450, %v2528
        %v2545 = vmul.f32 %v2452, %v2529
        %v2546 = vmul.f32 %v2454, %v2530
        %v2547 = vmul.f32 %v2456, %v2531
        %v2548 = vmul.f32 %v2458, %v2532
        %v2549 = vmul.f32 %v2460, %v2533
        %v2550 = vmul.f32 %v2462, %v2534
        %v2551 = vmul.f32 %v2464, %v2535
        %v2552 = vmul.f32 %v2466, %v2536
        %v2553 = vmul.f32 %v2468, %v2537
        %v2554 = vmul.f32 %v2470, %v2538
        %v2555 = vmul.f32 %v2472, %v2539
        %v2556 = vmul.f32 %v2474, %v2540
        %v2557 = vmul.f32 %v2476, %v2541
        %v2558 = vmul.f32 %v2478, %v2542
        %v2560 = vsel %vm559, %v2543, 0
        %v2563 = vsel %vm559, %v2544, 0
        %v2566 = vsel %vm559, %v2545, 0
        %v2569 = vsel %vm559, %v2546, 0
        %2571 = vmatprep.subr.mxu0 0.0
        %2572 = vmatpush1.msra.mxu0 %v1674
        %2573 = vmatprep.subr.mxu0 0.0
        %2574 = vmatpush1.msra.mxu0 %v1679
        %2575 = vmatprep.subr.mxu0 0.0
        %2576 = vmatpush1.msra.mxu0 %v1684
        %2577 = vmatprep.subr.mxu0 0.0
        %2578 = vmatpush1.msra.mxu0 %v1689
        %2579 = vmatprep.subr.mxu0 0.0
        %2580 = vmatpush1.msra.mxu0 0.0
        %2581 = vmatprep.subr.mxu0 0.0
        %2582 = vmatpush1.msra.mxu0 0.0
        %2583 = vmatprep.subr.mxu0 0.0
        %2584 = vmatpush1.msra.mxu0 0.0
        %2585 = vmatprep.subr.mxu0 0.0
        %2586 = vmatpush1.msra.mxu0 0.0
        %2587 = vmatprep.subr.mxu0 0.0
        %2588 = vmatpush1.msra.mxu0 0.0
        %2589 = vmatprep.subr.mxu0 0.0
        %2590 = vmatpush1.msra.mxu0 0.0
        %2591 = vmatprep.subr.mxu0 0.0
        %2592 = vmatpush1.msra.mxu0 0.0
        %2593 = vmatprep.subr.mxu0 0.0
        %2594 = vmatpush1.msra.mxu0 0.0
        %2595 = vmatprep.subr.mxu0 0.0
        %2596 = vmatpush1.msra.mxu0 0.0
        %2597 = vmatprep.subr.mxu0 0.0
        %2598 = vmatpush1.msra.mxu0 0.0
        %2599 = vmatprep.subr.mxu0 0.0
        %2600 = vmatpush1.msra.mxu0 0.0
        %2601 = vmatprep.subr.mxu0 0.0
        %2602 = vmatpush1.msra.mxu0 0.0
        %2603 = vmatprep.subr.mxu0 0.0
        %2604 = vmatpush1.msra.mxu0 0.0
        %2605 = vmatprep.subr.mxu0 0.0
        %2606 = vmatpush1.msra.mxu0 0.0
        %2607 = vmatprep.subr.mxu0 0.0
        %2608 = vmatpush1.msra.mxu0 0.0
        %2609 = vmatprep.subr.mxu0 0.0
        %2610 = vmatpush1.msra.mxu0 0.0
        %2611 = vmatprep.subr.mxu0 0.0
        %2612 = vmatpush1.msra.mxu0 0.0
        %2613 = vmatprep.subr.mxu0 0.0
        %2614 = vmatpush1.msra.mxu0 0.0
        %2615 = vmatprep.subr.mxu0 0.0
        %2616 = vmatpush1.msra.mxu0 0.0
        %2617 = vmatprep.subr.mxu0 0.0
        %2618 = vmatpush1.msra.mxu0 0.0
        %2619 = vmatprep.subr.mxu0 0.0
        %2620 = vmatpush1.msra.mxu0 0.0
        %2621 = vmatprep.subr.mxu0 0.0
        %2622 = vmatpush1.msra.mxu0 0.0
        %2623 = vmatprep.subr.mxu0 0.0
        %2624 = vmatpush1.msra.mxu0 0.0
        %2625 = vmatprep.subr.mxu0 0.0
        %2626 = vmatpush1.msra.mxu0 0.0
        %2627 = vmatprep.subr.mxu0 0.0
        %2628 = vmatpush1.msra.mxu0 0.0
        %2629 = vmatprep.subr.mxu0 0.0
        %2630 = vmatpush1.msra.mxu0 0.0
        %2631 = vmatprep.subr.mxu0 0.0
        %2632 = vmatpush1.msra.mxu0 0.0
        %2633 = vmatprep.subr.mxu0 0.0
        %2634 = vmatpush1.msra.mxu0 0.0
        %2635 = vmatprep.mubr.f32.mxu0 0.0
        %2636 = vmatmul.mubr.f32.gmra.mrb[0].mxu0 %v2560
        %v2637 = vpop.f32.mrb[0].mxu0
        %v2638 = vadd.f32 0.0, %v2637
        %v2639 = vpop.f32.mrb[0].mxu0
        %2640 = vmatprep.mubr.f32.mxu0 0.0
        %2641 = vmatmul.mubr.f32.gmra.mrb[0].mxu0 %v2563
        %v2642 = vpop.f32.mrb[0].mxu0
        %v2643 = vadd.f32 0.0, %v2642
        %v2644 = vpop.f32.mrb[0].mxu0
        %2645 = vmatprep.mubr.f32.mxu0 0.0
        %2646 = vmatmul.mubr.f32.gmra.mrb[0].mxu0 %v2566
        %v2647 = vpop.f32.mrb[0].mxu0
        %v2648 = vadd.f32 0.0, %v2647
        %v2649 = vpop.f32.mrb[0].mxu0
        %2650 = vmatprep.mubr.f32.mxu0 0.0
        %2651 = vmatmul.mubr.f32.gmra.mrb[0].mxu0 %v2569
        %v2652 = vpop.f32.mrb[0].mxu0
        %v2653 = vadd.f32 0.0, %v2652
        %v2654 = vpop.f32.mrb[0].mxu0
        %2655 = vdwg.mxu0
        %v2657 = vsel %vm559, %v2547, 0
        %v2660 = vsel %vm559, %v2548, 0
        %v2663 = vsel %vm559, %v2549, 0
        %v2666 = vsel %vm559, %v2550, 0
        %2668 = vmatprep.subr.mxu0 0.0
        %2669 = vmatpush1.msra.mxu0 %v1759
        %2670 = vmatprep.subr.mxu0 0.0
        %2671 = vmatpush1.msra.mxu0 %v1764
        %2672 = vmatprep.subr.mxu0 0.0
        %2673 = vmatpush1.msra.mxu0 %v1769
        %2674 = vmatprep.subr.mxu0 0.0
        %2675 = vmatpush1.msra.mxu0 %v1774
        %2676 = vmatprep.subr.mxu0 0.0
        %2677 = vmatpush1.msra.mxu0 0.0
        %2678 = vmatprep.subr.mxu0 0.0
        %2679 = vmatpush1.msra.mxu0 0.0
        %2680 = vmatprep.subr.mxu0 0.0
        %2681 = vmatpush1.msra.mxu0 0.0
        %2682 = vmatprep.subr.mxu0 0.0
        %2683 = vmatpush1.msra.mxu0 0.0
        %2684 = vmatprep.subr.mxu0 0.0
        %2685 = vmatpush1.msra.mxu0 0.0
        %2686 = vmatprep.subr.mxu0 0.0
        %2687 = vmatpush1.msra.mxu0 0.0
        %2688 = vmatprep.subr.mxu0 0.0
        %2689 = vmatpush1.msra.mxu0 0.0
        %2690 = vmatprep.subr.mxu0 0.0
        %2691 = vmatpush1.msra.mxu0 0.0
        %2692 = vmatprep.subr.mxu0 0.0
        %2693 = vmatpush1.msra.mxu0 0.0
        %2694 = vmatprep.subr.mxu0 0.0
        %2695 = vmatpush1.msra.mxu0 0.0
        %2696 = vmatprep.subr.mxu0 0.0
        %2697 = vmatpush1.msra.mxu0 0.0
        %2698 = vmatprep.subr.mxu0 0.0
        %2699 = vmatpush1.msra.mxu0 0.0
        %2700 = vmatprep.subr.mxu0 0.0
        %2701 = vmatpush1.msra.mxu0 0.0
        %2702 = vmatprep.subr.mxu0 0.0
        %2703 = vmatpush1.msra.mxu0 0.0
        %2704 = vmatprep.subr.mxu0 0.0
        %2705 = vmatpush1.msra.mxu0 0.0
        %2706 = vmatprep.subr.mxu0 0.0
        %2707 = vmatpush1.msra.mxu0 0.0
        %2708 = vmatprep.subr.mxu0 0.0
        %2709 = vmatpush1.msra.mxu0 0.0
        %2710 = vmatprep.subr.mxu0 0.0
        %2711 = vmatpush1.msra.mxu0 0.0
        %2712 = vmatprep.subr.mxu0 0.0
        %2713 = vmatpush1.msra.mxu0 0.0
        %2714 = vmatprep.subr.mxu0 0.0
        %2715 = vmatpush1.msra.mxu0 0.0
        %2716 = vmatprep.subr.mxu0 0.0
        %2717 = vmatpush1.msra.mxu0 0.0
        %2718 = vmatprep.subr.mxu0 0.0
        %2719 = vmatpush1.msra.mxu0 0.0
        %2720 = vmatprep.subr.mxu0 0.0
        %2721 = vmatpush1.msra.mxu0 0.0
        %2722 = vmatprep.subr.mxu0 0.0
        %2723 = vmatpush1.msra.mxu0 0.0
        %2724 = vmatprep.subr.mxu0 0.0
        %2725 = vmatpush1.msra.mxu0 0.0
        %2726 = vmatprep.subr.mxu0 0.0
        %2727 = vmatpush1.msra.mxu0 0.0
        %2728 = vmatprep.subr.mxu0 0.0
        %2729 = vmatpush1.msra.mxu0 0.0
        %2730 = vmatprep.subr.mxu0 0.0
        %2731 = vmatpush1.msra.mxu0 0.0
        %2732 = vmatprep.mubr.f32.mxu0 0.0
        %2733 = vmatmul.mubr.f32.gmra.mrb[0].mxu0 %v2657
        %v2734 = vpop.f32.mrb[0].mxu0
        %v2735 = vadd.f32 0.0, %v2734
        %v2736 = vpop.f32.mrb[0].mxu0
        %2737 = vmatprep.mubr.f32.mxu0 0.0
        %2738 = vmatmul.mubr.f32.gmra.mrb[0].mxu0 %v2660
        %v2739 = vpop.f32.mrb[0].mxu0
        %v2740 = vadd.f32 0.0, %v2739
        %v2741 = vpop.f32.mrb[0].mxu0
        %2742 = vmatprep.mubr.f32.mxu0 0.0
        %2743 = vmatmul.mubr.f32.gmra.mrb[0].mxu0 %v2663
        %v2744 = vpop.f32.mrb[0].mxu0
        %v2745 = vadd.f32 0.0, %v2744
        %v2746 = vpop.f32.mrb[0].mxu0
        %2747 = vmatprep.mubr.f32.mxu0 0.0
        %2748 = vmatmul.mubr.f32.gmra.mrb[0].mxu0 %v2666
        %v2749 = vpop.f32.mrb[0].mxu0
        %v2750 = vadd.f32 0.0, %v2749
        %v2751 = vpop.f32.mrb[0].mxu0
        %2752 = vdwg.mxu0
        %v2754 = vsel %vm559, %v2551, 0
        %v2757 = vsel %vm559, %v2552, 0
        %v2760 = vsel %vm559, %v2553, 0
        %v2763 = vsel %vm559, %v2554, 0
        %2765 = vmatprep.subr.mxu0 0.0
        %2766 = vmatpush1.msra.mxu0 %v1844
        %2767 = vmatprep.subr.mxu0 0.0
        %2768 = vmatpush1.msra.mxu0 %v1849
        %2769 = vmatprep.subr.mxu0 0.0
        %2770 = vmatpush1.msra.mxu0 %v1854
        %2771 = vmatprep.subr.mxu0 0.0
        %2772 = vmatpush1.msra.mxu0 %v1859
        %2773 = vmatprep.subr.mxu0 0.0
        %2774 = vmatpush1.msra.mxu0 0.0
        %2775 = vmatprep.subr.mxu0 0.0
        %2776 = vmatpush1.msra.mxu0 0.0
        %2777 = vmatprep.subr.mxu0 0.0
        %2778 = vmatpush1.msra.mxu0 0.0
        %2779 = vmatprep.subr.mxu0 0.0
        %2780 = vmatpush1.msra.mxu0 0.0
        %2781 = vmatprep.subr.mxu0 0.0
        %2782 = vmatpush1.msra.mxu0 0.0
        %2783 = vmatprep.subr.mxu0 0.0
        %2784 = vmatpush1.msra.mxu0 0.0
        %2785 = vmatprep.subr.mxu0 0.0
        %2786 = vmatpush1.msra.mxu0 0.0
        %2787 = vmatprep.subr.mxu0 0.0
        %2788 = vmatpush1.msra.mxu0 0.0
        %2789 = vmatprep.subr.mxu0 0.0
        %2790 = vmatpush1.msra.mxu0 0.0
        %2791 = vmatprep.subr.mxu0 0.0
        %2792 = vmatpush1.msra.mxu0 0.0
        %2793 = vmatprep.subr.mxu0 0.0
        %2794 = vmatpush1.msra.mxu0 0.0
        %2795 = vmatprep.subr.mxu0 0.0
        %2796 = vmatpush1.msra.mxu0 0.0
        %2797 = vmatprep.subr.mxu0 0.0
        %2798 = vmatpush1.msra.mxu0 0.0
        %2799 = vmatprep.subr.mxu0 0.0
        %2800 = vmatpush1.msra.mxu0 0.0
        %2801 = vmatprep.subr.mxu0 0.0
        %2802 = vmatpush1.msra.mxu0 0.0
        %2803 = vmatprep.subr.mxu0 0.0
        %2804 = vmatpush1.msra.mxu0 0.0
        %2805 = vmatprep.subr.mxu0 0.0
        %2806 = vmatpush1.msra.mxu0 0.0
        %2807 = vmatprep.subr.mxu0 0.0
        %2808 = vmatpush1.msra.mxu0 0.0
        %2809 = vmatprep.subr.mxu0 0.0
        %2810 = vmatpush1.msra.mxu0 0.0
        %2811 = vmatprep.subr.mxu0 0.0
        %2812 = vmatpush1.msra.mxu0 0.0
        %2813 = vmatprep.subr.mxu0 0.0
        %2814 = vmatpush1.msra.mxu0 0.0
        %2815 = vmatprep.subr.mxu0 0.0
        %2816 = vmatpush1.msra.mxu0 0.0
        %2817 = vmatprep.subr.mxu0 0.0
        %2818 = vmatpush1.msra.mxu0 0.0
        %2819 = vmatprep.subr.mxu0 0.0
        %2820 = vmatpush1.msra.mxu0 0.0
        %2821 = vmatprep.subr.mxu0 0.0
        %2822 = vmatpush1.msra.mxu0 0.0
        %2823 = vmatprep.subr.mxu0 0.0
        %2824 = vmatpush1.msra.mxu0 0.0
        %2825 = vmatprep.subr.mxu0 0.0
        %2826 = vmatpush1.msra.mxu0 0.0
        %2827 = vmatprep.subr.mxu0 0.0
        %2828 = vmatpush1.msra.mxu0 0.0
        %2829 = vmatprep.mubr.f32.mxu0 0.0
        %2830 = vmatmul.mubr.f32.gmra.mrb[0].mxu0 %v2754
        %v2831 = vpop.f32.mrb[0].mxu0
        %v2832 = vadd.f32 0.0, %v2831
        %v2833 = vpop.f32.mrb[0].mxu0
        %2834 = vmatprep.mubr.f32.mxu0 0.0
        %2835 = vmatmul.mubr.f32.gmra.mrb[0].mxu0 %v2757
        %v2836 = vpop.f32.mrb[0].mxu0
        %v2837 = vadd.f32 0.0, %v2836
        %v2838 = vpop.f32.mrb[0].mxu0
        %2839 = vmatprep.mubr.f32.mxu0 0.0
        %2840 = vmatmul.mubr.f32.gmra.mrb[0].mxu0 %v2760
        %v2841 = vpop.f32.mrb[0].mxu0
        %v2842 = vadd.f32 0.0, %v2841
        %v2843 = vpop.f32.mrb[0].mxu0
        %2844 = vmatprep.mubr.f32.mxu0 0.0
        %2845 = vmatmul.mubr.f32.gmra.mrb[0].mxu0 %v2763
        %v2846 = vpop.f32.mrb[0].mxu0
        %v2847 = vadd.f32 0.0, %v2846
        %v2848 = vpop.f32.mrb[0].mxu0
        %2849 = vdwg.mxu0
        %v2851 = vsel %vm559, %v2555, 0
        %v2854 = vsel %vm559, %v2556, 0
        %v2857 = vsel %vm559, %v2557, 0
        %v2860 = vsel %vm559, %v2558, 0
        %2862 = vmatprep.subr.mxu0 0.0
        %2863 = vmatpush1.msra.mxu0 %v1929
        %2864 = vmatprep.subr.mxu0 0.0
        %2865 = vmatpush1.msra.mxu0 %v1934
        %2866 = vmatprep.subr.mxu0 0.0
        %2867 = vmatpush1.msra.mxu0 %v1939
        %2868 = vmatprep.subr.mxu0 0.0
        %2869 = vmatpush1.msra.mxu0 %v1944
        %2870 = vmatprep.subr.mxu0 0.0
        %2871 = vmatpush1.msra.mxu0 0.0
        %2872 = vmatprep.subr.mxu0 0.0
        %2873 = vmatpush1.msra.mxu0 0.0
        %2874 = vmatprep.subr.mxu0 0.0
        %2875 = vmatpush1.msra.mxu0 0.0
        %2876 = vmatprep.subr.mxu0 0.0
        %2877 = vmatpush1.msra.mxu0 0.0
        %2878 = vmatprep.subr.mxu0 0.0
        %2879 = vmatpush1.msra.mxu0 0.0
        %2880 = vmatprep.subr.mxu0 0.0
        %2881 = vmatpush1.msra.mxu0 0.0
        %2882 = vmatprep.subr.mxu0 0.0
        %2883 = vmatpush1.msra.mxu0 0.0
        %2884 = vmatprep.subr.mxu0 0.0
        %2885 = vmatpush1.msra.mxu0 0.0
        %2886 = vmatprep.subr.mxu0 0.0
        %2887 = vmatpush1.msra.mxu0 0.0
        %2888 = vmatprep.subr.mxu0 0.0
        %2889 = vmatpush1.msra.mxu0 0.0
        %2890 = vmatprep.subr.mxu0 0.0
        %2891 = vmatpush1.msra.mxu0 0.0
        %2892 = vmatprep.subr.mxu0 0.0
        %2893 = vmatpush1.msra.mxu0 0.0
        %2894 = vmatprep.subr.mxu0 0.0
        %2895 = vmatpush1.msra.mxu0 0.0
        %2896 = vmatprep.subr.mxu0 0.0
        %2897 = vmatpush1.msra.mxu0 0.0
        %2898 = vmatprep.subr.mxu0 0.0
        %2899 = vmatpush1.msra.mxu0 0.0
        %2900 = vmatprep.subr.mxu0 0.0
        %2901 = vmatpush1.msra.mxu0 0.0
        %2902 = vmatprep.subr.mxu0 0.0
        %2903 = vmatpush1.msra.mxu0 0.0
        %2904 = vmatprep.subr.mxu0 0.0
        %2905 = vmatpush1.msra.mxu0 0.0
        %2906 = vmatprep.subr.mxu0 0.0
        %2907 = vmatpush1.msra.mxu0 0.0
        %2908 = vmatprep.subr.mxu0 0.0
        %2909 = vmatpush1.msra.mxu0 0.0
        %2910 = vmatprep.subr.mxu0 0.0
        %2911 = vmatpush1.msra.mxu0 0.0
        %2912 = vmatprep.subr.mxu0 0.0
        %2913 = vmatpush1.msra.mxu0 0.0
        %2914 = vmatprep.subr.mxu0 0.0
        %2915 = vmatpush1.msra.mxu0 0.0
        %2916 = vmatprep.subr.mxu0 0.0
        %2917 = vmatpush1.msra.mxu0 0.0
        %2918 = vmatprep.subr.mxu0 0.0
        %2919 = vmatpush1.msra.mxu0 0.0
        %2920 = vmatprep.subr.mxu0 0.0
        %2921 = vmatpush1.msra.mxu0 0.0
        %2922 = vmatprep.subr.mxu0 0.0
        %2923 = vmatpush1.msra.mxu0 0.0
        %2924 = vmatprep.subr.mxu0 0.0
        %2925 = vmatpush1.msra.mxu0 0.0
        %2926 = vmatprep.mubr.f32.mxu0 0.0
        %2927 = vmatmul.mubr.f32.gmra.mrb[0].mxu0 %v2851
        %v2928 = vpop.f32.mrb[0].mxu0
        %v2929 = vadd.f32 0.0, %v2928
        %v2930 = vpop.f32.mrb[0].mxu0
        %2931 = vmatprep.mubr.f32.mxu0 0.0
        %2932 = vmatmul.mubr.f32.gmra.mrb[0].mxu0 %v2854
        %v2933 = vpop.f32.mrb[0].mxu0
        %v2934 = vadd.f32 0.0, %v2933
        %v2935 = vpop.f32.mrb[0].mxu0
        %2936 = vmatprep.mubr.f32.mxu0 0.0
        %2937 = vmatmul.mubr.f32.gmra.mrb[0].mxu0 %v2857
        %v2938 = vpop.f32.mrb[0].mxu0
        %v2939 = vadd.f32 0.0, %v2938
        %v2940 = vpop.f32.mrb[0].mxu0
        %2941 = vmatprep.mubr.f32.mxu0 0.0
        %2942 = vmatmul.mubr.f32.gmra.mrb[0].mxu0 %v2860
        %v2943 = vpop.f32.mrb[0].mxu0
        %v2944 = vadd.f32 0.0, %v2943
        %v2945 = vpop.f32.mrb[0].mxu0
        %2946 = vdwg.mxu0
        %v2947 = vld [vmem:[%s9] sm:$0xff]
        %v2948 = vld [vmem:[%s9 + $0x8] sm:$0xff]
        %v2949 = vld [vmem:[%s9 + $0x10] sm:$0xff]
        %v2950 = vld [vmem:[%s9 + $0x18] sm:$0xff]
        %v2951 = vld [vmem:[%s9 + $0x20] sm:$0xff]
        %v2952 = vld [vmem:[%s9 + $0x28] sm:$0xff]
        %v2953 = vld [vmem:[%s9 + $0x30] sm:$0xff]
        %v2954 = vld [vmem:[%s9 + $0x38] sm:$0xff]
        %v2955 = vld [vmem:[%s9 + $0x40] sm:$0xff]
        %v2956 = vld [vmem:[%s9 + $0x48] sm:$0xff]
        %v2957 = vld [vmem:[%s9 + $0x50] sm:$0xff]
        %v2958 = vld [vmem:[%s9 + $0x58] sm:$0xff]
        %v2959 = vld [vmem:[%s9 + $0x60] sm:$0xff]
        %v2960 = vld [vmem:[%s9 + $0x68] sm:$0xff]
        %v2961 = vld [vmem:[%s9 + $0x70] sm:$0xff]
        %v2962 = vld [vmem:[%s9 + $0x78] sm:$0xff]
        %v2964 = vsel %vm559, %v2638, 0
        %v2967 = vsel %vm559, %v2643, 0
        %v2970 = vsel %vm559, %v2648, 0
        %v2973 = vsel %vm559, %v2653, 0
        %2975 = vmatprep.subr.mxu0 0.0
        %2976 = vmatpush1.msra.mxu0 %v2947
        %2977 = vmatprep.subr.mxu0 0.0
        %2978 = vmatpush1.msra.mxu0 %v2948
        %2979 = vmatprep.subr.mxu0 0.0
        %2980 = vmatpush1.msra.mxu0 %v2949
        %2981 = vmatprep.subr.mxu0 0.0
        %2982 = vmatpush1.msra.mxu0 %v2950
        %2983 = vmatprep.subr.mxu0 0.0
        %2984 = vmatpush1.msra.mxu0 0.0
        %2985 = vmatprep.subr.mxu0 0.0
        %2986 = vmatpush1.msra.mxu0 0.0
        %2987 = vmatprep.subr.mxu0 0.0
        %2988 = vmatpush1.msra.mxu0 0.0
        %2989 = vmatprep.subr.mxu0 0.0
        %2990 = vmatpush1.msra.mxu0 0.0
        %2991 = vmatprep.subr.mxu0 0.0
        %2992 = vmatpush1.msra.mxu0 0.0
        %2993 = vmatprep.subr.mxu0 0.0
        %2994 = vmatpush1.msra.mxu0 0.0
        %2995 = vmatprep.subr.mxu0 0.0
        %2996 = vmatpush1.msra.mxu0 0.0
        %2997 = vmatprep.subr.mxu0 0.0
        %2998 = vmatpush1.msra.mxu0 0.0
        %2999 = vmatprep.subr.mxu0 0.0
        %3000 = vmatpush1.msra.mxu0 0.0
        %3001 = vmatprep.subr.mxu0 0.0
        %3002 = vmatpush1.msra.mxu0 0.0
        %3003 = vmatprep.subr.mxu0 0.0
        %3004 = vmatpush1.msra.mxu0 0.0
        %3005 = vmatprep.subr.mxu0 0.0
        %3006 = vmatpush1.msra.mxu0 0.0
        %3007 = vmatprep.subr.mxu0 0.0
        %3008 = vmatpush1.msra.mxu0 0.0
        %3009 = vmatprep.subr.mxu0 0.0
        %3010 = vmatpush1.msra.mxu0 0.0
        %3011 = vmatprep.subr.mxu0 0.0
        %3012 = vmatpush1.msra.mxu0 0.0
        %3013 = vmatprep.subr.mxu0 0.0
        %3014 = vmatpush1.msra.mxu0 0.0
        %3015 = vmatprep.subr.mxu0 0.0
        %3016 = vmatpush1.msra.mxu0 0.0
        %3017 = vmatprep.subr.mxu0 0.0
        %3018 = vmatpush1.msra.mxu0 0.0
        %3019 = vmatprep.subr.mxu0 0.0
        %3020 = vmatpush1.msra.mxu0 0.0
        %3021 = vmatprep.subr.mxu0 0.0
        %3022 = vmatpush1.msra.mxu0 0.0
        %3023 = vmatprep.subr.mxu0 0.0
        %3024 = vmatpush1.msra.mxu0 0.0
        %3025 = vmatprep.subr.mxu0 0.0
        %3026 = vmatpush1.msra.mxu0 0.0
        %3027 = vmatprep.subr.mxu0 0.0
        %3028 = vmatpush1.msra.mxu0 0.0
        %3029 = vmatprep.subr.mxu0 0.0
        %3030 = vmatpush1.msra.mxu0 0.0
        %3031 = vmatprep.subr.mxu0 0.0
        %3032 = vmatpush1.msra.mxu0 0.0
        %3033 = vmatprep.subr.mxu0 0.0
        %3034 = vmatpush1.msra.mxu0 0.0
        %3035 = vmatprep.subr.mxu0 0.0
        %3036 = vmatpush1.msra.mxu0 0.0
        %3037 = vmatprep.subr.mxu0 0.0
        %3038 = vmatpush1.msra.mxu0 0.0
        %3039 = vmatprep.mubr.f32.mxu0 0.0
        %3040 = vmatmul.mubr.f32.gmra.mrb[0].mxu0 %v2964
        %v3041 = vpop.f32.mrb[0].mxu0
        %v3042 = vadd.f32 0.0, %v3041
        %v3043 = vpop.f32.mrb[0].mxu0
        %3044 = vmatprep.mubr.f32.mxu0 0.0
        %3045 = vmatmul.mubr.f32.gmra.mrb[0].mxu0 %v2967
        %v3046 = vpop.f32.mrb[0].mxu0
        %v3047 = vadd.f32 0.0, %v3046
        %v3048 = vpop.f32.mrb[0].mxu0
        %3049 = vmatprep.mubr.f32.mxu0 0.0
        %3050 = vmatmul.mubr.f32.gmra.mrb[0].mxu0 %v2970
        %v3051 = vpop.f32.mrb[0].mxu0
        %v3052 = vadd.f32 0.0, %v3051
        %v3053 = vpop.f32.mrb[0].mxu0
        %3054 = vmatprep.mubr.f32.mxu0 0.0
        %3055 = vmatmul.mubr.f32.gmra.mrb[0].mxu0 %v2973
        %v3056 = vpop.f32.mrb[0].mxu0
        %v3057 = vadd.f32 0.0, %v3056
        %v3058 = vpop.f32.mrb[0].mxu0
        %3059 = vdwg.mxu0
        %v3061 = vsel %vm559, %v2735, 0
        %v3064 = vsel %vm559, %v2740, 0
        %v3067 = vsel %vm559, %v2745, 0
        %v3070 = vsel %vm559, %v2750, 0
        %3072 = vmatprep.subr.mxu0 0.0
        %3073 = vmatpush1.msra.mxu0 %v2951
        %3074 = vmatprep.subr.mxu0 0.0
        %3075 = vmatpush1.msra.mxu0 %v2952
        %3076 = vmatprep.subr.mxu0 0.0
        %3077 = vmatpush1.msra.mxu0 %v2953
        %3078 = vmatprep.subr.mxu0 0.0
        %3079 = vmatpush1.msra.mxu0 %v2954
        %3080 = vmatprep.subr.mxu0 0.0
        %3081 = vmatpush1.msra.mxu0 0.0
        %3082 = vmatprep.subr.mxu0 0.0
        %3083 = vmatpush1.msra.mxu0 0.0
        %3084 = vmatprep.subr.mxu0 0.0
        %3085 = vmatpush1.msra.mxu0 0.0
        %3086 = vmatprep.subr.mxu0 0.0
        %3087 = vmatpush1.msra.mxu0 0.0
        %3088 = vmatprep.subr.mxu0 0.0
        %3089 = vmatpush1.msra.mxu0 0.0
        %3090 = vmatprep.subr.mxu0 0.0
        %3091 = vmatpush1.msra.mxu0 0.0
        %3092 = vmatprep.subr.mxu0 0.0
        %3093 = vmatpush1.msra.mxu0 0.0
        %3094 = vmatprep.subr.mxu0 0.0
        %3095 = vmatpush1.msra.mxu0 0.0
        %3096 = vmatprep.subr.mxu0 0.0
        %3097 = vmatpush1.msra.mxu0 0.0
        %3098 = vmatprep.subr.mxu0 0.0
        %3099 = vmatpush1.msra.mxu0 0.0
        %3100 = vmatprep.subr.mxu0 0.0
        %3101 = vmatpush1.msra.mxu0 0.0
        %3102 = vmatprep.subr.mxu0 0.0
        %3103 = vmatpush1.msra.mxu0 0.0
        %3104 = vmatprep.subr.mxu0 0.0
        %3105 = vmatpush1.msra.mxu0 0.0
        %3106 = vmatprep.subr.mxu0 0.0
        %3107 = vmatpush1.msra.mxu0 0.0
        %3108 = vmatprep.subr.mxu0 0.0
        %3109 = vmatpush1.msra.mxu0 0.0
        %3110 = vmatprep.subr.mxu0 0.0
        %3111 = vmatpush1.msra.mxu0 0.0
        %3112 = vmatprep.subr.mxu0 0.0
        %3113 = vmatpush1.msra.mxu0 0.0
        %3114 = vmatprep.subr.mxu0 0.0
        %3115 = vmatpush1.msra.mxu0 0.0
        %3116 = vmatprep.subr.mxu0 0.0
        %3117 = vmatpush1.msra.mxu0 0.0
        %3118 = vmatprep.subr.mxu0 0.0
        %3119 = vmatpush1.msra.mxu0 0.0
        %3120 = vmatprep.subr.mxu0 0.0
        %3121 = vmatpush1.msra.mxu0 0.0
        %3122 = vmatprep.subr.mxu0 0.0
        %3123 = vmatpush1.msra.mxu0 0.0
        %3124 = vmatprep.subr.mxu0 0.0
        %3125 = vmatpush1.msra.mxu0 0.0
        %3126 = vmatprep.subr.mxu0 0.0
        %3127 = vmatpush1.msra.mxu0 0.0
        %3128 = vmatprep.subr.mxu0 0.0
        %3129 = vmatpush1.msra.mxu0 0.0
        %3130 = vmatprep.subr.mxu0 0.0
        %3131 = vmatpush1.msra.mxu0 0.0
        %3132 = vmatprep.subr.mxu0 0.0
        %3133 = vmatpush1.msra.mxu0 0.0
        %3134 = vmatprep.subr.mxu0 0.0
        %3135 = vmatpush1.msra.mxu0 0.0
        %3136 = vmatprep.mubr.f32.mxu0 0.0
        %3137 = vmatmul.mubr.f32.gmra.mrb[0].mxu0 %v3061
        %v3138 = vpop.f32.mrb[0].mxu0
        %v3139 = vadd.f32 0.0, %v3138
        %v3140 = vpop.f32.mrb[0].mxu0
        %3141 = vmatprep.mubr.f32.mxu0 0.0
        %3142 = vmatmul.mubr.f32.gmra.mrb[0].mxu0 %v3064
        %v3143 = vpop.f32.mrb[0].mxu0
        %v3144 = vadd.f32 0.0, %v3143
        %v3145 = vpop.f32.mrb[0].mxu0
        %3146 = vmatprep.mubr.f32.mxu0 0.0
        %3147 = vmatmul.mubr.f32.gmra.mrb[0].mxu0 %v3067
        %v3148 = vpop.f32.mrb[0].mxu0
        %v3149 = vadd.f32 0.0, %v3148
        %v3150 = vpop.f32.mrb[0].mxu0
        %3151 = vmatprep.mubr.f32.mxu0 0.0
        %3152 = vmatmul.mubr.f32.gmra.mrb[0].mxu0 %v3070
        %v3153 = vpop.f32.mrb[0].mxu0
        %v3154 = vadd.f32 0.0, %v3153
        %v3155 = vpop.f32.mrb[0].mxu0
        %3156 = vdwg.mxu0
        %v3158 = vsel %vm559, %v2832, 0
        %v3161 = vsel %vm559, %v2837, 0
        %v3164 = vsel %vm559, %v2842, 0
        %v3167 = vsel %vm559, %v2847, 0
        %3169 = vmatprep.subr.mxu0 0.0
        %3170 = vmatpush1.msra.mxu0 %v2955
        %3171 = vmatprep.subr.mxu0 0.0
        %3172 = vmatpush1.msra.mxu0 %v2956
        %3173 = vmatprep.subr.mxu0 0.0
        %3174 = vmatpush1.msra.mxu0 %v2957
        %3175 = vmatprep.subr.mxu0 0.0
        %3176 = vmatpush1.msra.mxu0 %v2958
        %3177 = vmatprep.subr.mxu0 0.0
        %3178 = vmatpush1.msra.mxu0 0.0
        %3179 = vmatprep.subr.mxu0 0.0
        %3180 = vmatpush1.msra.mxu0 0.0
        %3181 = vmatprep.subr.mxu0 0.0
        %3182 = vmatpush1.msra.mxu0 0.0
        %3183 = vmatprep.subr.mxu0 0.0
        %3184 = vmatpush1.msra.mxu0 0.0
        %3185 = vmatprep.subr.mxu0 0.0
        %3186 = vmatpush1.msra.mxu0 0.0
        %3187 = vmatprep.subr.mxu0 0.0
        %3188 = vmatpush1.msra.mxu0 0.0
        %3189 = vmatprep.subr.mxu0 0.0
        %3190 = vmatpush1.msra.mxu0 0.0
        %3191 = vmatprep.subr.mxu0 0.0
        %3192 = vmatpush1.msra.mxu0 0.0
        %3193 = vmatprep.subr.mxu0 0.0
        %3194 = vmatpush1.msra.mxu0 0.0
        %3195 = vmatprep.subr.mxu0 0.0
        %3196 = vmatpush1.msra.mxu0 0.0
        %3197 = vmatprep.subr.mxu0 0.0
        %3198 = vmatpush1.msra.mxu0 0.0
        %3199 = vmatprep.subr.mxu0 0.0
        %3200 = vmatpush1.msra.mxu0 0.0
        %3201 = vmatprep.subr.mxu0 0.0
        %3202 = vmatpush1.msra.mxu0 0.0
        %3203 = vmatprep.subr.mxu0 0.0
        %3204 = vmatpush1.msra.mxu0 0.0
        %3205 = vmatprep.subr.mxu0 0.0
        %3206 = vmatpush1.msra.mxu0 0.0
        %3207 = vmatprep.subr.mxu0 0.0
        %3208 = vmatpush1.msra.mxu0 0.0
        %3209 = vmatprep.subr.mxu0 0.0
        %3210 = vmatpush1.msra.mxu0 0.0
        %3211 = vmatprep.subr.mxu0 0.0
        %3212 = vmatpush1.msra.mxu0 0.0
        %3213 = vmatprep.subr.mxu0 0.0
        %3214 = vmatpush1.msra.mxu0 0.0
        %3215 = vmatprep.subr.mxu0 0.0
        %3216 = vmatpush1.msra.mxu0 0.0
        %3217 = vmatprep.subr.mxu0 0.0
        %3218 = vmatpush1.msra.mxu0 0.0
        %3219 = vmatprep.subr.mxu0 0.0
        %3220 = vmatpush1.msra.mxu0 0.0
        %3221 = vmatprep.subr.mxu0 0.0
        %3222 = vmatpush1.msra.mxu0 0.0
        %3223 = vmatprep.subr.mxu0 0.0
        %3224 = vmatpush1.msra.mxu0 0.0
        %3225 = vmatprep.subr.mxu0 0.0
        %3226 = vmatpush1.msra.mxu0 0.0
        %3227 = vmatprep.subr.mxu0 0.0
        %3228 = vmatpush1.msra.mxu0 0.0
        %3229 = vmatprep.subr.mxu0 0.0
        %3230 = vmatpush1.msra.mxu0 0.0
        %3231 = vmatprep.subr.mxu0 0.0
        %3232 = vmatpush1.msra.mxu0 0.0
        %3233 = vmatprep.mubr.f32.mxu0 0.0
        %3234 = vmatmul.mubr.f32.gmra.mrb[0].mxu0 %v3158
        %v3235 = vpop.f32.mrb[0].mxu0
        %v3236 = vadd.f32 0.0, %v3235
        %v3237 = vpop.f32.mrb[0].mxu0
        %3238 = vmatprep.mubr.f32.mxu0 0.0
        %3239 = vmatmul.mubr.f32.gmra.mrb[0].mxu0 %v3161
        %v3240 = vpop.f32.mrb[0].mxu0
        %v3241 = vadd.f32 0.0, %v3240
        %v3242 = vpop.f32.mrb[0].mxu0
        %3243 = vmatprep.mubr.f32.mxu0 0.0
        %3244 = vmatmul.mubr.f32.gmra.mrb[0].mxu0 %v3164
        %v3245 = vpop.f32.mrb[0].mxu0
        %v3246 = vadd.f32 0.0, %v3245
        %v3247 = vpop.f32.mrb[0].mxu0
        %3248 = vmatprep.mubr.f32.mxu0 0.0
        %3249 = vmatmul.mubr.f32.gmra.mrb[0].mxu0 %v3167
        %v3250 = vpop.f32.mrb[0].mxu0
        %v3251 = vadd.f32 0.0, %v3250
        %v3252 = vpop.f32.mrb[0].mxu0
        %3253 = vdwg.mxu0
        %v3255 = vsel %vm559, %v2929, 0
        %v3258 = vsel %vm559, %v2934, 0
        %v3261 = vsel %vm559, %v2939, 0
        %v3264 = vsel %vm559, %v2944, 0
        %3266 = vmatprep.subr.mxu0 0.0
        %3267 = vmatpush1.msra.mxu0 %v2959
        %3268 = vmatprep.subr.mxu0 0.0
        %3269 = vmatpush1.msra.mxu0 %v2960
        %3270 = vmatprep.subr.mxu0 0.0
        %3271 = vmatpush1.msra.mxu0 %v2961
        %3272 = vmatprep.subr.mxu0 0.0
        %3273 = vmatpush1.msra.mxu0 %v2962
        %3274 = vmatprep.subr.mxu0 0.0
        %3275 = vmatpush1.msra.mxu0 0.0
        %3276 = vmatprep.subr.mxu0 0.0
        %3277 = vmatpush1.msra.mxu0 0.0
        %3278 = vmatprep.subr.mxu0 0.0
        %3279 = vmatpush1.msra.mxu0 0.0
        %3280 = vmatprep.subr.mxu0 0.0
        %3281 = vmatpush1.msra.mxu0 0.0
        %3282 = vmatprep.subr.mxu0 0.0
        %3283 = vmatpush1.msra.mxu0 0.0
        %3284 = vmatprep.subr.mxu0 0.0
        %3285 = vmatpush1.msra.mxu0 0.0
        %3286 = vmatprep.subr.mxu0 0.0
        %3287 = vmatpush1.msra.mxu0 0.0
        %3288 = vmatprep.subr.mxu0 0.0
        %3289 = vmatpush1.msra.mxu0 0.0
        %3290 = vmatprep.subr.mxu0 0.0
        %3291 = vmatpush1.msra.mxu0 0.0
        %3292 = vmatprep.subr.mxu0 0.0
        %3293 = vmatpush1.msra.mxu0 0.0
        %3294 = vmatprep.subr.mxu0 0.0
        %3295 = vmatpush1.msra.mxu0 0.0
        %3296 = vmatprep.subr.mxu0 0.0
        %3297 = vmatpush1.msra.mxu0 0.0
        %3298 = vmatprep.subr.mxu0 0.0
        %3299 = vmatpush1.msra.mxu0 0.0
        %3300 = vmatprep.subr.mxu0 0.0
        %3301 = vmatpush1.msra.mxu0 0.0
        %3302 = vmatprep.subr.mxu0 0.0
        %3303 = vmatpush1.msra.mxu0 0.0
        %3304 = vmatprep.subr.mxu0 0.0
        %3305 = vmatpush1.msra.mxu0 0.0
        %3306 = vmatprep.subr.mxu0 0.0
        %3307 = vmatpush1.msra.mxu0 0.0
        %3308 = vmatprep.subr.mxu0 0.0
        %3309 = vmatpush1.msra.mxu0 0.0
        %3310 = vmatprep.subr.mxu0 0.0
        %3311 = vmatpush1.msra.mxu0 0.0
        %3312 = vmatprep.subr.mxu0 0.0
        %3313 = vmatpush1.msra.mxu0 0.0
        %3314 = vmatprep.subr.mxu0 0.0
        %3315 = vmatpush1.msra.mxu0 0.0
        %3316 = vmatprep.subr.mxu0 0.0
        %3317 = vmatpush1.msra.mxu0 0.0
        %3318 = vmatprep.subr.mxu0 0.0
        %3319 = vmatpush1.msra.mxu0 0.0
        %3320 = vmatprep.subr.mxu0 0.0
        %3321 = vmatpush1.msra.mxu0 0.0
        %3322 = vmatprep.subr.mxu0 0.0
        %3323 = vmatpush1.msra.mxu0 0.0
        %3324 = vmatprep.subr.mxu0 0.0
        %3325 = vmatpush1.msra.mxu0 0.0
        %3326 = vmatprep.subr.mxu0 0.0
        %3327 = vmatpush1.msra.mxu0 0.0
        %3328 = vmatprep.subr.mxu0 0.0
        %3329 = vmatpush1.msra.mxu0 0.0
        %3330 = vmatprep.mubr.f32.mxu0 0.0
        %3331 = vmatmul.mubr.f32.gmra.mrb[0].mxu0 %v3255
        %v3332 = vpop.f32.mrb[0].mxu0
        %v3333 = vadd.f32 0.0, %v3332
        %v3334 = vpop.f32.mrb[0].mxu0
        %3335 = vmatprep.mubr.f32.mxu0 0.0
        %3336 = vmatmul.mubr.f32.gmra.mrb[0].mxu0 %v3258
        %v3337 = vpop.f32.mrb[0].mxu0
        %v3338 = vadd.f32 0.0, %v3337
        %v3339 = vpop.f32.mrb[0].mxu0
        %3340 = vmatprep.mubr.f32.mxu0 0.0
        %3341 = vmatmul.mubr.f32.gmra.mrb[0].mxu0 %v3261
        %v3342 = vpop.f32.mrb[0].mxu0
        %v3343 = vadd.f32 0.0, %v3342
        %v3344 = vpop.f32.mrb[0].mxu0
        %3345 = vmatprep.mubr.f32.mxu0 0.0
        %3346 = vmatmul.mubr.f32.gmra.mrb[0].mxu0 %v3264
        %v3347 = vpop.f32.mrb[0].mxu0
        %v3348 = vadd.f32 0.0, %v3347
        %v3349 = vpop.f32.mrb[0].mxu0
        %3350 = vdwg.mxu0
        %v3351 = vadd.f32 %v3042, %v3139
        %v3352 = vadd.f32 %v3351, %v3236
        %v3353 = vadd.f32 %v3352, %v3333
        %v3354 = vadd.f32 %v3047, %v3144
        %v3355 = vadd.f32 %v3354, %v3241
        %v3356 = vadd.f32 %v3355, %v3338
        %v3357 = vadd.f32 %v3052, %v3149
        %v3358 = vadd.f32 %v3357, %v3246
        %v3359 = vadd.f32 %v3358, %v3343
        %v3360 = vadd.f32 %v3057, %v3154
        %v3361 = vadd.f32 %v3360, %v3251
        %v3362 = vadd.f32 %v3361, %v3348
        %v3363 = vadd.f32 %v639, %v3353
        %v3364 = vadd.f32 %v644, %v3356
        %v3365 = vadd.f32 %v649, %v3359
        %v3366 = vadd.f32 %v654, %v3362
        %v3367 = vld [vmem:[%s10] sm:$0x1]
        %v3369 = vlaneseq
        %v3370 = vshrl.u32 %v3369, 7
        %v3371 = vsub.s32 0, %v3370
        %v3372 = vrot.slane %v3367, %v3371
        %v3374 = vadd.f32 %v3363, %v3372
        %v3375 = vadd.f32 %v3364, %v3372
        %v3376 = vadd.f32 %v3365, %v3372
        %v3377 = vadd.f32 %v3366, %v3372
        %v3378 = vld [vmem:[%s11] sm:$0x1]
        %v3379 = vld [vmem:[%s12] sm:$0x1]
        %3380 = vadd.xlane.f32.xlu0 %v3374
        %v3381 = vpop.xlane.xlu0 %3380
        %3382 = vadd.xlane.f32.xlu0 %v3375
        %v3383 = vpop.xlane.xlu0 %3382
        %3384 = vadd.xlane.f32.xlu0 %v3376
        %v3385 = vpop.xlane.xlu0 %3384
        %3386 = vadd.xlane.f32.xlu0 %v3377
        %v3387 = vpop.xlane.xlu0 %3386
        %v3388 = vmul.f32 %v3381, 0.010416667
        %v3389 = vmul.f32 %v3383, 0.010416667
        %v3390 = vmul.f32 %v3385, 0.010416667
        %v3391 = vmul.f32 %v3387, 0.010416667
        %v3392 = vmul.f32 %v3374, %v3374
        %v3393 = vmul.f32 %v3375, %v3375
        %v3394 = vmul.f32 %v3376, %v3376
        %v3395 = vmul.f32 %v3377, %v3377
        %3396 = vadd.xlane.f32.xlu0 %v3392
        %v3397 = vpop.xlane.xlu0 %3396
        %3398 = vadd.xlane.f32.xlu0 %v3393
        %v3399 = vpop.xlane.xlu0 %3398
        %3400 = vadd.xlane.f32.xlu0 %v3394
        %v3401 = vpop.xlane.xlu0 %3400
        %3402 = vadd.xlane.f32.xlu0 %v3395
        %v3403 = vpop.xlane.xlu0 %3402
        %v3404 = vmul.f32 %v3397, 0.010416667
        %v3405 = vmul.f32 %v3399, 0.010416667
        %v3406 = vmul.f32 %v3401, 0.010416667
        %v3407 = vmul.f32 %v3403, 0.010416667
        %v3408 = vmul.f32 %v3388, %v3388
        %v3409 = vmul.f32 %v3389, %v3389
        %v3410 = vmul.f32 %v3390, %v3390
        %v3411 = vmul.f32 %v3391, %v3391
        %v3412 = vsub.f32 %v3404, %v3408
        %v3413 = vsub.f32 %v3405, %v3409
        %v3414 = vsub.f32 %v3406, %v3410
        %v3415 = vsub.f32 %v3407, %v3411
        %v3416 = vsub.f32 %v3374, %v3388
        %v3417 = vsub.f32 %v3375, %v3389
        %v3418 = vsub.f32 %v3376, %v3390
        %v3419 = vsub.f32 %v3377, %v3391
        %v3420 = vadd.f32 %v3412, 1e-05
        %v3421 = vadd.f32 %v3413, 1e-05
        %v3422 = vadd.f32 %v3414, 1e-05
        %v3423 = vadd.f32 %v3415, 1e-05
        %v3424 = vrsqrt.pop %v3420
        %v3425 = vrsqrt.pop %v3421
        %v3426 = vrsqrt.pop %v3422
        %v3427 = vrsqrt.pop %v3423
        %v3428 = vmul.f32 %v3416, %v3424
        %v3429 = vmul.f32 %v3417, %v3425
        %v3430 = vmul.f32 %v3418, %v3426
        %v3431 = vmul.f32 %v3419, %v3427
        %v3433 = vlaneseq
        %v3434 = vshrl.u32 %v3433, 7
        %v3435 = vsub.s32 0, %v3434
        %v3436 = vrot.slane %v3378, %v3435
        %v3438 = vmul.f32 %v3428, %v3436
        %v3439 = vmul.f32 %v3429, %v3436
        %v3440 = vmul.f32 %v3430, %v3436
        %v3441 = vmul.f32 %v3431, %v3436
        %v3443 = vlaneseq
        %v3444 = vshrl.u32 %v3443, 7
        %v3445 = vsub.s32 0, %v3444
        %v3446 = vrot.slane %v3379, %v3445
        %v3448 = vadd.f32 %v3438, %v3446
        %v3449 = vadd.f32 %v3439, %v3446
        %v3450 = vadd.f32 %v3440, %v3446
        %v3451 = vadd.f32 %v3441, %v3446
        %v3452 = vld [vmem:[%s13] sm:$0xff]
        %v3453 = vld [vmem:[%s13 + $0x8] sm:$0xff]
        %v3454 = vld [vmem:[%s13 + $0x10] sm:$0xff]
        %v3455 = vld [vmem:[%s13 + $0x18] sm:$0xff]
        %v3456 = vld [vmem:[%s13 + $0x20] sm:$0xff]
        %v3457 = vld [vmem:[%s13 + $0x28] sm:$0xff]
        %v3458 = vld [vmem:[%s13 + $0x30] sm:$0xff]
        %v3459 = vld [vmem:[%s13 + $0x38] sm:$0xff]
        %v3460 = vld [vmem:[%s13 + $0x40] sm:$0xff]
        %v3461 = vld [vmem:[%s13 + $0x48] sm:$0xff]
        %v3462 = vld [vmem:[%s13 + $0x50] sm:$0xff]
        %v3463 = vld [vmem:[%s13 + $0x58] sm:$0xff]
        %v3464 = vld [vmem:[%s13 + $0x60] sm:$0xff]
        %v3465 = vld [vmem:[%s13 + $0x68] sm:$0xff]
        %v3466 = vld [vmem:[%s13 + $0x70] sm:$0xff]
        %v3467 = vld [vmem:[%s13 + $0x78] sm:$0xff]
        %v3468 = vld [vmem:[%s13 + $0x80] sm:$0xff]
        %v3469 = vld [vmem:[%s13 + $0x88] sm:$0xff]
        %v3470 = vld [vmem:[%s13 + $0x90] sm:$0xff]
        %v3471 = vld [vmem:[%s13 + $0x98] sm:$0xff]
        %v3472 = vld [vmem:[%s13 + $0xa0] sm:$0xff]
        %v3473 = vld [vmem:[%s13 + $0xa8] sm:$0xff]
        %v3474 = vld [vmem:[%s13 + $0xb0] sm:$0xff]
        %v3475 = vld [vmem:[%s13 + $0xb8] sm:$0xff]
        %v3476 = vld [vmem:[%s13 + $0xc0] sm:$0xff]
        %v3477 = vld [vmem:[%s13 + $0xc8] sm:$0xff]
        %v3478 = vld [vmem:[%s13 + $0xd0] sm:$0xff]
        %v3479 = vld [vmem:[%s13 + $0xd8] sm:$0xff]
        %v3480 = vld [vmem:[%s13 + $0xe0] sm:$0xff]
        %v3481 = vld [vmem:[%s13 + $0xe8] sm:$0xff]
        %v3482 = vld [vmem:[%s13 + $0xf0] sm:$0xff]
        %v3483 = vld [vmem:[%s13 + $0xf8] sm:$0xff]
        %v3484 = vld [vmem:[%s13 + $0x100] sm:$0xff]
        %v3485 = vld [vmem:[%s13 + $0x108] sm:$0xff]
        %v3486 = vld [vmem:[%s13 + $0x110] sm:$0xff]
        %v3487 = vld [vmem:[%s13 + $0x118] sm:$0xff]
        %v3488 = vld [vmem:[%s13 + $0x120] sm:$0xff]
        %v3489 = vld [vmem:[%s13 + $0x128] sm:$0xff]
        %v3490 = vld [vmem:[%s13 + $0x130] sm:$0xff]
        %v3491 = vld [vmem:[%s13 + $0x138] sm:$0xff]
        %v3492 = vld [vmem:[%s13 + $0x140] sm:$0xff]
        %v3493 = vld [vmem:[%s13 + $0x148] sm:$0xff]
        %v3494 = vld [vmem:[%s13 + $0x150] sm:$0xff]
        %v3495 = vld [vmem:[%s13 + $0x158] sm:$0xff]
        %v3496 = vld [vmem:[%s13 + $0x160] sm:$0xff]
        %v3497 = vld [vmem:[%s13 + $0x168] sm:$0xff]
        %v3498 = vld [vmem:[%s13 + $0x170] sm:$0xff]
        %v3499 = vld [vmem:[%s13 + $0x178] sm:$0xff]
        %v3500 = vld [vmem:[%s13 + $0x180] sm:$0xff]
        %v3501 = vld [vmem:[%s13 + $0x188] sm:$0xff]
        %v3502 = vld [vmem:[%s13 + $0x190] sm:$0xff]
        %v3503 = vld [vmem:[%s13 + $0x198] sm:$0xff]
        %v3504 = vld [vmem:[%s13 + $0x1a0] sm:$0xff]
        %v3505 = vld [vmem:[%s13 + $0x1a8] sm:$0xff]
        %v3506 = vld [vmem:[%s13 + $0x1b0] sm:$0xff]
        %v3507 = vld [vmem:[%s13 + $0x1b8] sm:$0xff]
        %v3508 = vld [vmem:[%s13 + $0x1c0] sm:$0xff]
        %v3509 = vld [vmem:[%s13 + $0x1c8] sm:$0xff]
        %v3510 = vld [vmem:[%s13 + $0x1d0] sm:$0xff]
        %v3511 = vld [vmem:[%s13 + $0x1d8] sm:$0xff]
        %v3512 = vld [vmem:[%s13 + $0x1e0] sm:$0xff]
        %v3513 = vld [vmem:[%s13 + $0x1e8] sm:$0xff]
        %v3514 = vld [vmem:[%s13 + $0x1f0] sm:$0xff]
        %v3515 = vld [vmem:[%s13 + $0x1f8] sm:$0xff]
        %v3516 = vld [vmem:[%s14] sm:$0xf]
        %v3518 = vlaneseq
        %v3519 = vshrl.u32 %v3518, 7
        %v3520 = vsub.s32 0, %v3519
        %v3521 = vrot.slane %v3516, %v3520
        %v3522 = vlaneseq
        %v3523 = vshrl.u32 %v3522, 7
        %v3524 = vsub.s32 1, %v3523
        %v3525 = vrot.slane %v3516, %v3524
        %v3526 = vlaneseq
        %v3527 = vshrl.u32 %v3526, 7
        %v3528 = vsub.s32 2, %v3527
        %v3529 = vrot.slane %v3516, %v3528
        %v3530 = vlaneseq
        %v3531 = vshrl.u32 %v3530, 7
        %v3532 = vsub.s32 3, %v3531
        %v3533 = vrot.slane %v3516, %v3532
        %3538 = vmatprep.subr.mxu0 %v3453
        %3539 = vmatpush1.msra.mxu0 %v3452
        %3540 = vmatprep.subr.mxu0 %v3457
        %3541 = vmatpush1.msra.mxu0 %v3456
        %3542 = vmatprep.subr.mxu0 %v3461
        %3543 = vmatpush1.msra.mxu0 %v3460
        %3544 = vmatprep.subr.mxu0 %v3465
        %3545 = vmatpush1.msra.mxu0 %v3464
        %3546 = vmatprep.subr.mxu0 %v3469
        %3547 = vmatpush1.msra.mxu0 %v3468
        %3548 = vmatprep.subr.mxu0 %v3473
        %3549 = vmatpush1.msra.mxu0 %v3472
        %3550 = vmatprep.subr.mxu0 %v3477
        %3551 = vmatpush1.msra.mxu0 %v3476
        %3552 = vmatprep.subr.mxu0 %v3481
        %3553 = vmatpush1.msra.mxu0 %v3480
        %3554 = vmatprep.subr.mxu0 %v3485
        %3555 = vmatpush1.msra.mxu0 %v3484
        %3556 = vmatprep.subr.mxu0 %v3489
        %3557 = vmatpush1.msra.mxu0 %v3488
        %3558 = vmatprep.subr.mxu0 %v3493
        %3559 = vmatpush1.msra.mxu0 %v3492
        %3560 = vmatprep.subr.mxu0 %v3497
        %3561 = vmatpush1.msra.mxu0 %v3496
        %3562 = vmatprep.subr.mxu0 %v3501
        %3563 = vmatpush1.msra.mxu0 %v3500
        %3564 = vmatprep.subr.mxu0 %v3505
        %3565 = vmatpush1.msra.mxu0 %v3504
        %3566 = vmatprep.subr.mxu0 %v3509
        %3567 = vmatpush1.msra.mxu0 %v3508
        %3568 = vmatprep.subr.mxu0 %v3513
        %3569 = vmatpush1.msra.mxu0 %v3512
        %3570 = vmatprep.subr.mxu0 0.0
        %3571 = vmatpush1.msra.mxu0 0.0
        %3572 = vmatprep.subr.mxu0 0.0
        %3573 = vmatpush1.msra.mxu0 0.0
        %3574 = vmatprep.subr.mxu0 0.0
        %3575 = vmatpush1.msra.mxu0 0.0
        %3576 = vmatprep.subr.mxu0 0.0
        %3577 = vmatpush1.msra.mxu0 0.0
        %3578 = vmatprep.subr.mxu0 0.0
        %3579 = vmatpush1.msra.mxu0 0.0
        %3580 = vmatprep.subr.mxu0 0.0
        %3581 = vmatpush1.msra.mxu0 0.0
        %3582 = vmatprep.subr.mxu0 0.0
        %3583 = vmatpush1.msra.mxu0 0.0
        %3584 = vmatprep.subr.mxu0 0.0
        %3585 = vmatpush1.msra.mxu0 0.0
        %3586 = vmatprep.subr.mxu0 0.0
        %3587 = vmatpush1.msra.mxu0 0.0
        %3588 = vmatprep.subr.mxu0 0.0
        %3589 = vmatpush1.msra.mxu0 0.0
        %3590 = vmatprep.subr.mxu0 0.0
        %3591 = vmatpush1.msra.mxu0 0.0
        %3592 = vmatprep.subr.mxu0 0.0
        %3593 = vmatpush1.msra.mxu0 0.0
        %3594 = vmatprep.subr.mxu0 0.0
        %3595 = vmatpush1.msra.mxu0 0.0
        %3596 = vmatprep.subr.mxu0 0.0
        %3597 = vmatpush1.msra.mxu0 0.0
        %3598 = vmatprep.subr.mxu0 0.0
        %3599 = vmatpush1.msra.mxu0 0.0
        %3600 = vmatprep.subr.mxu0 0.0
        %3601 = vmatpush1.msra.mxu0 0.0
        %3602 = vmatprep.mubr.f32.mxu0 0.0
        %3603 = vmatmul.mubr.f32.gmra.mrb[0].mxu0 %v3448
        %v3604 = vpop.f32.mrb[0].mxu0
        %v3605 = vadd.f32 %v3521, %v3604
        %v3606 = vpop.f32.mrb[0].mxu0
        %v3607 = vadd.f32 %v3525, %v3606
        %3608 = vmatprep.mubr.f32.mxu0 0.0
        %3609 = vmatmul.mubr.f32.gmra.mrb[0].mxu0 %v3449
        %v3610 = vpop.f32.mrb[0].mxu0
        %v3611 = vadd.f32 %v3521, %v3610
        %v3612 = vpop.f32.mrb[0].mxu0
        %v3613 = vadd.f32 %v3525, %v3612
        %3614 = vmatprep.mubr.f32.mxu0 0.0
        %3615 = vmatmul.mubr.f32.gmra.mrb[0].mxu0 %v3450
        %v3616 = vpop.f32.mrb[0].mxu0
        %v3617 = vadd.f32 %v3521, %v3616
        %v3618 = vpop.f32.mrb[0].mxu0
        %v3619 = vadd.f32 %v3525, %v3618
        %3620 = vmatprep.mubr.f32.mxu0 0.0
        %3621 = vmatmul.mubr.f32.gmra.mrb[0].mxu0 %v3451
        %v3622 = vpop.f32.mrb[0].mxu0
        %v3623 = vadd.f32 %v3521, %v3622
        %v3624 = vpop.f32.mrb[0].mxu0
        %v3625 = vadd.f32 %v3525, %v3624
        %3626 = vdwg.mxu0
        %3627 = vmatprep.subr.mxu0 %v3455
        %3628 = vmatpush1.msra.mxu0 %v3454
        %3629 = vmatprep.subr.mxu0 %v3459
        %3630 = vmatpush1.msra.mxu0 %v3458
        %3631 = vmatprep.subr.mxu0 %v3463
        %3632 = vmatpush1.msra.mxu0 %v3462
        %3633 = vmatprep.subr.mxu0 %v3467
        %3634 = vmatpush1.msra.mxu0 %v3466
        %3635 = vmatprep.subr.mxu0 %v3471
        %3636 = vmatpush1.msra.mxu0 %v3470
        %3637 = vmatprep.subr.mxu0 %v3475
        %3638 = vmatpush1.msra.mxu0 %v3474
        %3639 = vmatprep.subr.mxu0 %v3479
        %3640 = vmatpush1.msra.mxu0 %v3478
        %3641 = vmatprep.subr.mxu0 %v3483
        %3642 = vmatpush1.msra.mxu0 %v3482
        %3643 = vmatprep.subr.mxu0 %v3487
        %3644 = vmatpush1.msra.mxu0 %v3486
        %3645 = vmatprep.subr.mxu0 %v3491
        %3646 = vmatpush1.msra.mxu0 %v3490
        %3647 = vmatprep.subr.mxu0 %v3495
        %3648 = vmatpush1.msra.mxu0 %v3494
        %3649 = vmatprep.subr.mxu0 %v3499
        %3650 = vmatpush1.msra.mxu0 %v3498
        %3651 = vmatprep.subr.mxu0 %v3503
        %3652 = vmatpush1.msra.mxu0 %v3502
        %3653 = vmatprep.subr.mxu0 %v3507
        %3654 = vmatpush1.msra.mxu0 %v3506
        %3655 = vmatprep.subr.mxu0 %v3511
        %3656 = vmatpush1.msra.mxu0 %v3510
        %3657 = vmatprep.subr.mxu0 %v3515
        %3658 = vmatpush1.msra.mxu0 %v3514
        %3659 = vmatprep.subr.mxu0 0.0
        %3660 = vmatpush1.msra.mxu0 0.0
        %3661 = vmatprep.subr.mxu0 0.0
        %3662 = vmatpush1.msra.mxu0 0.0
        %3663 = vmatprep.subr.mxu0 0.0
        %3664 = vmatpush1.msra.mxu0 0.0
        %3665 = vmatprep.subr.mxu0 0.0
        %3666 = vmatpush1.msra.mxu0 0.0
        %3667 = vmatprep.subr.mxu0 0.0
        %3668 = vmatpush1.msra.mxu0 0.0
        %3669 = vmatprep.subr.mxu0 0.0
        %3670 = vmatpush1.msra.mxu0 0.0
        %3671 = vmatprep.subr.mxu0 0.0
        %3672 = vmatpush1.msra.mxu0 0.0
        %3673 = vmatprep.subr.mxu0 0.0
        %3674 = vmatpush1.msra.mxu0 0.0
        %3675 = vmatprep.subr.mxu0 0.0
        %3676 = vmatpush1.msra.mxu0 0.0
        %3677 = vmatprep.subr.mxu0 0.0
        %3678 = vmatpush1.msra.mxu0 0.0
        %3679 = vmatprep.subr.mxu0 0.0
        %3680 = vmatpush1.msra.mxu0 0.0
        %3681 = vmatprep.subr.mxu0 0.0
        %3682 = vmatpush1.msra.mxu0 0.0
        %3683 = vmatprep.subr.mxu0 0.0
        %3684 = vmatpush1.msra.mxu0 0.0
        %3685 = vmatprep.subr.mxu0 0.0
        %3686 = vmatpush1.msra.mxu0 0.0
        %3687 = vmatprep.subr.mxu0 0.0
        %3688 = vmatpush1.msra.mxu0 0.0
        %3689 = vmatprep.subr.mxu0 0.0
        %3690 = vmatpush1.msra.mxu0 0.0
        %3691 = vmatprep.mubr.f32.mxu0 0.0
        %3692 = vmatmul.mubr.f32.gmra.mrb[0].mxu0 %v3448
        %v3693 = vpop.f32.mrb[0].mxu0
        %v3694 = vadd.f32 %v3529, %v3693
        %v3695 = vpop.f32.mrb[0].mxu0
        %v3696 = vadd.f32 %v3533, %v3695
        %3697 = vmatprep.mubr.f32.mxu0 0.0
        %3698 = vmatmul.mubr.f32.gmra.mrb[0].mxu0 %v3449
        %v3699 = vpop.f32.mrb[0].mxu0
        %v3700 = vadd.f32 %v3529, %v3699
        %v3701 = vpop.f32.mrb[0].mxu0
        %v3702 = vadd.f32 %v3533, %v3701
        %3703 = vmatprep.mubr.f32.mxu0 0.0
        %3704 = vmatmul.mubr.f32.gmra.mrb[0].mxu0 %v3450
        %v3705 = vpop.f32.mrb[0].mxu0
        %v3706 = vadd.f32 %v3529, %v3705
        %v3707 = vpop.f32.mrb[0].mxu0
        %v3708 = vadd.f32 %v3533, %v3707
        %3709 = vmatprep.mubr.f32.mxu0 0.0
        %3710 = vmatmul.mubr.f32.gmra.mrb[0].mxu0 %v3451
        %v3711 = vpop.f32.mrb[0].mxu0
        %v3712 = vadd.f32 %v3529, %v3711
        %v3713 = vpop.f32.mrb[0].mxu0
        %v3714 = vadd.f32 %v3533, %v3713
        %3715 = vdwg.mxu0
        %v3716 = vmul.f32 %v3605, 1.702
        %v3717 = vmul.f32 %v3607, 1.702
        %v3718 = vmul.f32 %v3694, 1.702
        %v3719 = vmul.f32 %v3696, 1.702
        %v3720 = vmul.f32 %v3611, 1.702
        %v3721 = vmul.f32 %v3613, 1.702
        %v3722 = vmul.f32 %v3700, 1.702
        %v3723 = vmul.f32 %v3702, 1.702
        %v3724 = vmul.f32 %v3617, 1.702
        %v3725 = vmul.f32 %v3619, 1.702
        %v3726 = vmul.f32 %v3706, 1.702
        %v3727 = vmul.f32 %v3708, 1.702
        %v3728 = vmul.f32 %v3623, 1.702
        %v3729 = vmul.f32 %v3625, 1.702
        %v3730 = vmul.f32 %v3712, 1.702
        %v3731 = vmul.f32 %v3714, 1.702
        %v3732 = vxor.u32 %v3716, 2147483648
        %v3733 = vxor.u32 %v3717, 2147483648
        %v3734 = vxor.u32 %v3718, 2147483648
        %v3735 = vxor.u32 %v3719, 2147483648
        %v3736 = vxor.u32 %v3720, 2147483648
        %v3737 = vxor.u32 %v3721, 2147483648
        %v3738 = vxor.u32 %v3722, 2147483648
        %v3739 = vxor.u32 %v3723, 2147483648
        %v3740 = vxor.u32 %v3724, 2147483648
        %v3741 = vxor.u32 %v3725, 2147483648
        %v3742 = vxor.u32 %v3726, 2147483648
        %v3743 = vxor.u32 %v3727, 2147483648
        %v3744 = vxor.u32 %v3728, 2147483648
        %v3745 = vxor.u32 %v3729, 2147483648
        %v3746 = vxor.u32 %v3730, 2147483648
        %v3747 = vxor.u32 %v3731, 2147483648
        %v3748 = vmul.f32 %v3732, 1.442695
        %v3749 = vpow.pop %v3748
        %v3750 = vmul.f32 %v3733, 1.442695
        %v3751 = vpow.pop %v3750
        %v3752 = vmul.f32 %v3734, 1.442695
        %v3753 = vpow.pop %v3752
        %v3754 = vmul.f32 %v3735, 1.442695
        %v3755 = vpow.pop %v3754
        %v3756 = vmul.f32 %v3736, 1.442695
        %v3757 = vpow.pop %v3756
        %v3758 = vmul.f32 %v3737, 1.442695
        %v3759 = vpow.pop %v3758
        %v3760 = vmul.f32 %v3738, 1.442695
        %v3761 = vpow.pop %v3760
        %v3762 = vmul.f32 %v3739, 1.442695
        %v3763 = vpow.pop %v3762
        %v3764 = vmul.f32 %v3740, 1.442695
        %v3765 = vpow.pop %v3764
        %v3766 = vmul.f32 %v3741, 1.442695
        %v3767 = vpow.pop %v3766
        %v3768 = vmul.f32 %v3742, 1.442695
        %v3769 = vpow.pop %v3768
        %v3770 = vmul.f32 %v3743, 1.442695
        %v3771 = vpow.pop %v3770
        %v3772 = vmul.f32 %v3744, 1.442695
        %v3773 = vpow.pop %v3772
        %v3774 = vmul.f32 %v3745, 1.442695
        %v3775 = vpow.pop %v3774
        %v3776 = vmul.f32 %v3746, 1.442695
        %v3777 = vpow.pop %v3776
        %v3778 = vmul.f32 %v3747, 1.442695
        %v3779 = vpow.pop %v3778
        %v3780 = vadd.f32 %v3749, 1.0
        %v3781 = vadd.f32 %v3751, 1.0
        %v3782 = vadd.f32 %v3753, 1.0
        %v3783 = vadd.f32 %v3755, 1.0
        %v3784 = vadd.f32 %v3757, 1.0
        %v3785 = vadd.f32 %v3759, 1.0
        %v3786 = vadd.f32 %v3761, 1.0
        %v3787 = vadd.f32 %v3763, 1.0
        %v3788 = vadd.f32 %v3765, 1.0
        %v3789 = vadd.f32 %v3767, 1.0
        %v3790 = vadd.f32 %v3769, 1.0
        %v3791 = vadd.f32 %v3771, 1.0
        %v3792 = vadd.f32 %v3773, 1.0
        %v3793 = vadd.f32 %v3775, 1.0
        %v3794 = vadd.f32 %v3777, 1.0
        %v3795 = vadd.f32 %v3779, 1.0
        %v3796 = vrcp.pop %v3780
        %v3797 = vmul.f32 1.0, %v3796
        %v3798 = vrcp.pop %v3781
        %v3799 = vmul.f32 1.0, %v3798
        %v3800 = vrcp.pop %v3782
        %v3801 = vmul.f32 1.0, %v3800
        %v3802 = vrcp.pop %v3783
        %v3803 = vmul.f32 1.0, %v3802
        %v3804 = vrcp.pop %v3784
        %v3805 = vmul.f32 1.0, %v3804
        %v3806 = vrcp.pop %v3785
        %v3807 = vmul.f32 1.0, %v3806
        %v3808 = vrcp.pop %v3786
        %v3809 = vmul.f32 1.0, %v3808
        %v3810 = vrcp.pop %v3787
        %v3811 = vmul.f32 1.0, %v3810
        %v3812 = vrcp.pop %v3788
        %v3813 = vmul.f32 1.0, %v3812
        %v3814 = vrcp.pop %v3789
        %v3815 = vmul.f32 1.0, %v3814
        %v3816 = vrcp.pop %v3790
        %v3817 = vmul.f32 1.0, %v3816
        %v3818 = vrcp.pop %v3791
        %v3819 = vmul.f32 1.0, %v3818
        %v3820 = vrcp.pop %v3792
        %v3821 = vmul.f32 1.0, %v3820
        %v3822 = vrcp.pop %v3793
        %v3823 = vmul.f32 1.0, %v3822
        %v3824 = vrcp.pop %v3794
        %v3825 = vmul.f32 1.0, %v3824
        %v3826 = vrcp.pop %v3795
        %v3827 = vmul.f32 1.0, %v3826
        %v3828 = vmul.f32 %v3797, %v3605
        %v3829 = vmul.f32 %v3799, %v3607
        %v3830 = vmul.f32 %v3801, %v3694
        %v3831 = vmul.f32 %v3803, %v3696
        %v3832 = vmul.f32 %v3805, %v3611
        %v3833 = vmul.f32 %v3807, %v3613
        %v3834 = vmul.f32 %v3809, %v3700
        %v3835 = vmul.f32 %v3811, %v3702
        %v3836 = vmul.f32 %v3813, %v3617
        %v3837 = vmul.f32 %v3815, %v3619
        %v3838 = vmul.f32 %v3817, %v3706
        %v3839 = vmul.f32 %v3819, %v3708
        %v3840 = vmul.f32 %v3821, %v3623
        %v3841 = vmul.f32 %v3823, %v3625
        %v3842 = vmul.f32 %v3825, %v3712
        %v3843 = vmul.f32 %v3827, %v3714
        %v3844 = vld [vmem:[%s15] sm:$0xff]
        %v3845 = vld [vmem:[%s15 + $0x8] sm:$0xff]
        %v3846 = vld [vmem:[%s15 + $0x10] sm:$0xff]
        %v3847 = vld [vmem:[%s15 + $0x18] sm:$0xff]
        %v3848 = vld [vmem:[%s15 + $0x20] sm:$0xff]
        %v3849 = vld [vmem:[%s15 + $0x28] sm:$0xff]
        %v3850 = vld [vmem:[%s15 + $0x30] sm:$0xff]
        %v3851 = vld [vmem:[%s15 + $0x38] sm:$0xff]
        %v3852 = vld [vmem:[%s15 + $0x40] sm:$0xff]
        %v3853 = vld [vmem:[%s15 + $0x48] sm:$0xff]
        %v3854 = vld [vmem:[%s15 + $0x50] sm:$0xff]
        %v3855 = vld [vmem:[%s15 + $0x58] sm:$0xff]
        %v3856 = vld [vmem:[%s15 + $0x60] sm:$0xff]
        %v3857 = vld [vmem:[%s15 + $0x68] sm:$0xff]
        %v3858 = vld [vmem:[%s15 + $0x70] sm:$0xff]
        %v3859 = vld [vmem:[%s15 + $0x78] sm:$0xff]
        %v3860 = vld [vmem:[%s15 + $0x80] sm:$0xff]
        %v3861 = vld [vmem:[%s15 + $0x88] sm:$0xff]
        %v3862 = vld [vmem:[%s15 + $0x90] sm:$0xff]
        %v3863 = vld [vmem:[%s15 + $0x98] sm:$0xff]
        %v3864 = vld [vmem:[%s15 + $0xa0] sm:$0xff]
        %v3865 = vld [vmem:[%s15 + $0xa8] sm:$0xff]
        %v3866 = vld [vmem:[%s15 + $0xb0] sm:$0xff]
        %v3867 = vld [vmem:[%s15 + $0xb8] sm:$0xff]
        %v3868 = vld [vmem:[%s15 + $0xc0] sm:$0xff]
        %v3869 = vld [vmem:[%s15 + $0xc8] sm:$0xff]
        %v3870 = vld [vmem:[%s15 + $0xd0] sm:$0xff]
        %v3871 = vld [vmem:[%s15 + $0xd8] sm:$0xff]
        %v3872 = vld [vmem:[%s15 + $0xe0] sm:$0xff]
        %v3873 = vld [vmem:[%s15 + $0xe8] sm:$0xff]
        %v3874 = vld [vmem:[%s15 + $0xf0] sm:$0xff]
        %v3875 = vld [vmem:[%s15 + $0xf8] sm:$0xff]
        %v3876 = vld [vmem:[%s15 + $0x100] sm:$0xff]
        %v3877 = vld [vmem:[%s15 + $0x108] sm:$0xff]
        %v3878 = vld [vmem:[%s15 + $0x110] sm:$0xff]
        %v3879 = vld [vmem:[%s15 + $0x118] sm:$0xff]
        %v3880 = vld [vmem:[%s15 + $0x120] sm:$0xff]
        %v3881 = vld [vmem:[%s15 + $0x128] sm:$0xff]
        %v3882 = vld [vmem:[%s15 + $0x130] sm:$0xff]
        %v3883 = vld [vmem:[%s15 + $0x138] sm:$0xff]
        %v3884 = vld [vmem:[%s15 + $0x140] sm:$0xff]
        %v3885 = vld [vmem:[%s15 + $0x148] sm:$0xff]
        %v3886 = vld [vmem:[%s15 + $0x150] sm:$0xff]
        %v3887 = vld [vmem:[%s15 + $0x158] sm:$0xff]
        %v3888 = vld [vmem:[%s15 + $0x160] sm:$0xff]
        %v3889 = vld [vmem:[%s15 + $0x168] sm:$0xff]
        %v3890 = vld [vmem:[%s15 + $0x170] sm:$0xff]
        %v3891 = vld [vmem:[%s15 + $0x178] sm:$0xff]
        %v3892 = vld [vmem:[%s15 + $0x180] sm:$0xff]
        %v3893 = vld [vmem:[%s15 + $0x188] sm:$0xff]
        %v3894 = vld [vmem:[%s15 + $0x190] sm:$0xff]
        %v3895 = vld [vmem:[%s15 + $0x198] sm:$0xff]
        %v3896 = vld [vmem:[%s15 + $0x1a0] sm:$0xff]
        %v3897 = vld [vmem:[%s15 + $0x1a8] sm:$0xff]
        %v3898 = vld [vmem:[%s15 + $0x1b0] sm:$0xff]
        %v3899 = vld [vmem:[%s15 + $0x1b8] sm:$0xff]
        %v3900 = vld [vmem:[%s15 + $0x1c0] sm:$0xff]
        %v3901 = vld [vmem:[%s15 + $0x1c8] sm:$0xff]
        %v3902 = vld [vmem:[%s15 + $0x1d0] sm:$0xff]
        %v3903 = vld [vmem:[%s15 + $0x1d8] sm:$0xff]
        %v3904 = vld [vmem:[%s15 + $0x1e0] sm:$0xff]
        %v3905 = vld [vmem:[%s15 + $0x1e8] sm:$0xff]
        %v3906 = vld [vmem:[%s15 + $0x1f0] sm:$0xff]
        %v3907 = vld [vmem:[%s15 + $0x1f8] sm:$0xff]
        %3908 = vmatprep.subr.mxu0 0.0
        %3909 = vmatpush1.msra.mxu0 %v3844
        %3910 = vmatprep.subr.mxu0 0.0
        %3911 = vmatpush1.msra.mxu0 %v3845
        %3912 = vmatprep.subr.mxu0 0.0
        %3913 = vmatpush1.msra.mxu0 %v3846
        %3914 = vmatprep.subr.mxu0 0.0
        %3915 = vmatpush1.msra.mxu0 %v3847
        %3916 = vmatprep.subr.mxu0 0.0
        %3917 = vmatpush1.msra.mxu0 %v3848
        %3918 = vmatprep.subr.mxu0 0.0
        %3919 = vmatpush1.msra.mxu0 %v3849
        %3920 = vmatprep.subr.mxu0 0.0
        %3921 = vmatpush1.msra.mxu0 %v3850
        %3922 = vmatprep.subr.mxu0 0.0
        %3923 = vmatpush1.msra.mxu0 %v3851
        %3924 = vmatprep.subr.mxu0 0.0
        %3925 = vmatpush1.msra.mxu0 %v3852
        %3926 = vmatprep.subr.mxu0 0.0
        %3927 = vmatpush1.msra.mxu0 %v3853
        %3928 = vmatprep.subr.mxu0 0.0
        %3929 = vmatpush1.msra.mxu0 %v3854
        %3930 = vmatprep.subr.mxu0 0.0
        %3931 = vmatpush1.msra.mxu0 %v3855
        %3932 = vmatprep.subr.mxu0 0.0
        %3933 = vmatpush1.msra.mxu0 %v3856
        %3934 = vmatprep.subr.mxu0 0.0
        %3935 = vmatpush1.msra.mxu0 %v3857
        %3936 = vmatprep.subr.mxu0 0.0
        %3937 = vmatpush1.msra.mxu0 %v3858
        %3938 = vmatprep.subr.mxu0 0.0
        %3939 = vmatpush1.msra.mxu0 %v3859
        %3940 = vmatprep.subr.mxu0 0.0
        %3941 = vmatpush1.msra.mxu0 %v3860
        %3942 = vmatprep.subr.mxu0 0.0
        %3943 = vmatpush1.msra.mxu0 %v3861
        %3944 = vmatprep.subr.mxu0 0.0
        %3945 = vmatpush1.msra.mxu0 %v3862
        %3946 = vmatprep.subr.mxu0 0.0
        %3947 = vmatpush1.msra.mxu0 %v3863
        %3948 = vmatprep.subr.mxu0 0.0
        %3949 = vmatpush1.msra.mxu0 %v3864
        %3950 = vmatprep.subr.mxu0 0.0
        %3951 = vmatpush1.msra.mxu0 %v3865
        %3952 = vmatprep.subr.mxu0 0.0
        %3953 = vmatpush1.msra.mxu0 %v3866
        %3954 = vmatprep.subr.mxu0 0.0
        %3955 = vmatpush1.msra.mxu0 %v3867
        %3956 = vmatprep.subr.mxu0 0.0
        %3957 = vmatpush1.msra.mxu0 %v3868
        %3958 = vmatprep.subr.mxu0 0.0
        %3959 = vmatpush1.msra.mxu0 %v3869
        %3960 = vmatprep.subr.mxu0 0.0
        %3961 = vmatpush1.msra.mxu0 %v3870
        %3962 = vmatprep.subr.mxu0 0.0
        %3963 = vmatpush1.msra.mxu0 %v3871
        %3964 = vmatprep.subr.mxu0 0.0
        %3965 = vmatpush1.msra.mxu0 %v3872
        %3966 = vmatprep.subr.mxu0 0.0
        %3967 = vmatpush1.msra.mxu0 %v3873
        %3968 = vmatprep.subr.mxu0 0.0
        %3969 = vmatpush1.msra.mxu0 %v3874
        %3970 = vmatprep.subr.mxu0 0.0
        %3971 = vmatpush1.msra.mxu0 %v3875
        %3972 = vmatprep.mubr.f32.mxu0 %v3829
        %3973 = vmatmul.mubr.f32.gmra.mrb[0].mxu0 %v3828
        %v3974 = vpop.f32.mrb[0].mxu0
        %v3975 = vadd.f32 0.0, %v3974
        %v3976 = vpop.f32.mrb[0].mxu0
        %3977 = vmatprep.mubr.f32.mxu0 %v3833
        %3978 = vmatmul.mubr.f32.gmra.mrb[0].mxu0 %v3832
        %v3979 = vpop.f32.mrb[0].mxu0
        %v3980 = vadd.f32 0.0, %v3979
        %v3981 = vpop.f32.mrb[0].mxu0
        %3982 = vmatprep.mubr.f32.mxu0 %v3837
        %3983 = vmatmul.mubr.f32.gmra.mrb[0].mxu0 %v3836
        %v3984 = vpop.f32.mrb[0].mxu0
        %v3985 = vadd.f32 0.0, %v3984
        %v3986 = vpop.f32.mrb[0].mxu0
        %3987 = vmatprep.mubr.f32.mxu0 %v3841
        %3988 = vmatmul.mubr.f32.gmra.mrb[0].mxu0 %v3840
        %v3989 = vpop.f32.mrb[0].mxu0
        %v3990 = vadd.f32 0.0, %v3989
        %v3991 = vpop.f32.mrb[0].mxu0
        %3992 = vdwg.mxu0
        %3993 = vmatprep.subr.mxu0 0.0
        %3994 = vmatpush1.msra.mxu0 %v3876
        %3995 = vmatprep.subr.mxu0 0.0
        %3996 = vmatpush1.msra.mxu0 %v3877
        %3997 = vmatprep.subr.mxu0 0.0
        %3998 = vmatpush1.msra.mxu0 %v3878
        %3999 = vmatprep.subr.mxu0 0.0
        %4000 = vmatpush1.msra.mxu0 %v3879
        %4001 = vmatprep.subr.mxu0 0.0
        %4002 = vmatpush1.msra.mxu0 %v3880
        %4003 = vmatprep.subr.mxu0 0.0
        %4004 = vmatpush1.msra.mxu0 %v3881
        %4005 = vmatprep.subr.mxu0 0.0
        %4006 = vmatpush1.msra.mxu0 %v3882
        %4007 = vmatprep.subr.mxu0 0.0
        %4008 = vmatpush1.msra.mxu0 %v3883
        %4009 = vmatprep.subr.mxu0 0.0
        %4010 = vmatpush1.msra.mxu0 %v3884
        %4011 = vmatprep.subr.mxu0 0.0
        %4012 = vmatpush1.msra.mxu0 %v3885
        %4013 = vmatprep.subr.mxu0 0.0
        %4014 = vmatpush1.msra.mxu0 %v3886
        %4015 = vmatprep.subr.mxu0 0.0
        %4016 = vmatpush1.msra.mxu0 %v3887
        %4017 = vmatprep.subr.mxu0 0.0
        %4018 = vmatpush1.msra.mxu0 %v3888
        %4019 = vmatprep.subr.mxu0 0.0
        %4020 = vmatpush1.msra.mxu0 %v3889
        %4021 = vmatprep.subr.mxu0 0.0
        %4022 = vmatpush1.msra.mxu0 %v3890
        %4023 = vmatprep.subr.mxu0 0.0
        %4024 = vmatpush1.msra.mxu0 %v3891
        %4025 = vmatprep.subr.mxu0 0.0
        %4026 = vmatpush1.msra.mxu0 %v3892
        %4027 = vmatprep.subr.mxu0 0.0
        %4028 = vmatpush1.msra.mxu0 %v3893
        %4029 = vmatprep.subr.mxu0 0.0
        %4030 = vmatpush1.msra.mxu0 %v3894
        %4031 = vmatprep.subr.mxu0 0.0
        %4032 = vmatpush1.msra.mxu0 %v3895
        %4033 = vmatprep.subr.mxu0 0.0
        %4034 = vmatpush1.msra.mxu0 %v3896
        %4035 = vmatprep.subr.mxu0 0.0
        %4036 = vmatpush1.msra.mxu0 %v3897
        %4037 = vmatprep.subr.mxu0 0.0
        %4038 = vmatpush1.msra.mxu0 %v3898
        %4039 = vmatprep.subr.mxu0 0.0
        %4040 = vmatpush1.msra.mxu0 %v3899
        %4041 = vmatprep.subr.mxu0 0.0
        %4042 = vmatpush1.msra.mxu0 %v3900
        %4043 = vmatprep.subr.mxu0 0.0
        %4044 = vmatpush1.msra.mxu0 %v3901
        %4045 = vmatprep.subr.mxu0 0.0
        %4046 = vmatpush1.msra.mxu0 %v3902
        %4047 = vmatprep.subr.mxu0 0.0
        %4048 = vmatpush1.msra.mxu0 %v3903
        %4049 = vmatprep.subr.mxu0 0.0
        %4050 = vmatpush1.msra.mxu0 %v3904
        %4051 = vmatprep.subr.mxu0 0.0
        %4052 = vmatpush1.msra.mxu0 %v3905
        %4053 = vmatprep.subr.mxu0 0.0
        %4054 = vmatpush1.msra.mxu0 %v3906
        %4055 = vmatprep.subr.mxu0 0.0
        %4056 = vmatpush1.msra.mxu0 %v3907
        %4057 = vmatprep.mubr.f32.mxu0 %v3831
        %4058 = vmatmul.mubr.f32.gmra.mrb[0].mxu0 %v3830
        %v4059 = vpop.f32.mrb[0].mxu0
        %v4060 = vadd.f32 %v3975, %v4059
        %v4061 = vpop.f32.mrb[0].mxu0
        %4062 = vmatprep.mubr.f32.mxu0 %v3835
        %4063 = vmatmul.mubr.f32.gmra.mrb[0].mxu0 %v3834
        %v4064 = vpop.f32.mrb[0].mxu0
        %v4065 = vadd.f32 %v3980, %v4064
        %v4066 = vpop.f32.mrb[0].mxu0
        %4067 = vmatprep.mubr.f32.mxu0 %v3839
        %4068 = vmatmul.mubr.f32.gmra.mrb[0].mxu0 %v3838
        %v4069 = vpop.f32.mrb[0].mxu0
        %v4070 = vadd.f32 %v3985, %v4069
        %v4071 = vpop.f32.mrb[0].mxu0
        %4072 = vmatprep.mubr.f32.mxu0 %v3843
        %4073 = vmatmul.mubr.f32.gmra.mrb[0].mxu0 %v3842
        %v4074 = vpop.f32.mrb[0].mxu0
        %v4075 = vadd.f32 %v3990, %v4074
        %v4076 = vpop.f32.mrb[0].mxu0
        %4077 = vdwg.mxu0
        %v4078 = vadd.f32 %v3374, %v4060
        %v4079 = vadd.f32 %v3375, %v4065
        %v4080 = vadd.f32 %v3376, %v4070
        %v4081 = vadd.f32 %v3377, %v4075
        %v4082 = vld [vmem:[%s16] sm:$0x1]
        %v4084 = vlaneseq
        %v4085 = vshrl.u32 %v4084, 7
        %v4086 = vsub.s32 0, %v4085
        %v4087 = vrot.slane %v4082, %v4086
        %v4089 = vadd.f32 %v4078, %v4087
        %v4090 = vadd.f32 %v4079, %v4087
        %v4091 = vadd.f32 %v4080, %v4087
        %v4092 = vadd.f32 %v4081, %v4087
        %s4093 = scalar_lea.vmem %s4, 1
        %v4094 = vld [vmem:[%s4093] sm:$0x1]
        %s4095 = scalar_lea.vmem %s5, 1
        %v4096 = vld [vmem:[%s4095] sm:$0x1]
        %4097 = vadd.xlane.f32.xlu0 %v4089
        %v4098 = vpop.xlane.xlu0 %4097
        %4099 = vadd.xlane.f32.xlu0 %v4090
        %v4100 = vpop.xlane.xlu0 %4099
        %4101 = vadd.xlane.f32.xlu0 %v4091
        %v4102 = vpop.xlane.xlu0 %4101
        %4103 = vadd.xlane.f32.xlu0 %v4092
        %v4104 = vpop.xlane.xlu0 %4103
        %v4105 = vmul.f32 %v4098, 0.010416667
        %v4106 = vmul.f32 %v4100, 0.010416667
        %v4107 = vmul.f32 %v4102, 0.010416667
        %v4108 = vmul.f32 %v4104, 0.010416667
        %v4109 = vmul.f32 %v4089, %v4089
        %v4110 = vmul.f32 %v4090, %v4090
        %v4111 = vmul.f32 %v4091, %v4091
        %v4112 = vmul.f32 %v4092, %v4092
        %4113 = vadd.xlane.f32.xlu0 %v4109
        %v4114 = vpop.xlane.xlu0 %4113
        %4115 = vadd.xlane.f32.xlu0 %v4110
        %v4116 = vpop.xlane.xlu0 %4115
        %4117 = vadd.xlane.f32.xlu0 %v4111
        %v4118 = vpop.xlane.xlu0 %4117
        %4119 = vadd.xlane.f32.xlu0 %v4112
        %v4120 = vpop.xlane.xlu0 %4119
        %v4121 = vmul.f32 %v4114, 0.010416667
        %v4122 = vmul.f32 %v4116, 0.010416667
        %v4123 = vmul.f32 %v4118, 0.010416667
        %v4124 = vmul.f32 %v4120, 0.010416667
        %v4125 = vmul.f32 %v4105, %v4105
        %v4126 = vmul.f32 %v4106, %v4106
        %v4127 = vmul.f32 %v4107, %v4107
        %v4128 = vmul.f32 %v4108, %v4108
        %v4129 = vsub.f32 %v4121, %v4125
        %v4130 = vsub.f32 %v4122, %v4126
        %v4131 = vsub.f32 %v4123, %v4127
        %v4132 = vsub.f32 %v4124, %v4128
        %v4133 = vsub.f32 %v4089, %v4105
        %v4134 = vsub.f32 %v4090, %v4106
        %v4135 = vsub.f32 %v4091, %v4107
        %v4136 = vsub.f32 %v4092, %v4108
        %v4137 = vadd.f32 %v4129, 1e-05
        %v4138 = vadd.f32 %v4130, 1e-05
        %v4139 = vadd.f32 %v4131, 1e-05
        %v4140 = vadd.f32 %v4132, 1e-05
        %v4141 = vrsqrt.pop %v4137
        %v4142 = vrsqrt.pop %v4138
        %v4143 = vrsqrt.pop %v4139
        %v4144 = vrsqrt.pop %v4140
        %v4145 = vmul.f32 %v4133, %v4141
        %v4146 = vmul.f32 %v4134, %v4142
        %v4147 = vmul.f32 %v4135, %v4143
        %v4148 = vmul.f32 %v4136, %v4144
        %v4150 = vlaneseq
        %v4151 = vshrl.u32 %v4150, 7
        %v4152 = vsub.s32 0, %v4151
        %v4153 = vrot.slane %v4094, %v4152
        %v4155 = vmul.f32 %v4145, %v4153
        %v4156 = vmul.f32 %v4146, %v4153
        %v4157 = vmul.f32 %v4147, %v4153
        %v4158 = vmul.f32 %v4148, %v4153
        %v4160 = vlaneseq
        %v4161 = vshrl.u32 %v4160, 7
        %v4162 = vsub.s32 0, %v4161
        %v4163 = vrot.slane %v4096, %v4162
        %v4165 = vadd.f32 %v4155, %v4163
        %v4166 = vadd.f32 %v4156, %v4163
        %v4167 = vadd.f32 %v4157, %v4163
        %v4168 = vadd.f32 %v4158, %v4163
        %s4169 = scalar_lea.vmem %s6, 512
        %v4170 = vld [vmem:[%s4169] sm:$0xff]
        %v4171 = vld [vmem:[%s4169 + $0x8] sm:$0xff]
        %v4172 = vld [vmem:[%s4169 + $0x10] sm:$0xff]
        %v4173 = vld [vmem:[%s4169 + $0x18] sm:$0xff]
        %v4174 = vld [vmem:[%s4169 + $0x20] sm:$0xff]
        %v4175 = vld [vmem:[%s4169 + $0x28] sm:$0xff]
        %v4176 = vld [vmem:[%s4169 + $0x30] sm:$0xff]
        %v4177 = vld [vmem:[%s4169 + $0x38] sm:$0xff]
        %v4178 = vld [vmem:[%s4169 + $0x40] sm:$0xff]
        %v4179 = vld [vmem:[%s4169 + $0x48] sm:$0xff]
        %v4180 = vld [vmem:[%s4169 + $0x50] sm:$0xff]
        %v4181 = vld [vmem:[%s4169 + $0x58] sm:$0xff]
        %v4182 = vld [vmem:[%s4169 + $0x60] sm:$0xff]
        %v4183 = vld [vmem:[%s4169 + $0x68] sm:$0xff]
        %v4184 = vld [vmem:[%s4169 + $0x70] sm:$0xff]
        %v4185 = vld [vmem:[%s4169 + $0x78] sm:$0xff]
        %v4186 = vld [vmem:[%s4169 + $0x80] sm:$0xff]
        %v4187 = vld [vmem:[%s4169 + $0x88] sm:$0xff]
        %v4188 = vld [vmem:[%s4169 + $0x90] sm:$0xff]
        %v4189 = vld [vmem:[%s4169 + $0x98] sm:$0xff]
        %v4190 = vld [vmem:[%s4169 + $0xa0] sm:$0xff]
        %v4191 = vld [vmem:[%s4169 + $0xa8] sm:$0xff]
        %v4192 = vld [vmem:[%s4169 + $0xb0] sm:$0xff]
        %v4193 = vld [vmem:[%s4169 + $0xb8] sm:$0xff]
        %v4194 = vld [vmem:[%s4169 + $0xc0] sm:$0xff]
        %v4195 = vld [vmem:[%s4169 + $0xc8] sm:$0xff]
        %v4196 = vld [vmem:[%s4169 + $0xd0] sm:$0xff]
        %v4197 = vld [vmem:[%s4169 + $0xd8] sm:$0xff]
        %v4198 = vld [vmem:[%s4169 + $0xe0] sm:$0xff]
        %v4199 = vld [vmem:[%s4169 + $0xe8] sm:$0xff]
        %v4200 = vld [vmem:[%s4169 + $0xf0] sm:$0xff]
        %v4201 = vld [vmem:[%s4169 + $0xf8] sm:$0xff]
        %v4202 = vld [vmem:[%s4169 + $0x100] sm:$0xff]
        %v4203 = vld [vmem:[%s4169 + $0x108] sm:$0xff]
        %v4204 = vld [vmem:[%s4169 + $0x110] sm:$0xff]
        %v4205 = vld [vmem:[%s4169 + $0x118] sm:$0xff]
        %v4206 = vld [vmem:[%s4169 + $0x120] sm:$0xff]
        %v4207 = vld [vmem:[%s4169 + $0x128] sm:$0xff]
        %v4208 = vld [vmem:[%s4169 + $0x130] sm:$0xff]
        %v4209 = vld [vmem:[%s4169 + $0x138] sm:$0xff]
        %v4210 = vld [vmem:[%s4169 + $0x140] sm:$0xff]
        %v4211 = vld [vmem:[%s4169 + $0x148] sm:$0xff]
        %v4212 = vld [vmem:[%s4169 + $0x150] sm:$0xff]
        %v4213 = vld [vmem:[%s4169 + $0x158] sm:$0xff]
        %v4214 = vld [vmem:[%s4169 + $0x160] sm:$0xff]
        %v4215 = vld [vmem:[%s4169 + $0x168] sm:$0xff]
        %v4216 = vld [vmem:[%s4169 + $0x170] sm:$0xff]
        %v4217 = vld [vmem:[%s4169 + $0x178] sm:$0xff]
        %v4218 = vld [vmem:[%s4169 + $0x180] sm:$0xff]
        %v4219 = vld [vmem:[%s4169 + $0x188] sm:$0xff]
        %v4220 = vld [vmem:[%s4169 + $0x190] sm:$0xff]
        %v4221 = vld [vmem:[%s4169 + $0x198] sm:$0xff]
        %v4222 = vld [vmem:[%s4169 + $0x1a0] sm:$0xff]
        %v4223 = vld [vmem:[%s4169 + $0x1a8] sm:$0xff]
        %v4224 = vld [vmem:[%s4169 + $0x1b0] sm:$0xff]
        %v4225 = vld [vmem:[%s4169 + $0x1b8] sm:$0xff]
        %v4226 = vld [vmem:[%s4169 + $0x1c0] sm:$0xff]
        %v4227 = vld [vmem:[%s4169 + $0x1c8] sm:$0xff]
        %v4228 = vld [vmem:[%s4169 + $0x1d0] sm:$0xff]
        %v4229 = vld [vmem:[%s4169 + $0x1d8] sm:$0xff]
        %v4230 = vld [vmem:[%s4169 + $0x1e0] sm:$0xff]
        %v4231 = vld [vmem:[%s4169 + $0x1e8] sm:$0xff]
        %v4232 = vld [vmem:[%s4169 + $0x1f0] sm:$0xff]
        %v4233 = vld [vmem:[%s4169 + $0x1f8] sm:$0xff]
        %4234 = vmatprep.subr.mxu0 0.0
        %4235 = vmatpush1.msra.mxu0 %v4170
        %4236 = vmatprep.subr.mxu0 0.0
        %4237 = vmatpush1.msra.mxu0 %v4171
        %4238 = vmatprep.subr.mxu0 0.0
        %4239 = vmatpush1.msra.mxu0 %v4172
        %4240 = vmatprep.subr.mxu0 0.0
        %4241 = vmatpush1.msra.mxu0 %v4173
        %4242 = vmatprep.subr.mxu0 0.0
        %4243 = vmatpush1.msra.mxu0 %v4174
        %4244 = vmatprep.subr.mxu0 0.0
        %4245 = vmatpush1.msra.mxu0 %v4175
        %4246 = vmatprep.subr.mxu0 0.0
        %4247 = vmatpush1.msra.mxu0 %v4176
        %4248 = vmatprep.subr.mxu0 0.0
        %4249 = vmatpush1.msra.mxu0 %v4177
        %4250 = vmatprep.subr.mxu0 0.0
        %4251 = vmatpush1.msra.mxu0 %v4178
        %4252 = vmatprep.subr.mxu0 0.0
        %4253 = vmatpush1.msra.mxu0 %v4179
        %4254 = vmatprep.subr.mxu0 0.0
        %4255 = vmatpush1.msra.mxu0 %v4180
        %4256 = vmatprep.subr.mxu0 0.0
        %4257 = vmatpush1.msra.mxu0 %v4181
        %4258 = vmatprep.subr.mxu0 0.0
        %4259 = vmatpush1.msra.mxu0 %v4182
        %4260 = vmatprep.subr.mxu0 0.0
        %4261 = vmatpush1.msra.mxu0 %v4183
        %4262 = vmatprep.subr.mxu0 0.0
        %4263 = vmatpush1.msra.mxu0 %v4184
        %4264 = vmatprep.subr.mxu0 0.0
        %4265 = vmatpush1.msra.mxu0 %v4185
        %4266 = vmatprep.subr.mxu0 0.0
        %4267 = vmatpush1.msra.mxu0 0.0
        %4268 = vmatprep.subr.mxu0 0.0
        %4269 = vmatpush1.msra.mxu0 0.0
        %4270 = vmatprep.subr.mxu0 0.0
        %4271 = vmatpush1.msra.mxu0 0.0
        %4272 = vmatprep.subr.mxu0 0.0
        %4273 = vmatpush1.msra.mxu0 0.0
        %4274 = vmatprep.subr.mxu0 0.0
        %4275 = vmatpush1.msra.mxu0 0.0
        %4276 = vmatprep.subr.mxu0 0.0
        %4277 = vmatpush1.msra.mxu0 0.0
        %4278 = vmatprep.subr.mxu0 0.0
        %4279 = vmatpush1.msra.mxu0 0.0
        %4280 = vmatprep.subr.mxu0 0.0
        %4281 = vmatpush1.msra.mxu0 0.0
        %4282 = vmatprep.subr.mxu0 0.0
        %4283 = vmatpush1.msra.mxu0 0.0
        %4284 = vmatprep.subr.mxu0 0.0
        %4285 = vmatpush1.msra.mxu0 0.0
        %4286 = vmatprep.subr.mxu0 0.0
        %4287 = vmatpush1.msra.mxu0 0.0
        %4288 = vmatprep.subr.mxu0 0.0
        %4289 = vmatpush1.msra.mxu0 0.0
        %4290 = vmatprep.subr.mxu0 0.0
        %4291 = vmatpush1.msra.mxu0 0.0
        %4292 = vmatprep.subr.mxu0 0.0
        %4293 = vmatpush1.msra.mxu0 0.0
        %4294 = vmatprep.subr.mxu0 0.0
        %4295 = vmatpush1.msra.mxu0 0.0
        %4296 = vmatprep.subr.mxu0 0.0
        %4297 = vmatpush1.msra.mxu0 0.0
        %4298 = vmatprep.mubr.f32.mxu0 0.0
        %4299 = vmatmul.mubr.f32.gmra.mrb[0].mxu0 %v4165
        %v4300 = vpop.f32.mrb[0].mxu0
        %v4301 = vadd.f32 0.0, %v4300
        %v4302 = vpop.f32.mrb[0].mxu0
        %4303 = vmatprep.mubr.f32.mxu0 0.0
        %4304 = vmatmul.mubr.f32.gmra.mrb[0].mxu0 %v4166
        %v4305 = vpop.f32.mrb[0].mxu0
        %v4306 = vadd.f32 0.0, %v4305
        %v4307 = vpop.f32.mrb[0].mxu0
        %4308 = vmatprep.mubr.f32.mxu0 0.0
        %4309 = vmatmul.mubr.f32.gmra.mrb[0].mxu0 %v4167
        %v4310 = vpop.f32.mrb[0].mxu0
        %v4311 = vadd.f32 0.0, %v4310
        %v4312 = vpop.f32.mrb[0].mxu0
        %4313 = vmatprep.mubr.f32.mxu0 0.0
        %4314 = vmatmul.mubr.f32.gmra.mrb[0].mxu0 %v4168
        %v4315 = vpop.f32.mrb[0].mxu0
        %v4316 = vadd.f32 0.0, %v4315
        %v4317 = vpop.f32.mrb[0].mxu0
        %4318 = vdwg.mxu0
        %4319 = vmatprep.subr.mxu0 0.0
        %4320 = vmatpush1.msra.mxu0 %v4186
        %4321 = vmatprep.subr.mxu0 0.0
        %4322 = vmatpush1.msra.mxu0 %v4187
        %4323 = vmatprep.subr.mxu0 0.0
        %4324 = vmatpush1.msra.mxu0 %v4188
        %4325 = vmatprep.subr.mxu0 0.0
        %4326 = vmatpush1.msra.mxu0 %v4189
        %4327 = vmatprep.subr.mxu0 0.0
        %4328 = vmatpush1.msra.mxu0 %v4190
        %4329 = vmatprep.subr.mxu0 0.0
        %4330 = vmatpush1.msra.mxu0 %v4191
        %4331 = vmatprep.subr.mxu0 0.0
        %4332 = vmatpush1.msra.mxu0 %v4192
        %4333 = vmatprep.subr.mxu0 0.0
        %4334 = vmatpush1.msra.mxu0 %v4193
        %4335 = vmatprep.subr.mxu0 0.0
        %4336 = vmatpush1.msra.mxu0 %v4194
        %4337 = vmatprep.subr.mxu0 0.0
        %4338 = vmatpush1.msra.mxu0 %v4195
        %4339 = vmatprep.subr.mxu0 0.0
        %4340 = vmatpush1.msra.mxu0 %v4196
        %4341 = vmatprep.subr.mxu0 0.0
        %4342 = vmatpush1.msra.mxu0 %v4197
        %4343 = vmatprep.subr.mxu0 0.0
        %4344 = vmatpush1.msra.mxu0 %v4198
        %4345 = vmatprep.subr.mxu0 0.0
        %4346 = vmatpush1.msra.mxu0 %v4199
        %4347 = vmatprep.subr.mxu0 0.0
        %4348 = vmatpush1.msra.mxu0 %v4200
        %4349 = vmatprep.subr.mxu0 0.0
        %4350 = vmatpush1.msra.mxu0 %v4201
        %4351 = vmatprep.subr.mxu0 0.0
        %4352 = vmatpush1.msra.mxu0 0.0
        %4353 = vmatprep.subr.mxu0 0.0
        %4354 = vmatpush1.msra.mxu0 0.0
        %4355 = vmatprep.subr.mxu0 0.0
        %4356 = vmatpush1.msra.mxu0 0.0
        %4357 = vmatprep.subr.mxu0 0.0
        %4358 = vmatpush1.msra.mxu0 0.0
        %4359 = vmatprep.subr.mxu0 0.0
        %4360 = vmatpush1.msra.mxu0 0.0
        %4361 = vmatprep.subr.mxu0 0.0
        %4362 = vmatpush1.msra.mxu0 0.0
        %4363 = vmatprep.subr.mxu0 0.0
        %4364 = vmatpush1.msra.mxu0 0.0
        %4365 = vmatprep.subr.mxu0 0.0
        %4366 = vmatpush1.msra.mxu0 0.0
        %4367 = vmatprep.subr.mxu0 0.0
        %4368 = vmatpush1.msra.mxu0 0.0
        %4369 = vmatprep.subr.mxu0 0.0
        %4370 = vmatpush1.msra.mxu0 0.0
        %4371 = vmatprep.subr.mxu0 0.0
        %4372 = vmatpush1.msra.mxu0 0.0
        %4373 = vmatprep.subr.mxu0 0.0
        %4374 = vmatpush1.msra.mxu0 0.0
        %4375 = vmatprep.subr.mxu0 0.0
        %4376 = vmatpush1.msra.mxu0 0.0
        %4377 = vmatprep.subr.mxu0 0.0
        %4378 = vmatpush1.msra.mxu0 0.0
        %4379 = vmatprep.subr.mxu0 0.0
        %4380 = vmatpush1.msra.mxu0 0.0
        %4381 = vmatprep.subr.mxu0 0.0
        %4382 = vmatpush1.msra.mxu0 0.0
        %4383 = vmatprep.mubr.f32.mxu0 0.0
        %4384 = vmatmul.mubr.f32.gmra.mrb[0].mxu0 %v4165
        %v4385 = vpop.f32.mrb[0].mxu0
        %v4386 = vadd.f32 0.0, %v4385
        %v4387 = vpop.f32.mrb[0].mxu0
        %4388 = vmatprep.mubr.f32.mxu0 0.0
        %4389 = vmatmul.mubr.f32.gmra.mrb[0].mxu0 %v4166
        %v4390 = vpop.f32.mrb[0].mxu0
        %v4391 = vadd.f32 0.0, %v4390
        %v4392 = vpop.f32.mrb[0].mxu0
        %4393 = vmatprep.mubr.f32.mxu0 0.0
        %4394 = vmatmul.mubr.f32.gmra.mrb[0].mxu0 %v4167
        %v4395 = vpop.f32.mrb[0].mxu0
        %v4396 = vadd.f32 0.0, %v4395
        %v4397 = vpop.f32.mrb[0].mxu0
        %4398 = vmatprep.mubr.f32.mxu0 0.0
        %4399 = vmatmul.mubr.f32.gmra.mrb[0].mxu0 %v4168
        %v4400 = vpop.f32.mrb[0].mxu0
        %v4401 = vadd.f32 0.0, %v4400
        %v4402 = vpop.f32.mrb[0].mxu0
        %4403 = vdwg.mxu0
        %4404 = vmatprep.subr.mxu0 0.0
        %4405 = vmatpush1.msra.mxu0 %v4202
        %4406 = vmatprep.subr.mxu0 0.0
        %4407 = vmatpush1.msra.mxu0 %v4203
        %4408 = vmatprep.subr.mxu0 0.0
        %4409 = vmatpush1.msra.mxu0 %v4204
        %4410 = vmatprep.subr.mxu0 0.0
        %4411 = vmatpush1.msra.mxu0 %v4205
        %4412 = vmatprep.subr.mxu0 0.0
        %4413 = vmatpush1.msra.mxu0 %v4206
        %4414 = vmatprep.subr.mxu0 0.0
        %4415 = vmatpush1.msra.mxu0 %v4207
        %4416 = vmatprep.subr.mxu0 0.0
        %4417 = vmatpush1.msra.mxu0 %v4208
        %4418 = vmatprep.subr.mxu0 0.0
        %4419 = vmatpush1.msra.mxu0 %v4209
        %4420 = vmatprep.subr.mxu0 0.0
        %4421 = vmatpush1.msra.mxu0 %v4210
        %4422 = vmatprep.subr.mxu0 0.0
        %4423 = vmatpush1.msra.mxu0 %v4211
        %4424 = vmatprep.subr.mxu0 0.0
        %4425 = vmatpush1.msra.mxu0 %v4212
        %4426 = vmatprep.subr.mxu0 0.0
        %4427 = vmatpush1.msra.mxu0 %v4213
        %4428 = vmatprep.subr.mxu0 0.0
        %4429 = vmatpush1.msra.mxu0 %v4214
        %4430 = vmatprep.subr.mxu0 0.0
        %4431 = vmatpush1.msra.mxu0 %v4215
        %4432 = vmatprep.subr.mxu0 0.0
        %4433 = vmatpush1.msra.mxu0 %v4216
        %4434 = vmatprep.subr.mxu0 0.0
        %4435 = vmatpush1.msra.mxu0 %v4217
        %4436 = vmatprep.subr.mxu0 0.0
        %4437 = vmatpush1.msra.mxu0 0.0
        %4438 = vmatprep.subr.mxu0 0.0
        %4439 = vmatpush1.msra.mxu0 0.0
        %4440 = vmatprep.subr.mxu0 0.0
        %4441 = vmatpush1.msra.mxu0 0.0
        %4442 = vmatprep.subr.mxu0 0.0
        %4443 = vmatpush1.msra.mxu0 0.0
        %4444 = vmatprep.subr.mxu0 0.0
        %4445 = vmatpush1.msra.mxu0 0.0
        %4446 = vmatprep.subr.mxu0 0.0
        %4447 = vmatpush1.msra.mxu0 0.0
        %4448 = vmatprep.subr.mxu0 0.0
        %4449 = vmatpush1.msra.mxu0 0.0
        %4450 = vmatprep.subr.mxu0 0.0
        %4451 = vmatpush1.msra.mxu0 0.0
        %4452 = vmatprep.subr.mxu0 0.0
        %4453 = vmatpush1.msra.mxu0 0.0
        %4454 = vmatprep.subr.mxu0 0.0
        %4455 = vmatpush1.msra.mxu0 0.0
        %4456 = vmatprep.subr.mxu0 0.0
        %4457 = vmatpush1.msra.mxu0 0.0
        %4458 = vmatprep.subr.mxu0 0.0
        %4459 = vmatpush1.msra.mxu0 0.0
        %4460 = vmatprep.subr.mxu0 0.0
        %4461 = vmatpush1.msra.mxu0 0.0
        %4462 = vmatprep.subr.mxu0 0.0
        %4463 = vmatpush1.msra.mxu0 0.0
        %4464 = vmatprep.subr.mxu0 0.0
        %4465 = vmatpush1.msra.mxu0 0.0
        %4466 = vmatprep.subr.mxu0 0.0
        %4467 = vmatpush1.msra.mxu0 0.0
        %4468 = vmatprep.mubr.f32.mxu0 0.0
        %4469 = vmatmul.mubr.f32.gmra.mrb[0].mxu0 %v4165
        %v4470 = vpop.f32.mrb[0].mxu0
        %v4471 = vadd.f32 0.0, %v4470
        %v4472 = vpop.f32.mrb[0].mxu0
        %4473 = vmatprep.mubr.f32.mxu0 0.0
        %4474 = vmatmul.mubr.f32.gmra.mrb[0].mxu0 %v4166
        %v4475 = vpop.f32.mrb[0].mxu0
        %v4476 = vadd.f32 0.0, %v4475
        %v4477 = vpop.f32.mrb[0].mxu0
        %4478 = vmatprep.mubr.f32.mxu0 0.0
        %4479 = vmatmul.mubr.f32.gmra.mrb[0].mxu0 %v4167
        %v4480 = vpop.f32.mrb[0].mxu0
        %v4481 = vadd.f32 0.0, %v4480
        %v4482 = vpop.f32.mrb[0].mxu0
        %4483 = vmatprep.mubr.f32.mxu0 0.0
        %4484 = vmatmul.mubr.f32.gmra.mrb[0].mxu0 %v4168
        %v4485 = vpop.f32.mrb[0].mxu0
        %v4486 = vadd.f32 0.0, %v4485
        %v4487 = vpop.f32.mrb[0].mxu0
        %4488 = vdwg.mxu0
        %4489 = vmatprep.subr.mxu0 0.0
        %4490 = vmatpush1.msra.mxu0 %v4218
        %4491 = vmatprep.subr.mxu0 0.0
        %4492 = vmatpush1.msra.mxu0 %v4219
        %4493 = vmatprep.subr.mxu0 0.0
        %4494 = vmatpush1.msra.mxu0 %v4220
        %4495 = vmatprep.subr.mxu0 0.0
        %4496 = vmatpush1.msra.mxu0 %v4221
        %4497 = vmatprep.subr.mxu0 0.0
        %4498 = vmatpush1.msra.mxu0 %v4222
        %4499 = vmatprep.subr.mxu0 0.0
        %4500 = vmatpush1.msra.mxu0 %v4223
        %4501 = vmatprep.subr.mxu0 0.0
        %4502 = vmatpush1.msra.mxu0 %v4224
        %4503 = vmatprep.subr.mxu0 0.0
        %4504 = vmatpush1.msra.mxu0 %v4225
        %4505 = vmatprep.subr.mxu0 0.0
        %4506 = vmatpush1.msra.mxu0 %v4226
        %4507 = vmatprep.subr.mxu0 0.0
        %4508 = vmatpush1.msra.mxu0 %v4227
        %4509 = vmatprep.subr.mxu0 0.0
        %4510 = vmatpush1.msra.mxu0 %v4228
        %4511 = vmatprep.subr.mxu0 0.0
        %4512 = vmatpush1.msra.mxu0 %v4229
        %4513 = vmatprep.subr.mxu0 0.0
        %4514 = vmatpush1.msra.mxu0 %v4230
        %4515 = vmatprep.subr.mxu0 0.0
        %4516 = vmatpush1.msra.mxu0 %v4231
        %4517 = vmatprep.subr.mxu0 0.0
        %4518 = vmatpush1.msra.mxu0 %v4232
        %4519 = vmatprep.subr.mxu0 0.0
        %4520 = vmatpush1.msra.mxu0 %v4233
        %4521 = vmatprep.subr.mxu0 0.0
        %4522 = vmatpush1.msra.mxu0 0.0
        %4523 = vmatprep.subr.mxu0 0.0
        %4524 = vmatpush1.msra.mxu0 0.0
        %4525 = vmatprep.subr.mxu0 0.0
        %4526 = vmatpush1.msra.mxu0 0.0
        %4527 = vmatprep.subr.mxu0 0.0
        %4528 = vmatpush1.msra.mxu0 0.0
        %4529 = vmatprep.subr.mxu0 0.0
        %4530 = vmatpush1.msra.mxu0 0.0
        %4531 = vmatprep.subr.mxu0 0.0
        %4532 = vmatpush1.msra.mxu0 0.0
        %4533 = vmatprep.subr.mxu0 0.0
        %4534 = vmatpush1.msra.mxu0 0.0
        %4535 = vmatprep.subr.mxu0 0.0
        %4536 = vmatpush1.msra.mxu0 0.0
        %4537 = vmatprep.subr.mxu0 0.0
        %4538 = vmatpush1.msra.mxu0 0.0
        %4539 = vmatprep.subr.mxu0 0.0
        %4540 = vmatpush1.msra.mxu0 0.0
        %4541 = vmatprep.subr.mxu0 0.0
        %4542 = vmatpush1.msra.mxu0 0.0
        %4543 = vmatprep.subr.mxu0 0.0
        %4544 = vmatpush1.msra.mxu0 0.0
        %4545 = vmatprep.subr.mxu0 0.0
        %4546 = vmatpush1.msra.mxu0 0.0
        %4547 = vmatprep.subr.mxu0 0.0
        %4548 = vmatpush1.msra.mxu0 0.0
        %4549 = vmatprep.subr.mxu0 0.0
        %4550 = vmatpush1.msra.mxu0 0.0
        %4551 = vmatprep.subr.mxu0 0.0
        %4552 = vmatpush1.msra.mxu0 0.0
        %4553 = vmatprep.mubr.f32.mxu0 0.0
        %4554 = vmatmul.mubr.f32.gmra.mrb[0].mxu0 %v4165
        %v4555 = vpop.f32.mrb[0].mxu0
        %v4556 = vadd.f32 0.0, %v4555
        %v4557 = vpop.f32.mrb[0].mxu0
        %4558 = vmatprep.mubr.f32.mxu0 0.0
        %4559 = vmatmul.mubr.f32.gmra.mrb[0].mxu0 %v4166
        %v4560 = vpop.f32.mrb[0].mxu0
        %v4561 = vadd.f32 0.0, %v4560
        %v4562 = vpop.f32.mrb[0].mxu0
        %4563 = vmatprep.mubr.f32.mxu0 0.0
        %4564 = vmatmul.mubr.f32.gmra.mrb[0].mxu0 %v4167
        %v4565 = vpop.f32.mrb[0].mxu0
        %v4566 = vadd.f32 0.0, %v4565
        %v4567 = vpop.f32.mrb[0].mxu0
        %4568 = vmatprep.mubr.f32.mxu0 0.0
        %4569 = vmatmul.mubr.f32.gmra.mrb[0].mxu0 %v4168
        %v4570 = vpop.f32.mrb[0].mxu0
        %v4571 = vadd.f32 0.0, %v4570
        %v4572 = vpop.f32.mrb[0].mxu0
        %4573 = vdwg.mxu0
        %s4574 = scalar_lea.vmem %s7, 512
        %v4575 = vld [vmem:[%s4574] sm:$0xff]
        %v4576 = vld [vmem:[%s4574 + $0x8] sm:$0xff]
        %v4577 = vld [vmem:[%s4574 + $0x10] sm:$0xff]
        %v4578 = vld [vmem:[%s4574 + $0x18] sm:$0xff]
        %v4579 = vld [vmem:[%s4574 + $0x20] sm:$0xff]
        %v4580 = vld [vmem:[%s4574 + $0x28] sm:$0xff]
        %v4581 = vld [vmem:[%s4574 + $0x30] sm:$0xff]
        %v4582 = vld [vmem:[%s4574 + $0x38] sm:$0xff]
        %v4583 = vld [vmem:[%s4574 + $0x40] sm:$0xff]
        %v4584 = vld [vmem:[%s4574 + $0x48] sm:$0xff]
        %v4585 = vld [vmem:[%s4574 + $0x50] sm:$0xff]
        %v4586 = vld [vmem:[%s4574 + $0x58] sm:$0xff]
        %v4587 = vld [vmem:[%s4574 + $0x60] sm:$0xff]
        %v4588 = vld [vmem:[%s4574 + $0x68] sm:$0xff]
        %v4589 = vld [vmem:[%s4574 + $0x70] sm:$0xff]
        %v4590 = vld [vmem:[%s4574 + $0x78] sm:$0xff]
        %v4591 = vld [vmem:[%s4574 + $0x80] sm:$0xff]
        %v4592 = vld [vmem:[%s4574 + $0x88] sm:$0xff]
        %v4593 = vld [vmem:[%s4574 + $0x90] sm:$0xff]
        %v4594 = vld [vmem:[%s4574 + $0x98] sm:$0xff]
        %v4595 = vld [vmem:[%s4574 + $0xa0] sm:$0xff]
        %v4596 = vld [vmem:[%s4574 + $0xa8] sm:$0xff]
        %v4597 = vld [vmem:[%s4574 + $0xb0] sm:$0xff]
        %v4598 = vld [vmem:[%s4574 + $0xb8] sm:$0xff]
        %v4599 = vld [vmem:[%s4574 + $0xc0] sm:$0xff]
        %v4600 = vld [vmem:[%s4574 + $0xc8] sm:$0xff]
        %v4601 = vld [vmem:[%s4574 + $0xd0] sm:$0xff]
        %v4602 = vld [vmem:[%s4574 + $0xd8] sm:$0xff]
        %v4603 = vld [vmem:[%s4574 + $0xe0] sm:$0xff]
        %v4604 = vld [vmem:[%s4574 + $0xe8] sm:$0xff]
        %v4605 = vld [vmem:[%s4574 + $0xf0] sm:$0xff]
        %v4606 = vld [vmem:[%s4574 + $0xf8] sm:$0xff]
        %v4607 = vld [vmem:[%s4574 + $0x100] sm:$0xff]
        %v4608 = vld [vmem:[%s4574 + $0x108] sm:$0xff]
        %v4609 = vld [vmem:[%s4574 + $0x110] sm:$0xff]
        %v4610 = vld [vmem:[%s4574 + $0x118] sm:$0xff]
        %v4611 = vld [vmem:[%s4574 + $0x120] sm:$0xff]
        %v4612 = vld [vmem:[%s4574 + $0x128] sm:$0xff]
        %v4613 = vld [vmem:[%s4574 + $0x130] sm:$0xff]
        %v4614 = vld [vmem:[%s4574 + $0x138] sm:$0xff]
        %v4615 = vld [vmem:[%s4574 + $0x140] sm:$0xff]
        %v4616 = vld [vmem:[%s4574 + $0x148] sm:$0xff]
        %v4617 = vld [vmem:[%s4574 + $0x150] sm:$0xff]
        %v4618 = vld [vmem:[%s4574 + $0x158] sm:$0xff]
        %v4619 = vld [vmem:[%s4574 + $0x160] sm:$0xff]
        %v4620 = vld [vmem:[%s4574 + $0x168] sm:$0xff]
        %v4621 = vld [vmem:[%s4574 + $0x170] sm:$0xff]
        %v4622 = vld [vmem:[%s4574 + $0x178] sm:$0xff]
        %v4623 = vld [vmem:[%s4574 + $0x180] sm:$0xff]
        %v4624 = vld [vmem:[%s4574 + $0x188] sm:$0xff]
        %v4625 = vld [vmem:[%s4574 + $0x190] sm:$0xff]
        %v4626 = vld [vmem:[%s4574 + $0x198] sm:$0xff]
        %v4627 = vld [vmem:[%s4574 + $0x1a0] sm:$0xff]
        %v4628 = vld [vmem:[%s4574 + $0x1a8] sm:$0xff]
        %v4629 = vld [vmem:[%s4574 + $0x1b0] sm:$0xff]
        %v4630 = vld [vmem:[%s4574 + $0x1b8] sm:$0xff]
        %v4631 = vld [vmem:[%s4574 + $0x1c0] sm:$0xff]
        %v4632 = vld [vmem:[%s4574 + $0x1c8] sm:$0xff]
        %v4633 = vld [vmem:[%s4574 + $0x1d0] sm:$0xff]
        %v4634 = vld [vmem:[%s4574 + $0x1d8] sm:$0xff]
        %v4635 = vld [vmem:[%s4574 + $0x1e0] sm:$0xff]
        %v4636 = vld [vmem:[%s4574 + $0x1e8] sm:$0xff]
        %v4637 = vld [vmem:[%s4574 + $0x1f0] sm:$0xff]
        %v4638 = vld [vmem:[%s4574 + $0x1f8] sm:$0xff]
        %4639 = vmatprep.subr.mxu0 0.0
        %4640 = vmatpush1.msra.mxu0 %v4575
        %4641 = vmatprep.subr.mxu0 0.0
        %4642 = vmatpush1.msra.mxu0 %v4576
        %4643 = vmatprep.subr.mxu0 0.0
        %4644 = vmatpush1.msra.mxu0 %v4577
        %4645 = vmatprep.subr.mxu0 0.0
        %4646 = vmatpush1.msra.mxu0 %v4578
        %4647 = vmatprep.subr.mxu0 0.0
        %4648 = vmatpush1.msra.mxu0 %v4579
        %4649 = vmatprep.subr.mxu0 0.0
        %4650 = vmatpush1.msra.mxu0 %v4580
        %4651 = vmatprep.subr.mxu0 0.0
        %4652 = vmatpush1.msra.mxu0 %v4581
        %4653 = vmatprep.subr.mxu0 0.0
        %4654 = vmatpush1.msra.mxu0 %v4582
        %4655 = vmatprep.subr.mxu0 0.0
        %4656 = vmatpush1.msra.mxu0 %v4583
        %4657 = vmatprep.subr.mxu0 0.0
        %4658 = vmatpush1.msra.mxu0 %v4584
        %4659 = vmatprep.subr.mxu0 0.0
        %4660 = vmatpush1.msra.mxu0 %v4585
        %4661 = vmatprep.subr.mxu0 0.0
        %4662 = vmatpush1.msra.mxu0 %v4586
        %4663 = vmatprep.subr.mxu0 0.0
        %4664 = vmatpush1.msra.mxu0 %v4587
        %4665 = vmatprep.subr.mxu0 0.0
        %4666 = vmatpush1.msra.mxu0 %v4588
        %4667 = vmatprep.subr.mxu0 0.0
        %4668 = vmatpush1.msra.mxu0 %v4589
        %4669 = vmatprep.subr.mxu0 0.0
        %4670 = vmatpush1.msra.mxu0 %v4590
        %4671 = vmatprep.subr.mxu0 0.0
        %4672 = vmatpush1.msra.mxu0 0.0
        %4673 = vmatprep.subr.mxu0 0.0
        %4674 = vmatpush1.msra.mxu0 0.0
        %4675 = vmatprep.subr.mxu0 0.0
        %4676 = vmatpush1.msra.mxu0 0.0
        %4677 = vmatprep.subr.mxu0 0.0
        %4678 = vmatpush1.msra.mxu0 0.0
        %4679 = vmatprep.subr.mxu0 0.0
        %4680 = vmatpush1.msra.mxu0 0.0
        %4681 = vmatprep.subr.mxu0 0.0
        %4682 = vmatpush1.msra.mxu0 0.0
        %4683 = vmatprep.subr.mxu0 0.0
        %4684 = vmatpush1.msra.mxu0 0.0
        %4685 = vmatprep.subr.mxu0 0.0
        %4686 = vmatpush1.msra.mxu0 0.0
        %4687 = vmatprep.subr.mxu0 0.0
        %4688 = vmatpush1.msra.mxu0 0.0
        %4689 = vmatprep.subr.mxu0 0.0
        %4690 = vmatpush1.msra.mxu0 0.0
        %4691 = vmatprep.subr.mxu0 0.0
        %4692 = vmatpush1.msra.mxu0 0.0
        %4693 = vmatprep.subr.mxu0 0.0
        %4694 = vmatpush1.msra.mxu0 0.0
        %4695 = vmatprep.subr.mxu0 0.0
        %4696 = vmatpush1.msra.mxu0 0.0
        %4697 = vmatprep.subr.mxu0 0.0
        %4698 = vmatpush1.msra.mxu0 0.0
        %4699 = vmatprep.subr.mxu0 0.0
        %4700 = vmatpush1.msra.mxu0 0.0
        %4701 = vmatprep.subr.mxu0 0.0
        %4702 = vmatpush1.msra.mxu0 0.0
        %4703 = vmatprep.mubr.f32.mxu0 0.0
        %4704 = vmatmul.mubr.f32.gmra.mrb[0].mxu0 %v4165
        %v4705 = vpop.f32.mrb[0].mxu0
        %v4706 = vadd.f32 0.0, %v4705
        %v4707 = vpop.f32.mrb[0].mxu0
        %4708 = vmatprep.mubr.f32.mxu0 0.0
        %4709 = vmatmul.mubr.f32.gmra.mrb[0].mxu0 %v4166
        %v4710 = vpop.f32.mrb[0].mxu0
        %v4711 = vadd.f32 0.0, %v4710
        %v4712 = vpop.f32.mrb[0].mxu0
        %4713 = vmatprep.mubr.f32.mxu0 0.0
        %4714 = vmatmul.mubr.f32.gmra.mrb[0].mxu0 %v4167
        %v4715 = vpop.f32.mrb[0].mxu0
        %v4716 = vadd.f32 0.0, %v4715
        %v4717 = vpop.f32.mrb[0].mxu0
        %4718 = vmatprep.mubr.f32.mxu0 0.0
        %4719 = vmatmul.mubr.f32.gmra.mrb[0].mxu0 %v4168
        %v4720 = vpop.f32.mrb[0].mxu0
        %v4721 = vadd.f32 0.0, %v4720
        %v4722 = vpop.f32.mrb[0].mxu0
        %4723 = vdwg.mxu0
        %4724 = vmatprep.subr.mxu0 0.0
        %4725 = vmatpush1.msra.mxu0 %v4591
        %4726 = vmatprep.subr.mxu0 0.0
        %4727 = vmatpush1.msra.mxu0 %v4592
        %4728 = vmatprep.subr.mxu0 0.0
        %4729 = vmatpush1.msra.mxu0 %v4593
        %4730 = vmatprep.subr.mxu0 0.0
        %4731 = vmatpush1.msra.mxu0 %v4594
        %4732 = vmatprep.subr.mxu0 0.0
        %4733 = vmatpush1.msra.mxu0 %v4595
        %4734 = vmatprep.subr.mxu0 0.0
        %4735 = vmatpush1.msra.mxu0 %v4596
        %4736 = vmatprep.subr.mxu0 0.0
        %4737 = vmatpush1.msra.mxu0 %v4597
        %4738 = vmatprep.subr.mxu0 0.0
        %4739 = vmatpush1.msra.mxu0 %v4598
        %4740 = vmatprep.subr.mxu0 0.0
        %4741 = vmatpush1.msra.mxu0 %v4599
        %4742 = vmatprep.subr.mxu0 0.0
        %4743 = vmatpush1.msra.mxu0 %v4600
        %4744 = vmatprep.subr.mxu0 0.0
        %4745 = vmatpush1.msra.mxu0 %v4601
        %4746 = vmatprep.subr.mxu0 0.0
        %4747 = vmatpush1.msra.mxu0 %v4602
        %4748 = vmatprep.subr.mxu0 0.0
        %4749 = vmatpush1.msra.mxu0 %v4603
        %4750 = vmatprep.subr.mxu0 0.0
        %4751 = vmatpush1.msra.mxu0 %v4604
        %4752 = vmatprep.subr.mxu0 0.0
        %4753 = vmatpush1.msra.mxu0 %v4605
        %4754 = vmatprep.subr.mxu0 0.0
        %4755 = vmatpush1.msra.mxu0 %v4606
        %4756 = vmatprep.subr.mxu0 0.0
        %4757 = vmatpush1.msra.mxu0 0.0
        %4758 = vmatprep.subr.mxu0 0.0
        %4759 = vmatpush1.msra.mxu0 0.0
        %4760 = vmatprep.subr.mxu0 0.0
        %4761 = vmatpush1.msra.mxu0 0.0
        %4762 = vmatprep.subr.mxu0 0.0
        %4763 = vmatpush1.msra.mxu0 0.0
        %4764 = vmatprep.subr.mxu0 0.0
        %4765 = vmatpush1.msra.mxu0 0.0
        %4766 = vmatprep.subr.mxu0 0.0
        %4767 = vmatpush1.msra.mxu0 0.0
        %4768 = vmatprep.subr.mxu0 0.0
        %4769 = vmatpush1.msra.mxu0 0.0
        %4770 = vmatprep.subr.mxu0 0.0
        %4771 = vmatpush1.msra.mxu0 0.0
        %4772 = vmatprep.subr.mxu0 0.0
        %4773 = vmatpush1.msra.mxu0 0.0
        %4774 = vmatprep.subr.mxu0 0.0
        %4775 = vmatpush1.msra.mxu0 0.0
        %4776 = vmatprep.subr.mxu0 0.0
        %4777 = vmatpush1.msra.mxu0 0.0
        %4778 = vmatprep.subr.mxu0 0.0
        %4779 = vmatpush1.msra.mxu0 0.0
        %4780 = vmatprep.subr.mxu0 0.0
        %4781 = vmatpush1.msra.mxu0 0.0
        %4782 = vmatprep.subr.mxu0 0.0
        %4783 = vmatpush1.msra.mxu0 0.0
        %4784 = vmatprep.subr.mxu0 0.0
        %4785 = vmatpush1.msra.mxu0 0.0
        %4786 = vmatprep.subr.mxu0 0.0
        %4787 = vmatpush1.msra.mxu0 0.0
        %4788 = vmatprep.mubr.f32.mxu0 0.0
        %4789 = vmatmul.mubr.f32.gmra.mrb[0].mxu0 %v4165
        %v4790 = vpop.f32.mrb[0].mxu0
        %v4791 = vadd.f32 0.0, %v4790
        %v4792 = vpop.f32.mrb[0].mxu0
        %4793 = vmatprep.mubr.f32.mxu0 0.0
        %4794 = vmatmul.mubr.f32.gmra.mrb[0].mxu0 %v4166
        %v4795 = vpop.f32.mrb[0].mxu0
        %v4796 = vadd.f32 0.0, %v4795
        %v4797 = vpop.f32.mrb[0].mxu0
        %4798 = vmatprep.mubr.f32.mxu0 0.0
        %4799 = vmatmul.mubr.f32.gmra.mrb[0].mxu0 %v4167
        %v4800 = vpop.f32.mrb[0].mxu0
        %v4801 = vadd.f32 0.0, %v4800
        %v4802 = vpop.f32.mrb[0].mxu0
        %4803 = vmatprep.mubr.f32.mxu0 0.0
        %4804 = vmatmul.mubr.f32.gmra.mrb[0].mxu0 %v4168
        %v4805 = vpop.f32.mrb[0].mxu0
        %v4806 = vadd.f32 0.0, %v4805
        %v4807 = vpop.f32.mrb[0].mxu0
        %4808 = vdwg.mxu0
        %4809 = vmatprep.subr.mxu0 0.0
        %4810 = vmatpush1.msra.mxu0 %v4607
        %4811 = vmatprep.subr.mxu0 0.0
        %4812 = vmatpush1.msra.mxu0 %v4608
        %4813 = vmatprep.subr.mxu0 0.0
        %4814 = vmatpush1.msra.mxu0 %v4609
        %4815 = vmatprep.subr.mxu0 0.0
        %4816 = vmatpush1.msra.mxu0 %v4610
        %4817 = vmatprep.subr.mxu0 0.0
        %4818 = vmatpush1.msra.mxu0 %v4611
        %4819 = vmatprep.subr.mxu0 0.0
        %4820 = vmatpush1.msra.mxu0 %v4612
        %4821 = vmatprep.subr.mxu0 0.0
        %4822 = vmatpush1.msra.mxu0 %v4613
        %4823 = vmatprep.subr.mxu0 0.0
        %4824 = vmatpush1.msra.mxu0 %v4614
        %4825 = vmatprep.subr.mxu0 0.0
        %4826 = vmatpush1.msra.mxu0 %v4615
        %4827 = vmatprep.subr.mxu0 0.0
        %4828 = vmatpush1.msra.mxu0 %v4616
        %4829 = vmatprep.subr.mxu0 0.0
        %4830 = vmatpush1.msra.mxu0 %v4617
        %4831 = vmatprep.subr.mxu0 0.0
        %4832 = vmatpush1.msra.mxu0 %v4618
        %4833 = vmatprep.subr.mxu0 0.0
        %4834 = vmatpush1.msra.mxu0 %v4619
        %4835 = vmatprep.subr.mxu0 0.0
        %4836 = vmatpush1.msra.mxu0 %v4620
        %4837 = vmatprep.subr.mxu0 0.0
        %4838 = vmatpush1.msra.mxu0 %v4621
        %4839 = vmatprep.subr.mxu0 0.0
        %4840 = vmatpush1.msra.mxu0 %v4622
        %4841 = vmatprep.subr.mxu0 0.0
        %4842 = vmatpush1.msra.mxu0 0.0
        %4843 = vmatprep.subr.mxu0 0.0
        %4844 = vmatpush1.msra.mxu0 0.0
        %4845 = vmatprep.subr.mxu0 0.0
        %4846 = vmatpush1.msra.mxu0 0.0
        %4847 = vmatprep.subr.mxu0 0.0
        %4848 = vmatpush1.msra.mxu0 0.0
        %4849 = vmatprep.subr.mxu0 0.0
        %4850 = vmatpush1.msra.mxu0 0.0
        %4851 = vmatprep.subr.mxu0 0.0
        %4852 = vmatpush1.msra.mxu0 0.0
        %4853 = vmatprep.subr.mxu0 0.0
        %4854 = vmatpush1.msra.mxu0 0.0
        %4855 = vmatprep.subr.mxu0 0.0
        %4856 = vmatpush1.msra.mxu0 0.0
        %4857 = vmatprep.subr.mxu0 0.0
        %4858 = vmatpush1.msra.mxu0 0.0
        %4859 = vmatprep.subr.mxu0 0.0
        %4860 = vmatpush1.msra.mxu0 0.0
        %4861 = vmatprep.subr.mxu0 0.0
        %4862 = vmatpush1.msra.mxu0 0.0
        %4863 = vmatprep.subr.mxu0 0.0
        %4864 = vmatpush1.msra.mxu0 0.0
        %4865 = vmatprep.subr.mxu0 0.0
        %4866 = vmatpush1.msra.mxu0 0.0
        %4867 = vmatprep.subr.mxu0 0.0
        %4868 = vmatpush1.msra.mxu0 0.0
        %4869 = vmatprep.subr.mxu0 0.0
        %4870 = vmatpush1.msra.mxu0 0.0
        %4871 = vmatprep.subr.mxu0 0.0
        %4872 = vmatpush1.msra.mxu0 0.0
        %4873 = vmatprep.mubr.f32.mxu0 0.0
        %4874 = vmatmul.mubr.f32.gmra.mrb[0].mxu0 %v4165
        %v4875 = vpop.f32.mrb[0].mxu0
        %v4876 = vadd.f32 0.0, %v4875
        %v4877 = vpop.f32.mrb[0].mxu0
        %4878 = vmatprep.mubr.f32.mxu0 0.0
        %4879 = vmatmul.mubr.f32.gmra.mrb[0].mxu0 %v4166
        %v4880 = vpop.f32.mrb[0].mxu0
        %v4881 = vadd.f32 0.0, %v4880
        %v4882 = vpop.f32.mrb[0].mxu0
        %4883 = vmatprep.mubr.f32.mxu0 0.0
        %4884 = vmatmul.mubr.f32.gmra.mrb[0].mxu0 %v4167
        %v4885 = vpop.f32.mrb[0].mxu0
        %v4886 = vadd.f32 0.0, %v4885
        %v4887 = vpop.f32.mrb[0].mxu0
        %4888 = vmatprep.mubr.f32.mxu0 0.0
        %4889 = vmatmul.mubr.f32.gmra.mrb[0].mxu0 %v4168
        %v4890 = vpop.f32.mrb[0].mxu0
        %v4891 = vadd.f32 0.0, %v4890
        %v4892 = vpop.f32.mrb[0].mxu0
        %4893 = vdwg.mxu0
        %4894 = vmatprep.subr.mxu0 0.0
        %4895 = vmatpush1.msra.mxu0 %v4623
        %4896 = vmatprep.subr.mxu0 0.0
        %4897 = vmatpush1.msra.mxu0 %v4624
        %4898 = vmatprep.subr.mxu0 0.0
        %4899 = vmatpush1.msra.mxu0 %v4625
        %4900 = vmatprep.subr.mxu0 0.0
        %4901 = vmatpush1.msra.mxu0 %v4626
        %4902 = vmatprep.subr.mxu0 0.0
        %4903 = vmatpush1.msra.mxu0 %v4627
        %4904 = vmatprep.subr.mxu0 0.0
        %4905 = vmatpush1.msra.mxu0 %v4628
        %4906 = vmatprep.subr.mxu0 0.0
        %4907 = vmatpush1.msra.mxu0 %v4629
        %4908 = vmatprep.subr.mxu0 0.0
        %4909 = vmatpush1.msra.mxu0 %v4630
        %4910 = vmatprep.subr.mxu0 0.0
        %4911 = vmatpush1.msra.mxu0 %v4631
        %4912 = vmatprep.subr.mxu0 0.0
        %4913 = vmatpush1.msra.mxu0 %v4632
        %4914 = vmatprep.subr.mxu0 0.0
        %4915 = vmatpush1.msra.mxu0 %v4633
        %4916 = vmatprep.subr.mxu0 0.0
        %4917 = vmatpush1.msra.mxu0 %v4634
        %4918 = vmatprep.subr.mxu0 0.0
        %4919 = vmatpush1.msra.mxu0 %v4635
        %4920 = vmatprep.subr.mxu0 0.0
        %4921 = vmatpush1.msra.mxu0 %v4636
        %4922 = vmatprep.subr.mxu0 0.0
        %4923 = vmatpush1.msra.mxu0 %v4637
        %4924 = vmatprep.subr.mxu0 0.0
        %4925 = vmatpush1.msra.mxu0 %v4638
        %4926 = vmatprep.subr.mxu0 0.0
        %4927 = vmatpush1.msra.mxu0 0.0
        %4928 = vmatprep.subr.mxu0 0.0
        %4929 = vmatpush1.msra.mxu0 0.0
        %4930 = vmatprep.subr.mxu0 0.0
        %4931 = vmatpush1.msra.mxu0 0.0
        %4932 = vmatprep.subr.mxu0 0.0
        %4933 = vmatpush1.msra.mxu0 0.0
        %4934 = vmatprep.subr.mxu0 0.0
        %4935 = vmatpush1.msra.mxu0 0.0
        %4936 = vmatprep.subr.mxu0 0.0
        %4937 = vmatpush1.msra.mxu0 0.0
        %4938 = vmatprep.subr.mxu0 0.0
        %4939 = vmatpush1.msra.mxu0 0.0
        %4940 = vmatprep.subr.mxu0 0.0
        %4941 = vmatpush1.msra.mxu0 0.0
        %4942 = vmatprep.subr.mxu0 0.0
        %4943 = vmatpush1.msra.mxu0 0.0
        %4944 = vmatprep.subr.mxu0 0.0
        %4945 = vmatpush1.msra.mxu0 0.0
        %4946 = vmatprep.subr.mxu0 0.0
        %4947 = vmatpush1.msra.mxu0 0.0
        %4948 = vmatprep.subr.mxu0 0.0
        %4949 = vmatpush1.msra.mxu0 0.0
        %4950 = vmatprep.subr.mxu0 0.0
        %4951 = vmatpush1.msra.mxu0 0.0
        %4952 = vmatprep.subr.mxu0 0.0
        %4953 = vmatpush1.msra.mxu0 0.0
        %4954 = vmatprep.subr.mxu0 0.0
        %4955 = vmatpush1.msra.mxu0 0.0
        %4956 = vmatprep.subr.mxu0 0.0
        %4957 = vmatpush1.msra.mxu0 0.0
        %4958 = vmatprep.mubr.f32.mxu0 0.0
        %4959 = vmatmul.mubr.f32.gmra.mrb[0].mxu0 %v4165
        %v4960 = vpop.f32.mrb[0].mxu0
        %v4961 = vadd.f32 0.0, %v4960
        %v4962 = vpop.f32.mrb[0].mxu0
        %4963 = vmatprep.mubr.f32.mxu0 0.0
        %4964 = vmatmul.mubr.f32.gmra.mrb[0].mxu0 %v4166
        %v4965 = vpop.f32.mrb[0].mxu0
        %v4966 = vadd.f32 0.0, %v4965
        %v4967 = vpop.f32.mrb[0].mxu0
        %4968 = vmatprep.mubr.f32.mxu0 0.0
        %4969 = vmatmul.mubr.f32.gmra.mrb[0].mxu0 %v4167
        %v4970 = vpop.f32.mrb[0].mxu0
        %v4971 = vadd.f32 0.0, %v4970
        %v4972 = vpop.f32.mrb[0].mxu0
        %4973 = vmatprep.mubr.f32.mxu0 0.0
        %4974 = vmatmul.mubr.f32.gmra.mrb[0].mxu0 %v4168
        %v4975 = vpop.f32.mrb[0].mxu0
        %v4976 = vadd.f32 0.0, %v4975
        %v4977 = vpop.f32.mrb[0].mxu0
        %4978 = vdwg.mxu0
        %s4979 = scalar_lea.vmem %s8, 512
        %v4980 = vld [vmem:[%s4979] sm:$0xff]
        %v4981 = vld [vmem:[%s4979 + $0x8] sm:$0xff]
        %v4982 = vld [vmem:[%s4979 + $0x10] sm:$0xff]
        %v4983 = vld [vmem:[%s4979 + $0x18] sm:$0xff]
        %v4984 = vld [vmem:[%s4979 + $0x20] sm:$0xff]
        %v4985 = vld [vmem:[%s4979 + $0x28] sm:$0xff]
        %v4986 = vld [vmem:[%s4979 + $0x30] sm:$0xff]
        %v4987 = vld [vmem:[%s4979 + $0x38] sm:$0xff]
        %v4988 = vld [vmem:[%s4979 + $0x40] sm:$0xff]
        %v4989 = vld [vmem:[%s4979 + $0x48] sm:$0xff]
        %v4990 = vld [vmem:[%s4979 + $0x50] sm:$0xff]
        %v4991 = vld [vmem:[%s4979 + $0x58] sm:$0xff]
        %v4992 = vld [vmem:[%s4979 + $0x60] sm:$0xff]
        %v4993 = vld [vmem:[%s4979 + $0x68] sm:$0xff]
        %v4994 = vld [vmem:[%s4979 + $0x70] sm:$0xff]
        %v4995 = vld [vmem:[%s4979 + $0x78] sm:$0xff]
        %v4996 = vld [vmem:[%s4979 + $0x80] sm:$0xff]
        %v4997 = vld [vmem:[%s4979 + $0x88] sm:$0xff]
        %v4998 = vld [vmem:[%s4979 + $0x90] sm:$0xff]
        %v4999 = vld [vmem:[%s4979 + $0x98] sm:$0xff]
        %v5000 = vld [vmem:[%s4979 + $0xa0] sm:$0xff]
        %v5001 = vld [vmem:[%s4979 + $0xa8] sm:$0xff]
        %v5002 = vld [vmem:[%s4979 + $0xb0] sm:$0xff]
        %v5003 = vld [vmem:[%s4979 + $0xb8] sm:$0xff]
        %v5004 = vld [vmem:[%s4979 + $0xc0] sm:$0xff]
        %v5005 = vld [vmem:[%s4979 + $0xc8] sm:$0xff]
        %v5006 = vld [vmem:[%s4979 + $0xd0] sm:$0xff]
        %v5007 = vld [vmem:[%s4979 + $0xd8] sm:$0xff]
        %v5008 = vld [vmem:[%s4979 + $0xe0] sm:$0xff]
        %v5009 = vld [vmem:[%s4979 + $0xe8] sm:$0xff]
        %v5010 = vld [vmem:[%s4979 + $0xf0] sm:$0xff]
        %v5011 = vld [vmem:[%s4979 + $0xf8] sm:$0xff]
        %v5012 = vld [vmem:[%s4979 + $0x100] sm:$0xff]
        %v5013 = vld [vmem:[%s4979 + $0x108] sm:$0xff]
        %v5014 = vld [vmem:[%s4979 + $0x110] sm:$0xff]
        %v5015 = vld [vmem:[%s4979 + $0x118] sm:$0xff]
        %v5016 = vld [vmem:[%s4979 + $0x120] sm:$0xff]
        %v5017 = vld [vmem:[%s4979 + $0x128] sm:$0xff]
        %v5018 = vld [vmem:[%s4979 + $0x130] sm:$0xff]
        %v5019 = vld [vmem:[%s4979 + $0x138] sm:$0xff]
        %v5020 = vld [vmem:[%s4979 + $0x140] sm:$0xff]
        %v5021 = vld [vmem:[%s4979 + $0x148] sm:$0xff]
        %v5022 = vld [vmem:[%s4979 + $0x150] sm:$0xff]
        %v5023 = vld [vmem:[%s4979 + $0x158] sm:$0xff]
        %v5024 = vld [vmem:[%s4979 + $0x160] sm:$0xff]
        %v5025 = vld [vmem:[%s4979 + $0x168] sm:$0xff]
        %v5026 = vld [vmem:[%s4979 + $0x170] sm:$0xff]
        %v5027 = vld [vmem:[%s4979 + $0x178] sm:$0xff]
        %v5028 = vld [vmem:[%s4979 + $0x180] sm:$0xff]
        %v5029 = vld [vmem:[%s4979 + $0x188] sm:$0xff]
        %v5030 = vld [vmem:[%s4979 + $0x190] sm:$0xff]
        %v5031 = vld [vmem:[%s4979 + $0x198] sm:$0xff]
        %v5032 = vld [vmem:[%s4979 + $0x1a0] sm:$0xff]
        %v5033 = vld [vmem:[%s4979 + $0x1a8] sm:$0xff]
        %v5034 = vld [vmem:[%s4979 + $0x1b0] sm:$0xff]
        %v5035 = vld [vmem:[%s4979 + $0x1b8] sm:$0xff]
        %v5036 = vld [vmem:[%s4979 + $0x1c0] sm:$0xff]
        %v5037 = vld [vmem:[%s4979 + $0x1c8] sm:$0xff]
        %v5038 = vld [vmem:[%s4979 + $0x1d0] sm:$0xff]
        %v5039 = vld [vmem:[%s4979 + $0x1d8] sm:$0xff]
        %v5040 = vld [vmem:[%s4979 + $0x1e0] sm:$0xff]
        %v5041 = vld [vmem:[%s4979 + $0x1e8] sm:$0xff]
        %v5042 = vld [vmem:[%s4979 + $0x1f0] sm:$0xff]
        %v5043 = vld [vmem:[%s4979 + $0x1f8] sm:$0xff]
        %5044 = vmatprep.subr.mxu0 0.0
        %5045 = vmatpush1.msra.mxu0 %v4980
        %5046 = vmatprep.subr.mxu0 0.0
        %5047 = vmatpush1.msra.mxu0 %v4981
        %5048 = vmatprep.subr.mxu0 0.0
        %5049 = vmatpush1.msra.mxu0 %v4982
        %5050 = vmatprep.subr.mxu0 0.0
        %5051 = vmatpush1.msra.mxu0 %v4983
        %5052 = vmatprep.subr.mxu0 0.0
        %5053 = vmatpush1.msra.mxu0 %v4984
        %5054 = vmatprep.subr.mxu0 0.0
        %5055 = vmatpush1.msra.mxu0 %v4985
        %5056 = vmatprep.subr.mxu0 0.0
        %5057 = vmatpush1.msra.mxu0 %v4986
        %5058 = vmatprep.subr.mxu0 0.0
        %5059 = vmatpush1.msra.mxu0 %v4987
        %5060 = vmatprep.subr.mxu0 0.0
        %5061 = vmatpush1.msra.mxu0 %v4988
        %5062 = vmatprep.subr.mxu0 0.0
        %5063 = vmatpush1.msra.mxu0 %v4989
        %5064 = vmatprep.subr.mxu0 0.0
        %5065 = vmatpush1.msra.mxu0 %v4990
        %5066 = vmatprep.subr.mxu0 0.0
        %5067 = vmatpush1.msra.mxu0 %v4991
        %5068 = vmatprep.subr.mxu0 0.0
        %5069 = vmatpush1.msra.mxu0 %v4992
        %5070 = vmatprep.subr.mxu0 0.0
        %5071 = vmatpush1.msra.mxu0 %v4993
        %5072 = vmatprep.subr.mxu0 0.0
        %5073 = vmatpush1.msra.mxu0 %v4994
        %5074 = vmatprep.subr.mxu0 0.0
        %5075 = vmatpush1.msra.mxu0 %v4995
        %5076 = vmatprep.subr.mxu0 0.0
        %5077 = vmatpush1.msra.mxu0 0.0
        %5078 = vmatprep.subr.mxu0 0.0
        %5079 = vmatpush1.msra.mxu0 0.0
        %5080 = vmatprep.subr.mxu0 0.0
        %5081 = vmatpush1.msra.mxu0 0.0
        %5082 = vmatprep.subr.mxu0 0.0
        %5083 = vmatpush1.msra.mxu0 0.0
        %5084 = vmatprep.subr.mxu0 0.0
        %5085 = vmatpush1.msra.mxu0 0.0
        %5086 = vmatprep.subr.mxu0 0.0
        %5087 = vmatpush1.msra.mxu0 0.0
        %5088 = vmatprep.subr.mxu0 0.0
        %5089 = vmatpush1.msra.mxu0 0.0
        %5090 = vmatprep.subr.mxu0 0.0
        %5091 = vmatpush1.msra.mxu0 0.0
        %5092 = vmatprep.subr.mxu0 0.0
        %5093 = vmatpush1.msra.mxu0 0.0
        %5094 = vmatprep.subr.mxu0 0.0
        %5095 = vmatpush1.msra.mxu0 0.0
        %5096 = vmatprep.subr.mxu0 0.0
        %5097 = vmatpush1.msra.mxu0 0.0
        %5098 = vmatprep.subr.mxu0 0.0
        %5099 = vmatpush1.msra.mxu0 0.0
        %5100 = vmatprep.subr.mxu0 0.0
        %5101 = vmatpush1.msra.mxu0 0.0
        %5102 = vmatprep.subr.mxu0 0.0
        %5103 = vmatpush1.msra.mxu0 0.0
        %5104 = vmatprep.subr.mxu0 0.0
        %5105 = vmatpush1.msra.mxu0 0.0
        %5106 = vmatprep.subr.mxu0 0.0
        %5107 = vmatpush1.msra.mxu0 0.0
        %5108 = vmatprep.mubr.f32.mxu0 0.0
        %5109 = vmatmul.mubr.f32.gmra.mrb[0].mxu0 %v4165
        %v5110 = vpop.f32.mrb[0].mxu0
        %v5111 = vadd.f32 0.0, %v5110
        %v5112 = vpop.f32.mrb[0].mxu0
        %5113 = vmatprep.mubr.f32.mxu0 0.0
        %5114 = vmatmul.mubr.f32.gmra.mrb[0].mxu0 %v4166
        %v5115 = vpop.f32.mrb[0].mxu0
        %v5116 = vadd.f32 0.0, %v5115
        %v5117 = vpop.f32.mrb[0].mxu0
        %5118 = vmatprep.mubr.f32.mxu0 0.0
        %5119 = vmatmul.mubr.f32.gmra.mrb[0].mxu0 %v4167
        %v5120 = vpop.f32.mrb[0].mxu0
        %v5121 = vadd.f32 0.0, %v5120
        %v5122 = vpop.f32.mrb[0].mxu0
        %5123 = vmatprep.mubr.f32.mxu0 0.0
        %5124 = vmatmul.mubr.f32.gmra.mrb[0].mxu0 %v4168
        %v5125 = vpop.f32.mrb[0].mxu0
        %v5126 = vadd.f32 0.0, %v5125
        %v5127 = vpop.f32.mrb[0].mxu0
        %5128 = vdwg.mxu0
        %5129 = vmatprep.subr.mxu0 0.0
        %5130 = vmatpush1.msra.mxu0 %v4996
        %5131 = vmatprep.subr.mxu0 0.0
        %5132 = vmatpush1.msra.mxu0 %v4997
        %5133 = vmatprep.subr.mxu0 0.0
        %5134 = vmatpush1.msra.mxu0 %v4998
        %5135 = vmatprep.subr.mxu0 0.0
        %5136 = vmatpush1.msra.mxu0 %v4999
        %5137 = vmatprep.subr.mxu0 0.0
        %5138 = vmatpush1.msra.mxu0 %v5000
        %5139 = vmatprep.subr.mxu0 0.0
        %5140 = vmatpush1.msra.mxu0 %v5001
        %5141 = vmatprep.subr.mxu0 0.0
        %5142 = vmatpush1.msra.mxu0 %v5002
        %5143 = vmatprep.subr.mxu0 0.0
        %5144 = vmatpush1.msra.mxu0 %v5003
        %5145 = vmatprep.subr.mxu0 0.0
        %5146 = vmatpush1.msra.mxu0 %v5004
        %5147 = vmatprep.subr.mxu0 0.0
        %5148 = vmatpush1.msra.mxu0 %v5005
        %5149 = vmatprep.subr.mxu0 0.0
        %5150 = vmatpush1.msra.mxu0 %v5006
        %5151 = vmatprep.subr.mxu0 0.0
        %5152 = vmatpush1.msra.mxu0 %v5007
        %5153 = vmatprep.subr.mxu0 0.0
        %5154 = vmatpush1.msra.mxu0 %v5008
        %5155 = vmatprep.subr.mxu0 0.0
        %5156 = vmatpush1.msra.mxu0 %v5009
        %5157 = vmatprep.subr.mxu0 0.0
        %5158 = vmatpush1.msra.mxu0 %v5010
        %5159 = vmatprep.subr.mxu0 0.0
        %5160 = vmatpush1.msra.mxu0 %v5011
        %5161 = vmatprep.subr.mxu0 0.0
        %5162 = vmatpush1.msra.mxu0 0.0
        %5163 = vmatprep.subr.mxu0 0.0
        %5164 = vmatpush1.msra.mxu0 0.0
        %5165 = vmatprep.subr.mxu0 0.0
        %5166 = vmatpush1.msra.mxu0 0.0
        %5167 = vmatprep.subr.mxu0 0.0
        %5168 = vmatpush1.msra.mxu0 0.0
        %5169 = vmatprep.subr.mxu0 0.0
        %5170 = vmatpush1.msra.mxu0 0.0
        %5171 = vmatprep.subr.mxu0 0.0
        %5172 = vmatpush1.msra.mxu0 0.0
        %5173 = vmatprep.subr.mxu0 0.0
        %5174 = vmatpush1.msra.mxu0 0.0
        %5175 = vmatprep.subr.mxu0 0.0
        %5176 = vmatpush1.msra.mxu0 0.0
        %5177 = vmatprep.subr.mxu0 0.0
        %5178 = vmatpush1.msra.mxu0 0.0
        %5179 = vmatprep.subr.mxu0 0.0
        %5180 = vmatpush1.msra.mxu0 0.0
        %5181 = vmatprep.subr.mxu0 0.0
        %5182 = vmatpush1.msra.mxu0 0.0
        %5183 = vmatprep.subr.mxu0 0.0
        %5184 = vmatpush1.msra.mxu0 0.0
        %5185 = vmatprep.subr.mxu0 0.0
        %5186 = vmatpush1.msra.mxu0 0.0
        %5187 = vmatprep.subr.mxu0 0.0
        %5188 = vmatpush1.msra.mxu0 0.0
        %5189 = vmatprep.subr.mxu0 0.0
        %5190 = vmatpush1.msra.mxu0 0.0
        %5191 = vmatprep.subr.mxu0 0.0
        %5192 = vmatpush1.msra.mxu0 0.0
        %5193 = vmatprep.mubr.f32.mxu0 0.0
        %5194 = vmatmul.mubr.f32.gmra.mrb[0].mxu0 %v4165
        %v5195 = vpop.f32.mrb[0].mxu0
        %v5196 = vadd.f32 0.0, %v5195
        %v5197 = vpop.f32.mrb[0].mxu0
        %5198 = vmatprep.mubr.f32.mxu0 0.0
        %5199 = vmatmul.mubr.f32.gmra.mrb[0].mxu0 %v4166
        %v5200 = vpop.f32.mrb[0].mxu0
        %v5201 = vadd.f32 0.0, %v5200
        %v5202 = vpop.f32.mrb[0].mxu0
        %5203 = vmatprep.mubr.f32.mxu0 0.0
        %5204 = vmatmul.mubr.f32.gmra.mrb[0].mxu0 %v4167
        %v5205 = vpop.f32.mrb[0].mxu0
        %v5206 = vadd.f32 0.0, %v5205
        %v5207 = vpop.f32.mrb[0].mxu0
        %5208 = vmatprep.mubr.f32.mxu0 0.0
        %5209 = vmatmul.mubr.f32.gmra.mrb[0].mxu0 %v4168
        %v5210 = vpop.f32.mrb[0].mxu0
        %v5211 = vadd.f32 0.0, %v5210
        %v5212 = vpop.f32.mrb[0].mxu0
        %5213 = vdwg.mxu0
        %5214 = vmatprep.subr.mxu0 0.0
        %5215 = vmatpush1.msra.mxu0 %v5012
        %5216 = vmatprep.subr.mxu0 0.0
        %5217 = vmatpush1.msra.mxu0 %v5013
        %5218 = vmatprep.subr.mxu0 0.0
        %5219 = vmatpush1.msra.mxu0 %v5014
        %5220 = vmatprep.subr.mxu0 0.0
        %5221 = vmatpush1.msra.mxu0 %v5015
        %5222 = vmatprep.subr.mxu0 0.0
        %5223 = vmatpush1.msra.mxu0 %v5016
        %5224 = vmatprep.subr.mxu0 0.0
        %5225 = vmatpush1.msra.mxu0 %v5017
        %5226 = vmatprep.subr.mxu0 0.0
        %5227 = vmatpush1.msra.mxu0 %v5018
        %5228 = vmatprep.subr.mxu0 0.0
        %5229 = vmatpush1.msra.mxu0 %v5019
        %5230 = vmatprep.subr.mxu0 0.0
        %5231 = vmatpush1.msra.mxu0 %v5020
        %5232 = vmatprep.subr.mxu0 0.0
        %5233 = vmatpush1.msra.mxu0 %v5021
        %5234 = vmatprep.subr.mxu0 0.0
        %5235 = vmatpush1.msra.mxu0 %v5022
        %5236 = vmatprep.subr.mxu0 0.0
        %5237 = vmatpush1.msra.mxu0 %v5023
        %5238 = vmatprep.subr.mxu0 0.0
        %5239 = vmatpush1.msra.mxu0 %v5024
        %5240 = vmatprep.subr.mxu0 0.0
        %5241 = vmatpush1.msra.mxu0 %v5025
        %5242 = vmatprep.subr.mxu0 0.0
        %5243 = vmatpush1.msra.mxu0 %v5026
        %5244 = vmatprep.subr.mxu0 0.0
        %5245 = vmatpush1.msra.mxu0 %v5027
        %5246 = vmatprep.subr.mxu0 0.0
        %5247 = vmatpush1.msra.mxu0 0.0
        %5248 = vmatprep.subr.mxu0 0.0
        %5249 = vmatpush1.msra.mxu0 0.0
        %5250 = vmatprep.subr.mxu0 0.0
        %5251 = vmatpush1.msra.mxu0 0.0
        %5252 = vmatprep.subr.mxu0 0.0
        %5253 = vmatpush1.msra.mxu0 0.0
        %5254 = vmatprep.subr.mxu0 0.0
        %5255 = vmatpush1.msra.mxu0 0.0
        %5256 = vmatprep.subr.mxu0 0.0
        %5257 = vmatpush1.msra.mxu0 0.0
        %5258 = vmatprep.subr.mxu0 0.0
        %5259 = vmatpush1.msra.mxu0 0.0
        %5260 = vmatprep.subr.mxu0 0.0
        %5261 = vmatpush1.msra.mxu0 0.0
        %5262 = vmatprep.subr.mxu0 0.0
        %5263 = vmatpush1.msra.mxu0 0.0
        %5264 = vmatprep.subr.mxu0 0.0
        %5265 = vmatpush1.msra.mxu0 0.0
        %5266 = vmatprep.subr.mxu0 0.0
        %5267 = vmatpush1.msra.mxu0 0.0
        %5268 = vmatprep.subr.mxu0 0.0
        %5269 = vmatpush1.msra.mxu0 0.0
        %5270 = vmatprep.subr.mxu0 0.0
        %5271 = vmatpush1.msra.mxu0 0.0
        %5272 = vmatprep.subr.mxu0 0.0
        %5273 = vmatpush1.msra.mxu0 0.0
        %5274 = vmatprep.subr.mxu0 0.0
        %5275 = vmatpush1.msra.mxu0 0.0
        %5276 = vmatprep.subr.mxu0 0.0
        %5277 = vmatpush1.msra.mxu0 0.0
        %5278 = vmatprep.mubr.f32.mxu0 0.0
        %5279 = vmatmul.mubr.f32.gmra.mrb[0].mxu0 %v4165
        %v5280 = vpop.f32.mrb[0].mxu0
        %v5281 = vadd.f32 0.0, %v5280
        %v5282 = vpop.f32.mrb[0].mxu0
        %5283 = vmatprep.mubr.f32.mxu0 0.0
        %5284 = vmatmul.mubr.f32.gmra.mrb[0].mxu0 %v4166
        %v5285 = vpop.f32.mrb[0].mxu0
        %v5286 = vadd.f32 0.0, %v5285
        %v5287 = vpop.f32.mrb[0].mxu0
        %5288 = vmatprep.mubr.f32.mxu0 0.0
        %5289 = vmatmul.mubr.f32.gmra.mrb[0].mxu0 %v4167
        %v5290 = vpop.f32.mrb[0].mxu0
        %v5291 = vadd.f32 0.0, %v5290
        %v5292 = vpop.f32.mrb[0].mxu0
        %5293 = vmatprep.mubr.f32.mxu0 0.0
        %5294 = vmatmul.mubr.f32.gmra.mrb[0].mxu0 %v4168
        %v5295 = vpop.f32.mrb[0].mxu0
        %v5296 = vadd.f32 0.0, %v5295
        %v5297 = vpop.f32.mrb[0].mxu0
        %5298 = vdwg.mxu0
        %5299 = vmatprep.subr.mxu0 0.0
        %5300 = vmatpush1.msra.mxu0 %v5028
        %5301 = vmatprep.subr.mxu0 0.0
        %5302 = vmatpush1.msra.mxu0 %v5029
        %5303 = vmatprep.subr.mxu0 0.0
        %5304 = vmatpush1.msra.mxu0 %v5030
        %5305 = vmatprep.subr.mxu0 0.0
        %5306 = vmatpush1.msra.mxu0 %v5031
        %5307 = vmatprep.subr.mxu0 0.0
        %5308 = vmatpush1.msra.mxu0 %v5032
        %5309 = vmatprep.subr.mxu0 0.0
        %5310 = vmatpush1.msra.mxu0 %v5033
        %5311 = vmatprep.subr.mxu0 0.0
        %5312 = vmatpush1.msra.mxu0 %v5034
        %5313 = vmatprep.subr.mxu0 0.0
        %5314 = vmatpush1.msra.mxu0 %v5035
        %5315 = vmatprep.subr.mxu0 0.0
        %5316 = vmatpush1.msra.mxu0 %v5036
        %5317 = vmatprep.subr.mxu0 0.0
        %5318 = vmatpush1.msra.mxu0 %v5037
        %5319 = vmatprep.subr.mxu0 0.0
        %5320 = vmatpush1.msra.mxu0 %v5038
        %5321 = vmatprep.subr.mxu0 0.0
        %5322 = vmatpush1.msra.mxu0 %v5039
        %5323 = vmatprep.subr.mxu0 0.0
        %5324 = vmatpush1.msra.mxu0 %v5040
        %5325 = vmatprep.subr.mxu0 0.0
        %5326 = vmatpush1.msra.mxu0 %v5041
        %5327 = vmatprep.subr.mxu0 0.0
        %5328 = vmatpush1.msra.mxu0 %v5042
        %5329 = vmatprep.subr.mxu0 0.0
        %5330 = vmatpush1.msra.mxu0 %v5043
        %5331 = vmatprep.subr.mxu0 0.0
        %5332 = vmatpush1.msra.mxu0 0.0
        %5333 = vmatprep.subr.mxu0 0.0
        %5334 = vmatpush1.msra.mxu0 0.0
        %5335 = vmatprep.subr.mxu0 0.0
        %5336 = vmatpush1.msra.mxu0 0.0
        %5337 = vmatprep.subr.mxu0 0.0
        %5338 = vmatpush1.msra.mxu0 0.0
        %5339 = vmatprep.subr.mxu0 0.0
        %5340 = vmatpush1.msra.mxu0 0.0
        %5341 = vmatprep.subr.mxu0 0.0
        %5342 = vmatpush1.msra.mxu0 0.0
        %5343 = vmatprep.subr.mxu0 0.0
        %5344 = vmatpush1.msra.mxu0 0.0
        %5345 = vmatprep.subr.mxu0 0.0
        %5346 = vmatpush1.msra.mxu0 0.0
        %5347 = vmatprep.subr.mxu0 0.0
        %5348 = vmatpush1.msra.mxu0 0.0
        %5349 = vmatprep.subr.mxu0 0.0
        %5350 = vmatpush1.msra.mxu0 0.0
        %5351 = vmatprep.subr.mxu0 0.0
        %5352 = vmatpush1.msra.mxu0 0.0
        %5353 = vmatprep.subr.mxu0 0.0
        %5354 = vmatpush1.msra.mxu0 0.0
        %5355 = vmatprep.subr.mxu0 0.0
        %5356 = vmatpush1.msra.mxu0 0.0
        %5357 = vmatprep.subr.mxu0 0.0
        %5358 = vmatpush1.msra.mxu0 0.0
        %5359 = vmatprep.subr.mxu0 0.0
        %5360 = vmatpush1.msra.mxu0 0.0
        %5361 = vmatprep.subr.mxu0 0.0
        %5362 = vmatpush1.msra.mxu0 0.0
        %5363 = vmatprep.mubr.f32.mxu0 0.0
        %5364 = vmatmul.mubr.f32.gmra.mrb[0].mxu0 %v4165
        %v5365 = vpop.f32.mrb[0].mxu0
        %v5366 = vadd.f32 0.0, %v5365
        %v5367 = vpop.f32.mrb[0].mxu0
        %5368 = vmatprep.mubr.f32.mxu0 0.0
        %5369 = vmatmul.mubr.f32.gmra.mrb[0].mxu0 %v4166
        %v5370 = vpop.f32.mrb[0].mxu0
        %v5371 = vadd.f32 0.0, %v5370
        %v5372 = vpop.f32.mrb[0].mxu0
        %5373 = vmatprep.mubr.f32.mxu0 0.0
        %5374 = vmatmul.mubr.f32.gmra.mrb[0].mxu0 %v4167
        %v5375 = vpop.f32.mrb[0].mxu0
        %v5376 = vadd.f32 0.0, %v5375
        %v5377 = vpop.f32.mrb[0].mxu0
        %5378 = vmatprep.mubr.f32.mxu0 0.0
        %5379 = vmatmul.mubr.f32.gmra.mrb[0].mxu0 %v4168
        %v5380 = vpop.f32.mrb[0].mxu0
        %v5381 = vadd.f32 0.0, %v5380
        %v5382 = vpop.f32.mrb[0].mxu0
        %5383 = vdwg.mxu0
        %v5385 = vsel %vm559, %v4301, 0
        %v5388 = vsel %vm559, %v4306, 0
        %v5391 = vsel %vm559, %v4311, 0
        %v5394 = vsel %vm559, %v4316, 0
        %v5397 = vsel %vm559, %v4706, 0
        %v5400 = vsel %vm559, %v4711, 0
        %v5403 = vsel %vm559, %v4716, 0
        %v5406 = vsel %vm559, %v4721, 0
        %5408 = vmatprep.subr.mxu0 0.0
        %5409 = vmatpush1.xpose.msra.mxu0 %v5397
        %5410 = vmatprep.subr.mxu0 0.0
        %5411 = vmatpush1.xpose.msra.mxu0 %v5400
        %5412 = vmatprep.subr.mxu0 0.0
        %5413 = vmatpush1.xpose.msra.mxu0 %v5403
        %5414 = vmatprep.subr.mxu0 0.0
        %5415 = vmatpush1.xpose.msra.mxu0 %v5406
        %5416 = vmatprep.subr.mxu0 0.0
        %5417 = vmatpush1.xpose.msra.mxu0 0.0
        %5418 = vmatprep.subr.mxu0 0.0
        %5419 = vmatpush1.xpose.msra.mxu0 0.0
        %5420 = vmatprep.subr.mxu0 0.0
        %5421 = vmatpush1.xpose.msra.mxu0 0.0
        %5422 = vmatprep.subr.mxu0 0.0
        %5423 = vmatpush1.xpose.msra.mxu0 0.0
        %5424 = vmatprep.subr.mxu0 0.0
        %5425 = vmatpush1.xpose.msra.mxu0 0.0
        %5426 = vmatprep.subr.mxu0 0.0
        %5427 = vmatpush1.xpose.msra.mxu0 0.0
        %5428 = vmatprep.subr.mxu0 0.0
        %5429 = vmatpush1.xpose.msra.mxu0 0.0
        %5430 = vmatprep.subr.mxu0 0.0
        %5431 = vmatpush1.xpose.msra.mxu0 0.0
        %5432 = vmatprep.subr.mxu0 0.0
        %5433 = vmatpush1.xpose.msra.mxu0 0.0
        %5434 = vmatprep.subr.mxu0 0.0
        %5435 = vmatpush1.xpose.msra.mxu0 0.0
        %5436 = vmatprep.subr.mxu0 0.0
        %5437 = vmatpush1.xpose.msra.mxu0 0.0
        %5438 = vmatprep.subr.mxu0 0.0
        %5439 = vmatpush1.xpose.msra.mxu0 0.0
        %5440 = vmatprep.subr.mxu0 0.0
        %5441 = vmatpush1.xpose.msra.mxu0 0.0
        %5442 = vmatprep.subr.mxu0 0.0
        %5443 = vmatpush1.xpose.msra.mxu0 0.0
        %5444 = vmatprep.subr.mxu0 0.0
        %5445 = vmatpush1.xpose.msra.mxu0 0.0
        %5446 = vmatprep.subr.mxu0 0.0
        %5447 = vmatpush1.xpose.msra.mxu0 0.0
        %5448 = vmatprep.subr.mxu0 0.0
        %5449 = vmatpush1.xpose.msra.mxu0 0.0
        %5450 = vmatprep.subr.mxu0 0.0
        %5451 = vmatpush1.xpose.msra.mxu0 0.0
        %5452 = vmatprep.subr.mxu0 0.0
        %5453 = vmatpush1.xpose.msra.mxu0 0.0
        %5454 = vmatprep.subr.mxu0 0.0
        %5455 = vmatpush1.xpose.msra.mxu0 0.0
        %5456 = vmatprep.subr.mxu0 0.0
        %5457 = vmatpush1.xpose.msra.mxu0 0.0
        %5458 = vmatprep.subr.mxu0 0.0
        %5459 = vmatpush1.xpose.msra.mxu0 0.0
        %5460 = vmatprep.subr.mxu0 0.0
        %5461 = vmatpush1.xpose.msra.mxu0 0.0
        %5462 = vmatprep.subr.mxu0 0.0
        %5463 = vmatpush1.xpose.msra.mxu0 0.0
        %5464 = vmatprep.subr.mxu0 0.0
        %5465 = vmatpush1.xpose.msra.mxu0 0.0
        %5466 = vmatprep.subr.mxu0 0.0
        %5467 = vmatpush1.xpose.msra.mxu0 0.0
        %5468 = vmatprep.subr.mxu0 0.0
        %5469 = vmatpush1.xpose.msra.mxu0 0.0
        %5470 = vmatprep.subr.mxu0 0.0
        %5471 = vmatpush1.xpose.msra.mxu0 0.0
        %5472 = vmatprep.mubr.f32.mxu0 0.0
        %5473 = vmatmul.mubr.f32.gmra.mrb[0].mxu0 %v5385
        %v5474 = vpop.f32.mrb[0].mxu0
        %v5475 = vadd.f32 %v657, %v5474
        %v5476 = vpop.f32.mrb[0].mxu0
        %5477 = vmatprep.mubr.f32.mxu0 0.0
        %5478 = vmatmul.mubr.f32.gmra.mrb[0].mxu0 %v5388
        %v5479 = vpop.f32.mrb[0].mxu0
        %v5480 = vadd.f32 %v658, %v5479
        %v5481 = vpop.f32.mrb[0].mxu0
        %5482 = vmatprep.mubr.f32.mxu0 0.0
        %5483 = vmatmul.mubr.f32.gmra.mrb[0].mxu0 %v5391
        %v5484 = vpop.f32.mrb[0].mxu0
        %v5485 = vadd.f32 %v659, %v5484
        %v5486 = vpop.f32.mrb[0].mxu0
        %5487 = vmatprep.mubr.f32.mxu0 0.0
        %5488 = vmatmul.mubr.f32.gmra.mrb[0].mxu0 %v5394
        %v5489 = vpop.f32.mrb[0].mxu0
        %v5490 = vadd.f32 %v660, %v5489
        %v5491 = vpop.f32.mrb[0].mxu0
        %5492 = vdwg.mxu0
        %v5494 = vsel %vm559, %v4386, 0
        %v5497 = vsel %vm559, %v4391, 0
        %v5500 = vsel %vm559, %v4396, 0
        %v5503 = vsel %vm559, %v4401, 0
        %v5506 = vsel %vm559, %v4791, 0
        %v5509 = vsel %vm559, %v4796, 0
        %v5512 = vsel %vm559, %v4801, 0
        %v5515 = vsel %vm559, %v4806, 0
        %5517 = vmatprep.subr.mxu0 0.0
        %5518 = vmatpush1.xpose.msra.mxu0 %v5506
        %5519 = vmatprep.subr.mxu0 0.0
        %5520 = vmatpush1.xpose.msra.mxu0 %v5509
        %5521 = vmatprep.subr.mxu0 0.0
        %5522 = vmatpush1.xpose.msra.mxu0 %v5512
        %5523 = vmatprep.subr.mxu0 0.0
        %5524 = vmatpush1.xpose.msra.mxu0 %v5515
        %5525 = vmatprep.subr.mxu0 0.0
        %5526 = vmatpush1.xpose.msra.mxu0 0.0
        %5527 = vmatprep.subr.mxu0 0.0
        %5528 = vmatpush1.xpose.msra.mxu0 0.0
        %5529 = vmatprep.subr.mxu0 0.0
        %5530 = vmatpush1.xpose.msra.mxu0 0.0
        %5531 = vmatprep.subr.mxu0 0.0
        %5532 = vmatpush1.xpose.msra.mxu0 0.0
        %5533 = vmatprep.subr.mxu0 0.0
        %5534 = vmatpush1.xpose.msra.mxu0 0.0
        %5535 = vmatprep.subr.mxu0 0.0
        %5536 = vmatpush1.xpose.msra.mxu0 0.0
        %5537 = vmatprep.subr.mxu0 0.0
        %5538 = vmatpush1.xpose.msra.mxu0 0.0
        %5539 = vmatprep.subr.mxu0 0.0
        %5540 = vmatpush1.xpose.msra.mxu0 0.0
        %5541 = vmatprep.subr.mxu0 0.0
        %5542 = vmatpush1.xpose.msra.mxu0 0.0
        %5543 = vmatprep.subr.mxu0 0.0
        %5544 = vmatpush1.xpose.msra.mxu0 0.0
        %5545 = vmatprep.subr.mxu0 0.0
        %5546 = vmatpush1.xpose.msra.mxu0 0.0
        %5547 = vmatprep.subr.mxu0 0.0
        %5548 = vmatpush1.xpose.msra.mxu0 0.0
        %5549 = vmatprep.subr.mxu0 0.0
        %5550 = vmatpush1.xpose.msra.mxu0 0.0
        %5551 = vmatprep.subr.mxu0 0.0
        %5552 = vmatpush1.xpose.msra.mxu0 0.0
        %5553 = vmatprep.subr.mxu0 0.0
        %5554 = vmatpush1.xpose.msra.mxu0 0.0
        %5555 = vmatprep.subr.mxu0 0.0
        %5556 = vmatpush1.xpose.msra.mxu0 0.0
        %5557 = vmatprep.subr.mxu0 0.0
        %5558 = vmatpush1.xpose.msra.mxu0 0.0
        %5559 = vmatprep.subr.mxu0 0.0
        %5560 = vmatpush1.xpose.msra.mxu0 0.0
        %5561 = vmatprep.subr.mxu0 0.0
        %5562 = vmatpush1.xpose.msra.mxu0 0.0
        %5563 = vmatprep.subr.mxu0 0.0
        %5564 = vmatpush1.xpose.msra.mxu0 0.0
        %5565 = vmatprep.subr.mxu0 0.0
        %5566 = vmatpush1.xpose.msra.mxu0 0.0
        %5567 = vmatprep.subr.mxu0 0.0
        %5568 = vmatpush1.xpose.msra.mxu0 0.0
        %5569 = vmatprep.subr.mxu0 0.0
        %5570 = vmatpush1.xpose.msra.mxu0 0.0
        %5571 = vmatprep.subr.mxu0 0.0
        %5572 = vmatpush1.xpose.msra.mxu0 0.0
        %5573 = vmatprep.subr.mxu0 0.0
        %5574 = vmatpush1.xpose.msra.mxu0 0.0
        %5575 = vmatprep.subr.mxu0 0.0
        %5576 = vmatpush1.xpose.msra.mxu0 0.0
        %5577 = vmatprep.subr.mxu0 0.0
        %5578 = vmatpush1.xpose.msra.mxu0 0.0
        %5579 = vmatprep.subr.mxu0 0.0
        %5580 = vmatpush1.xpose.msra.mxu0 0.0
        %5581 = vmatprep.mubr.f32.mxu0 0.0
        %5582 = vmatmul.mubr.f32.gmra.mrb[0].mxu0 %v5494
        %v5583 = vpop.f32.mrb[0].mxu0
        %v5584 = vadd.f32 %v657, %v5583
        %v5585 = vpop.f32.mrb[0].mxu0
        %5586 = vmatprep.mubr.f32.mxu0 0.0
        %5587 = vmatmul.mubr.f32.gmra.mrb[0].mxu0 %v5497
        %v5588 = vpop.f32.mrb[0].mxu0
        %v5589 = vadd.f32 %v658, %v5588
        %v5590 = vpop.f32.mrb[0].mxu0
        %5591 = vmatprep.mubr.f32.mxu0 0.0
        %5592 = vmatmul.mubr.f32.gmra.mrb[0].mxu0 %v5500
        %v5593 = vpop.f32.mrb[0].mxu0
        %v5594 = vadd.f32 %v659, %v5593
        %v5595 = vpop.f32.mrb[0].mxu0
        %5596 = vmatprep.mubr.f32.mxu0 0.0
        %5597 = vmatmul.mubr.f32.gmra.mrb[0].mxu0 %v5503
        %v5598 = vpop.f32.mrb[0].mxu0
        %v5599 = vadd.f32 %v660, %v5598
        %v5600 = vpop.f32.mrb[0].mxu0
        %5601 = vdwg.mxu0
        %v5603 = vsel %vm559, %v4471, 0
        %v5606 = vsel %vm559, %v4476, 0
        %v5609 = vsel %vm559, %v4481, 0
        %v5612 = vsel %vm559, %v4486, 0
        %v5615 = vsel %vm559, %v4876, 0
        %v5618 = vsel %vm559, %v4881, 0
        %v5621 = vsel %vm559, %v4886, 0
        %v5624 = vsel %vm559, %v4891, 0
        %5626 = vmatprep.subr.mxu0 0.0
        %5627 = vmatpush1.xpose.msra.mxu0 %v5615
        %5628 = vmatprep.subr.mxu0 0.0
        %5629 = vmatpush1.xpose.msra.mxu0 %v5618
        %5630 = vmatprep.subr.mxu0 0.0
        %5631 = vmatpush1.xpose.msra.mxu0 %v5621
        %5632 = vmatprep.subr.mxu0 0.0
        %5633 = vmatpush1.xpose.msra.mxu0 %v5624
        %5634 = vmatprep.subr.mxu0 0.0
        %5635 = vmatpush1.xpose.msra.mxu0 0.0
        %5636 = vmatprep.subr.mxu0 0.0
        %5637 = vmatpush1.xpose.msra.mxu0 0.0
        %5638 = vmatprep.subr.mxu0 0.0
        %5639 = vmatpush1.xpose.msra.mxu0 0.0
        %5640 = vmatprep.subr.mxu0 0.0
        %5641 = vmatpush1.xpose.msra.mxu0 0.0
        %5642 = vmatprep.subr.mxu0 0.0
        %5643 = vmatpush1.xpose.msra.mxu0 0.0
        %5644 = vmatprep.subr.mxu0 0.0
        %5645 = vmatpush1.xpose.msra.mxu0 0.0
        %5646 = vmatprep.subr.mxu0 0.0
        %5647 = vmatpush1.xpose.msra.mxu0 0.0
        %5648 = vmatprep.subr.mxu0 0.0
        %5649 = vmatpush1.xpose.msra.mxu0 0.0
        %5650 = vmatprep.subr.mxu0 0.0
        %5651 = vmatpush1.xpose.msra.mxu0 0.0
        %5652 = vmatprep.subr.mxu0 0.0
        %5653 = vmatpush1.xpose.msra.mxu0 0.0
        %5654 = vmatprep.subr.mxu0 0.0
        %5655 = vmatpush1.xpose.msra.mxu0 0.0
        %5656 = vmatprep.subr.mxu0 0.0
        %5657 = vmatpush1.xpose.msra.mxu0 0.0
        %5658 = vmatprep.subr.mxu0 0.0
        %5659 = vmatpush1.xpose.msra.mxu0 0.0
        %5660 = vmatprep.subr.mxu0 0.0
        %5661 = vmatpush1.xpose.msra.mxu0 0.0
        %5662 = vmatprep.subr.mxu0 0.0
        %5663 = vmatpush1.xpose.msra.mxu0 0.0
        %5664 = vmatprep.subr.mxu0 0.0
        %5665 = vmatpush1.xpose.msra.mxu0 0.0
        %5666 = vmatprep.subr.mxu0 0.0
        %5667 = vmatpush1.xpose.msra.mxu0 0.0
        %5668 = vmatprep.subr.mxu0 0.0
        %5669 = vmatpush1.xpose.msra.mxu0 0.0
        %5670 = vmatprep.subr.mxu0 0.0
        %5671 = vmatpush1.xpose.msra.mxu0 0.0
        %5672 = vmatprep.subr.mxu0 0.0
        %5673 = vmatpush1.xpose.msra.mxu0 0.0
        %5674 = vmatprep.subr.mxu0 0.0
        %5675 = vmatpush1.xpose.msra.mxu0 0.0
        %5676 = vmatprep.subr.mxu0 0.0
        %5677 = vmatpush1.xpose.msra.mxu0 0.0
        %5678 = vmatprep.subr.mxu0 0.0
        %5679 = vmatpush1.xpose.msra.mxu0 0.0
        %5680 = vmatprep.subr.mxu0 0.0
        %5681 = vmatpush1.xpose.msra.mxu0 0.0
        %5682 = vmatprep.subr.mxu0 0.0
        %5683 = vmatpush1.xpose.msra.mxu0 0.0
        %5684 = vmatprep.subr.mxu0 0.0
        %5685 = vmatpush1.xpose.msra.mxu0 0.0
        %5686 = vmatprep.subr.mxu0 0.0
        %5687 = vmatpush1.xpose.msra.mxu0 0.0
        %5688 = vmatprep.subr.mxu0 0.0
        %5689 = vmatpush1.xpose.msra.mxu0 0.0
        %5690 = vmatprep.mubr.f32.mxu0 0.0
        %5691 = vmatmul.mubr.f32.gmra.mrb[0].mxu0 %v5603
        %v5692 = vpop.f32.mrb[0].mxu0
        %v5693 = vadd.f32 %v657, %v5692
        %v5694 = vpop.f32.mrb[0].mxu0
        %5695 = vmatprep.mubr.f32.mxu0 0.0
        %5696 = vmatmul.mubr.f32.gmra.mrb[0].mxu0 %v5606
        %v5697 = vpop.f32.mrb[0].mxu0
        %v5698 = vadd.f32 %v658, %v5697
        %v5699 = vpop.f32.mrb[0].mxu0
        %5700 = vmatprep.mubr.f32.mxu0 0.0
        %5701 = vmatmul.mubr.f32.gmra.mrb[0].mxu0 %v5609
        %v5702 = vpop.f32.mrb[0].mxu0
        %v5703 = vadd.f32 %v659, %v5702
        %v5704 = vpop.f32.mrb[0].mxu0
        %5705 = vmatprep.mubr.f32.mxu0 0.0
        %5706 = vmatmul.mubr.f32.gmra.mrb[0].mxu0 %v5612
        %v5707 = vpop.f32.mrb[0].mxu0
        %v5708 = vadd.f32 %v660, %v5707
        %v5709 = vpop.f32.mrb[0].mxu0
        %5710 = vdwg.mxu0
        %v5712 = vsel %vm559, %v4556, 0
        %v5715 = vsel %vm559, %v4561, 0
        %v5718 = vsel %vm559, %v4566, 0
        %v5721 = vsel %vm559, %v4571, 0
        %v5724 = vsel %vm559, %v4961, 0
        %v5727 = vsel %vm559, %v4966, 0
        %v5730 = vsel %vm559, %v4971, 0
        %v5733 = vsel %vm559, %v4976, 0
        %5735 = vmatprep.subr.mxu0 0.0
        %5736 = vmatpush1.xpose.msra.mxu0 %v5724
        %5737 = vmatprep.subr.mxu0 0.0
        %5738 = vmatpush1.xpose.msra.mxu0 %v5727
        %5739 = vmatprep.subr.mxu0 0.0
        %5740 = vmatpush1.xpose.msra.mxu0 %v5730
        %5741 = vmatprep.subr.mxu0 0.0
        %5742 = vmatpush1.xpose.msra.mxu0 %v5733
        %5743 = vmatprep.subr.mxu0 0.0
        %5744 = vmatpush1.xpose.msra.mxu0 0.0
        %5745 = vmatprep.subr.mxu0 0.0
        %5746 = vmatpush1.xpose.msra.mxu0 0.0
        %5747 = vmatprep.subr.mxu0 0.0
        %5748 = vmatpush1.xpose.msra.mxu0 0.0
        %5749 = vmatprep.subr.mxu0 0.0
        %5750 = vmatpush1.xpose.msra.mxu0 0.0
        %5751 = vmatprep.subr.mxu0 0.0
        %5752 = vmatpush1.xpose.msra.mxu0 0.0
        %5753 = vmatprep.subr.mxu0 0.0
        %5754 = vmatpush1.xpose.msra.mxu0 0.0
        %5755 = vmatprep.subr.mxu0 0.0
        %5756 = vmatpush1.xpose.msra.mxu0 0.0
        %5757 = vmatprep.subr.mxu0 0.0
        %5758 = vmatpush1.xpose.msra.mxu0 0.0
        %5759 = vmatprep.subr.mxu0 0.0
        %5760 = vmatpush1.xpose.msra.mxu0 0.0
        %5761 = vmatprep.subr.mxu0 0.0
        %5762 = vmatpush1.xpose.msra.mxu0 0.0
        %5763 = vmatprep.subr.mxu0 0.0
        %5764 = vmatpush1.xpose.msra.mxu0 0.0
        %5765 = vmatprep.subr.mxu0 0.0
        %5766 = vmatpush1.xpose.msra.mxu0 0.0
        %5767 = vmatprep.subr.mxu0 0.0
        %5768 = vmatpush1.xpose.msra.mxu0 0.0
        %5769 = vmatprep.subr.mxu0 0.0
        %5770 = vmatpush1.xpose.msra.mxu0 0.0
        %5771 = vmatprep.subr.mxu0 0.0
        %5772 = vmatpush1.xpose.msra.mxu0 0.0
        %5773 = vmatprep.subr.mxu0 0.0
        %5774 = vmatpush1.xpose.msra.mxu0 0.0
        %5775 = vmatprep.subr.mxu0 0.0
        %5776 = vmatpush1.xpose.msra.mxu0 0.0
        %5777 = vmatprep.subr.mxu0 0.0
        %5778 = vmatpush1.xpose.msra.mxu0 0.0
        %5779 = vmatprep.subr.mxu0 0.0
        %5780 = vmatpush1.xpose.msra.mxu0 0.0
        %5781 = vmatprep.subr.mxu0 0.0
        %5782 = vmatpush1.xpose.msra.mxu0 0.0
        %5783 = vmatprep.subr.mxu0 0.0
        %5784 = vmatpush1.xpose.msra.mxu0 0.0
        %5785 = vmatprep.subr.mxu0 0.0
        %5786 = vmatpush1.xpose.msra.mxu0 0.0
        %5787 = vmatprep.subr.mxu0 0.0
        %5788 = vmatpush1.xpose.msra.mxu0 0.0
        %5789 = vmatprep.subr.mxu0 0.0
        %5790 = vmatpush1.xpose.msra.mxu0 0.0
        %5791 = vmatprep.subr.mxu0 0.0
        %5792 = vmatpush1.xpose.msra.mxu0 0.0
        %5793 = vmatprep.subr.mxu0 0.0
        %5794 = vmatpush1.xpose.msra.mxu0 0.0
        %5795 = vmatprep.subr.mxu0 0.0
        %5796 = vmatpush1.xpose.msra.mxu0 0.0
        %5797 = vmatprep.subr.mxu0 0.0
        %5798 = vmatpush1.xpose.msra.mxu0 0.0
        %5799 = vmatprep.mubr.f32.mxu0 0.0
        %5800 = vmatmul.mubr.f32.gmra.mrb[0].mxu0 %v5712
        %v5801 = vpop.f32.mrb[0].mxu0
        %v5802 = vadd.f32 %v657, %v5801
        %v5803 = vpop.f32.mrb[0].mxu0
        %5804 = vmatprep.mubr.f32.mxu0 0.0
        %5805 = vmatmul.mubr.f32.gmra.mrb[0].mxu0 %v5715
        %v5806 = vpop.f32.mrb[0].mxu0
        %v5807 = vadd.f32 %v658, %v5806
        %v5808 = vpop.f32.mrb[0].mxu0
        %5809 = vmatprep.mubr.f32.mxu0 0.0
        %5810 = vmatmul.mubr.f32.gmra.mrb[0].mxu0 %v5718
        %v5811 = vpop.f32.mrb[0].mxu0
        %v5812 = vadd.f32 %v659, %v5811
        %v5813 = vpop.f32.mrb[0].mxu0
        %5814 = vmatprep.mubr.f32.mxu0 0.0
        %5815 = vmatmul.mubr.f32.gmra.mrb[0].mxu0 %v5721
        %v5816 = vpop.f32.mrb[0].mxu0
        %v5817 = vadd.f32 %v660, %v5816
        %v5818 = vpop.f32.mrb[0].mxu0
        %5819 = vdwg.mxu0
        %v5820 = vsel %vm559, %v5475, -inf
        %5821 = vmax.xlane.f32.xlu0 %v5820
        %v5822 = vpop.xlane.xlu0 %5821
        %v5823 = vsel %vm559, %v5480, -inf
        %5824 = vmax.xlane.f32.xlu0 %v5823
        %v5825 = vpop.xlane.xlu0 %5824
        %v5826 = vsel %vm559, %v5485, -inf
        %5827 = vmax.xlane.f32.xlu0 %v5826
        %v5828 = vpop.xlane.xlu0 %5827
        %v5829 = vsel %vm559, %v5490, -inf
        %5830 = vmax.xlane.f32.xlu0 %v5829
        %v5831 = vpop.xlane.xlu0 %5830
        %v5832 = vsel %vm559, %v5584, -inf
        %5833 = vmax.xlane.f32.xlu0 %v5832
        %v5834 = vpop.xlane.xlu0 %5833
        %v5835 = vsel %vm559, %v5589, -inf
        %5836 = vmax.xlane.f32.xlu0 %v5835
        %v5837 = vpop.xlane.xlu0 %5836
        %v5838 = vsel %vm559, %v5594, -inf
        %5839 = vmax.xlane.f32.xlu0 %v5838
        %v5840 = vpop.xlane.xlu0 %5839
        %v5841 = vsel %vm559, %v5599, -inf
        %5842 = vmax.xlane.f32.xlu0 %v5841
        %v5843 = vpop.xlane.xlu0 %5842
        %v5844 = vsel %vm559, %v5693, -inf
        %5845 = vmax.xlane.f32.xlu0 %v5844
        %v5846 = vpop.xlane.xlu0 %5845
        %v5847 = vsel %vm559, %v5698, -inf
        %5848 = vmax.xlane.f32.xlu0 %v5847
        %v5849 = vpop.xlane.xlu0 %5848
        %v5850 = vsel %vm559, %v5703, -inf
        %5851 = vmax.xlane.f32.xlu0 %v5850
        %v5852 = vpop.xlane.xlu0 %5851
        %v5853 = vsel %vm559, %v5708, -inf
        %5854 = vmax.xlane.f32.xlu0 %v5853
        %v5855 = vpop.xlane.xlu0 %5854
        %v5856 = vsel %vm559, %v5802, -inf
        %5857 = vmax.xlane.f32.xlu0 %v5856
        %v5858 = vpop.xlane.xlu0 %5857
        %v5859 = vsel %vm559, %v5807, -inf
        %5860 = vmax.xlane.f32.xlu0 %v5859
        %v5861 = vpop.xlane.xlu0 %5860
        %v5862 = vsel %vm559, %v5812, -inf
        %5863 = vmax.xlane.f32.xlu0 %v5862
        %v5864 = vpop.xlane.xlu0 %5863
        %v5865 = vsel %vm559, %v5817, -inf
        %5866 = vmax.xlane.f32.xlu0 %v5865
        %v5867 = vpop.xlane.xlu0 %5866
        %v5868 = vsub.f32 %v5475, %v5822
        %v5869 = vsub.f32 %v5480, %v5825
        %v5870 = vsub.f32 %v5485, %v5828
        %v5871 = vsub.f32 %v5490, %v5831
        %v5872 = vsub.f32 %v5584, %v5834
        %v5873 = vsub.f32 %v5589, %v5837
        %v5874 = vsub.f32 %v5594, %v5840
        %v5875 = vsub.f32 %v5599, %v5843
        %v5876 = vsub.f32 %v5693, %v5846
        %v5877 = vsub.f32 %v5698, %v5849
        %v5878 = vsub.f32 %v5703, %v5852
        %v5879 = vsub.f32 %v5708, %v5855
        %v5880 = vsub.f32 %v5802, %v5858
        %v5881 = vsub.f32 %v5807, %v5861
        %v5882 = vsub.f32 %v5812, %v5864
        %v5883 = vsub.f32 %v5817, %v5867
        %v5884 = vmul.f32 %v5868, 1.442695
        %v5885 = vpow.pop %v5884
        %v5886 = vmul.f32 %v5869, 1.442695
        %v5887 = vpow.pop %v5886
        %v5888 = vmul.f32 %v5870, 1.442695
        %v5889 = vpow.pop %v5888
        %v5890 = vmul.f32 %v5871, 1.442695
        %v5891 = vpow.pop %v5890
        %v5892 = vmul.f32 %v5872, 1.442695
        %v5893 = vpow.pop %v5892
        %v5894 = vmul.f32 %v5873, 1.442695
        %v5895 = vpow.pop %v5894
        %v5896 = vmul.f32 %v5874, 1.442695
        %v5897 = vpow.pop %v5896
        %v5898 = vmul.f32 %v5875, 1.442695
        %v5899 = vpow.pop %v5898
        %v5900 = vmul.f32 %v5876, 1.442695
        %v5901 = vpow.pop %v5900
        %v5902 = vmul.f32 %v5877, 1.442695
        %v5903 = vpow.pop %v5902
        %v5904 = vmul.f32 %v5878, 1.442695
        %v5905 = vpow.pop %v5904
        %v5906 = vmul.f32 %v5879, 1.442695
        %v5907 = vpow.pop %v5906
        %v5908 = vmul.f32 %v5880, 1.442695
        %v5909 = vpow.pop %v5908
        %v5910 = vmul.f32 %v5881, 1.442695
        %v5911 = vpow.pop %v5910
        %v5912 = vmul.f32 %v5882, 1.442695
        %v5913 = vpow.pop %v5912
        %v5914 = vmul.f32 %v5883, 1.442695
        %v5915 = vpow.pop %v5914
        %v5916 = vsel %vm559, %v5885, 0.0
        %5917 = vadd.xlane.f32.xlu0 %v5916
        %v5918 = vpop.xlane.xlu0 %5917
        %v5919 = vsel %vm559, %v5887, 0.0
        %5920 = vadd.xlane.f32.xlu0 %v5919
        %v5921 = vpop.xlane.xlu0 %5920
        %v5922 = vsel %vm559, %v5889, 0.0
        %5923 = vadd.xlane.f32.xlu0 %v5922
        %v5924 = vpop.xlane.xlu0 %5923
        %v5925 = vsel %vm559, %v5891, 0.0
        %5926 = vadd.xlane.f32.xlu0 %v5925
        %v5927 = vpop.xlane.xlu0 %5926
        %v5928 = vsel %vm559, %v5893, 0.0
        %5929 = vadd.xlane.f32.xlu0 %v5928
        %v5930 = vpop.xlane.xlu0 %5929
        %v5931 = vsel %vm559, %v5895, 0.0
        %5932 = vadd.xlane.f32.xlu0 %v5931
        %v5933 = vpop.xlane.xlu0 %5932
        %v5934 = vsel %vm559, %v5897, 0.0
        %5935 = vadd.xlane.f32.xlu0 %v5934
        %v5936 = vpop.xlane.xlu0 %5935
        %v5937 = vsel %vm559, %v5899, 0.0
        %5938 = vadd.xlane.f32.xlu0 %v5937
        %v5939 = vpop.xlane.xlu0 %5938
        %v5940 = vsel %vm559, %v5901, 0.0
        %5941 = vadd.xlane.f32.xlu0 %v5940
        %v5942 = vpop.xlane.xlu0 %5941
        %v5943 = vsel %vm559, %v5903, 0.0
        %5944 = vadd.xlane.f32.xlu0 %v5943
        %v5945 = vpop.xlane.xlu0 %5944
        %v5946 = vsel %vm559, %v5905, 0.0
        %5947 = vadd.xlane.f32.xlu0 %v5946
        %v5948 = vpop.xlane.xlu0 %5947
        %v5949 = vsel %vm559, %v5907, 0.0
        %5950 = vadd.xlane.f32.xlu0 %v5949
        %v5951 = vpop.xlane.xlu0 %5950
        %v5952 = vsel %vm559, %v5909, 0.0
        %5953 = vadd.xlane.f32.xlu0 %v5952
        %v5954 = vpop.xlane.xlu0 %5953
        %v5955 = vsel %vm559, %v5911, 0.0
        %5956 = vadd.xlane.f32.xlu0 %v5955
        %v5957 = vpop.xlane.xlu0 %5956
        %v5958 = vsel %vm559, %v5913, 0.0
        %5959 = vadd.xlane.f32.xlu0 %v5958
        %v5960 = vpop.xlane.xlu0 %5959
        %v5961 = vsel %vm559, %v5915, 0.0
        %5962 = vadd.xlane.f32.xlu0 %v5961
        %v5963 = vpop.xlane.xlu0 %5962
        %v5964 = vrcp.pop %v5918
        %v5965 = vrcp.pop %v5921
        %v5966 = vrcp.pop %v5924
        %v5967 = vrcp.pop %v5927
        %v5968 = vrcp.pop %v5930
        %v5969 = vrcp.pop %v5933
        %v5970 = vrcp.pop %v5936
        %v5971 = vrcp.pop %v5939
        %v5972 = vrcp.pop %v5942
        %v5973 = vrcp.pop %v5945
        %v5974 = vrcp.pop %v5948
        %v5975 = vrcp.pop %v5951
        %v5976 = vrcp.pop %v5954
        %v5977 = vrcp.pop %v5957
        %v5978 = vrcp.pop %v5960
        %v5979 = vrcp.pop %v5963
        %v5980 = vmul.f32 %v5885, %v5964
        %v5981 = vmul.f32 %v5887, %v5965
        %v5982 = vmul.f32 %v5889, %v5966
        %v5983 = vmul.f32 %v5891, %v5967
        %v5984 = vmul.f32 %v5893, %v5968
        %v5985 = vmul.f32 %v5895, %v5969
        %v5986 = vmul.f32 %v5897, %v5970
        %v5987 = vmul.f32 %v5899, %v5971
        %v5988 = vmul.f32 %v5901, %v5972
        %v5989 = vmul.f32 %v5903, %v5973
        %v5990 = vmul.f32 %v5905, %v5974
        %v5991 = vmul.f32 %v5907, %v5975
        %v5992 = vmul.f32 %v5909, %v5976
        %v5993 = vmul.f32 %v5911, %v5977
        %v5994 = vmul.f32 %v5913, %v5978
        %v5995 = vmul.f32 %v5915, %v5979
        %v5997 = vsel %vm559, %v5980, 0
        %v6000 = vsel %vm559, %v5981, 0
        %v6003 = vsel %vm559, %v5982, 0
        %v6006 = vsel %vm559, %v5983, 0
        %6008 = vmatprep.subr.mxu0 0.0
        %6009 = vmatpush1.msra.mxu0 %v5111
        %6010 = vmatprep.subr.mxu0 0.0
        %6011 = vmatpush1.msra.mxu0 %v5116
        %6012 = vmatprep.subr.mxu0 0.0
        %6013 = vmatpush1.msra.mxu0 %v5121
        %6014 = vmatprep.subr.mxu0 0.0
        %6015 = vmatpush1.msra.mxu0 %v5126
        %6016 = vmatprep.subr.mxu0 0.0
        %6017 = vmatpush1.msra.mxu0 0.0
        %6018 = vmatprep.subr.mxu0 0.0
        %6019 = vmatpush1.msra.mxu0 0.0
        %6020 = vmatprep.subr.mxu0 0.0
        %6021 = vmatpush1.msra.mxu0 0.0
        %6022 = vmatprep.subr.mxu0 0.0
        %6023 = vmatpush1.msra.mxu0 0.0
        %6024 = vmatprep.subr.mxu0 0.0
        %6025 = vmatpush1.msra.mxu0 0.0
        %6026 = vmatprep.subr.mxu0 0.0
        %6027 = vmatpush1.msra.mxu0 0.0
        %6028 = vmatprep.subr.mxu0 0.0
        %6029 = vmatpush1.msra.mxu0 0.0
        %6030 = vmatprep.subr.mxu0 0.0
        %6031 = vmatpush1.msra.mxu0 0.0
        %6032 = vmatprep.subr.mxu0 0.0
        %6033 = vmatpush1.msra.mxu0 0.0
        %6034 = vmatprep.subr.mxu0 0.0
        %6035 = vmatpush1.msra.mxu0 0.0
        %6036 = vmatprep.subr.mxu0 0.0
        %6037 = vmatpush1.msra.mxu0 0.0
        %6038 = vmatprep.subr.mxu0 0.0
        %6039 = vmatpush1.msra.mxu0 0.0
        %6040 = vmatprep.subr.mxu0 0.0
        %6041 = vmatpush1.msra.mxu0 0.0
        %6042 = vmatprep.subr.mxu0 0.0
        %6043 = vmatpush1.msra.mxu0 0.0
        %6044 = vmatprep.subr.mxu0 0.0
        %6045 = vmatpush1.msra.mxu0 0.0
        %6046 = vmatprep.subr.mxu0 0.0
        %6047 = vmatpush1.msra.mxu0 0.0
        %6048 = vmatprep.subr.mxu0 0.0
        %6049 = vmatpush1.msra.mxu0 0.0
        %6050 = vmatprep.subr.mxu0 0.0
        %6051 = vmatpush1.msra.mxu0 0.0
        %6052 = vmatprep.subr.mxu0 0.0
        %6053 = vmatpush1.msra.mxu0 0.0
        %6054 = vmatprep.subr.mxu0 0.0
        %6055 = vmatpush1.msra.mxu0 0.0
        %6056 = vmatprep.subr.mxu0 0.0
        %6057 = vmatpush1.msra.mxu0 0.0
        %6058 = vmatprep.subr.mxu0 0.0
        %6059 = vmatpush1.msra.mxu0 0.0
        %6060 = vmatprep.subr.mxu0 0.0
        %6061 = vmatpush1.msra.mxu0 0.0
        %6062 = vmatprep.subr.mxu0 0.0
        %6063 = vmatpush1.msra.mxu0 0.0
        %6064 = vmatprep.subr.mxu0 0.0
        %6065 = vmatpush1.msra.mxu0 0.0
        %6066 = vmatprep.subr.mxu0 0.0
        %6067 = vmatpush1.msra.mxu0 0.0
        %6068 = vmatprep.subr.mxu0 0.0
        %6069 = vmatpush1.msra.mxu0 0.0
        %6070 = vmatprep.subr.mxu0 0.0
        %6071 = vmatpush1.msra.mxu0 0.0
        %6072 = vmatprep.mubr.f32.mxu0 0.0
        %6073 = vmatmul.mubr.f32.gmra.mrb[0].mxu0 %v5997
        %v6074 = vpop.f32.mrb[0].mxu0
        %v6075 = vadd.f32 0.0, %v6074
        %v6076 = vpop.f32.mrb[0].mxu0
        %6077 = vmatprep.mubr.f32.mxu0 0.0
        %6078 = vmatmul.mubr.f32.gmra.mrb[0].mxu0 %v6000
        %v6079 = vpop.f32.mrb[0].mxu0
        %v6080 = vadd.f32 0.0, %v6079
        %v6081 = vpop.f32.mrb[0].mxu0
        %6082 = vmatprep.mubr.f32.mxu0 0.0
        %6083 = vmatmul.mubr.f32.gmra.mrb[0].mxu0 %v6003
        %v6084 = vpop.f32.mrb[0].mxu0
        %v6085 = vadd.f32 0.0, %v6084
        %v6086 = vpop.f32.mrb[0].mxu0
        %6087 = vmatprep.mubr.f32.mxu0 0.0
        %6088 = vmatmul.mubr.f32.gmra.mrb[0].mxu0 %v6006
        %v6089 = vpop.f32.mrb[0].mxu0
        %v6090 = vadd.f32 0.0, %v6089
        %v6091 = vpop.f32.mrb[0].mxu0
        %6092 = vdwg.mxu0
        %v6094 = vsel %vm559, %v5984, 0
        %v6097 = vsel %vm559, %v5985, 0
        %v6100 = vsel %vm559, %v5986, 0
        %v6103 = vsel %vm559, %v5987, 0
        %6105 = vmatprep.subr.mxu0 0.0
        %6106 = vmatpush1.msra.mxu0 %v5196
        %6107 = vmatprep.subr.mxu0 0.0
        %6108 = vmatpush1.msra.mxu0 %v5201
        %6109 = vmatprep.subr.mxu0 0.0
        %6110 = vmatpush1.msra.mxu0 %v5206
        %6111 = vmatprep.subr.mxu0 0.0
        %6112 = vmatpush1.msra.mxu0 %v5211
        %6113 = vmatprep.subr.mxu0 0.0
        %6114 = vmatpush1.msra.mxu0 0.0
        %6115 = vmatprep.subr.mxu0 0.0
        %6116 = vmatpush1.msra.mxu0 0.0
        %6117 = vmatprep.subr.mxu0 0.0
        %6118 = vmatpush1.msra.mxu0 0.0
        %6119 = vmatprep.subr.mxu0 0.0
        %6120 = vmatpush1.msra.mxu0 0.0
        %6121 = vmatprep.subr.mxu0 0.0
        %6122 = vmatpush1.msra.mxu0 0.0
        %6123 = vmatprep.subr.mxu0 0.0
        %6124 = vmatpush1.msra.mxu0 0.0
        %6125 = vmatprep.subr.mxu0 0.0
        %6126 = vmatpush1.msra.mxu0 0.0
        %6127 = vmatprep.subr.mxu0 0.0
        %6128 = vmatpush1.msra.mxu0 0.0
        %6129 = vmatprep.subr.mxu0 0.0
        %6130 = vmatpush1.msra.mxu0 0.0
        %6131 = vmatprep.subr.mxu0 0.0
        %6132 = vmatpush1.msra.mxu0 0.0
        %6133 = vmatprep.subr.mxu0 0.0
        %6134 = vmatpush1.msra.mxu0 0.0
        %6135 = vmatprep.subr.mxu0 0.0
        %6136 = vmatpush1.msra.mxu0 0.0
        %6137 = vmatprep.subr.mxu0 0.0
        %6138 = vmatpush1.msra.mxu0 0.0
        %6139 = vmatprep.subr.mxu0 0.0
        %6140 = vmatpush1.msra.mxu0 0.0
        %6141 = vmatprep.subr.mxu0 0.0
        %6142 = vmatpush1.msra.mxu0 0.0
        %6143 = vmatprep.subr.mxu0 0.0
        %6144 = vmatpush1.msra.mxu0 0.0
        %6145 = vmatprep.subr.mxu0 0.0
        %6146 = vmatpush1.msra.mxu0 0.0
        %6147 = vmatprep.subr.mxu0 0.0
        %6148 = vmatpush1.msra.mxu0 0.0
        %6149 = vmatprep.subr.mxu0 0.0
        %6150 = vmatpush1.msra.mxu0 0.0
        %6151 = vmatprep.subr.mxu0 0.0
        %6152 = vmatpush1.msra.mxu0 0.0
        %6153 = vmatprep.subr.mxu0 0.0
        %6154 = vmatpush1.msra.mxu0 0.0
        %6155 = vmatprep.subr.mxu0 0.0
        %6156 = vmatpush1.msra.mxu0 0.0
        %6157 = vmatprep.subr.mxu0 0.0
        %6158 = vmatpush1.msra.mxu0 0.0
        %6159 = vmatprep.subr.mxu0 0.0
        %6160 = vmatpush1.msra.mxu0 0.0
        %6161 = vmatprep.subr.mxu0 0.0
        %6162 = vmatpush1.msra.mxu0 0.0
        %6163 = vmatprep.subr.mxu0 0.0
        %6164 = vmatpush1.msra.mxu0 0.0
        %6165 = vmatprep.subr.mxu0 0.0
        %6166 = vmatpush1.msra.mxu0 0.0
        %6167 = vmatprep.subr.mxu0 0.0
        %6168 = vmatpush1.msra.mxu0 0.0
        %6169 = vmatprep.mubr.f32.mxu0 0.0
        %6170 = vmatmul.mubr.f32.gmra.mrb[0].mxu0 %v6094
        %v6171 = vpop.f32.mrb[0].mxu0
        %v6172 = vadd.f32 0.0, %v6171
        %v6173 = vpop.f32.mrb[0].mxu0
        %6174 = vmatprep.mubr.f32.mxu0 0.0
        %6175 = vmatmul.mubr.f32.gmra.mrb[0].mxu0 %v6097
        %v6176 = vpop.f32.mrb[0].mxu0
        %v6177 = vadd.f32 0.0, %v6176
        %v6178 = vpop.f32.mrb[0].mxu0
        %6179 = vmatprep.mubr.f32.mxu0 0.0
        %6180 = vmatmul.mubr.f32.gmra.mrb[0].mxu0 %v6100
        %v6181 = vpop.f32.mrb[0].mxu0
        %v6182 = vadd.f32 0.0, %v6181
        %v6183 = vpop.f32.mrb[0].mxu0
        %6184 = vmatprep.mubr.f32.mxu0 0.0
        %6185 = vmatmul.mubr.f32.gmra.mrb[0].mxu0 %v6103
        %v6186 = vpop.f32.mrb[0].mxu0
        %v6187 = vadd.f32 0.0, %v6186
        %v6188 = vpop.f32.mrb[0].mxu0
        %6189 = vdwg.mxu0
        %v6191 = vsel %vm559, %v5988, 0
        %v6194 = vsel %vm559, %v5989, 0
        %v6197 = vsel %vm559, %v5990, 0
        %v6200 = vsel %vm559, %v5991, 0
        %6202 = vmatprep.subr.mxu0 0.0
        %6203 = vmatpush1.msra.mxu0 %v5281
        %6204 = vmatprep.subr.mxu0 0.0
        %6205 = vmatpush1.msra.mxu0 %v5286
        %6206 = vmatprep.subr.mxu0 0.0
        %6207 = vmatpush1.msra.mxu0 %v5291
        %6208 = vmatprep.subr.mxu0 0.0
        %6209 = vmatpush1.msra.mxu0 %v5296
        %6210 = vmatprep.subr.mxu0 0.0
        %6211 = vmatpush1.msra.mxu0 0.0
        %6212 = vmatprep.subr.mxu0 0.0
        %6213 = vmatpush1.msra.mxu0 0.0
        %6214 = vmatprep.subr.mxu0 0.0
        %6215 = vmatpush1.msra.mxu0 0.0
        %6216 = vmatprep.subr.mxu0 0.0
        %6217 = vmatpush1.msra.mxu0 0.0
        %6218 = vmatprep.subr.mxu0 0.0
        %6219 = vmatpush1.msra.mxu0 0.0
        %6220 = vmatprep.subr.mxu0 0.0
        %6221 = vmatpush1.msra.mxu0 0.0
        %6222 = vmatprep.subr.mxu0 0.0
        %6223 = vmatpush1.msra.mxu0 0.0
        %6224 = vmatprep.subr.mxu0 0.0
        %6225 = vmatpush1.msra.mxu0 0.0
        %6226 = vmatprep.subr.mxu0 0.0
        %6227 = vmatpush1.msra.mxu0 0.0
        %6228 = vmatprep.subr.mxu0 0.0
        %6229 = vmatpush1.msra.mxu0 0.0
        %6230 = vmatprep.subr.mxu0 0.0
        %6231 = vmatpush1.msra.mxu0 0.0
        %6232 = vmatprep.subr.mxu0 0.0
        %6233 = vmatpush1.msra.mxu0 0.0
        %6234 = vmatprep.subr.mxu0 0.0
        %6235 = vmatpush1.msra.mxu0 0.0
        %6236 = vmatprep.subr.mxu0 0.0
        %6237 = vmatpush1.msra.mxu0 0.0
        %6238 = vmatprep.subr.mxu0 0.0
        %6239 = vmatpush1.msra.mxu0 0.0
        %6240 = vmatprep.subr.mxu0 0.0
        %6241 = vmatpush1.msra.mxu0 0.0
        %6242 = vmatprep.subr.mxu0 0.0
        %6243 = vmatpush1.msra.mxu0 0.0
        %6244 = vmatprep.subr.mxu0 0.0
        %6245 = vmatpush1.msra.mxu0 0.0
        %6246 = vmatprep.subr.mxu0 0.0
        %6247 = vmatpush1.msra.mxu0 0.0
        %6248 = vmatprep.subr.mxu0 0.0
        %6249 = vmatpush1.msra.mxu0 0.0
        %6250 = vmatprep.subr.mxu0 0.0
        %6251 = vmatpush1.msra.mxu0 0.0
        %6252 = vmatprep.subr.mxu0 0.0
        %6253 = vmatpush1.msra.mxu0 0.0
        %6254 = vmatprep.subr.mxu0 0.0
        %6255 = vmatpush1.msra.mxu0 0.0
        %6256 = vmatprep.subr.mxu0 0.0
        %6257 = vmatpush1.msra.mxu0 0.0
        %6258 = vmatprep.subr.mxu0 0.0
        %6259 = vmatpush1.msra.mxu0 0.0
        %6260 = vmatprep.subr.mxu0 0.0
        %6261 = vmatpush1.msra.mxu0 0.0
        %6262 = vmatprep.subr.mxu0 0.0
        %6263 = vmatpush1.msra.mxu0 0.0
        %6264 = vmatprep.subr.mxu0 0.0
        %6265 = vmatpush1.msra.mxu0 0.0
        %6266 = vmatprep.mubr.f32.mxu0 0.0
        %6267 = vmatmul.mubr.f32.gmra.mrb[0].mxu0 %v6191
        %v6268 = vpop.f32.mrb[0].mxu0
        %v6269 = vadd.f32 0.0, %v6268
        %v6270 = vpop.f32.mrb[0].mxu0
        %6271 = vmatprep.mubr.f32.mxu0 0.0
        %6272 = vmatmul.mubr.f32.gmra.mrb[0].mxu0 %v6194
        %v6273 = vpop.f32.mrb[0].mxu0
        %v6274 = vadd.f32 0.0, %v6273
        %v6275 = vpop.f32.mrb[0].mxu0
        %6276 = vmatprep.mubr.f32.mxu0 0.0
        %6277 = vmatmul.mubr.f32.gmra.mrb[0].mxu0 %v6197
        %v6278 = vpop.f32.mrb[0].mxu0
        %v6279 = vadd.f32 0.0, %v6278
        %v6280 = vpop.f32.mrb[0].mxu0
        %6281 = vmatprep.mubr.f32.mxu0 0.0
        %6282 = vmatmul.mubr.f32.gmra.mrb[0].mxu0 %v6200
        %v6283 = vpop.f32.mrb[0].mxu0
        %v6284 = vadd.f32 0.0, %v6283
        %v6285 = vpop.f32.mrb[0].mxu0
        %6286 = vdwg.mxu0
        %v6288 = vsel %vm559, %v5992, 0
        %v6291 = vsel %vm559, %v5993, 0
        %v6294 = vsel %vm559, %v5994, 0
        %v6297 = vsel %vm559, %v5995, 0
        %6299 = vmatprep.subr.mxu0 0.0
        %6300 = vmatpush1.msra.mxu0 %v5366
        %6301 = vmatprep.subr.mxu0 0.0
        %6302 = vmatpush1.msra.mxu0 %v5371
        %6303 = vmatprep.subr.mxu0 0.0
        %6304 = vmatpush1.msra.mxu0 %v5376
        %6305 = vmatprep.subr.mxu0 0.0
        %6306 = vmatpush1.msra.mxu0 %v5381
        %6307 = vmatprep.subr.mxu0 0.0
        %6308 = vmatpush1.msra.mxu0 0.0
        %6309 = vmatprep.subr.mxu0 0.0
        %6310 = vmatpush1.msra.mxu0 0.0
        %6311 = vmatprep.subr.mxu0 0.0
        %6312 = vmatpush1.msra.mxu0 0.0
        %6313 = vmatprep.subr.mxu0 0.0
        %6314 = vmatpush1.msra.mxu0 0.0
        %6315 = vmatprep.subr.mxu0 0.0
        %6316 = vmatpush1.msra.mxu0 0.0
        %6317 = vmatprep.subr.mxu0 0.0
        %6318 = vmatpush1.msra.mxu0 0.0
        %6319 = vmatprep.subr.mxu0 0.0
        %6320 = vmatpush1.msra.mxu0 0.0
        %6321 = vmatprep.subr.mxu0 0.0
        %6322 = vmatpush1.msra.mxu0 0.0
        %6323 = vmatprep.subr.mxu0 0.0
        %6324 = vmatpush1.msra.mxu0 0.0
        %6325 = vmatprep.subr.mxu0 0.0
        %6326 = vmatpush1.msra.mxu0 0.0
        %6327 = vmatprep.subr.mxu0 0.0
        %6328 = vmatpush1.msra.mxu0 0.0
        %6329 = vmatprep.subr.mxu0 0.0
        %6330 = vmatpush1.msra.mxu0 0.0
        %6331 = vmatprep.subr.mxu0 0.0
        %6332 = vmatpush1.msra.mxu0 0.0
        %6333 = vmatprep.subr.mxu0 0.0
        %6334 = vmatpush1.msra.mxu0 0.0
        %6335 = vmatprep.subr.mxu0 0.0
        %6336 = vmatpush1.msra.mxu0 0.0
        %6337 = vmatprep.subr.mxu0 0.0
        %6338 = vmatpush1.msra.mxu0 0.0
        %6339 = vmatprep.subr.mxu0 0.0
        %6340 = vmatpush1.msra.mxu0 0.0
        %6341 = vmatprep.subr.mxu0 0.0
        %6342 = vmatpush1.msra.mxu0 0.0
        %6343 = vmatprep.subr.mxu0 0.0
        %6344 = vmatpush1.msra.mxu0 0.0
        %6345 = vmatprep.subr.mxu0 0.0
        %6346 = vmatpush1.msra.mxu0 0.0
        %6347 = vmatprep.subr.mxu0 0.0
        %6348 = vmatpush1.msra.mxu0 0.0
        %6349 = vmatprep.subr.mxu0 0.0
        %6350 = vmatpush1.msra.mxu0 0.0
        %6351 = vmatprep.subr.mxu0 0.0
        %6352 = vmatpush1.msra.mxu0 0.0
        %6353 = vmatprep.subr.mxu0 0.0
        %6354 = vmatpush1.msra.mxu0 0.0
        %6355 = vmatprep.subr.mxu0 0.0
        %6356 = vmatpush1.msra.mxu0 0.0
        %6357 = vmatprep.subr.mxu0 0.0
        %6358 = vmatpush1.msra.mxu0 0.0
        %6359 = vmatprep.subr.mxu0 0.0
        %6360 = vmatpush1.msra.mxu0 0.0
        %6361 = vmatprep.subr.mxu0 0.0
        %6362 = vmatpush1.msra.mxu0 0.0
        %6363 = vmatprep.mubr.f32.mxu0 0.0
        %6364 = vmatmul.mubr.f32.gmra.mrb[0].mxu0 %v6288
        %v6365 = vpop.f32.mrb[0].mxu0
        %v6366 = vadd.f32 0.0, %v6365
        %v6367 = vpop.f32.mrb[0].mxu0
        %6368 = vmatprep.mubr.f32.mxu0 0.0
        %6369 = vmatmul.mubr.f32.gmra.mrb[0].mxu0 %v6291
        %v6370 = vpop.f32.mrb[0].mxu0
        %v6371 = vadd.f32 0.0, %v6370
        %v6372 = vpop.f32.mrb[0].mxu0
        %6373 = vmatprep.mubr.f32.mxu0 0.0
        %6374 = vmatmul.mubr.f32.gmra.mrb[0].mxu0 %v6294
        %v6375 = vpop.f32.mrb[0].mxu0
        %v6376 = vadd.f32 0.0, %v6375
        %v6377 = vpop.f32.mrb[0].mxu0
        %6378 = vmatprep.mubr.f32.mxu0 0.0
        %6379 = vmatmul.mubr.f32.gmra.mrb[0].mxu0 %v6297
        %v6380 = vpop.f32.mrb[0].mxu0
        %v6381 = vadd.f32 0.0, %v6380
        %v6382 = vpop.f32.mrb[0].mxu0
        %6383 = vdwg.mxu0
        %s6384 = scalar_lea.vmem %s9, 128
        %v6385 = vld [vmem:[%s6384] sm:$0xff]
        %v6386 = vld [vmem:[%s6384 + $0x8] sm:$0xff]
        %v6387 = vld [vmem:[%s6384 + $0x10] sm:$0xff]
        %v6388 = vld [vmem:[%s6384 + $0x18] sm:$0xff]
        %v6389 = vld [vmem:[%s6384 + $0x20] sm:$0xff]
        %v6390 = vld [vmem:[%s6384 + $0x28] sm:$0xff]
        %v6391 = vld [vmem:[%s6384 + $0x30] sm:$0xff]
        %v6392 = vld [vmem:[%s6384 + $0x38] sm:$0xff]
        %v6393 = vld [vmem:[%s6384 + $0x40] sm:$0xff]
        %v6394 = vld [vmem:[%s6384 + $0x48] sm:$0xff]
        %v6395 = vld [vmem:[%s6384 + $0x50] sm:$0xff]
        %v6396 = vld [vmem:[%s6384 + $0x58] sm:$0xff]
        %v6397 = vld [vmem:[%s6384 + $0x60] sm:$0xff]
        %v6398 = vld [vmem:[%s6384 + $0x68] sm:$0xff]
        %v6399 = vld [vmem:[%s6384 + $0x70] sm:$0xff]
        %v6400 = vld [vmem:[%s6384 + $0x78] sm:$0xff]
        %v6402 = vsel %vm559, %v6075, 0
        %v6405 = vsel %vm559, %v6080, 0
        %v6408 = vsel %vm559, %v6085, 0
        %v6411 = vsel %vm559, %v6090, 0
        %6413 = vmatprep.subr.mxu0 0.0
        %6414 = vmatpush1.msra.mxu0 %v6385
        %6415 = vmatprep.subr.mxu0 0.0
        %6416 = vmatpush1.msra.mxu0 %v6386
        %6417 = vmatprep.subr.mxu0 0.0
        %6418 = vmatpush1.msra.mxu0 %v6387
        %6419 = vmatprep.subr.mxu0 0.0
        %6420 = vmatpush1.msra.mxu0 %v6388
        %6421 = vmatprep.subr.mxu0 0.0
        %6422 = vmatpush1.msra.mxu0 0.0
        %6423 = vmatprep.subr.mxu0 0.0
        %6424 = vmatpush1.msra.mxu0 0.0
        %6425 = vmatprep.subr.mxu0 0.0
        %6426 = vmatpush1.msra.mxu0 0.0
        %6427 = vmatprep.subr.mxu0 0.0
        %6428 = vmatpush1.msra.mxu0 0.0
        %6429 = vmatprep.subr.mxu0 0.0
        %6430 = vmatpush1.msra.mxu0 0.0
        %6431 = vmatprep.subr.mxu0 0.0
        %6432 = vmatpush1.msra.mxu0 0.0
        %6433 = vmatprep.subr.mxu0 0.0
        %6434 = vmatpush1.msra.mxu0 0.0
        %6435 = vmatprep.subr.mxu0 0.0
        %6436 = vmatpush1.msra.mxu0 0.0
        %6437 = vmatprep.subr.mxu0 0.0
        %6438 = vmatpush1.msra.mxu0 0.0
        %6439 = vmatprep.subr.mxu0 0.0
        %6440 = vmatpush1.msra.mxu0 0.0
        %6441 = vmatprep.subr.mxu0 0.0
        %6442 = vmatpush1.msra.mxu0 0.0
        %6443 = vmatprep.subr.mxu0 0.0
        %6444 = vmatpush1.msra.mxu0 0.0
        %6445 = vmatprep.subr.mxu0 0.0
        %6446 = vmatpush1.msra.mxu0 0.0
        %6447 = vmatprep.subr.mxu0 0.0
        %6448 = vmatpush1.msra.mxu0 0.0
        %6449 = vmatprep.subr.mxu0 0.0
        %6450 = vmatpush1.msra.mxu0 0.0
        %6451 = vmatprep.subr.mxu0 0.0
        %6452 = vmatpush1.msra.mxu0 0.0
        %6453 = vmatprep.subr.mxu0 0.0
        %6454 = vmatpush1.msra.mxu0 0.0
        %6455 = vmatprep.subr.mxu0 0.0
        %6456 = vmatpush1.msra.mxu0 0.0
        %6457 = vmatprep.subr.mxu0 0.0
        %6458 = vmatpush1.msra.mxu0 0.0
        %6459 = vmatprep.subr.mxu0 0.0
        %6460 = vmatpush1.msra.mxu0 0.0
        %6461 = vmatprep.subr.mxu0 0.0
        %6462 = vmatpush1.msra.mxu0 0.0
        %6463 = vmatprep.subr.mxu0 0.0
        %6464 = vmatpush1.msra.mxu0 0.0
        %6465 = vmatprep.subr.mxu0 0.0
        %6466 = vmatpush1.msra.mxu0 0.0
        %6467 = vmatprep.subr.mxu0 0.0
        %6468 = vmatpush1.msra.mxu0 0.0
        %6469 = vmatprep.subr.mxu0 0.0
        %6470 = vmatpush1.msra.mxu0 0.0
        %6471 = vmatprep.subr.mxu0 0.0
        %6472 = vmatpush1.msra.mxu0 0.0
        %6473 = vmatprep.subr.mxu0 0.0
        %6474 = vmatpush1.msra.mxu0 0.0
        %6475 = vmatprep.subr.mxu0 0.0
        %6476 = vmatpush1.msra.mxu0 0.0
        %6477 = vmatprep.mubr.f32.mxu0 0.0
        %6478 = vmatmul.mubr.f32.gmra.mrb[0].mxu0 %v6402
        %v6479 = vpop.f32.mrb[0].mxu0
        %v6480 = vadd.f32 0.0, %v6479
        %v6481 = vpop.f32.mrb[0].mxu0
        %6482 = vmatprep.mubr.f32.mxu0 0.0
        %6483 = vmatmul.mubr.f32.gmra.mrb[0].mxu0 %v6405
        %v6484 = vpop.f32.mrb[0].mxu0
        %v6485 = vadd.f32 0.0, %v6484
        %v6486 = vpop.f32.mrb[0].mxu0
        %6487 = vmatprep.mubr.f32.mxu0 0.0
        %6488 = vmatmul.mubr.f32.gmra.mrb[0].mxu0 %v6408
        %v6489 = vpop.f32.mrb[0].mxu0
        %v6490 = vadd.f32 0.0, %v6489
        %v6491 = vpop.f32.mrb[0].mxu0
        %6492 = vmatprep.mubr.f32.mxu0 0.0
        %6493 = vmatmul.mubr.f32.gmra.mrb[0].mxu0 %v6411
        %v6494 = vpop.f32.mrb[0].mxu0
        %v6495 = vadd.f32 0.0, %v6494
        %v6496 = vpop.f32.mrb[0].mxu0
        %6497 = vdwg.mxu0
        %v6499 = vsel %vm559, %v6172, 0
        %v6502 = vsel %vm559, %v6177, 0
        %v6505 = vsel %vm559, %v6182, 0
        %v6508 = vsel %vm559, %v6187, 0
        %6510 = vmatprep.subr.mxu0 0.0
        %6511 = vmatpush1.msra.mxu0 %v6389
        %6512 = vmatprep.subr.mxu0 0.0
        %6513 = vmatpush1.msra.mxu0 %v6390
        %6514 = vmatprep.subr.mxu0 0.0
        %6515 = vmatpush1.msra.mxu0 %v6391
        %6516 = vmatprep.subr.mxu0 0.0
        %6517 = vmatpush1.msra.mxu0 %v6392
        %6518 = vmatprep.subr.mxu0 0.0
        %6519 = vmatpush1.msra.mxu0 0.0
        %6520 = vmatprep.subr.mxu0 0.0
        %6521 = vmatpush1.msra.mxu0 0.0
        %6522 = vmatprep.subr.mxu0 0.0
        %6523 = vmatpush1.msra.mxu0 0.0
        %6524 = vmatprep.subr.mxu0 0.0
        %6525 = vmatpush1.msra.mxu0 0.0
        %6526 = vmatprep.subr.mxu0 0.0
        %6527 = vmatpush1.msra.mxu0 0.0
        %6528 = vmatprep.subr.mxu0 0.0
        %6529 = vmatpush1.msra.mxu0 0.0
        %6530 = vmatprep.subr.mxu0 0.0
        %6531 = vmatpush1.msra.mxu0 0.0
        %6532 = vmatprep.subr.mxu0 0.0
        %6533 = vmatpush1.msra.mxu0 0.0
        %6534 = vmatprep.subr.mxu0 0.0
        %6535 = vmatpush1.msra.mxu0 0.0
        %6536 = vmatprep.subr.mxu0 0.0
        %6537 = vmatpush1.msra.mxu0 0.0
        %6538 = vmatprep.subr.mxu0 0.0
        %6539 = vmatpush1.msra.mxu0 0.0
        %6540 = vmatprep.subr.mxu0 0.0
        %6541 = vmatpush1.msra.mxu0 0.0
        %6542 = vmatprep.subr.mxu0 0.0
        %6543 = vmatpush1.msra.mxu0 0.0
        %6544 = vmatprep.subr.mxu0 0.0
        %6545 = vmatpush1.msra.mxu0 0.0
        %6546 = vmatprep.subr.mxu0 0.0
        %6547 = vmatpush1.msra.mxu0 0.0
        %6548 = vmatprep.subr.mxu0 0.0
        %6549 = vmatpush1.msra.mxu0 0.0
        %6550 = vmatprep.subr.mxu0 0.0
        %6551 = vmatpush1.msra.mxu0 0.0
        %6552 = vmatprep.subr.mxu0 0.0
        %6553 = vmatpush1.msra.mxu0 0.0
        %6554 = vmatprep.subr.mxu0 0.0
        %6555 = vmatpush1.msra.mxu0 0.0
        %6556 = vmatprep.subr.mxu0 0.0
        %6557 = vmatpush1.msra.mxu0 0.0
        %6558 = vmatprep.subr.mxu0 0.0
        %6559 = vmatpush1.msra.mxu0 0.0
        %6560 = vmatprep.subr.mxu0 0.0
        %6561 = vmatpush1.msra.mxu0 0.0
        %6562 = vmatprep.subr.mxu0 0.0
        %6563 = vmatpush1.msra.mxu0 0.0
        %6564 = vmatprep.subr.mxu0 0.0
        %6565 = vmatpush1.msra.mxu0 0.0
        %6566 = vmatprep.subr.mxu0 0.0
        %6567 = vmatpush1.msra.mxu0 0.0
        %6568 = vmatprep.subr.mxu0 0.0
        %6569 = vmatpush1.msra.mxu0 0.0
        %6570 = vmatprep.subr.mxu0 0.0
        %6571 = vmatpush1.msra.mxu0 0.0
        %6572 = vmatprep.subr.mxu0 0.0
        %6573 = vmatpush1.msra.mxu0 0.0
        %6574 = vmatprep.mubr.f32.mxu0 0.0
        %6575 = vmatmul.mubr.f32.gmra.mrb[0].mxu0 %v6499
        %v6576 = vpop.f32.mrb[0].mxu0
        %v6577 = vadd.f32 0.0, %v6576
        %v6578 = vpop.f32.mrb[0].mxu0
        %6579 = vmatprep.mubr.f32.mxu0 0.0
        %6580 = vmatmul.mubr.f32.gmra.mrb[0].mxu0 %v6502
        %v6581 = vpop.f32.mrb[0].mxu0
        %v6582 = vadd.f32 0.0, %v6581
        %v6583 = vpop.f32.mrb[0].mxu0
        %6584 = vmatprep.mubr.f32.mxu0 0.0
        %6585 = vmatmul.mubr.f32.gmra.mrb[0].mxu0 %v6505
        %v6586 = vpop.f32.mrb[0].mxu0
        %v6587 = vadd.f32 0.0, %v6586
        %v6588 = vpop.f32.mrb[0].mxu0
        %6589 = vmatprep.mubr.f32.mxu0 0.0
        %6590 = vmatmul.mubr.f32.gmra.mrb[0].mxu0 %v6508
        %v6591 = vpop.f32.mrb[0].mxu0
        %v6592 = vadd.f32 0.0, %v6591
        %v6593 = vpop.f32.mrb[0].mxu0
        %6594 = vdwg.mxu0
        %v6596 = vsel %vm559, %v6269, 0
        %v6599 = vsel %vm559, %v6274, 0
        %v6602 = vsel %vm559, %v6279, 0
        %v6605 = vsel %vm559, %v6284, 0
        %6607 = vmatprep.subr.mxu0 0.0
        %6608 = vmatpush1.msra.mxu0 %v6393
        %6609 = vmatprep.subr.mxu0 0.0
        %6610 = vmatpush1.msra.mxu0 %v6394
        %6611 = vmatprep.subr.mxu0 0.0
        %6612 = vmatpush1.msra.mxu0 %v6395
        %6613 = vmatprep.subr.mxu0 0.0
        %6614 = vmatpush1.msra.mxu0 %v6396
        %6615 = vmatprep.subr.mxu0 0.0
        %6616 = vmatpush1.msra.mxu0 0.0
        %6617 = vmatprep.subr.mxu0 0.0
        %6618 = vmatpush1.msra.mxu0 0.0
        %6619 = vmatprep.subr.mxu0 0.0
        %6620 = vmatpush1.msra.mxu0 0.0
        %6621 = vmatprep.subr.mxu0 0.0
        %6622 = vmatpush1.msra.mxu0 0.0
        %6623 = vmatprep.subr.mxu0 0.0
        %6624 = vmatpush1.msra.mxu0 0.0
        %6625 = vmatprep.subr.mxu0 0.0
        %6626 = vmatpush1.msra.mxu0 0.0
        %6627 = vmatprep.subr.mxu0 0.0
        %6628 = vmatpush1.msra.mxu0 0.0
        %6629 = vmatprep.subr.mxu0 0.0
        %6630 = vmatpush1.msra.mxu0 0.0
        %6631 = vmatprep.subr.mxu0 0.0
        %6632 = vmatpush1.msra.mxu0 0.0
        %6633 = vmatprep.subr.mxu0 0.0
        %6634 = vmatpush1.msra.mxu0 0.0
        %6635 = vmatprep.subr.mxu0 0.0
        %6636 = vmatpush1.msra.mxu0 0.0
        %6637 = vmatprep.subr.mxu0 0.0
        %6638 = vmatpush1.msra.mxu0 0.0
        %6639 = vmatprep.subr.mxu0 0.0
        %6640 = vmatpush1.msra.mxu0 0.0
        %6641 = vmatprep.subr.mxu0 0.0
        %6642 = vmatpush1.msra.mxu0 0.0
        %6643 = vmatprep.subr.mxu0 0.0
        %6644 = vmatpush1.msra.mxu0 0.0
        %6645 = vmatprep.subr.mxu0 0.0
        %6646 = vmatpush1.msra.mxu0 0.0
        %6647 = vmatprep.subr.mxu0 0.0
        %6648 = vmatpush1.msra.mxu0 0.0
        %6649 = vmatprep.subr.mxu0 0.0
        %6650 = vmatpush1.msra.mxu0 0.0
        %6651 = vmatprep.subr.mxu0 0.0
        %6652 = vmatpush1.msra.mxu0 0.0
        %6653 = vmatprep.subr.mxu0 0.0
        %6654 = vmatpush1.msra.mxu0 0.0
        %6655 = vmatprep.subr.mxu0 0.0
        %6656 = vmatpush1.msra.mxu0 0.0
        %6657 = vmatprep.subr.mxu0 0.0
        %6658 = vmatpush1.msra.mxu0 0.0
        %6659 = vmatprep.subr.mxu0 0.0
        %6660 = vmatpush1.msra.mxu0 0.0
        %6661 = vmatprep.subr.mxu0 0.0
        %6662 = vmatpush1.msra.mxu0 0.0
        %6663 = vmatprep.subr.mxu0 0.0
        %6664 = vmatpush1.msra.mxu0 0.0
        %6665 = vmatprep.subr.mxu0 0.0
        %6666 = vmatpush1.msra.mxu0 0.0
        %6667 = vmatprep.subr.mxu0 0.0
        %6668 = vmatpush1.msra.mxu0 0.0
        %6669 = vmatprep.subr.mxu0 0.0
        %6670 = vmatpush1.msra.mxu0 0.0
        %6671 = vmatprep.mubr.f32.mxu0 0.0
        %6672 = vmatmul.mubr.f32.gmra.mrb[0].mxu0 %v6596
        %v6673 = vpop.f32.mrb[0].mxu0
        %v6674 = vadd.f32 0.0, %v6673
        %v6675 = vpop.f32.mrb[0].mxu0
        %6676 = vmatprep.mubr.f32.mxu0 0.0
        %6677 = vmatmul.mubr.f32.gmra.mrb[0].mxu0 %v6599
        %v6678 = vpop.f32.mrb[0].mxu0
        %v6679 = vadd.f32 0.0, %v6678
        %v6680 = vpop.f32.mrb[0].mxu0
        %6681 = vmatprep.mubr.f32.mxu0 0.0
        %6682 = vmatmul.mubr.f32.gmra.mrb[0].mxu0 %v6602
        %v6683 = vpop.f32.mrb[0].mxu0
        %v6684 = vadd.f32 0.0, %v6683
        %v6685 = vpop.f32.mrb[0].mxu0
        %6686 = vmatprep.mubr.f32.mxu0 0.0
        %6687 = vmatmul.mubr.f32.gmra.mrb[0].mxu0 %v6605
        %v6688 = vpop.f32.mrb[0].mxu0
        %v6689 = vadd.f32 0.0, %v6688
        %v6690 = vpop.f32.mrb[0].mxu0
        %6691 = vdwg.mxu0
        %v6693 = vsel %vm559, %v6366, 0
        %v6696 = vsel %vm559, %v6371, 0
        %v6699 = vsel %vm559, %v6376, 0
        %v6702 = vsel %vm559, %v6381, 0
        %6704 = vmatprep.subr.mxu0 0.0
        %6705 = vmatpush1.msra.mxu0 %v6397
        %6706 = vmatprep.subr.mxu0 0.0
        %6707 = vmatpush1.msra.mxu0 %v6398
        %6708 = vmatprep.subr.mxu0 0.0
        %6709 = vmatpush1.msra.mxu0 %v6399
        %6710 = vmatprep.subr.mxu0 0.0
        %6711 = vmatpush1.msra.mxu0 %v6400
        %6712 = vmatprep.subr.mxu0 0.0
        %6713 = vmatpush1.msra.mxu0 0.0
        %6714 = vmatprep.subr.mxu0 0.0
        %6715 = vmatpush1.msra.mxu0 0.0
        %6716 = vmatprep.subr.mxu0 0.0
        %6717 = vmatpush1.msra.mxu0 0.0
        %6718 = vmatprep.subr.mxu0 0.0
        %6719 = vmatpush1.msra.mxu0 0.0
        %6720 = vmatprep.subr.mxu0 0.0
        %6721 = vmatpush1.msra.mxu0 0.0
        %6722 = vmatprep.subr.mxu0 0.0
        %6723 = vmatpush1.msra.mxu0 0.0
        %6724 = vmatprep.subr.mxu0 0.0
        %6725 = vmatpush1.msra.mxu0 0.0
        %6726 = vmatprep.subr.mxu0 0.0
        %6727 = vmatpush1.msra.mxu0 0.0
        %6728 = vmatprep.subr.mxu0 0.0
        %6729 = vmatpush1.msra.mxu0 0.0
        %6730 = vmatprep.subr.mxu0 0.0
        %6731 = vmatpush1.msra.mxu0 0.0
        %6732 = vmatprep.subr.mxu0 0.0
        %6733 = vmatpush1.msra.mxu0 0.0
        %6734 = vmatprep.subr.mxu0 0.0
        %6735 = vmatpush1.msra.mxu0 0.0
        %6736 = vmatprep.subr.mxu0 0.0
        %6737 = vmatpush1.msra.mxu0 0.0
        %6738 = vmatprep.subr.mxu0 0.0
        %6739 = vmatpush1.msra.mxu0 0.0
        %6740 = vmatprep.subr.mxu0 0.0
        %6741 = vmatpush1.msra.mxu0 0.0
        %6742 = vmatprep.subr.mxu0 0.0
        %6743 = vmatpush1.msra.mxu0 0.0
        %6744 = vmatprep.subr.mxu0 0.0
        %6745 = vmatpush1.msra.mxu0 0.0
        %6746 = vmatprep.subr.mxu0 0.0
        %6747 = vmatpush1.msra.mxu0 0.0
        %6748 = vmatprep.subr.mxu0 0.0
        %6749 = vmatpush1.msra.mxu0 0.0
        %6750 = vmatprep.subr.mxu0 0.0
        %6751 = vmatpush1.msra.mxu0 0.0
        %6752 = vmatprep.subr.mxu0 0.0
        %6753 = vmatpush1.msra.mxu0 0.0
        %6754 = vmatprep.subr.mxu0 0.0
        %6755 = vmatpush1.msra.mxu0 0.0
        %6756 = vmatprep.subr.mxu0 0.0
        %6757 = vmatpush1.msra.mxu0 0.0
        %6758 = vmatprep.subr.mxu0 0.0
        %6759 = vmatpush1.msra.mxu0 0.0
        %6760 = vmatprep.subr.mxu0 0.0
        %6761 = vmatpush1.msra.mxu0 0.0
        %6762 = vmatprep.subr.mxu0 0.0
        %6763 = vmatpush1.msra.mxu0 0.0
        %6764 = vmatprep.subr.mxu0 0.0
        %6765 = vmatpush1.msra.mxu0 0.0
        %6766 = vmatprep.subr.mxu0 0.0
        %6767 = vmatpush1.msra.mxu0 0.0
        %6768 = vmatprep.mubr.f32.mxu0 0.0
        %6769 = vmatmul.mubr.f32.gmra.mrb[0].mxu0 %v6693
        %v6770 = vpop.f32.mrb[0].mxu0
        %v6771 = vadd.f32 0.0, %v6770
        %v6772 = vpop.f32.mrb[0].mxu0
        %6773 = vmatprep.mubr.f32.mxu0 0.0
        %6774 = vmatmul.mubr.f32.gmra.mrb[0].mxu0 %v6696
        %v6775 = vpop.f32.mrb[0].mxu0
        %v6776 = vadd.f32 0.0, %v6775
        %v6777 = vpop.f32.mrb[0].mxu0
        %6778 = vmatprep.mubr.f32.mxu0 0.0
        %6779 = vmatmul.mubr.f32.gmra.mrb[0].mxu0 %v6699
        %v6780 = vpop.f32.mrb[0].mxu0
        %v6781 = vadd.f32 0.0, %v6780
        %v6782 = vpop.f32.mrb[0].mxu0
        %6783 = vmatprep.mubr.f32.mxu0 0.0
        %6784 = vmatmul.mubr.f32.gmra.mrb[0].mxu0 %v6702
        %v6785 = vpop.f32.mrb[0].mxu0
        %v6786 = vadd.f32 0.0, %v6785
        %v6787 = vpop.f32.mrb[0].mxu0
        %6788 = vdwg.mxu0
        %v6789 = vadd.f32 %v6480, %v6577
        %v6790 = vadd.f32 %v6789, %v6674
        %v6791 = vadd.f32 %v6790, %v6771
        %v6792 = vadd.f32 %v6485, %v6582
        %v6793 = vadd.f32 %v6792, %v6679
        %v6794 = vadd.f32 %v6793, %v6776
        %v6795 = vadd.f32 %v6490, %v6587
        %v6796 = vadd.f32 %v6795, %v6684
        %v6797 = vadd.f32 %v6796, %v6781
        %v6798 = vadd.f32 %v6495, %v6592
        %v6799 = vadd.f32 %v6798, %v6689
        %v6800 = vadd.f32 %v6799, %v6786
        %v6801 = vadd.f32 %v4089, %v6791
        %v6802 = vadd.f32 %v4090, %v6794
        %v6803 = vadd.f32 %v4091, %v6797
        %v6804 = vadd.f32 %v4092, %v6800
        %s6805 = scalar_lea.vmem %s10, 1
        %v6806 = vld [vmem:[%s6805] sm:$0x1]
        %v6808 = vlaneseq
        %v6809 = vshrl.u32 %v6808, 7
        %v6810 = vsub.s32 0, %v6809
        %v6811 = vrot.slane %v6806, %v6810
        %v6813 = vadd.f32 %v6801, %v6811
        %v6814 = vadd.f32 %v6802, %v6811
        %v6815 = vadd.f32 %v6803, %v6811
        %v6816 = vadd.f32 %v6804, %v6811
        %s6817 = scalar_lea.vmem %s11, 1
        %v6818 = vld [vmem:[%s6817] sm:$0x1]
        %s6819 = scalar_lea.vmem %s12, 1
        %v6820 = vld [vmem:[%s6819] sm:$0x1]
        %6821 = vadd.xlane.f32.xlu0 %v6813
        %v6822 = vpop.xlane.xlu0 %6821
        %6823 = vadd.xlane.f32.xlu0 %v6814
        %v6824 = vpop.xlane.xlu0 %6823
        %6825 = vadd.xlane.f32.xlu0 %v6815
        %v6826 = vpop.xlane.xlu0 %6825
        %6827 = vadd.xlane.f32.xlu0 %v6816
        %v6828 = vpop.xlane.xlu0 %6827
        %v6829 = vmul.f32 %v6822, 0.010416667
        %v6830 = vmul.f32 %v6824, 0.010416667
        %v6831 = vmul.f32 %v6826, 0.010416667
        %v6832 = vmul.f32 %v6828, 0.010416667
        %v6833 = vmul.f32 %v6813, %v6813
        %v6834 = vmul.f32 %v6814, %v6814
        %v6835 = vmul.f32 %v6815, %v6815
        %v6836 = vmul.f32 %v6816, %v6816
        %6837 = vadd.xlane.f32.xlu0 %v6833
        %v6838 = vpop.xlane.xlu0 %6837
        %6839 = vadd.xlane.f32.xlu0 %v6834
        %v6840 = vpop.xlane.xlu0 %6839
        %6841 = vadd.xlane.f32.xlu0 %v6835
        %v6842 = vpop.xlane.xlu0 %6841
        %6843 = vadd.xlane.f32.xlu0 %v6836
        %v6844 = vpop.xlane.xlu0 %6843
        %v6845 = vmul.f32 %v6838, 0.010416667
        %v6846 = vmul.f32 %v6840, 0.010416667
        %v6847 = vmul.f32 %v6842, 0.010416667
        %v6848 = vmul.f32 %v6844, 0.010416667
        %v6849 = vmul.f32 %v6829, %v6829
        %v6850 = vmul.f32 %v6830, %v6830
        %v6851 = vmul.f32 %v6831, %v6831
        %v6852 = vmul.f32 %v6832, %v6832
        %v6853 = vsub.f32 %v6845, %v6849
        %v6854 = vsub.f32 %v6846, %v6850
        %v6855 = vsub.f32 %v6847, %v6851
        %v6856 = vsub.f32 %v6848, %v6852
        %v6857 = vsub.f32 %v6813, %v6829
        %v6858 = vsub.f32 %v6814, %v6830
        %v6859 = vsub.f32 %v6815, %v6831
        %v6860 = vsub.f32 %v6816, %v6832
        %v6861 = vadd.f32 %v6853, 1e-05
        %v6862 = vadd.f32 %v6854, 1e-05
        %v6863 = vadd.f32 %v6855, 1e-05
        %v6864 = vadd.f32 %v6856, 1e-05
        %v6865 = vrsqrt.pop %v6861
        %v6866 = vrsqrt.pop %v6862
        %v6867 = vrsqrt.pop %v6863
        %v6868 = vrsqrt.pop %v6864
        %v6869 = vmul.f32 %v6857, %v6865
        %v6870 = vmul.f32 %v6858, %v6866
        %v6871 = vmul.f32 %v6859, %v6867
        %v6872 = vmul.f32 %v6860, %v6868
        %v6874 = vlaneseq
        %v6875 = vshrl.u32 %v6874, 7
        %v6876 = vsub.s32 0, %v6875
        %v6877 = vrot.slane %v6818, %v6876
        %v6879 = vmul.f32 %v6869, %v6877
        %v6880 = vmul.f32 %v6870, %v6877
        %v6881 = vmul.f32 %v6871, %v6877
        %v6882 = vmul.f32 %v6872, %v6877
        %v6884 = vlaneseq
        %v6885 = vshrl.u32 %v6884, 7
        %v6886 = vsub.s32 0, %v6885
        %v6887 = vrot.slane %v6820, %v6886
        %v6889 = vadd.f32 %v6879, %v6887
        %v6890 = vadd.f32 %v6880, %v6887
        %v6891 = vadd.f32 %v6881, %v6887
        %v6892 = vadd.f32 %v6882, %v6887
        %s6893 = scalar_lea.vmem %s13, 512
        %v6894 = vld [vmem:[%s6893] sm:$0xff]
        %v6895 = vld [vmem:[%s6893 + $0x8] sm:$0xff]
        %v6896 = vld [vmem:[%s6893 + $0x10] sm:$0xff]
        %v6897 = vld [vmem:[%s6893 + $0x18] sm:$0xff]
        %v6898 = vld [vmem:[%s6893 + $0x20] sm:$0xff]
        %v6899 = vld [vmem:[%s6893 + $0x28] sm:$0xff]
        %v6900 = vld [vmem:[%s6893 + $0x30] sm:$0xff]
        %v6901 = vld [vmem:[%s6893 + $0x38] sm:$0xff]
        %v6902 = vld [vmem:[%s6893 + $0x40] sm:$0xff]
        %v6903 = vld [vmem:[%s6893 + $0x48] sm:$0xff]
        %v6904 = vld [vmem:[%s6893 + $0x50] sm:$0xff]
        %v6905 = vld [vmem:[%s6893 + $0x58] sm:$0xff]
        %v6906 = vld [vmem:[%s6893 + $0x60] sm:$0xff]
        %v6907 = vld [vmem:[%s6893 + $0x68] sm:$0xff]
        %v6908 = vld [vmem:[%s6893 + $0x70] sm:$0xff]
        %v6909 = vld [vmem:[%s6893 + $0x78] sm:$0xff]
        %v6910 = vld [vmem:[%s6893 + $0x80] sm:$0xff]
        %v6911 = vld [vmem:[%s6893 + $0x88] sm:$0xff]
        %v6912 = vld [vmem:[%s6893 + $0x90] sm:$0xff]
        %v6913 = vld [vmem:[%s6893 + $0x98] sm:$0xff]
        %v6914 = vld [vmem:[%s6893 + $0xa0] sm:$0xff]
        %v6915 = vld [vmem:[%s6893 + $0xa8] sm:$0xff]
        %v6916 = vld [vmem:[%s6893 + $0xb0] sm:$0xff]
        %v6917 = vld [vmem:[%s6893 + $0xb8] sm:$0xff]
        %v6918 = vld [vmem:[%s6893 + $0xc0] sm:$0xff]
        %v6919 = vld [vmem:[%s6893 + $0xc8] sm:$0xff]
        %v6920 = vld [vmem:[%s6893 + $0xd0] sm:$0xff]
        %v6921 = vld [vmem:[%s6893 + $0xd8] sm:$0xff]
        %v6922 = vld [vmem:[%s6893 + $0xe0] sm:$0xff]
        %v6923 = vld [vmem:[%s6893 + $0xe8] sm:$0xff]
        %v6924 = vld [vmem:[%s6893 + $0xf0] sm:$0xff]
        %v6925 = vld [vmem:[%s6893 + $0xf8] sm:$0xff]
        %v6926 = vld [vmem:[%s6893 + $0x100] sm:$0xff]
        %v6927 = vld [vmem:[%s6893 + $0x108] sm:$0xff]
        %v6928 = vld [vmem:[%s6893 + $0x110] sm:$0xff]
        %v6929 = vld [vmem:[%s6893 + $0x118] sm:$0xff]
        %v6930 = vld [vmem:[%s6893 + $0x120] sm:$0xff]
        %v6931 = vld [vmem:[%s6893 + $0x128] sm:$0xff]
        %v6932 = vld [vmem:[%s6893 + $0x130] sm:$0xff]
        %v6933 = vld [vmem:[%s6893 + $0x138] sm:$0xff]
        %v6934 = vld [vmem:[%s6893 + $0x140] sm:$0xff]
        %v6935 = vld [vmem:[%s6893 + $0x148] sm:$0xff]
        %v6936 = vld [vmem:[%s6893 + $0x150] sm:$0xff]
        %v6937 = vld [vmem:[%s6893 + $0x158] sm:$0xff]
        %v6938 = vld [vmem:[%s6893 + $0x160] sm:$0xff]
        %v6939 = vld [vmem:[%s6893 + $0x168] sm:$0xff]
        %v6940 = vld [vmem:[%s6893 + $0x170] sm:$0xff]
        %v6941 = vld [vmem:[%s6893 + $0x178] sm:$0xff]
        %v6942 = vld [vmem:[%s6893 + $0x180] sm:$0xff]
        %v6943 = vld [vmem:[%s6893 + $0x188] sm:$0xff]
        %v6944 = vld [vmem:[%s6893 + $0x190] sm:$0xff]
        %v6945 = vld [vmem:[%s6893 + $0x198] sm:$0xff]
        %v6946 = vld [vmem:[%s6893 + $0x1a0] sm:$0xff]
        %v6947 = vld [vmem:[%s6893 + $0x1a8] sm:$0xff]
        %v6948 = vld [vmem:[%s6893 + $0x1b0] sm:$0xff]
        %v6949 = vld [vmem:[%s6893 + $0x1b8] sm:$0xff]
        %v6950 = vld [vmem:[%s6893 + $0x1c0] sm:$0xff]
        %v6951 = vld [vmem:[%s6893 + $0x1c8] sm:$0xff]
        %v6952 = vld [vmem:[%s6893 + $0x1d0] sm:$0xff]
        %v6953 = vld [vmem:[%s6893 + $0x1d8] sm:$0xff]
        %v6954 = vld [vmem:[%s6893 + $0x1e0] sm:$0xff]
        %v6955 = vld [vmem:[%s6893 + $0x1e8] sm:$0xff]
        %v6956 = vld [vmem:[%s6893 + $0x1f0] sm:$0xff]
        %v6957 = vld [vmem:[%s6893 + $0x1f8] sm:$0xff]
        %s6958 = scalar_lea.vmem %s14, 4
        %v6959 = vld [vmem:[%s6958] sm:$0xf]
        %v6961 = vlaneseq
        %v6962 = vshrl.u32 %v6961, 7
        %v6963 = vsub.s32 0, %v6962
        %v6964 = vrot.slane %v6959, %v6963
        %v6965 = vlaneseq
        %v6966 = vshrl.u32 %v6965, 7
        %v6967 = vsub.s32 1, %v6966
        %v6968 = vrot.slane %v6959, %v6967
        %v6969 = vlaneseq
        %v6970 = vshrl.u32 %v6969, 7
        %v6971 = vsub.s32 2, %v6970
        %v6972 = vrot.slane %v6959, %v6971
        %v6973 = vlaneseq
        %v6974 = vshrl.u32 %v6973, 7
        %v6975 = vsub.s32 3, %v6974
        %v6976 = vrot.slane %v6959, %v6975
        %6981 = vmatprep.subr.mxu0 %v6895
        %6982 = vmatpush1.msra.mxu0 %v6894
        %6983 = vmatprep.subr.mxu0 %v6899
        %6984 = vmatpush1.msra.mxu0 %v6898
        %6985 = vmatprep.subr.mxu0 %v6903
        %6986 = vmatpush1.msra.mxu0 %v6902
        %6987 = vmatprep.subr.mxu0 %v6907
        %6988 = vmatpush1.msra.mxu0 %v6906
        %6989 = vmatprep.subr.mxu0 %v6911
        %6990 = vmatpush1.msra.mxu0 %v6910
        %6991 = vmatprep.subr.mxu0 %v6915
        %6992 = vmatpush1.msra.mxu0 %v6914
        %6993 = vmatprep.subr.mxu0 %v6919
        %6994 = vmatpush1.msra.mxu0 %v6918
        %6995 = vmatprep.subr.mxu0 %v6923
        %6996 = vmatpush1.msra.mxu0 %v6922
        %6997 = vmatprep.subr.mxu0 %v6927
        %6998 = vmatpush1.msra.mxu0 %v6926
        %6999 = vmatprep.subr.mxu0 %v6931
        %7000 = vmatpush1.msra.mxu0 %v6930
        %7001 = vmatprep.subr.mxu0 %v6935
        %7002 = vmatpush1.msra.mxu0 %v6934
        %7003 = vmatprep.subr.mxu0 %v6939
        %7004 = vmatpush1.msra.mxu0 %v6938
        %7005 = vmatprep.subr.mxu0 %v6943
        %7006 = vmatpush1.msra.mxu0 %v6942
        %7007 = vmatprep.subr.mxu0 %v6947
        %7008 = vmatpush1.msra.mxu0 %v6946
        %7009 = vmatprep.subr.mxu0 %v6951
        %7010 = vmatpush1.msra.mxu0 %v6950
        %7011 = vmatprep.subr.mxu0 %v6955
        %7012 = vmatpush1.msra.mxu0 %v6954
        %7013 = vmatprep.subr.mxu0 0.0
        %7014 = vmatpush1.msra.mxu0 0.0
        %7015 = vmatprep.subr.mxu0 0.0
        %7016 = vmatpush1.msra.mxu0 0.0
        %7017 = vmatprep.subr.mxu0 0.0
        %7018 = vmatpush1.msra.mxu0 0.0
        %7019 = vmatprep.subr.mxu0 0.0
        %7020 = vmatpush1.msra.mxu0 0.0
        %7021 = vmatprep.subr.mxu0 0.0
        %7022 = vmatpush1.msra.mxu0 0.0
        %7023 = vmatprep.subr.mxu0 0.0
        %7024 = vmatpush1.msra.mxu0 0.0
        %7025 = vmatprep.subr.mxu0 0.0
        %7026 = vmatpush1.msra.mxu0 0.0
        %7027 = vmatprep.subr.mxu0 0.0
        %7028 = vmatpush1.msra.mxu0 0.0
        %7029 = vmatprep.subr.mxu0 0.0
        %7030 = vmatpush1.msra.mxu0 0.0
        %7031 = vmatprep.subr.mxu0 0.0
        %7032 = vmatpush1.msra.mxu0 0.0
        %7033 = vmatprep.subr.mxu0 0.0
        %7034 = vmatpush1.msra.mxu0 0.0
        %7035 = vmatprep.subr.mxu0 0.0
        %7036 = vmatpush1.msra.mxu0 0.0
        %7037 = vmatprep.subr.mxu0 0.0
        %7038 = vmatpush1.msra.mxu0 0.0
        %7039 = vmatprep.subr.mxu0 0.0
        %7040 = vmatpush1.msra.mxu0 0.0
        %7041 = vmatprep.subr.mxu0 0.0
        %7042 = vmatpush1.msra.mxu0 0.0
        %7043 = vmatprep.subr.mxu0 0.0
        %7044 = vmatpush1.msra.mxu0 0.0
        %7045 = vmatprep.mubr.f32.mxu0 0.0
        %7046 = vmatmul.mubr.f32.gmra.mrb[0].mxu0 %v6889
        %v7047 = vpop.f32.mrb[0].mxu0
        %v7048 = vadd.f32 %v6964, %v7047
        %v7049 = vpop.f32.mrb[0].mxu0
        %v7050 = vadd.f32 %v6968, %v7049
        %7051 = vmatprep.mubr.f32.mxu0 0.0
        %7052 = vmatmul.mubr.f32.gmra.mrb[0].mxu0 %v6890
        %v7053 = vpop.f32.mrb[0].mxu0
        %v7054 = vadd.f32 %v6964, %v7053
        %v7055 = vpop.f32.mrb[0].mxu0
        %v7056 = vadd.f32 %v6968, %v7055
        %7057 = vmatprep.mubr.f32.mxu0 0.0
        %7058 = vmatmul.mubr.f32.gmra.mrb[0].mxu0 %v6891
        %v7059 = vpop.f32.mrb[0].mxu0
        %v7060 = vadd.f32 %v6964, %v7059
        %v7061 = vpop.f32.mrb[0].mxu0
        %v7062 = vadd.f32 %v6968, %v7061
        %7063 = vmatprep.mubr.f32.mxu0 0.0
        %7064 = vmatmul.mubr.f32.gmra.mrb[0].mxu0 %v6892
        %v7065 = vpop.f32.mrb[0].mxu0
        %v7066 = vadd.f32 %v6964, %v7065
        %v7067 = vpop.f32.mrb[0].mxu0
        %v7068 = vadd.f32 %v6968, %v7067
        %7069 = vdwg.mxu0
        %7070 = vmatprep.subr.mxu0 %v6897
        %7071 = vmatpush1.msra.mxu0 %v6896
        %7072 = vmatprep.subr.mxu0 %v6901
        %7073 = vmatpush1.msra.mxu0 %v6900
        %7074 = vmatprep.subr.mxu0 %v6905
        %7075 = vmatpush1.msra.mxu0 %v6904
        %7076 = vmatprep.subr.mxu0 %v6909
        %7077 = vmatpush1.msra.mxu0 %v6908
        %7078 = vmatprep.subr.mxu0 %v6913
        %7079 = vmatpush1.msra.mxu0 %v6912
        %7080 = vmatprep.subr.mxu0 %v6917
        %7081 = vmatpush1.msra.mxu0 %v6916
        %7082 = vmatprep.subr.mxu0 %v6921
        %7083 = vmatpush1.msra.mxu0 %v6920
        %7084 = vmatprep.subr.mxu0 %v6925
        %7085 = vmatpush1.msra.mxu0 %v6924
        %7086 = vmatprep.subr.mxu0 %v6929
        %7087 = vmatpush1.msra.mxu0 %v6928
        %7088 = vmatprep.subr.mxu0 %v6933
        %7089 = vmatpush1.msra.mxu0 %v6932
        %7090 = vmatprep.subr.mxu0 %v6937
        %7091 = vmatpush1.msra.mxu0 %v6936
        %7092 = vmatprep.subr.mxu0 %v6941
        %7093 = vmatpush1.msra.mxu0 %v6940
        %7094 = vmatprep.subr.mxu0 %v6945
        %7095 = vmatpush1.msra.mxu0 %v6944
        %7096 = vmatprep.subr.mxu0 %v6949
        %7097 = vmatpush1.msra.mxu0 %v6948
        %7098 = vmatprep.subr.mxu0 %v6953
        %7099 = vmatpush1.msra.mxu0 %v6952
        %7100 = vmatprep.subr.mxu0 %v6957
        %7101 = vmatpush1.msra.mxu0 %v6956
        %7102 = vmatprep.subr.mxu0 0.0
        %7103 = vmatpush1.msra.mxu0 0.0
        %7104 = vmatprep.subr.mxu0 0.0
        %7105 = vmatpush1.msra.mxu0 0.0
        %7106 = vmatprep.subr.mxu0 0.0
        %7107 = vmatpush1.msra.mxu0 0.0
        %7108 = vmatprep.subr.mxu0 0.0
        %7109 = vmatpush1.msra.mxu0 0.0
        %7110 = vmatprep.subr.mxu0 0.0
        %7111 = vmatpush1.msra.mxu0 0.0
        %7112 = vmatprep.subr.mxu0 0.0
        %7113 = vmatpush1.msra.mxu0 0.0
        %7114 = vmatprep.subr.mxu0 0.0
        %7115 = vmatpush1.msra.mxu0 0.0
        %7116 = vmatprep.subr.mxu0 0.0
        %7117 = vmatpush1.msra.mxu0 0.0
        %7118 = vmatprep.subr.mxu0 0.0
        %7119 = vmatpush1.msra.mxu0 0.0
        %7120 = vmatprep.subr.mxu0 0.0
        %7121 = vmatpush1.msra.mxu0 0.0
        %7122 = vmatprep.subr.mxu0 0.0
        %7123 = vmatpush1.msra.mxu0 0.0
        %7124 = vmatprep.subr.mxu0 0.0
        %7125 = vmatpush1.msra.mxu0 0.0
        %7126 = vmatprep.subr.mxu0 0.0
        %7127 = vmatpush1.msra.mxu0 0.0
        %7128 = vmatprep.subr.mxu0 0.0
        %7129 = vmatpush1.msra.mxu0 0.0
        %7130 = vmatprep.subr.mxu0 0.0
        %7131 = vmatpush1.msra.mxu0 0.0
        %7132 = vmatprep.subr.mxu0 0.0
        %7133 = vmatpush1.msra.mxu0 0.0
        %7134 = vmatprep.mubr.f32.mxu0 0.0
        %7135 = vmatmul.mubr.f32.gmra.mrb[0].mxu0 %v6889
        %v7136 = vpop.f32.mrb[0].mxu0
        %v7137 = vadd.f32 %v6972, %v7136
        %v7138 = vpop.f32.mrb[0].mxu0
        %v7139 = vadd.f32 %v6976, %v7138
        %7140 = vmatprep.mubr.f32.mxu0 0.0
        %7141 = vmatmul.mubr.f32.gmra.mrb[0].mxu0 %v6890
        %v7142 = vpop.f32.mrb[0].mxu0
        %v7143 = vadd.f32 %v6972, %v7142
        %v7144 = vpop.f32.mrb[0].mxu0
        %v7145 = vadd.f32 %v6976, %v7144
        %7146 = vmatprep.mubr.f32.mxu0 0.0
        %7147 = vmatmul.mubr.f32.gmra.mrb[0].mxu0 %v6891
        %v7148 = vpop.f32.mrb[0].mxu0
        %v7149 = vadd.f32 %v6972, %v7148
        %v7150 = vpop.f32.mrb[0].mxu0
        %v7151 = vadd.f32 %v6976, %v7150
        %7152 = vmatprep.mubr.f32.mxu0 0.0
        %7153 = vmatmul.mubr.f32.gmra.mrb[0].mxu0 %v6892
        %v7154 = vpop.f32.mrb[0].mxu0
        %v7155 = vadd.f32 %v6972, %v7154
        %v7156 = vpop.f32.mrb[0].mxu0
        %v7157 = vadd.f32 %v6976, %v7156
        %7158 = vdwg.mxu0
        %v7159 = vmul.f32 %v7048, 1.702
        %v7160 = vmul.f32 %v7050, 1.702
        %v7161 = vmul.f32 %v7137, 1.702
        %v7162 = vmul.f32 %v7139, 1.702
        %v7163 = vmul.f32 %v7054, 1.702
        %v7164 = vmul.f32 %v7056, 1.702
        %v7165 = vmul.f32 %v7143, 1.702
        %v7166 = vmul.f32 %v7145, 1.702
        %v7167 = vmul.f32 %v7060, 1.702
        %v7168 = vmul.f32 %v7062, 1.702
        %v7169 = vmul.f32 %v7149, 1.702
        %v7170 = vmul.f32 %v7151, 1.702
        %v7171 = vmul.f32 %v7066, 1.702
        %v7172 = vmul.f32 %v7068, 1.702
        %v7173 = vmul.f32 %v7155, 1.702
        %v7174 = vmul.f32 %v7157, 1.702
        %v7175 = vxor.u32 %v7159, 2147483648
        %v7176 = vxor.u32 %v7160, 2147483648
        %v7177 = vxor.u32 %v7161, 2147483648
        %v7178 = vxor.u32 %v7162, 2147483648
        %v7179 = vxor.u32 %v7163, 2147483648
        %v7180 = vxor.u32 %v7164, 2147483648
        %v7181 = vxor.u32 %v7165, 2147483648
        %v7182 = vxor.u32 %v7166, 2147483648
        %v7183 = vxor.u32 %v7167, 2147483648
        %v7184 = vxor.u32 %v7168, 2147483648
        %v7185 = vxor.u32 %v7169, 2147483648
        %v7186 = vxor.u32 %v7170, 2147483648
        %v7187 = vxor.u32 %v7171, 2147483648
        %v7188 = vxor.u32 %v7172, 2147483648
        %v7189 = vxor.u32 %v7173, 2147483648
        %v7190 = vxor.u32 %v7174, 2147483648
        %v7191 = vmul.f32 %v7175, 1.442695
        %v7192 = vpow.pop %v7191
        %v7193 = vmul.f32 %v7176, 1.442695
        %v7194 = vpow.pop %v7193
        %v7195 = vmul.f32 %v7177, 1.442695
        %v7196 = vpow.pop %v7195
        %v7197 = vmul.f32 %v7178, 1.442695
        %v7198 = vpow.pop %v7197
        %v7199 = vmul.f32 %v7179, 1.442695
        %v7200 = vpow.pop %v7199
        %v7201 = vmul.f32 %v7180, 1.442695
        %v7202 = vpow.pop %v7201
        %v7203 = vmul.f32 %v7181, 1.442695
        %v7204 = vpow.pop %v7203
        %v7205 = vmul.f32 %v7182, 1.442695
        %v7206 = vpow.pop %v7205
        %v7207 = vmul.f32 %v7183, 1.442695
        %v7208 = vpow.pop %v7207
        %v7209 = vmul.f32 %v7184, 1.442695
        %v7210 = vpow.pop %v7209
        %v7211 = vmul.f32 %v7185, 1.442695
        %v7212 = vpow.pop %v7211
        %v7213 = vmul.f32 %v7186, 1.442695
        %v7214 = vpow.pop %v7213
        %v7215 = vmul.f32 %v7187, 1.442695
        %v7216 = vpow.pop %v7215
        %v7217 = vmul.f32 %v7188, 1.442695
        %v7218 = vpow.pop %v7217
        %v7219 = vmul.f32 %v7189, 1.442695
        %v7220 = vpow.pop %v7219
        %v7221 = vmul.f32 %v7190, 1.442695
        %v7222 = vpow.pop %v7221
        %v7223 = vadd.f32 %v7192, 1.0
        %v7224 = vadd.f32 %v7194, 1.0
        %v7225 = vadd.f32 %v7196, 1.0
        %v7226 = vadd.f32 %v7198, 1.0
        %v7227 = vadd.f32 %v7200, 1.0
        %v7228 = vadd.f32 %v7202, 1.0
        %v7229 = vadd.f32 %v7204, 1.0
        %v7230 = vadd.f32 %v7206, 1.0
        %v7231 = vadd.f32 %v7208, 1.0
        %v7232 = vadd.f32 %v7210, 1.0
        %v7233 = vadd.f32 %v7212, 1.0
        %v7234 = vadd.f32 %v7214, 1.0
        %v7235 = vadd.f32 %v7216, 1.0
        %v7236 = vadd.f32 %v7218, 1.0
        %v7237 = vadd.f32 %v7220, 1.0
        %v7238 = vadd.f32 %v7222, 1.0
        %v7239 = vrcp.pop %v7223
        %v7240 = vmul.f32 1.0, %v7239
        %v7241 = vrcp.pop %v7224
        %v7242 = vmul.f32 1.0, %v7241
        %v7243 = vrcp.pop %v7225
        %v7244 = vmul.f32 1.0, %v7243
        %v7245 = vrcp.pop %v7226
        %v7246 = vmul.f32 1.0, %v7245
        %v7247 = vrcp.pop %v7227
        %v7248 = vmul.f32 1.0, %v7247
        %v7249 = vrcp.pop %v7228
        %v7250 = vmul.f32 1.0, %v7249
        %v7251 = vrcp.pop %v7229
        %v7252 = vmul.f32 1.0, %v7251
        %v7253 = vrcp.pop %v7230
        %v7254 = vmul.f32 1.0, %v7253
        %v7255 = vrcp.pop %v7231
        %v7256 = vmul.f32 1.0, %v7255
        %v7257 = vrcp.pop %v7232
        %v7258 = vmul.f32 1.0, %v7257
        %v7259 = vrcp.pop %v7233
        %v7260 = vmul.f32 1.0, %v7259
        %v7261 = vrcp.pop %v7234
        %v7262 = vmul.f32 1.0, %v7261
        %v7263 = vrcp.pop %v7235
        %v7264 = vmul.f32 1.0, %v7263
        %v7265 = vrcp.pop %v7236
        %v7266 = vmul.f32 1.0, %v7265
        %v7267 = vrcp.pop %v7237
        %v7268 = vmul.f32 1.0, %v7267
        %v7269 = vrcp.pop %v7238
        %v7270 = vmul.f32 1.0, %v7269
        %v7271 = vmul.f32 %v7240, %v7048
        %v7272 = vmul.f32 %v7242, %v7050
        %v7273 = vmul.f32 %v7244, %v7137
        %v7274 = vmul.f32 %v7246, %v7139
        %v7275 = vmul.f32 %v7248, %v7054
        %v7276 = vmul.f32 %v7250, %v7056
        %v7277 = vmul.f32 %v7252, %v7143
        %v7278 = vmul.f32 %v7254, %v7145
        %v7279 = vmul.f32 %v7256, %v7060
        %v7280 = vmul.f32 %v7258, %v7062
        %v7281 = vmul.f32 %v7260, %v7149
        %v7282 = vmul.f32 %v7262, %v7151
        %v7283 = vmul.f32 %v7264, %v7066
        %v7284 = vmul.f32 %v7266, %v7068
        %v7285 = vmul.f32 %v7268, %v7155
        %v7286 = vmul.f32 %v7270, %v7157
        %s7287 = scalar_lea.vmem %s15, 512
        %v7288 = vld [vmem:[%s7287] sm:$0xff]
        %v7289 = vld [vmem:[%s7287 + $0x8] sm:$0xff]
        %v7290 = vld [vmem:[%s7287 + $0x10] sm:$0xff]
        %v7291 = vld [vmem:[%s7287 + $0x18] sm:$0xff]
        %v7292 = vld [vmem:[%s7287 + $0x20] sm:$0xff]
        %v7293 = vld [vmem:[%s7287 + $0x28] sm:$0xff]
        %v7294 = vld [vmem:[%s7287 + $0x30] sm:$0xff]
        %v7295 = vld [vmem:[%s7287 + $0x38] sm:$0xff]
        %v7296 = vld [vmem:[%s7287 + $0x40] sm:$0xff]
        %v7297 = vld [vmem:[%s7287 + $0x48] sm:$0xff]
        %v7298 = vld [vmem:[%s7287 + $0x50] sm:$0xff]
        %v7299 = vld [vmem:[%s7287 + $0x58] sm:$0xff]
        %v7300 = vld [vmem:[%s7287 + $0x60] sm:$0xff]
        %v7301 = vld [vmem:[%s7287 + $0x68] sm:$0xff]
        %v7302 = vld [vmem:[%s7287 + $0x70] sm:$0xff]
        %v7303 = vld [vmem:[%s7287 + $0x78] sm:$0xff]
        %v7304 = vld [vmem:[%s7287 + $0x80] sm:$0xff]
        %v7305 = vld [vmem:[%s7287 + $0x88] sm:$0xff]
        %v7306 = vld [vmem:[%s7287 + $0x90] sm:$0xff]
        %v7307 = vld [vmem:[%s7287 + $0x98] sm:$0xff]
        %v7308 = vld [vmem:[%s7287 + $0xa0] sm:$0xff]
        %v7309 = vld [vmem:[%s7287 + $0xa8] sm:$0xff]
        %v7310 = vld [vmem:[%s7287 + $0xb0] sm:$0xff]
        %v7311 = vld [vmem:[%s7287 + $0xb8] sm:$0xff]
        %v7312 = vld [vmem:[%s7287 + $0xc0] sm:$0xff]
        %v7313 = vld [vmem:[%s7287 + $0xc8] sm:$0xff]
        %v7314 = vld [vmem:[%s7287 + $0xd0] sm:$0xff]
        %v7315 = vld [vmem:[%s7287 + $0xd8] sm:$0xff]
        %v7316 = vld [vmem:[%s7287 + $0xe0] sm:$0xff]
        %v7317 = vld [vmem:[%s7287 + $0xe8] sm:$0xff]
        %v7318 = vld [vmem:[%s7287 + $0xf0] sm:$0xff]
        %v7319 = vld [vmem:[%s7287 + $0xf8] sm:$0xff]
        %v7320 = vld [vmem:[%s7287 + $0x100] sm:$0xff]
        %v7321 = vld [vmem:[%s7287 + $0x108] sm:$0xff]
        %v7322 = vld [vmem:[%s7287 + $0x110] sm:$0xff]
        %v7323 = vld [vmem:[%s7287 + $0x118] sm:$0xff]
        %v7324 = vld [vmem:[%s7287 + $0x120] sm:$0xff]
        %v7325 = vld [vmem:[%s7287 + $0x128] sm:$0xff]
        %v7326 = vld [vmem:[%s7287 + $0x130] sm:$0xff]
        %v7327 = vld [vmem:[%s7287 + $0x138] sm:$0xff]
        %v7328 = vld [vmem:[%s7287 + $0x140] sm:$0xff]
        %v7329 = vld [vmem:[%s7287 + $0x148] sm:$0xff]
        %v7330 = vld [vmem:[%s7287 + $0x150] sm:$0xff]
        %v7331 = vld [vmem:[%s7287 + $0x158] sm:$0xff]
        %v7332 = vld [vmem:[%s7287 + $0x160] sm:$0xff]
        %v7333 = vld [vmem:[%s7287 + $0x168] sm:$0xff]
        %v7334 = vld [vmem:[%s7287 + $0x170] sm:$0xff]
        %v7335 = vld [vmem:[%s7287 + $0x178] sm:$0xff]
        %v7336 = vld [vmem:[%s7287 + $0x180] sm:$0xff]
        %v7337 = vld [vmem:[%s7287 + $0x188] sm:$0xff]
        %v7338 = vld [vmem:[%s7287 + $0x190] sm:$0xff]
        %v7339 = vld [vmem:[%s7287 + $0x198] sm:$0xff]
        %v7340 = vld [vmem:[%s7287 + $0x1a0] sm:$0xff]
        %v7341 = vld [vmem:[%s7287 + $0x1a8] sm:$0xff]
        %v7342 = vld [vmem:[%s7287 + $0x1b0] sm:$0xff]
        %v7343 = vld [vmem:[%s7287 + $0x1b8] sm:$0xff]
        %v7344 = vld [vmem:[%s7287 + $0x1c0] sm:$0xff]
        %v7345 = vld [vmem:[%s7287 + $0x1c8] sm:$0xff]
        %v7346 = vld [vmem:[%s7287 + $0x1d0] sm:$0xff]
        %v7347 = vld [vmem:[%s7287 + $0x1d8] sm:$0xff]
        %v7348 = vld [vmem:[%s7287 + $0x1e0] sm:$0xff]
        %v7349 = vld [vmem:[%s7287 + $0x1e8] sm:$0xff]
        %v7350 = vld [vmem:[%s7287 + $0x1f0] sm:$0xff]
        %v7351 = vld [vmem:[%s7287 + $0x1f8] sm:$0xff]
        %7352 = vmatprep.subr.mxu0 0.0
        %7353 = vmatpush1.msra.mxu0 %v7288
        %7354 = vmatprep.subr.mxu0 0.0
        %7355 = vmatpush1.msra.mxu0 %v7289
        %7356 = vmatprep.subr.mxu0 0.0
        %7357 = vmatpush1.msra.mxu0 %v7290
        %7358 = vmatprep.subr.mxu0 0.0
        %7359 = vmatpush1.msra.mxu0 %v7291
        %7360 = vmatprep.subr.mxu0 0.0
        %7361 = vmatpush1.msra.mxu0 %v7292
        %7362 = vmatprep.subr.mxu0 0.0
        %7363 = vmatpush1.msra.mxu0 %v7293
        %7364 = vmatprep.subr.mxu0 0.0
        %7365 = vmatpush1.msra.mxu0 %v7294
        %7366 = vmatprep.subr.mxu0 0.0
        %7367 = vmatpush1.msra.mxu0 %v7295
        %7368 = vmatprep.subr.mxu0 0.0
        %7369 = vmatpush1.msra.mxu0 %v7296
        %7370 = vmatprep.subr.mxu0 0.0
        %7371 = vmatpush1.msra.mxu0 %v7297
        %7372 = vmatprep.subr.mxu0 0.0
        %7373 = vmatpush1.msra.mxu0 %v7298
        %7374 = vmatprep.subr.mxu0 0.0
        %7375 = vmatpush1.msra.mxu0 %v7299
        %7376 = vmatprep.subr.mxu0 0.0
        %7377 = vmatpush1.msra.mxu0 %v7300
        %7378 = vmatprep.subr.mxu0 0.0
        %7379 = vmatpush1.msra.mxu0 %v7301
        %7380 = vmatprep.subr.mxu0 0.0
        %7381 = vmatpush1.msra.mxu0 %v7302
        %7382 = vmatprep.subr.mxu0 0.0
        %7383 = vmatpush1.msra.mxu0 %v7303
        %7384 = vmatprep.subr.mxu0 0.0
        %7385 = vmatpush1.msra.mxu0 %v7304
        %7386 = vmatprep.subr.mxu0 0.0
        %7387 = vmatpush1.msra.mxu0 %v7305
        %7388 = vmatprep.subr.mxu0 0.0
        %7389 = vmatpush1.msra.mxu0 %v7306
        %7390 = vmatprep.subr.mxu0 0.0
        %7391 = vmatpush1.msra.mxu0 %v7307
        %7392 = vmatprep.subr.mxu0 0.0
        %7393 = vmatpush1.msra.mxu0 %v7308
        %7394 = vmatprep.subr.mxu0 0.0
        %7395 = vmatpush1.msra.mxu0 %v7309
        %7396 = vmatprep.subr.mxu0 0.0
        %7397 = vmatpush1.msra.mxu0 %v7310
        %7398 = vmatprep.subr.mxu0 0.0
        %7399 = vmatpush1.msra.mxu0 %v7311
        %7400 = vmatprep.subr.mxu0 0.0
        %7401 = vmatpush1.msra.mxu0 %v7312
        %7402 = vmatprep.subr.mxu0 0.0
        %7403 = vmatpush1.msra.mxu0 %v7313
        %7404 = vmatprep.subr.mxu0 0.0
        %7405 = vmatpush1.msra.mxu0 %v7314
        %7406 = vmatprep.subr.mxu0 0.0
        %7407 = vmatpush1.msra.mxu0 %v7315
        %7408 = vmatprep.subr.mxu0 0.0
        %7409 = vmatpush1.msra.mxu0 %v7316
        %7410 = vmatprep.subr.mxu0 0.0
        %7411 = vmatpush1.msra.mxu0 %v7317
        %7412 = vmatprep.subr.mxu0 0.0
        %7413 = vmatpush1.msra.mxu0 %v7318
        %7414 = vmatprep.subr.mxu0 0.0
        %7415 = vmatpush1.msra.mxu0 %v7319
        %7416 = vmatprep.mubr.f32.mxu0 %v7272
        %7417 = vmatmul.mubr.f32.gmra.mrb[0].mxu0 %v7271
        %v7418 = vpop.f32.mrb[0].mxu0
        %v7419 = vadd.f32 0.0, %v7418
        %v7420 = vpop.f32.mrb[0].mxu0
        %7421 = vmatprep.mubr.f32.mxu0 %v7276
        %7422 = vmatmul.mubr.f32.gmra.mrb[0].mxu0 %v7275
        %v7423 = vpop.f32.mrb[0].mxu0
        %v7424 = vadd.f32 0.0, %v7423
        %v7425 = vpop.f32.mrb[0].mxu0
        %7426 = vmatprep.mubr.f32.mxu0 %v7280
        %7427 = vmatmul.mubr.f32.gmra.mrb[0].mxu0 %v7279
        %v7428 = vpop.f32.mrb[0].mxu0
        %v7429 = vadd.f32 0.0, %v7428
        %v7430 = vpop.f32.mrb[0].mxu0
        %7431 = vmatprep.mubr.f32.mxu0 %v7284
        %7432 = vmatmul.mubr.f32.gmra.mrb[0].mxu0 %v7283
        %v7433 = vpop.f32.mrb[0].mxu0
        %v7434 = vadd.f32 0.0, %v7433
        %v7435 = vpop.f32.mrb[0].mxu0
        %7436 = vdwg.mxu0
        %7437 = vmatprep.subr.mxu0 0.0
        %7438 = vmatpush1.msra.mxu0 %v7320
        %7439 = vmatprep.subr.mxu0 0.0
        %7440 = vmatpush1.msra.mxu0 %v7321
        %7441 = vmatprep.subr.mxu0 0.0
        %7442 = vmatpush1.msra.mxu0 %v7322
        %7443 = vmatprep.subr.mxu0 0.0
        %7444 = vmatpush1.msra.mxu0 %v7323
        %7445 = vmatprep.subr.mxu0 0.0
        %7446 = vmatpush1.msra.mxu0 %v7324
        %7447 = vmatprep.subr.mxu0 0.0
        %7448 = vmatpush1.msra.mxu0 %v7325
        %7449 = vmatprep.subr.mxu0 0.0
        %7450 = vmatpush1.msra.mxu0 %v7326
        %7451 = vmatprep.subr.mxu0 0.0
        %7452 = vmatpush1.msra.mxu0 %v7327
        %7453 = vmatprep.subr.mxu0 0.0
        %7454 = vmatpush1.msra.mxu0 %v7328
        %7455 = vmatprep.subr.mxu0 0.0
        %7456 = vmatpush1.msra.mxu0 %v7329
        %7457 = vmatprep.subr.mxu0 0.0
        %7458 = vmatpush1.msra.mxu0 %v7330
        %7459 = vmatprep.subr.mxu0 0.0
        %7460 = vmatpush1.msra.mxu0 %v7331
        %7461 = vmatprep.subr.mxu0 0.0
        %7462 = vmatpush1.msra.mxu0 %v7332
        %7463 = vmatprep.subr.mxu0 0.0
        %7464 = vmatpush1.msra.mxu0 %v7333
        %7465 = vmatprep.subr.mxu0 0.0
        %7466 = vmatpush1.msra.mxu0 %v7334
        %7467 = vmatprep.subr.mxu0 0.0
        %7468 = vmatpush1.msra.mxu0 %v7335
        %7469 = vmatprep.subr.mxu0 0.0
        %7470 = vmatpush1.msra.mxu0 %v7336
        %7471 = vmatprep.subr.mxu0 0.0
        %7472 = vmatpush1.msra.mxu0 %v7337
        %7473 = vmatprep.subr.mxu0 0.0
        %7474 = vmatpush1.msra.mxu0 %v7338
        %7475 = vmatprep.subr.mxu0 0.0
        %7476 = vmatpush1.msra.mxu0 %v7339
        %7477 = vmatprep.subr.mxu0 0.0
        %7478 = vmatpush1.msra.mxu0 %v7340
        %7479 = vmatprep.subr.mxu0 0.0
        %7480 = vmatpush1.msra.mxu0 %v7341
        %7481 = vmatprep.subr.mxu0 0.0
        %7482 = vmatpush1.msra.mxu0 %v7342
        %7483 = vmatprep.subr.mxu0 0.0
        %7484 = vmatpush1.msra.mxu0 %v7343
        %7485 = vmatprep.subr.mxu0 0.0
        %7486 = vmatpush1.msra.mxu0 %v7344
        %7487 = vmatprep.subr.mxu0 0.0
        %7488 = vmatpush1.msra.mxu0 %v7345
        %7489 = vmatprep.subr.mxu0 0.0
        %7490 = vmatpush1.msra.mxu0 %v7346
        %7491 = vmatprep.subr.mxu0 0.0
        %7492 = vmatpush1.msra.mxu0 %v7347
        %7493 = vmatprep.subr.mxu0 0.0
        %7494 = vmatpush1.msra.mxu0 %v7348
        %7495 = vmatprep.subr.mxu0 0.0
        %7496 = vmatpush1.msra.mxu0 %v7349
        %7497 = vmatprep.subr.mxu0 0.0
        %7498 = vmatpush1.msra.mxu0 %v7350
        %7499 = vmatprep.subr.mxu0 0.0
        %7500 = vmatpush1.msra.mxu0 %v7351
        %7501 = vmatprep.mubr.f32.mxu0 %v7274
        %7502 = vmatmul.mubr.f32.gmra.mrb[0].mxu0 %v7273
        %v7503 = vpop.f32.mrb[0].mxu0
        %v7504 = vadd.f32 %v7419, %v7503
        %v7505 = vpop.f32.mrb[0].mxu0
        %7506 = vmatprep.mubr.f32.mxu0 %v7278
        %7507 = vmatmul.mubr.f32.gmra.mrb[0].mxu0 %v7277
        %v7508 = vpop.f32.mrb[0].mxu0
        %v7509 = vadd.f32 %v7424, %v7508
        %v7510 = vpop.f32.mrb[0].mxu0
        %7511 = vmatprep.mubr.f32.mxu0 %v7282
        %7512 = vmatmul.mubr.f32.gmra.mrb[0].mxu0 %v7281
        %v7513 = vpop.f32.mrb[0].mxu0
        %v7514 = vadd.f32 %v7429, %v7513
        %v7515 = vpop.f32.mrb[0].mxu0
        %7516 = vmatprep.mubr.f32.mxu0 %v7286
        %7517 = vmatmul.mubr.f32.gmra.mrb[0].mxu0 %v7285
        %v7518 = vpop.f32.mrb[0].mxu0
        %v7519 = vadd.f32 %v7434, %v7518
        %v7520 = vpop.f32.mrb[0].mxu0
        %7521 = vdwg.mxu0
        %v7522 = vadd.f32 %v6813, %v7504
        %v7523 = vadd.f32 %v6814, %v7509
        %v7524 = vadd.f32 %v6815, %v7514
        %v7525 = vadd.f32 %v6816, %v7519
        %s7526 = scalar_lea.vmem %s16, 1
        %v7527 = vld [vmem:[%s7526] sm:$0x1]
        %v7529 = vlaneseq
        %v7530 = vshrl.u32 %v7529, 7
        %v7531 = vsub.s32 0, %v7530
        %v7532 = vrot.slane %v7527, %v7531
        %v7534 = vadd.f32 %v7522, %v7532
        %v7535 = vadd.f32 %v7523, %v7532
        %v7536 = vadd.f32 %v7524, %v7532
        %v7537 = vadd.f32 %v7525, %v7532
        %7538 = vst [vmem:[%s541] sm:$0xff] %v7534
        %7539 = vst [vmem:[%s541 + $0x8] sm:$0xff] %v7535
        %7540 = vst [vmem:[%s541 + $0x10] sm:$0xff] %v7536
        %7541 = vst [vmem:[%s541 + $0x18] sm:$0xff] %v7537
        %s7542 = sand.u32 %s401, 1
        %s7543 = scalar_lea.sflag [#allocation3], %s7542
        %s7544 = sand.u32 %s401, 1
        %s7545 = smul.addr %s7544, 32
        %s7546 = scalar_lea.vmem [#allocation2], %s7545
        // Predicated region
        $region89: #{attention_stack_pallas.1} parent=87 // pred_check
          %p7547 = pneg %p411
        $region90: #{attention_stack_pallas.1} parent=87 // pred_check_branch
          %7549 = sbr.rel (%p7547) target = $region92
        $region91: #{attention_stack_pallas.1} parent=87 // pred_region
          %s7551 = ssub.s32 512, 512
          %7552 = vsyncadd %s7543, %s7551
          %s7553 = smul.addr %s31, 4
          %s7554 = smul.addr %s7553, 128
          %s7555 = scalar_lea.hbm %s17, %s7554
          %s7556 = sshll.u32 %s7546, 4
          %s7557 = int_to_ptr.vmem [resolvable:$true] %s7556
          %7562 = dma.vmem_to_hbm [thread:$0]  %s7557, 512, %s7555, %s7543, 128, 128, 8
        $region92: #{attention_stack_pallas.1} parent=87 // pred_fallthru
          _
      $region88: #{attention_stack_pallas.1} parent=5 // pred_fallthru
        _
      %p7563 = scmp.le.s32.totalorder 2, %s26
      // Predicated region
      $region93: #{attention_stack_pallas.1} parent=5 // pred_check
        %p7564 = pneg %p7563
      $region94: #{attention_stack_pallas.1} parent=5 // pred_check_branch
        %7566 = sbr.rel (%p7564) target = $region96
      $region95: #{attention_stack_pallas.1} parent=5 // pred_region
        %s7567 = ssub.s32 %s26, 2
        // Predicated region
        $region97: #{attention_stack_pallas.1} parent=95 // pred_check
          %p7568 = pneg %p417
        $region98: #{attention_stack_pallas.1} parent=95 // pred_check_branch
          %7570 = sbr.rel (%p7568) target = $region100
        $region99: #{attention_stack_pallas.1} parent=95 // pred_region
          %s7571 = sand.u32 %s402, 1
          %s7572 = scalar_lea.sflag [#allocation3], %s7571
          %s7573 = sand.u32 %s402, 1
          %s7574 = smul.addr %s7573, 32
          %s7575 = scalar_lea.vmem [#allocation2], %s7574
          %7576 = dma.done %s7572, 512
        $region100: #{attention_stack_pallas.1} parent=95 // pred_fallthru
          _
      $region96: #{attention_stack_pallas.1} parent=5 // pred_fallthru
        _
    $region6: #{attention_stack_pallas.1} parent=1 // loop_footer
      %s30 = sadd.s32 1, %s26
    $region7: #{attention_stack_pallas.1} parent=1 // loop_footer_branch
      %25 = sbr.rel target = $region3
    $region8: #{attention_stack_pallas.1} parent=1 // loop_exit
      _
    %7577 = vsyncpa [#allocation3], 1
    %s7578 = scalar_lea.sflag [#allocation3], 1
    %7579 = vsyncpa %s7578, 1

</llo_original>
